<compile_context>
chip_gen: v5e
topology: v5e:2x2
jax: 0.10.0
libtpu: 0.0.40
codegen_flags: <defaults>
</compile_context>

<pallas_src>
import functools
import math

import jax
import jax.numpy as jnp
from jax import lax
from jax.experimental import pallas as pl
from jax.experimental.pallas import tpu as pltpu


IMG_STACK = 4
CONV_CFG = [  # (cin, cout, kernel, stride)
    (IMG_STACK, 8, 4, 2),
    (8, 16, 3, 2),
    (16, 32, 3, 2),
    (32, 64, 3, 2),
    (64, 128, 3, 1),
    (128, 256, 3, 1),
]
CONV_KS = [(k, s) for (_ci, _co, k, s) in CONV_CFG]


# ----------------------------------------------------------------------------
# Pallas kernel: fused (X @ W + b) -> ReLU  (used for conv1..conv5 via im2col)
# ----------------------------------------------------------------------------
def _matmul_bias_act_kernel(x_ref, w_ref, b_ref, o_ref, *, act):
    acc = jnp.dot(x_ref[...], w_ref[...], preferred_element_type=jnp.float32)
    acc = acc + b_ref[...]                      # (tm, N) + (1, N) broadcast, f32
    if act == "relu":
        acc = jnp.maximum(acc, 0.0)
    o_ref[...] = acc.astype(o_ref.dtype)


def matmul_bias_act(x, w, b, *, act="relu", out_dtype=jnp.bfloat16, tm_max=4608):
    """x: (M, K), w: (K, N), b: (1, N) -> (M, N). Single fused Pallas call.

    K and N are kept at full extent (no explicit padding / slicing); the M axis
    is tiled only when it exceeds tm_max (multiple of 8), so at this problem
    size every layer runs as one grid step with a single DMA in / out.
    """
    M, K = x.shape
    N = w.shape[1]
    tm = M if M <= tm_max else tm_max
    grid = (pl.cdiv(M, tm),)

    cost = pl.CostEstimate(
        flops=2 * M * K * N,
        transcendentals=0,
        bytes_accessed=int(
            x.size * x.dtype.itemsize
            + w.size * w.dtype.itemsize
            + b.size * b.dtype.itemsize
            + M * N * jnp.dtype(out_dtype).itemsize
        ),
    )

    return pl.pallas_call(
        functools.partial(_matmul_bias_act_kernel, act=act),
        out_shape=jax.ShapeDtypeStruct((M, N), out_dtype),
        grid_spec=pltpu.PrefetchScalarGridSpec(
            num_scalar_prefetch=0,
            grid=grid,
            in_specs=[
                pl.BlockSpec((tm, K), lambda i: (i, 0)),
                pl.BlockSpec((K, N), lambda i: (0, 0)),
                pl.BlockSpec((1, N), lambda i: (0, 0)),
            ],
            out_specs=pl.BlockSpec((tm, N), lambda i: (i, 0)),
        ),
        compiler_params=pltpu.CompilerParams(
            dimension_semantics=("parallel",)),
        cost_estimate=cost,
    )(x, w, b)


# ----------------------------------------------------------------------------
# Pallas kernel: conv6 + full head fused (3 chained matmuls, one dispatch)
# ----------------------------------------------------------------------------
def _conv6_head_kernel(x_ref, w6_ref, b6_ref, w1_ref, b1_ref, w2_ref, b2_ref,
                       o_ref):
    # conv6: its 3x3 window covers the whole 3x3 map, so im2col == flatten.
    feat = jnp.dot(x_ref[...], w6_ref[...], preferred_element_type=jnp.float32)
    feat = jnp.maximum(feat + b6_ref[...], 0.0)                       # (B, 256)

    # Fused first head stage: W1 = [w_v1 | w_fc]  ->  h[:, :100] = v hidden,
    # h[:, 100:200] = fc hidden (independent columns, so ReLU is per-branch).
    h = jnp.dot(feat.astype(jnp.bfloat16), w1_ref[...],
                preferred_element_type=jnp.float32)
    h = jnp.maximum(h + b1_ref[...], 0.0)                             # (B, 200)

    # Block-diagonal second stage: col 0 = v, cols 1:4 = alpha, cols 4:7 = beta.
    out = jnp.dot(h.astype(jnp.bfloat16), w2_ref[...],
                  preferred_element_type=jnp.float32) + b2_ref[...]   # (B, 7)

    # Softplus (beta=1, threshold=20, matches torch.nn.Softplus) then +1,
    # applied only to lanes 1..6; lane 0 (value head) passes through.
    sp = jnp.where(out > 20.0, out,
                   jnp.log1p(jnp.exp(jnp.minimum(out, 20.0)))) + 1.0
    lane = lax.broadcasted_iota(jnp.int32, out.shape, 1)
    o_ref[...] = jnp.where(lane == 0, out, sp)


def conv6_and_head(feat6, w6, b6, w1, b1, w2, b2):
    B, K6 = feat6.shape
    N6, H1, N2 = w6.shape[1], w1.shape[1], w2.shape[1]
    cost = pl.CostEstimate(
        flops=2 * B * (K6 * N6 + N6 * H1 + H1 * N2),
        transcendentals=2 * B * (N2 - 1),
        bytes_accessed=int(
            feat6.size * feat6.dtype.itemsize
            + w6.size * 2 + w1.size * 2 + w2.size * 2
            + (b6.size + b1.size + b2.size) * 4
            + B * N2 * 4
        ),
    )
    # All operands are tiny (< 1 MB total); whole-array VMEM blocks, no grid.
    return pl.pallas_call(
        _conv6_head_kernel,
        out_shape=jax.ShapeDtypeStruct((B, N2), jnp.float32),
        cost_estimate=cost,
    )(feat6, w6, b6, w1, b1, w2, b2)


# ----------------------------------------------------------------------------
# im2col in NHWC (no transposes; concat along channel axis)
# ----------------------------------------------------------------------------
def _im2col_nhwc(x, k, stride):
    """x: (B, H, W, C) -> (B*Ho*Wo, k*k*C), patch order (kh, kw, C)."""
    B, H, W, C = x.shape
    Ho = (H - k) // stride + 1
    Wo = (W - k) // stride + 1
    cols = []
    for i in range(k):
        for j in range(k):
            cols.append(x[:, i:i + stride * Ho:stride,
                          j:j + stride * Wo:stride, :])
    patches = jnp.concatenate(cols, axis=-1)          # (B, Ho, Wo, k*k*C)
    return patches.reshape(B * Ho * Wo, k * k * C)


def _conv_w_to_mat(w):
    """PyTorch conv weight (O, C, kh, kw) -> (kh*kw*C, O), matching im2col."""
    O, C, kh, kw = w.shape
    return jnp.transpose(w, (2, 3, 1, 0)).reshape(kh * kw * C, O)


# ----------------------------------------------------------------------------
# Parameter init (mirrors module __init__) and one-time packing
# ----------------------------------------------------------------------------
def init_params(key):
    params = {"conv": []}
    gain = math.sqrt(2.0)  # calculate_gain('relu')
    for (cin, cout, k, _s) in CONV_CFG:
        key, wk = jax.random.split(key)
        fan_in = cin * k * k
        fan_out = cout * k * k
        bound = gain * math.sqrt(6.0 / (fan_in + fan_out))  # xavier_uniform_
        w = jax.random.uniform(wk, (cout, cin, k, k), jnp.float32, -bound, bound)
        b = jnp.full((cout,), 0.1, jnp.float32)              # constant_(bias, 0.1)
        params["conv"].append((w, b))

    def linear(key, fin, fout):
        k1, k2 = jax.random.split(key)
        bound = 1.0 / math.sqrt(fin)
        w = jax.random.uniform(k1, (fin, fout), jnp.float32, -bound, bound)
        b = jax.random.uniform(k2, (fout,), jnp.float32, -bound, bound)
        return w, b

    key, k1, k2, k3, k4, k5 = jax.random.split(key, 6)
    params["v1"] = linear(k1, 256, 100)
    params["v2"] = linear(k2, 100, 1)
    params["fc"] = linear(k3, 256, 100)
    params["alpha"] = linear(k4, 100, 3)
    params["beta"] = linear(k5, 100, 3)
    return params


def prepare_params(params):
    """One-time repack: matmul-ready bf16 weights, f32 (1, N) biases,
    fused head weights. Done once, outside the per-step forward graph."""
    conv = []
    for (w, b) in params["conv"][:5]:
        conv.append((_conv_w_to_mat(w).astype(jnp.bfloat16),
                     b.astype(jnp.float32).reshape(1, -1)))

    w6, b6 = params["conv"][5]
    w6m = _conv_w_to_mat(w6).astype(jnp.bfloat16)            # (1152, 256)
    b6r = b6.astype(jnp.float32).reshape(1, -1)

    w_v1, b_v1 = params["v1"]
    w_v2, b_v2 = params["v2"]
    w_fc, b_fc = params["fc"]
    w_a, b_a = params["alpha"]
    w_b, b_b = params["beta"]

    w1 = jnp.concatenate([w_v1, w_fc], axis=1).astype(jnp.bfloat16)   # (256,200)
    b1 = jnp.concatenate([b_v1, b_fc]).reshape(1, -1).astype(jnp.float32)

    w2 = jnp.zeros((200, 7), jnp.float32)                    # block-diagonal
    w2 = w2.at[0:100, 0:1].set(w_v2)
    w2 = w2.at[100:200, 1:4].set(w_a)
    w2 = w2.at[100:200, 4:7].set(w_b)
    w2 = w2.astype(jnp.bfloat16)
    b2 = jnp.concatenate([b_v2, b_a, b_b]).reshape(1, -1).astype(jnp.float32)

    return {"conv": conv, "tail": (w6m, b6r, w1, b1, w2, b2)}


# ----------------------------------------------------------------------------
# Forward pass (matches Net.forward semantics)
# ----------------------------------------------------------------------------
def net_forward(pp, x_nchw):
    # Single layout change + bf16 cast at the boundary; NHWC from here on.
    x = jnp.transpose(x_nchw, (0, 2, 3, 1)).astype(jnp.bfloat16)

    # conv1..conv5 (+ReLU): 96 -> 47 -> 23 -> 11 -> 5 -> 3
    for (w_mat, b), (k, s) in zip(pp["conv"], CONV_KS[:5]):
        B, H, W, C = x.shape
        Ho = (H - k) // s + 1
        Wo = (W - k) // s + 1
        patches = _im2col_nhwc(x, k, s)                       # (B*Ho*Wo, k*k*C)
        y = matmul_bias_act(patches, w_mat, b, act="relu",
                            out_dtype=jnp.bfloat16)
        x = y.reshape(B, Ho, Wo, w_mat.shape[1])

    # conv6 + ReLU + view(-1, 256) + v/fc/alpha/beta heads, all in one kernel.
    B = x.shape[0]
    feat6 = x.reshape(B, x.shape[1] * x.shape[2] * x.shape[3])  # (B, 1152)
    assert feat6.shape[1] == pp["tail"][0].shape[0]
    head = conv6_and_head(feat6, *pp["tail"])                  # (B, 7) f32

    v = head[:, 0:1]
    alpha = head[:, 1:4]
    beta = head[:, 4:7]
    return (alpha, beta), v


if __name__ == "__main__":
    key = jax.random.PRNGKey(0)
    pkey, xkey = jax.random.split(key)
    params = prepare_params(init_params(pkey))

    # Spatial must be 96x96 for the CNN to reduce to 1x1 (the module's
    # x.view(-1, 256) hard-codes that); batch kept small.
    x = jax.random.uniform(xkey, (2, IMG_STACK, 96, 96), dtype=jnp.float32)

    fwd = jax.jit(net_forward)
    (alpha, beta), v = fwd(params, x)
    jax.block_until_ready((alpha, beta, v))

    assert alpha.shape == (2, 3) and beta.shape == (2, 3) and v.shape == (2, 1)
    assert bool(jnp.all(jnp.isfinite(alpha))) and bool(jnp.all(jnp.isfinite(v)))
    assert bool(jnp.all(alpha >= 1.0)) and bool(jnp.all(beta >= 1.0))
    print("KERNEL_OK")
</pallas_src>

<mosaic_0001>
module attributes {stable_mosaic.version = 11 : i64} {
  func.func @_matmul_bias_act_kernel(%arg0: i32, %arg1: memref<4418x64xbf16, #tpu.memory_space<vmem>>, %arg2: memref<64x8xbf16, #tpu.memory_space<vmem>>, %arg3: memref<1x8xf32, #tpu.memory_space<vmem>>, %arg4: memref<4418x8xbf16, #tpu.memory_space<vmem>>) attributes {dimension_semantics = [#tpu.dimension_semantics<parallel>], iteration_bounds = array<i64: 1>, scalar_prefetch = 0 : i64, scratch_operands = 0 : i64, tpu.core_type = #tpu.core_type<tc>, window_params = [{transform_indices = @transform_0, window_bounds = array<i64: 4418, 64>}, {pipeline_mode = #tpu.pipeline_mode<synchronous>, transform_indices = @transform_1, window_bounds = array<i64: 64, 8>}, {pipeline_mode = #tpu.pipeline_mode<synchronous>, transform_indices = @transform_2, window_bounds = array<i64: 1, 8>}, {transform_indices = @transform_3, window_bounds = array<i64: 4418, 8>}]} {
    %c0 = arith.constant 0 : index
    %c0_0 = arith.constant 0 : index
    %0 = vector.load %arg1[%c0, %c0_0] : memref<4418x64xbf16, #tpu.memory_space<vmem>>, vector<4418x64xbf16>
    %c0_1 = arith.constant 0 : index
    %c0_2 = arith.constant 0 : index
    %1 = vector.load %arg2[%c0_1, %c0_2] : memref<64x8xbf16, #tpu.memory_space<vmem>>, vector<64x8xbf16>
    %cst = arith.constant dense<0.000000e+00> : vector<4418x8xf32>
    %2 = tpu.matmul %0, %1, %cst {dimension_numbers = #tpu.dot_dimension_numbers<[1], [0], [0], [1], [0, 0, 1, 1], [], []>} : vector<4418x64xbf16>, vector<64x8xbf16>, vector<4418x8xf32> -> vector<4418x8xf32>
    %c0_3 = arith.constant 0 : index
    %c0_4 = arith.constant 0 : index
    %3 = vector.load %arg3[%c0_3, %c0_4] : memref<1x8xf32, #tpu.memory_space<vmem>>, vector<1x8xf32>
    %4 = vector.broadcast %3 : vector<1x8xf32> to vector<4418x8xf32>
    %5 = arith.addf %2, %4 : vector<4418x8xf32>
    %cst_5 = arith.constant 0.000000e+00 : f32
    %6 = vector.broadcast %cst_5 : f32 to vector<4418x8xf32>
    %7 = arith.maximumf %5, %6 : vector<4418x8xf32>
    %8 = arith.truncf %7 : vector<4418x8xf32> to vector<4418x8xbf16>
    %c0_6 = arith.constant 0 : index
    %c0_7 = arith.constant 0 : index
    %9 = vector.load %arg4[%c0_6, %c0_7] : memref<4418x8xbf16, #tpu.memory_space<vmem>>, vector<4418x8xbf16>
    tpu.vector_store %arg4[%c0_6, %c0_7], %8 {strides = array<i32>} : memref<4418x8xbf16, #tpu.memory_space<vmem>>, vector<4418x8xbf16>,
    return
  }
  func.func @transform_0(%arg0: i32) -> (i32, i32) {
    %c0_i32 = arith.constant 0 : i32
    %c0_i32_0 = arith.constant 0 : i32
    return %arg0, %c0_i32 : i32, i32
  }
  func.func @transform_1(%arg0: i32) -> (i32, i32) {
    %c0_i32 = arith.constant 0 : i32
    %c0_i32_0 = arith.constant 0 : i32
    %c0_i32_1 = arith.constant 0 : i32
    return %c0_i32, %c0_i32_0 : i32, i32
  }
  func.func @transform_2(%arg0: i32) -> (i32, i32) {
    %c0_i32 = arith.constant 0 : i32
    %c0_i32_0 = arith.constant 0 : i32
    %c0_i32_1 = arith.constant 0 : i32
    return %c0_i32, %c0_i32_0 : i32, i32
  }
  func.func @transform_3(%arg0: i32) -> (i32, i32) {
    %c0_i32 = arith.constant 0 : i32
    %c0_i32_0 = arith.constant 0 : i32
    return %arg0, %c0_i32 : i32, i32
  }
}

module attributes {stable_mosaic.version = 11 : i64} {
  func.func @_matmul_bias_act_kernel(%arg0: i32, %arg1: memref<1058x72xbf16, #tpu.memory_space<vmem>>, %arg2: memref<72x16xbf16, #tpu.memory_space<vmem>>, %arg3: memref<1x16xf32, #tpu.memory_space<vmem>>, %arg4: memref<1058x16xbf16, #tpu.memory_space<vmem>>) attributes {dimension_semantics = [#tpu.dimension_semantics<parallel>], iteration_bounds = array<i64: 1>, scalar_prefetch = 0 : i64, scratch_operands = 0 : i64, tpu.core_type = #tpu.core_type<tc>, window_params = [{transform_indices = @transform_0, window_bounds = array<i64: 1058, 72>}, {pipeline_mode = #tpu.pipeline_mode<synchronous>, transform_indices = @transform_1, window_bounds = array<i64: 72, 16>}, {pipeline_mode = #tpu.pipeline_mode<synchronous>, transform_indices = @transform_2, window_bounds = array<i64: 1, 16>}, {transform_indices = @transform_3, window_bounds = array<i64: 1058, 16>}]} {
    %c0 = arith.constant 0 : index
    %c0_0 = arith.constant 0 : index
    %0 = vector.load %arg1[%c0, %c0_0] : memref<1058x72xbf16, #tpu.memory_space<vmem>>, vector<1058x72xbf16>
    %c0_1 = arith.constant 0 : index
    %c0_2 = arith.constant 0 : index
    %1 = vector.load %arg2[%c0_1, %c0_2] : memref<72x16xbf16, #tpu.memory_space<vmem>>, vector<72x16xbf16>
    %cst = arith.constant dense<0.000000e+00> : vector<1058x16xf32>
    %2 = tpu.matmul %0, %1, %cst {dimension_numbers = #tpu.dot_dimension_numbers<[1], [0], [0], [1], [0, 0, 1, 1], [], []>} : vector<1058x72xbf16>, vector<72x16xbf16>, vector<1058x16xf32> -> vector<1058x16xf32>
    %c0_3 = arith.constant 0 : index
    %c0_4 = arith.constant 0 : index
    %3 = vector.load %arg3[%c0_3, %c0_4] : memref<1x16xf32, #tpu.memory_space<vmem>>, vector<1x16xf32>
    %4 = vector.broadcast %3 : vector<1x16xf32> to vector<1058x16xf32>
    %5 = arith.addf %2, %4 : vector<1058x16xf32>
    %cst_5 = arith.constant 0.000000e+00 : f32
    %6 = vector.broadcast %cst_5 : f32 to vector<1058x16xf32>
    %7 = arith.maximumf %5, %6 : vector<1058x16xf32>
    %8 = arith.truncf %7 : vector<1058x16xf32> to vector<1058x16xbf16>
    %c0_6 = arith.constant 0 : index
    %c0_7 = arith.constant 0 : index
    %9 = vector.load %arg4[%c0_6, %c0_7] : memref<1058x16xbf16, #tpu.memory_space<vmem>>, vector<1058x16xbf16>
    tpu.vector_store %arg4[%c0_6, %c0_7], %8 {strides = array<i32>} : memref<1058x16xbf16, #tpu.memory_space<vmem>>, vector<1058x16xbf16>,
    return
  }
  func.func @transform_0(%arg0: i32) -> (i32, i32) {
    %c0_i32 = arith.constant 0 : i32
    %c0_i32_0 = arith.constant 0 : i32
    return %arg0, %c0_i32 : i32, i32
  }
  func.func @transform_1(%arg0: i32) -> (i32, i32) {
    %c0_i32 = arith.constant 0 : i32
    %c0_i32_0 = arith.constant 0 : i32
    %c0_i32_1 = arith.constant 0 : i32
    return %c0_i32, %c0_i32_0 : i32, i32
  }
  func.func @transform_2(%arg0: i32) -> (i32, i32) {
    %c0_i32 = arith.constant 0 : i32
    %c0_i32_0 = arith.constant 0 : i32
    %c0_i32_1 = arith.constant 0 : i32
    return %c0_i32, %c0_i32_0 : i32, i32
  }
  func.func @transform_3(%arg0: i32) -> (i32, i32) {
    %c0_i32 = arith.constant 0 : i32
    %c0_i32_0 = arith.constant 0 : i32
    return %arg0, %c0_i32 : i32, i32
  }
}

module attributes {stable_mosaic.version = 11 : i64} {
  func.func @_matmul_bias_act_kernel(%arg0: i32, %arg1: memref<242x144xbf16, #tpu.memory_space<vmem>>, %arg2: memref<144x32xbf16, #tpu.memory_space<vmem>>, %arg3: memref<1x32xf32, #tpu.memory_space<vmem>>, %arg4: memref<242x32xbf16, #tpu.memory_space<vmem>>) attributes {dimension_semantics = [#tpu.dimension_semantics<parallel>], iteration_bounds = array<i64: 1>, scalar_prefetch = 0 : i64, scratch_operands = 0 : i64, tpu.core_type = #tpu.core_type<tc>, window_params = [{transform_indices = @transform_0, window_bounds = array<i64: 242, 144>}, {pipeline_mode = #tpu.pipeline_mode<synchronous>, transform_indices = @transform_1, window_bounds = array<i64: 144, 32>}, {pipeline_mode = #tpu.pipeline_mode<synchronous>, transform_indices = @transform_2, window_bounds = array<i64: 1, 32>}, {transform_indices = @transform_3, window_bounds = array<i64: 242, 32>}]} {
    %c0 = arith.constant 0 : index
    %c0_0 = arith.constant 0 : index
    %0 = vector.load %arg1[%c0, %c0_0] : memref<242x144xbf16, #tpu.memory_space<vmem>>, vector<242x144xbf16>
    %c0_1 = arith.constant 0 : index
    %c0_2 = arith.constant 0 : index
    %1 = vector.load %arg2[%c0_1, %c0_2] : memref<144x32xbf16, #tpu.memory_space<vmem>>, vector<144x32xbf16>
    %cst = arith.constant dense<0.000000e+00> : vector<242x32xf32>
    %2 = tpu.matmul %0, %1, %cst {dimension_numbers = #tpu.dot_dimension_numbers<[1], [0], [0], [1], [0, 0, 1, 1], [], []>} : vector<242x144xbf16>, vector<144x32xbf16>, vector<242x32xf32> -> vector<242x32xf32>
    %c0_3 = arith.constant 0 : index
    %c0_4 = arith.constant 0 : index
    %3 = vector.load %arg3[%c0_3, %c0_4] : memref<1x32xf32, #tpu.memory_space<vmem>>, vector<1x32xf32>
    %4 = vector.broadcast %3 : vector<1x32xf32> to vector<242x32xf32>
    %5 = arith.addf %2, %4 : vector<242x32xf32>
    %cst_5 = arith.constant 0.000000e+00 : f32
    %6 = vector.broadcast %cst_5 : f32 to vector<242x32xf32>
    %7 = arith.maximumf %5, %6 : vector<242x32xf32>
    %8 = arith.truncf %7 : vector<242x32xf32> to vector<242x32xbf16>
    %c0_6 = arith.constant 0 : index
    %c0_7 = arith.constant 0 : index
    %9 = vector.load %arg4[%c0_6, %c0_7] : memref<242x32xbf16, #tpu.memory_space<vmem>>, vector<242x32xbf16>
    tpu.vector_store %arg4[%c0_6, %c0_7], %8 {strides = array<i32>} : memref<242x32xbf16, #tpu.memory_space<vmem>>, vector<242x32xbf16>,
    return
  }
  func.func @transform_0(%arg0: i32) -> (i32, i32) {
    %c0_i32 = arith.constant 0 : i32
    %c0_i32_0 = arith.constant 0 : i32
    return %arg0, %c0_i32 : i32, i32
  }
  func.func @transform_1(%arg0: i32) -> (i32, i32) {
    %c0_i32 = arith.constant 0 : i32
    %c0_i32_0 = arith.constant 0 : i32
    %c0_i32_1 = arith.constant 0 : i32
    return %c0_i32, %c0_i32_0 : i32, i32
  }
  func.func @transform_2(%arg0: i32) -> (i32, i32) {
    %c0_i32 = arith.constant 0 : i32
    %c0_i32_0 = arith.constant 0 : i32
    %c0_i32_1 = arith.constant 0 : i32
    return %c0_i32, %c0_i32_0 : i32, i32
  }
  func.func @transform_3(%arg0: i32) -> (i32, i32) {
    %c0_i32 = arith.constant 0 : i32
    %c0_i32_0 = arith.constant 0 : i32
    return %arg0, %c0_i32 : i32, i32
  }
}

module attributes {stable_mosaic.version = 11 : i64} {
  func.func @_matmul_bias_act_kernel(%arg0: i32, %arg1: memref<50x288xbf16, #tpu.memory_space<vmem>>, %arg2: memref<288x64xbf16, #tpu.memory_space<vmem>>, %arg3: memref<1x64xf32, #tpu.memory_space<vmem>>, %arg4: memref<50x64xbf16, #tpu.memory_space<vmem>>) attributes {dimension_semantics = [#tpu.dimension_semantics<parallel>], iteration_bounds = array<i64: 1>, scalar_prefetch = 0 : i64, scratch_operands = 0 : i64, tpu.core_type = #tpu.core_type<tc>, window_params = [{transform_indices = @transform_0, window_bounds = array<i64: 50, 288>}, {pipeline_mode = #tpu.pipeline_mode<synchronous>, transform_indices = @transform_1, window_bounds = array<i64: 288, 64>}, {pipeline_mode = #tpu.pipeline_mode<synchronous>, transform_indices = @transform_2, window_bounds = array<i64: 1, 64>}, {transform_indices = @transform_3, window_bounds = array<i64: 50, 64>}]} {
    %c0 = arith.constant 0 : index
    %c0_0 = arith.constant 0 : index
    %0 = vector.load %arg1[%c0, %c0_0] : memref<50x288xbf16, #tpu.memory_space<vmem>>, vector<50x288xbf16>
    %c0_1 = arith.constant 0 : index
    %c0_2 = arith.constant 0 : index
    %1 = vector.load %arg2[%c0_1, %c0_2] : memref<288x64xbf16, #tpu.memory_space<vmem>>, vector<288x64xbf16>
    %cst = arith.constant dense<0.000000e+00> : vector<50x64xf32>
    %2 = tpu.matmul %0, %1, %cst {dimension_numbers = #tpu.dot_dimension_numbers<[1], [0], [0], [1], [0, 0, 1, 1], [], []>} : vector<50x288xbf16>, vector<288x64xbf16>, vector<50x64xf32> -> vector<50x64xf32>
    %c0_3 = arith.constant 0 : index
    %c0_4 = arith.constant 0 : index
    %3 = vector.load %arg3[%c0_3, %c0_4] : memref<1x64xf32, #tpu.memory_space<vmem>>, vector<1x64xf32>
    %4 = vector.broadcast %3 : vector<1x64xf32> to vector<50x64xf32>
    %5 = arith.addf %2, %4 : vector<50x64xf32>
    %cst_5 = arith.constant 0.000000e+00 : f32
    %6 = vector.broadcast %cst_5 : f32 to vector<50x64xf32>
    %7 = arith.maximumf %5, %6 : vector<50x64xf32>
    %8 = arith.truncf %7 : vector<50x64xf32> to vector<50x64xbf16>
    %c0_6 = arith.constant 0 : index
    %c0_7 = arith.constant 0 : index
    %9 = vector.load %arg4[%c0_6, %c0_7] : memref<50x64xbf16, #tpu.memory_space<vmem>>, vector<50x64xbf16>
    tpu.vector_store %arg4[%c0_6, %c0_7], %8 {strides = array<i32>} : memref<50x64xbf16, #tpu.memory_space<vmem>>, vector<50x64xbf16>,
    return
  }
  func.func @transform_0(%arg0: i32) -> (i32, i32) {
    %c0_i32 = arith.constant 0 : i32
    %c0_i32_0 = arith.constant 0 : i32
    return %arg0, %c0_i32 : i32, i32
  }
  func.func @transform_1(%arg0: i32) -> (i32, i32) {
    %c0_i32 = arith.constant 0 : i32
    %c0_i32_0 = arith.constant 0 : i32
    %c0_i32_1 = arith.constant 0 : i32
    return %c0_i32, %c0_i32_0 : i32, i32
  }
  func.func @transform_2(%arg0: i32) -> (i32, i32) {
    %c0_i32 = arith.constant 0 : i32
    %c0_i32_0 = arith.constant 0 : i32
    %c0_i32_1 = arith.constant 0 : i32
    return %c0_i32, %c0_i32_0 : i32, i32
  }
  func.func @transform_3(%arg0: i32) -> (i32, i32) {
    %c0_i32 = arith.constant 0 : i32
    %c0_i32_0 = arith.constant 0 : i32
    return %arg0, %c0_i32 : i32, i32
  }
}

module attributes {stable_mosaic.version = 11 : i64} {
  func.func @_matmul_bias_act_kernel(%arg0: i32, %arg1: memref<18x576xbf16, #tpu.memory_space<vmem>>, %arg2: memref<576x128xbf16, #tpu.memory_space<vmem>>, %arg3: memref<1x128xf32, #tpu.memory_space<vmem>>, %arg4: memref<18x128xbf16, #tpu.memory_space<vmem>>) attributes {dimension_semantics = [#tpu.dimension_semantics<parallel>], iteration_bounds = array<i64: 1>, scalar_prefetch = 0 : i64, scratch_operands = 0 : i64, tpu.core_type = #tpu.core_type<tc>, window_params = [{transform_indices = @transform_0, window_bounds = array<i64: 18, 576>}, {pipeline_mode = #tpu.pipeline_mode<synchronous>, transform_indices = @transform_1, window_bounds = array<i64: 576, 128>}, {pipeline_mode = #tpu.pipeline_mode<synchronous>, transform_indices = @transform_2, window_bounds = array<i64: 1, 128>}, {transform_indices = @transform_3, window_bounds = array<i64: 18, 128>}]} {
    %c0 = arith.constant 0 : index
    %c0_0 = arith.constant 0 : index
    %0 = vector.load %arg1[%c0, %c0_0] : memref<18x576xbf16, #tpu.memory_space<vmem>>, vector<18x576xbf16>
    %c0_1 = arith.constant 0 : index
    %c0_2 = arith.constant 0 : index
    %1 = vector.load %arg2[%c0_1, %c0_2] : memref<576x128xbf16, #tpu.memory_space<vmem>>, vector<576x128xbf16>
    %cst = arith.constant dense<0.000000e+00> : vector<18x128xf32>
    %2 = tpu.matmul %0, %1, %cst {dimension_numbers = #tpu.dot_dimension_numbers<[1], [0], [0], [1], [0, 0, 1, 1], [], []>} : vector<18x576xbf16>, vector<576x128xbf16>, vector<18x128xf32> -> vector<18x128xf32>
    %c0_3 = arith.constant 0 : index
    %c0_4 = arith.constant 0 : index
    %3 = vector.load %arg3[%c0_3, %c0_4] : memref<1x128xf32, #tpu.memory_space<vmem>>, vector<1x128xf32>
    %4 = vector.broadcast %3 : vector<1x128xf32> to vector<18x128xf32>
    %5 = arith.addf %2, %4 : vector<18x128xf32>
    %cst_5 = arith.constant 0.000000e+00 : f32
    %6 = vector.broadcast %cst_5 : f32 to vector<18x128xf32>
    %7 = arith.maximumf %5, %6 : vector<18x128xf32>
    %8 = arith.truncf %7 : vector<18x128xf32> to vector<18x128xbf16>
    %c0_6 = arith.constant 0 : index
    %c0_7 = arith.constant 0 : index
    %9 = vector.load %arg4[%c0_6, %c0_7] : memref<18x128xbf16, #tpu.memory_space<vmem>>, vector<18x128xbf16>
    tpu.vector_store %arg4[%c0_6, %c0_7], %8 {strides = array<i32>} : memref<18x128xbf16, #tpu.memory_space<vmem>>, vector<18x128xbf16>,
    return
  }
  func.func @transform_0(%arg0: i32) -> (i32, i32) {
    %c0_i32 = arith.constant 0 : i32
    %c0_i32_0 = arith.constant 0 : i32
    return %arg0, %c0_i32 : i32, i32
  }
  func.func @transform_1(%arg0: i32) -> (i32, i32) {
    %c0_i32 = arith.constant 0 : i32
    %c0_i32_0 = arith.constant 0 : i32
    %c0_i32_1 = arith.constant 0 : i32
    return %c0_i32, %c0_i32_0 : i32, i32
  }
  func.func @transform_2(%arg0: i32) -> (i32, i32) {
    %c0_i32 = arith.constant 0 : i32
    %c0_i32_0 = arith.constant 0 : i32
    %c0_i32_1 = arith.constant 0 : i32
    return %c0_i32, %c0_i32_0 : i32, i32
  }
  func.func @transform_3(%arg0: i32) -> (i32, i32) {
    %c0_i32 = arith.constant 0 : i32
    %c0_i32_0 = arith.constant 0 : i32
    return %arg0, %c0_i32 : i32, i32
  }
}

module attributes {stable_mosaic.version = 11 : i64} {
  func.func @_conv6_head_kernel(%arg0: memref<2x1152xbf16, #tpu.memory_space<vmem>>, %arg1: memref<1152x256xbf16, #tpu.memory_space<vmem>>, %arg2: memref<1x256xf32, #tpu.memory_space<vmem>>, %arg3: memref<256x200xbf16, #tpu.memory_space<vmem>>, %arg4: memref<1x200xf32, #tpu.memory_space<vmem>>, %arg5: memref<200x7xbf16, #tpu.memory_space<vmem>>, %arg6: memref<1x7xf32, #tpu.memory_space<vmem>>, %arg7: memref<2x7xf32, #tpu.memory_space<vmem>>) attributes {dimension_semantics = [], scalar_prefetch = 0 : i64, scratch_operands = 0 : i64, tpu.core_type = #tpu.core_type<tc>} {
    %c0 = arith.constant 0 : index
    %c0_0 = arith.constant 0 : index
    %0 = vector.load %arg0[%c0, %c0_0] : memref<2x1152xbf16, #tpu.memory_space<vmem>>, vector<2x1152xbf16>
    %c0_1 = arith.constant 0 : index
    %c0_2 = arith.constant 0 : index
    %1 = vector.load %arg1[%c0_1, %c0_2] : memref<1152x256xbf16, #tpu.memory_space<vmem>>, vector<1152x256xbf16>
    %cst = arith.constant dense<0.000000e+00> : vector<2x256xf32>
    %2 = tpu.matmul %0, %1, %cst {dimension_numbers = #tpu.dot_dimension_numbers<[1], [0], [0], [1], [0, 0, 1, 1], [], []>} : vector<2x1152xbf16>, vector<1152x256xbf16>, vector<2x256xf32> -> vector<2x256xf32>
    %c0_3 = arith.constant 0 : index
    %c0_4 = arith.constant 0 : index
    %3 = vector.load %arg2[%c0_3, %c0_4] : memref<1x256xf32, #tpu.memory_space<vmem>>, vector<1x256xf32>
    %4 = vector.broadcast %3 : vector<1x256xf32> to vector<2x256xf32>
    %5 = arith.addf %2, %4 : vector<2x256xf32>
    %cst_5 = arith.constant 0.000000e+00 : f32
    %6 = vector.broadcast %cst_5 : f32 to vector<2x256xf32>
    %7 = arith.maximumf %5, %6 : vector<2x256xf32>
    %8 = arith.truncf %7 : vector<2x256xf32> to vector<2x256xbf16>
    %c0_6 = arith.constant 0 : index
    %c0_7 = arith.constant 0 : index
    %9 = vector.load %arg3[%c0_6, %c0_7] : memref<256x200xbf16, #tpu.memory_space<vmem>>, vector<256x200xbf16>
    %cst_8 = arith.constant dense<0.000000e+00> : vector<2x200xf32>
    %10 = tpu.matmul %8, %9, %cst_8 {dimension_numbers = #tpu.dot_dimension_numbers<[1], [0], [0], [1], [0, 0, 1, 1], [], []>} : vector<2x256xbf16>, vector<256x200xbf16>, vector<2x200xf32> -> vector<2x200xf32>
    %c0_9 = arith.constant 0 : index
    %c0_10 = arith.constant 0 : index
    %11 = vector.load %arg4[%c0_9, %c0_10] : memref<1x200xf32, #tpu.memory_space<vmem>>, vector<1x200xf32>
    %12 = vector.broadcast %11 : vector<1x200xf32> to vector<2x200xf32>
    %13 = arith.addf %10, %12 : vector<2x200xf32>
    %cst_11 = arith.constant 0.000000e+00 : f32
    %14 = vector.broadcast %cst_11 : f32 to vector<2x200xf32>
    %15 = arith.maximumf %13, %14 : vector<2x200xf32>
    %16 = arith.truncf %15 : vector<2x200xf32> to vector<2x200xbf16>
    %c0_12 = arith.constant 0 : index
    %c0_13 = arith.constant 0 : index
    %17 = vector.load %arg5[%c0_12, %c0_13] : memref<200x7xbf16, #tpu.memory_space<vmem>>, vector<200x7xbf16>
    %cst_14 = arith.constant dense<0.000000e+00> : vector<2x7xf32>
    %18 = tpu.matmul %16, %17, %cst_14 {dimension_numbers = #tpu.dot_dimension_numbers<[1], [0], [0], [1], [0, 0, 1, 1], [], []>} : vector<2x200xbf16>, vector<200x7xbf16>, vector<2x7xf32> -> vector<2x7xf32>
    %c0_15 = arith.constant 0 : index
    %c0_16 = arith.constant 0 : index
    %19 = vector.load %arg6[%c0_15, %c0_16] : memref<1x7xf32, #tpu.memory_space<vmem>>, vector<1x7xf32>
    %20 = vector.broadcast %19 : vector<1x7xf32> to vector<2x7xf32>
    %21 = arith.addf %18, %20 : vector<2x7xf32>
    %cst_17 = arith.constant 2.000000e+01 : f32
    %22 = vector.broadcast %cst_17 : f32 to vector<2x7xf32>
    %23 = arith.cmpf ogt, %21, %22 : vector<2x7xf32>
    %cst_18 = arith.constant 2.000000e+01 : f32
    %24 = vector.broadcast %cst_18 : f32 to vector<2x7xf32>
    %25 = arith.minimumf %21, %24 : vector<2x7xf32>
    %26 = math.exp %25 : vector<2x7xf32>
    %27 = math.log1p %26 : vector<2x7xf32>
    %28 = arith.select %23, %21, %27 : vector<2x7xi1>, vector<2x7xf32>
    %cst_19 = arith.constant 1.000000e+00 : f32
    %29 = vector.broadcast %cst_19 : f32 to vector<2x7xf32>
    %30 = arith.addf %28, %29 : vector<2x7xf32>
    %31 = tpu.iota {dimensions = array<i32: 1>} : vector<2x7xi32>
    %c0_i32 = arith.constant 0 : i32
    %32 = vector.broadcast %c0_i32 : i32 to vector<2x7xi32>
    %33 = arith.cmpi eq, %31, %32 : vector<2x7xi32>
    %34 = arith.select %33, %21, %30 : vector<2x7xi1>, vector<2x7xf32>
    %c0_20 = arith.constant 0 : index
    %c0_21 = arith.constant 0 : index
    %35 = vector.load %arg7[%c0_20, %c0_21] : memref<2x7xf32, #tpu.memory_space<vmem>>, vector<2x7xf32>
    tpu.vector_store %arg7[%c0_20, %c0_21], %34 {strides = array<i32>} : memref<2x7xf32, #tpu.memory_space<vmem>>, vector<2x7xf32>,
    return
  }
}

</mosaic_0001>

<llo_original>
// kernel: net_forward.6
$region0: #{net_forward.6}
  #allocation0 [shape = 'u32[]', space=smem, size = 0x4, offset = 0x4, fixed_abs, tag = 'smem constant byte address 0x4 - core index']
  #allocation1 [shape = 'u32[72,128]{1,0:T(1,128)}', space=vmem, size = 0x9000, scoped, tag = 'internal scratch']
  %s0 = inlined_call_operand.vmem [shape: bf16[4418,64], index: 0, kind: input, shape index: {}]
  %s1 = inlined_call_operand.vmem [shape: bf16[64,8], index: 1, kind: input, shape index: {}]
  %s2 = inlined_call_operand.vmem [shape: f32[1,8], index: 2, kind: input, shape index: {}]
  %s3 = inlined_call_operand.vmem [shape: bf16[4418,8], index: 3, kind: output, shape index: {}]
  %s4 = sld [smem:[#allocation0]]
  $region22: #{net_forward.6} parent=0
    _
  %s6 = ssub.s32 1, %s4
  %s7 = scalar_select 0, %s6, %s4
  // Predicated region
  $region2: #{net_forward.6} parent=0 // pred_check
    _
  $region3: #{net_forward.6} parent=0 // pred_check_branch
    %9 = sbr.rel (0) target = $region5
  $region4: #{net_forward.6} parent=0 // pred_region
    _
  $region5: #{net_forward.6} parent=0 // pred_fallthru
    _
  // Predicated region
  $region6: #{net_forward.6} parent=0 // pred_check
    _
  $region7: #{net_forward.6} parent=0 // pred_check_branch
    %11 = sbr.rel (0) target = $region9
  $region8: #{net_forward.6} parent=0 // pred_region
    _
  $region9: #{net_forward.6} parent=0 // pred_fallthru
    _
  // Predicated region
  $region10: #{net_forward.6} parent=0 // pred_check
    _
  $region11: #{net_forward.6} parent=0 // pred_check_branch
    %13 = sbr.rel (0) target = $region13
  $region12: #{net_forward.6} parent=0 // pred_region
    _
  $region13: #{net_forward.6} parent=0 // pred_fallthru
    _
  %v15 = vld [vmem:[%s0] sm:$0xf]
  %v16 = vld [vmem:[%s0 + $0x4] sm:$0xf]
  %v17 = vld [vmem:[%s0 + $0x8] sm:$0xf]
  %v18 = vld [vmem:[%s0 + $0xc] sm:$0xf]
  %v19 = vld [vmem:[%s0 + $0x10] sm:$0xf]
  %v20 = vld [vmem:[%s0 + $0x14] sm:$0xf]
  %v21 = vld [vmem:[%s0 + $0x18] sm:$0xf]
  %v22 = vld [vmem:[%s0 + $0x1c] sm:$0xf]
  %v23 = vld [vmem:[%s0 + $0x20] sm:$0xf]
  %v24 = vld [vmem:[%s0 + $0x24] sm:$0xf]
  %v25 = vld [vmem:[%s0 + $0x28] sm:$0xf]
  %v26 = vld [vmem:[%s0 + $0x2c] sm:$0xf]
  %v27 = vld [vmem:[%s0 + $0x30] sm:$0xf]
  %v28 = vld [vmem:[%s0 + $0x34] sm:$0xf]
  %v29 = vld [vmem:[%s0 + $0x38] sm:$0xf]
  %v30 = vld [vmem:[%s0 + $0x3c] sm:$0xf]
  %v31 = vld [vmem:[%s0 + $0x40] sm:$0xf]
  %v32 = vld [vmem:[%s0 + $0x44] sm:$0xf]
  %v33 = vld [vmem:[%s0 + $0x48] sm:$0xf]
  %v34 = vld [vmem:[%s0 + $0x4c] sm:$0xf]
  %v35 = vld [vmem:[%s0 + $0x50] sm:$0xf]
  %v36 = vld [vmem:[%s0 + $0x54] sm:$0xf]
  %v37 = vld [vmem:[%s0 + $0x58] sm:$0xf]
  %v38 = vld [vmem:[%s0 + $0x5c] sm:$0xf]
  %v39 = vld [vmem:[%s0 + $0x60] sm:$0xf]
  %v40 = vld [vmem:[%s0 + $0x64] sm:$0xf]
  %v41 = vld [vmem:[%s0 + $0x68] sm:$0xf]
  %v42 = vld [vmem:[%s0 + $0x6c] sm:$0xf]
  %v43 = vld [vmem:[%s0 + $0x70] sm:$0xf]
  %v44 = vld [vmem:[%s0 + $0x74] sm:$0xf]
  %v45 = vld [vmem:[%s0 + $0x78] sm:$0xf]
  %v46 = vld [vmem:[%s0 + $0x7c] sm:$0xf]
  %v47 = vld [vmem:[%s0 + $0x80] sm:$0xf]
  %v48 = vld [vmem:[%s0 + $0x84] sm:$0xf]
  %v49 = vld [vmem:[%s0 + $0x88] sm:$0xf]
  %v50 = vld [vmem:[%s0 + $0x8c] sm:$0xf]
  %v51 = vld [vmem:[%s0 + $0x90] sm:$0xf]
  %v52 = vld [vmem:[%s0 + $0x94] sm:$0xf]
  %v53 = vld [vmem:[%s0 + $0x98] sm:$0xf]
  %v54 = vld [vmem:[%s0 + $0x9c] sm:$0xf]
  %v55 = vld [vmem:[%s0 + $0xa0] sm:$0xf]
  %v56 = vld [vmem:[%s0 + $0xa4] sm:$0xf]
  %v57 = vld [vmem:[%s0 + $0xa8] sm:$0xf]
  %v58 = vld [vmem:[%s0 + $0xac] sm:$0xf]
  %v59 = vld [vmem:[%s0 + $0xb0] sm:$0xf]
  %v60 = vld [vmem:[%s0 + $0xb4] sm:$0xf]
  %v61 = vld [vmem:[%s0 + $0xb8] sm:$0xf]
  %v62 = vld [vmem:[%s0 + $0xbc] sm:$0xf]
  %v63 = vld [vmem:[%s0 + $0xc0] sm:$0xf]
  %v64 = vld [vmem:[%s0 + $0xc4] sm:$0xf]
  %v65 = vld [vmem:[%s0 + $0xc8] sm:$0xf]
  %v66 = vld [vmem:[%s0 + $0xcc] sm:$0xf]
  %v67 = vld [vmem:[%s0 + $0xd0] sm:$0xf]
  %v68 = vld [vmem:[%s0 + $0xd4] sm:$0xf]
  %v69 = vld [vmem:[%s0 + $0xd8] sm:$0xf]
  %v70 = vld [vmem:[%s0 + $0xdc] sm:$0xf]
  %v71 = vld [vmem:[%s0 + $0xe0] sm:$0xf]
  %v72 = vld [vmem:[%s0 + $0xe4] sm:$0xf]
  %v73 = vld [vmem:[%s0 + $0xe8] sm:$0xf]
  %v74 = vld [vmem:[%s0 + $0xec] sm:$0xf]
  %v75 = vld [vmem:[%s0 + $0xf0] sm:$0xf]
  %v76 = vld [vmem:[%s0 + $0xf4] sm:$0xf]
  %v77 = vld [vmem:[%s0 + $0xf8] sm:$0xf]
  %v78 = vld [vmem:[%s0 + $0xfc] sm:$0xf]
  %v79 = vld [vmem:[%s0 + $0x100] sm:$0xf]
  %v80 = vld [vmem:[%s0 + $0x104] sm:$0xf]
  %v81 = vld [vmem:[%s0 + $0x108] sm:$0xf]
  %v82 = vld [vmem:[%s0 + $0x10c] sm:$0xf]
  %v83 = vld [vmem:[%s0 + $0x110] sm:$0xf]
  %v84 = vld [vmem:[%s0 + $0x114] sm:$0xf]
  %v85 = vld [vmem:[%s0 + $0x118] sm:$0xf]
  %v86 = vld [vmem:[%s0 + $0x11c] sm:$0xf]
  %v87 = vld [vmem:[%s0 + $0x120] sm:$0xf]
  %v88 = vld [vmem:[%s0 + $0x124] sm:$0xf]
  %v89 = vld [vmem:[%s0 + $0x128] sm:$0xf]
  %v90 = vld [vmem:[%s0 + $0x12c] sm:$0xf]
  %v91 = vld [vmem:[%s0 + $0x130] sm:$0xf]
  %v92 = vld [vmem:[%s0 + $0x134] sm:$0xf]
  %v93 = vld [vmem:[%s0 + $0x138] sm:$0xf]
  %v94 = vld [vmem:[%s0 + $0x13c] sm:$0xf]
  %v95 = vld [vmem:[%s0 + $0x140] sm:$0xf]
  %v96 = vld [vmem:[%s0 + $0x144] sm:$0xf]
  %v97 = vld [vmem:[%s0 + $0x148] sm:$0xf]
  %v98 = vld [vmem:[%s0 + $0x14c] sm:$0xf]
  %v99 = vld [vmem:[%s0 + $0x150] sm:$0xf]
  %v100 = vld [vmem:[%s0 + $0x154] sm:$0xf]
  %v101 = vld [vmem:[%s0 + $0x158] sm:$0xf]
  %v102 = vld [vmem:[%s0 + $0x15c] sm:$0xf]
  %v103 = vld [vmem:[%s0 + $0x160] sm:$0xf]
  %v104 = vld [vmem:[%s0 + $0x164] sm:$0xf]
  %v105 = vld [vmem:[%s0 + $0x168] sm:$0xf]
  %v106 = vld [vmem:[%s0 + $0x16c] sm:$0xf]
  %v107 = vld [vmem:[%s0 + $0x170] sm:$0xf]
  %v108 = vld [vmem:[%s0 + $0x174] sm:$0xf]
  %v109 = vld [vmem:[%s0 + $0x178] sm:$0xf]
  %v110 = vld [vmem:[%s0 + $0x17c] sm:$0xf]
  %v111 = vld [vmem:[%s0 + $0x180] sm:$0xf]
  %v112 = vld [vmem:[%s0 + $0x184] sm:$0xf]
  %v113 = vld [vmem:[%s0 + $0x188] sm:$0xf]
  %v114 = vld [vmem:[%s0 + $0x18c] sm:$0xf]
  %v115 = vld [vmem:[%s0 + $0x190] sm:$0xf]
  %v116 = vld [vmem:[%s0 + $0x194] sm:$0xf]
  %v117 = vld [vmem:[%s0 + $0x198] sm:$0xf]
  %v118 = vld [vmem:[%s0 + $0x19c] sm:$0xf]
  %v119 = vld [vmem:[%s0 + $0x1a0] sm:$0xf]
  %v120 = vld [vmem:[%s0 + $0x1a4] sm:$0xf]
  %v121 = vld [vmem:[%s0 + $0x1a8] sm:$0xf]
  %v122 = vld [vmem:[%s0 + $0x1ac] sm:$0xf]
  %v123 = vld [vmem:[%s0 + $0x1b0] sm:$0xf]
  %v124 = vld [vmem:[%s0 + $0x1b4] sm:$0xf]
  %v125 = vld [vmem:[%s0 + $0x1b8] sm:$0xf]
  %v126 = vld [vmem:[%s0 + $0x1bc] sm:$0xf]
  %v127 = vld [vmem:[%s0 + $0x1c0] sm:$0xf]
  %v128 = vld [vmem:[%s0 + $0x1c4] sm:$0xf]
  %v129 = vld [vmem:[%s0 + $0x1c8] sm:$0xf]
  %v130 = vld [vmem:[%s0 + $0x1cc] sm:$0xf]
  %v131 = vld [vmem:[%s0 + $0x1d0] sm:$0xf]
  %v132 = vld [vmem:[%s0 + $0x1d4] sm:$0xf]
  %v133 = vld [vmem:[%s0 + $0x1d8] sm:$0xf]
  %v134 = vld [vmem:[%s0 + $0x1dc] sm:$0xf]
  %v135 = vld [vmem:[%s0 + $0x1e0] sm:$0xf]
  %v136 = vld [vmem:[%s0 + $0x1e4] sm:$0xf]
  %v137 = vld [vmem:[%s0 + $0x1e8] sm:$0xf]
  %v138 = vld [vmem:[%s0 + $0x1ec] sm:$0xf]
  %v139 = vld [vmem:[%s0 + $0x1f0] sm:$0xf]
  %v140 = vld [vmem:[%s0 + $0x1f4] sm:$0xf]
  %v141 = vld [vmem:[%s0 + $0x1f8] sm:$0xf]
  %v142 = vld [vmem:[%s0 + $0x1fc] sm:$0xf]
  %v143 = vld [vmem:[%s0 + $0x200] sm:$0xf]
  %v144 = vld [vmem:[%s0 + $0x204] sm:$0xf]
  %v145 = vld [vmem:[%s0 + $0x208] sm:$0xf]
  %v146 = vld [vmem:[%s0 + $0x20c] sm:$0xf]
  %v147 = vld [vmem:[%s0 + $0x210] sm:$0xf]
  %v148 = vld [vmem:[%s0 + $0x214] sm:$0xf]
  %v149 = vld [vmem:[%s0 + $0x218] sm:$0xf]
  %v150 = vld [vmem:[%s0 + $0x21c] sm:$0xf]
  %v151 = vld [vmem:[%s0 + $0x220] sm:$0xf]
  %v152 = vld [vmem:[%s0 + $0x224] sm:$0xf]
  %v153 = vld [vmem:[%s0 + $0x228] sm:$0xf]
  %v154 = vld [vmem:[%s0 + $0x22c] sm:$0xf]
  %v155 = vld [vmem:[%s0 + $0x230] sm:$0xf]
  %v156 = vld [vmem:[%s0 + $0x234] sm:$0xf]
  %v157 = vld [vmem:[%s0 + $0x238] sm:$0xf]
  %v158 = vld [vmem:[%s0 + $0x23c] sm:$0xf]
  %v159 = vld [vmem:[%s0 + $0x240] sm:$0xf]
  %v160 = vld [vmem:[%s0 + $0x244] sm:$0xf]
  %v161 = vld [vmem:[%s0 + $0x248] sm:$0xf]
  %v162 = vld [vmem:[%s0 + $0x24c] sm:$0xf]
  %v163 = vld [vmem:[%s0 + $0x250] sm:$0xf]
  %v164 = vld [vmem:[%s0 + $0x254] sm:$0xf]
  %v165 = vld [vmem:[%s0 + $0x258] sm:$0xf]
  %v166 = vld [vmem:[%s0 + $0x25c] sm:$0xf]
  %v167 = vld [vmem:[%s0 + $0x260] sm:$0xf]
  %v168 = vld [vmem:[%s0 + $0x264] sm:$0xf]
  %v169 = vld [vmem:[%s0 + $0x268] sm:$0xf]
  %v170 = vld [vmem:[%s0 + $0x26c] sm:$0xf]
  %v171 = vld [vmem:[%s0 + $0x270] sm:$0xf]
  %v172 = vld [vmem:[%s0 + $0x274] sm:$0xf]
  %v173 = vld [vmem:[%s0 + $0x278] sm:$0xf]
  %v174 = vld [vmem:[%s0 + $0x27c] sm:$0xf]
  %v175 = vld [vmem:[%s0 + $0x280] sm:$0xf]
  %v176 = vld [vmem:[%s0 + $0x284] sm:$0xf]
  %v177 = vld [vmem:[%s0 + $0x288] sm:$0xf]
  %v178 = vld [vmem:[%s0 + $0x28c] sm:$0xf]
  %v179 = vld [vmem:[%s0 + $0x290] sm:$0xf]
  %v180 = vld [vmem:[%s0 + $0x294] sm:$0xf]
  %v181 = vld [vmem:[%s0 + $0x298] sm:$0xf]
  %v182 = vld [vmem:[%s0 + $0x29c] sm:$0xf]
  %v183 = vld [vmem:[%s0 + $0x2a0] sm:$0xf]
  %v184 = vld [vmem:[%s0 + $0x2a4] sm:$0xf]
  %v185 = vld [vmem:[%s0 + $0x2a8] sm:$0xf]
  %v186 = vld [vmem:[%s0 + $0x2ac] sm:$0xf]
  %v187 = vld [vmem:[%s0 + $0x2b0] sm:$0xf]
  %v188 = vld [vmem:[%s0 + $0x2b4] sm:$0xf]
  %v189 = vld [vmem:[%s0 + $0x2b8] sm:$0xf]
  %v190 = vld [vmem:[%s0 + $0x2bc] sm:$0xf]
  %v191 = vld [vmem:[%s0 + $0x2c0] sm:$0xf]
  %v192 = vld [vmem:[%s0 + $0x2c4] sm:$0xf]
  %v193 = vld [vmem:[%s0 + $0x2c8] sm:$0xf]
  %v194 = vld [vmem:[%s0 + $0x2cc] sm:$0xf]
  %v195 = vld [vmem:[%s0 + $0x2d0] sm:$0xf]
  %v196 = vld [vmem:[%s0 + $0x2d4] sm:$0xf]
  %v197 = vld [vmem:[%s0 + $0x2d8] sm:$0xf]
  %v198 = vld [vmem:[%s0 + $0x2dc] sm:$0xf]
  %v199 = vld [vmem:[%s0 + $0x2e0] sm:$0xf]
  %v200 = vld [vmem:[%s0 + $0x2e4] sm:$0xf]
  %v201 = vld [vmem:[%s0 + $0x2e8] sm:$0xf]
  %v202 = vld [vmem:[%s0 + $0x2ec] sm:$0xf]
  %v203 = vld [vmem:[%s0 + $0x2f0] sm:$0xf]
  %v204 = vld [vmem:[%s0 + $0x2f4] sm:$0xf]
  %v205 = vld [vmem:[%s0 + $0x2f8] sm:$0xf]
  %v206 = vld [vmem:[%s0 + $0x2fc] sm:$0xf]
  %v207 = vld [vmem:[%s0 + $0x300] sm:$0xf]
  %v208 = vld [vmem:[%s0 + $0x304] sm:$0xf]
  %v209 = vld [vmem:[%s0 + $0x308] sm:$0xf]
  %v210 = vld [vmem:[%s0 + $0x30c] sm:$0xf]
  %v211 = vld [vmem:[%s0 + $0x310] sm:$0xf]
  %v212 = vld [vmem:[%s0 + $0x314] sm:$0xf]
  %v213 = vld [vmem:[%s0 + $0x318] sm:$0xf]
  %v214 = vld [vmem:[%s0 + $0x31c] sm:$0xf]
  %v215 = vld [vmem:[%s0 + $0x320] sm:$0xf]
  %v216 = vld [vmem:[%s0 + $0x324] sm:$0xf]
  %v217 = vld [vmem:[%s0 + $0x328] sm:$0xf]
  %v218 = vld [vmem:[%s0 + $0x32c] sm:$0xf]
  %v219 = vld [vmem:[%s0 + $0x330] sm:$0xf]
  %v220 = vld [vmem:[%s0 + $0x334] sm:$0xf]
  %v221 = vld [vmem:[%s0 + $0x338] sm:$0xf]
  %v222 = vld [vmem:[%s0 + $0x33c] sm:$0xf]
  %v223 = vld [vmem:[%s0 + $0x340] sm:$0xf]
  %v224 = vld [vmem:[%s0 + $0x344] sm:$0xf]
  %v225 = vld [vmem:[%s0 + $0x348] sm:$0xf]
  %v226 = vld [vmem:[%s0 + $0x34c] sm:$0xf]
  %v227 = vld [vmem:[%s0 + $0x350] sm:$0xf]
  %v228 = vld [vmem:[%s0 + $0x354] sm:$0xf]
  %v229 = vld [vmem:[%s0 + $0x358] sm:$0xf]
  %v230 = vld [vmem:[%s0 + $0x35c] sm:$0xf]
  %v231 = vld [vmem:[%s0 + $0x360] sm:$0xf]
  %v232 = vld [vmem:[%s0 + $0x364] sm:$0xf]
  %v233 = vld [vmem:[%s0 + $0x368] sm:$0xf]
  %v234 = vld [vmem:[%s0 + $0x36c] sm:$0xf]
  %v235 = vld [vmem:[%s0 + $0x370] sm:$0xf]
  %v236 = vld [vmem:[%s0 + $0x374] sm:$0xf]
  %v237 = vld [vmem:[%s0 + $0x378] sm:$0xf]
  %v238 = vld [vmem:[%s0 + $0x37c] sm:$0xf]
  %v239 = vld [vmem:[%s0 + $0x380] sm:$0xf]
  %v240 = vld [vmem:[%s0 + $0x384] sm:$0xf]
  %v241 = vld [vmem:[%s0 + $0x388] sm:$0xf]
  %v242 = vld [vmem:[%s0 + $0x38c] sm:$0xf]
  %v243 = vld [vmem:[%s0 + $0x390] sm:$0xf]
  %v244 = vld [vmem:[%s0 + $0x394] sm:$0xf]
  %v245 = vld [vmem:[%s0 + $0x398] sm:$0xf]
  %v246 = vld [vmem:[%s0 + $0x39c] sm:$0xf]
  %v247 = vld [vmem:[%s0 + $0x3a0] sm:$0xf]
  %v248 = vld [vmem:[%s0 + $0x3a4] sm:$0xf]
  %v249 = vld [vmem:[%s0 + $0x3a8] sm:$0xf]
  %v250 = vld [vmem:[%s0 + $0x3ac] sm:$0xf]
  %v251 = vld [vmem:[%s0 + $0x3b0] sm:$0xf]
  %v252 = vld [vmem:[%s0 + $0x3b4] sm:$0xf]
  %v253 = vld [vmem:[%s0 + $0x3b8] sm:$0xf]
  %v254 = vld [vmem:[%s0 + $0x3bc] sm:$0xf]
  %v255 = vld [vmem:[%s0 + $0x3c0] sm:$0xf]
  %v256 = vld [vmem:[%s0 + $0x3c4] sm:$0xf]
  %v257 = vld [vmem:[%s0 + $0x3c8] sm:$0xf]
  %v258 = vld [vmem:[%s0 + $0x3cc] sm:$0xf]
  %v259 = vld [vmem:[%s0 + $0x3d0] sm:$0xf]
  %v260 = vld [vmem:[%s0 + $0x3d4] sm:$0xf]
  %v261 = vld [vmem:[%s0 + $0x3d8] sm:$0xf]
  %v262 = vld [vmem:[%s0 + $0x3dc] sm:$0xf]
  %v263 = vld [vmem:[%s0 + $0x3e0] sm:$0xf]
  %v264 = vld [vmem:[%s0 + $0x3e4] sm:$0xf]
  %v265 = vld [vmem:[%s0 + $0x3e8] sm:$0xf]
  %v266 = vld [vmem:[%s0 + $0x3ec] sm:$0xf]
  %v267 = vld [vmem:[%s0 + $0x3f0] sm:$0xf]
  %v268 = vld [vmem:[%s0 + $0x3f4] sm:$0xf]
  %v269 = vld [vmem:[%s0 + $0x3f8] sm:$0xf]
  %v270 = vld [vmem:[%s0 + $0x3fc] sm:$0xf]
  %v271 = vld [vmem:[%s0 + $0x400] sm:$0xf]
  %v272 = vld [vmem:[%s0 + $0x404] sm:$0xf]
  %v273 = vld [vmem:[%s0 + $0x408] sm:$0xf]
  %v274 = vld [vmem:[%s0 + $0x40c] sm:$0xf]
  %v275 = vld [vmem:[%s0 + $0x410] sm:$0xf]
  %v276 = vld [vmem:[%s0 + $0x414] sm:$0xf]
  %v277 = vld [vmem:[%s0 + $0x418] sm:$0xf]
  %v278 = vld [vmem:[%s0 + $0x41c] sm:$0xf]
  %v279 = vld [vmem:[%s0 + $0x420] sm:$0xf]
  %v280 = vld [vmem:[%s0 + $0x424] sm:$0xf]
  %v281 = vld [vmem:[%s0 + $0x428] sm:$0xf]
  %v282 = vld [vmem:[%s0 + $0x42c] sm:$0xf]
  %v283 = vld [vmem:[%s0 + $0x430] sm:$0xf]
  %v284 = vld [vmem:[%s0 + $0x434] sm:$0xf]
  %v285 = vld [vmem:[%s0 + $0x438] sm:$0xf]
  %v286 = vld [vmem:[%s0 + $0x43c] sm:$0xf]
  %v287 = vld [vmem:[%s0 + $0x440] sm:$0xf]
  %v288 = vld [vmem:[%s0 + $0x444] sm:$0xf]
  %v289 = vld [vmem:[%s0 + $0x448] sm:$0xf]
  %v290 = vld [vmem:[%s0 + $0x44c] sm:$0xf]
  %v291 = vld [vmem:[%s0 + $0x450] sm:$0xf]
  %v292 = vld [vmem:[%s0 + $0x454] sm:$0xf]
  %v293 = vld [vmem:[%s0 + $0x458] sm:$0xf]
  %v294 = vld [vmem:[%s0 + $0x45c] sm:$0xf]
  %v295 = vld [vmem:[%s0 + $0x460] sm:$0xf]
  %v296 = vld [vmem:[%s0 + $0x464] sm:$0xf]
  %v297 = vld [vmem:[%s0 + $0x468] sm:$0xf]
  %v298 = vld [vmem:[%s0 + $0x46c] sm:$0xf]
  %v299 = vld [vmem:[%s0 + $0x470] sm:$0xf]
  %v300 = vld [vmem:[%s0 + $0x474] sm:$0xf]
  %v301 = vld [vmem:[%s0 + $0x478] sm:$0xf]
  %v302 = vld [vmem:[%s0 + $0x47c] sm:$0xf]
  %v303 = vld [vmem:[%s0 + $0x480] sm:$0xf]
  %v304 = vld [vmem:[%s0 + $0x484] sm:$0xf]
  %v305 = vld [vmem:[%s0 + $0x488] sm:$0xf]
  %v306 = vld [vmem:[%s0 + $0x48c] sm:$0xf]
  %v307 = vld [vmem:[%s0 + $0x490] sm:$0xf]
  %v308 = vld [vmem:[%s0 + $0x494] sm:$0xf]
  %v309 = vld [vmem:[%s0 + $0x498] sm:$0xf]
  %v310 = vld [vmem:[%s0 + $0x49c] sm:$0xf]
  %v311 = vld [vmem:[%s0 + $0x4a0] sm:$0xf]
  %v312 = vld [vmem:[%s0 + $0x4a4] sm:$0xf]
  %v313 = vld [vmem:[%s0 + $0x4a8] sm:$0xf]
  %v314 = vld [vmem:[%s0 + $0x4ac] sm:$0xf]
  %v315 = vld [vmem:[%s0 + $0x4b0] sm:$0xf]
  %v316 = vld [vmem:[%s0 + $0x4b4] sm:$0xf]
  %v317 = vld [vmem:[%s0 + $0x4b8] sm:$0xf]
  %v318 = vld [vmem:[%s0 + $0x4bc] sm:$0xf]
  %v319 = vld [vmem:[%s0 + $0x4c0] sm:$0xf]
  %v320 = vld [vmem:[%s0 + $0x4c4] sm:$0xf]
  %v321 = vld [vmem:[%s0 + $0x4c8] sm:$0xf]
  %v322 = vld [vmem:[%s0 + $0x4cc] sm:$0xf]
  %v323 = vld [vmem:[%s0 + $0x4d0] sm:$0xf]
  %v324 = vld [vmem:[%s0 + $0x4d4] sm:$0xf]
  %v325 = vld [vmem:[%s0 + $0x4d8] sm:$0xf]
  %v326 = vld [vmem:[%s0 + $0x4dc] sm:$0xf]
  %v327 = vld [vmem:[%s0 + $0x4e0] sm:$0xf]
  %v328 = vld [vmem:[%s0 + $0x4e4] sm:$0xf]
  %v329 = vld [vmem:[%s0 + $0x4e8] sm:$0xf]
  %v330 = vld [vmem:[%s0 + $0x4ec] sm:$0xf]
  %v331 = vld [vmem:[%s0 + $0x4f0] sm:$0xf]
  %v332 = vld [vmem:[%s0 + $0x4f4] sm:$0xf]
  %v333 = vld [vmem:[%s0 + $0x4f8] sm:$0xf]
  %v334 = vld [vmem:[%s0 + $0x4fc] sm:$0xf]
  %v335 = vld [vmem:[%s0 + $0x500] sm:$0xf]
  %v336 = vld [vmem:[%s0 + $0x504] sm:$0xf]
  %v337 = vld [vmem:[%s0 + $0x508] sm:$0xf]
  %v338 = vld [vmem:[%s0 + $0x50c] sm:$0xf]
  %v339 = vld [vmem:[%s0 + $0x510] sm:$0xf]
  %v340 = vld [vmem:[%s0 + $0x514] sm:$0xf]
  %v341 = vld [vmem:[%s0 + $0x518] sm:$0xf]
  %v342 = vld [vmem:[%s0 + $0x51c] sm:$0xf]
  %v343 = vld [vmem:[%s0 + $0x520] sm:$0xf]
  %v344 = vld [vmem:[%s0 + $0x524] sm:$0xf]
  %v345 = vld [vmem:[%s0 + $0x528] sm:$0xf]
  %v346 = vld [vmem:[%s0 + $0x52c] sm:$0xf]
  %v347 = vld [vmem:[%s0 + $0x530] sm:$0xf]
  %v348 = vld [vmem:[%s0 + $0x534] sm:$0xf]
  %v349 = vld [vmem:[%s0 + $0x538] sm:$0xf]
  %v350 = vld [vmem:[%s0 + $0x53c] sm:$0xf]
  %v351 = vld [vmem:[%s0 + $0x540] sm:$0xf]
  %v352 = vld [vmem:[%s0 + $0x544] sm:$0xf]
  %v353 = vld [vmem:[%s0 + $0x548] sm:$0xf]
  %v354 = vld [vmem:[%s0 + $0x54c] sm:$0xf]
  %v355 = vld [vmem:[%s0 + $0x550] sm:$0xf]
  %v356 = vld [vmem:[%s0 + $0x554] sm:$0xf]
  %v357 = vld [vmem:[%s0 + $0x558] sm:$0xf]
  %v358 = vld [vmem:[%s0 + $0x55c] sm:$0xf]
  %v359 = vld [vmem:[%s0 + $0x560] sm:$0xf]
  %v360 = vld [vmem:[%s0 + $0x564] sm:$0xf]
  %v361 = vld [vmem:[%s0 + $0x568] sm:$0xf]
  %v362 = vld [vmem:[%s0 + $0x56c] sm:$0xf]
  %v363 = vld [vmem:[%s0 + $0x570] sm:$0xf]
  %v364 = vld [vmem:[%s0 + $0x574] sm:$0xf]
  %v365 = vld [vmem:[%s0 + $0x578] sm:$0xf]
  %v366 = vld [vmem:[%s0 + $0x57c] sm:$0xf]
  %v367 = vld [vmem:[%s0 + $0x580] sm:$0xf]
  %v368 = vld [vmem:[%s0 + $0x584] sm:$0xf]
  %v369 = vld [vmem:[%s0 + $0x588] sm:$0xf]
  %v370 = vld [vmem:[%s0 + $0x58c] sm:$0xf]
  %v371 = vld [vmem:[%s0 + $0x590] sm:$0xf]
  %v372 = vld [vmem:[%s0 + $0x594] sm:$0xf]
  %v373 = vld [vmem:[%s0 + $0x598] sm:$0xf]
  %v374 = vld [vmem:[%s0 + $0x59c] sm:$0xf]
  %v375 = vld [vmem:[%s0 + $0x5a0] sm:$0xf]
  %v376 = vld [vmem:[%s0 + $0x5a4] sm:$0xf]
  %v377 = vld [vmem:[%s0 + $0x5a8] sm:$0xf]
  %v378 = vld [vmem:[%s0 + $0x5ac] sm:$0xf]
  %v379 = vld [vmem:[%s0 + $0x5b0] sm:$0xf]
  %v380 = vld [vmem:[%s0 + $0x5b4] sm:$0xf]
  %v381 = vld [vmem:[%s0 + $0x5b8] sm:$0xf]
  %v382 = vld [vmem:[%s0 + $0x5bc] sm:$0xf]
  %v383 = vld [vmem:[%s0 + $0x5c0] sm:$0xf]
  %v384 = vld [vmem:[%s0 + $0x5c4] sm:$0xf]
  %v385 = vld [vmem:[%s0 + $0x5c8] sm:$0xf]
  %v386 = vld [vmem:[%s0 + $0x5cc] sm:$0xf]
  %v387 = vld [vmem:[%s0 + $0x5d0] sm:$0xf]
  %v388 = vld [vmem:[%s0 + $0x5d4] sm:$0xf]
  %v389 = vld [vmem:[%s0 + $0x5d8] sm:$0xf]
  %v390 = vld [vmem:[%s0 + $0x5dc] sm:$0xf]
  %v391 = vld [vmem:[%s0 + $0x5e0] sm:$0xf]
  %v392 = vld [vmem:[%s0 + $0x5e4] sm:$0xf]
  %v393 = vld [vmem:[%s0 + $0x5e8] sm:$0xf]
  %v394 = vld [vmem:[%s0 + $0x5ec] sm:$0xf]
  %v395 = vld [vmem:[%s0 + $0x5f0] sm:$0xf]
  %v396 = vld [vmem:[%s0 + $0x5f4] sm:$0xf]
  %v397 = vld [vmem:[%s0 + $0x5f8] sm:$0xf]
  %v398 = vld [vmem:[%s0 + $0x5fc] sm:$0xf]
  %v399 = vld [vmem:[%s0 + $0x600] sm:$0xf]
  %v400 = vld [vmem:[%s0 + $0x604] sm:$0xf]
  %v401 = vld [vmem:[%s0 + $0x608] sm:$0xf]
  %v402 = vld [vmem:[%s0 + $0x60c] sm:$0xf]
  %v403 = vld [vmem:[%s0 + $0x610] sm:$0xf]
  %v404 = vld [vmem:[%s0 + $0x614] sm:$0xf]
  %v405 = vld [vmem:[%s0 + $0x618] sm:$0xf]
  %v406 = vld [vmem:[%s0 + $0x61c] sm:$0xf]
  %v407 = vld [vmem:[%s0 + $0x620] sm:$0xf]
  %v408 = vld [vmem:[%s0 + $0x624] sm:$0xf]
  %v409 = vld [vmem:[%s0 + $0x628] sm:$0xf]
  %v410 = vld [vmem:[%s0 + $0x62c] sm:$0xf]
  %v411 = vld [vmem:[%s0 + $0x630] sm:$0xf]
  %v412 = vld [vmem:[%s0 + $0x634] sm:$0xf]
  %v413 = vld [vmem:[%s0 + $0x638] sm:$0xf]
  %v414 = vld [vmem:[%s0 + $0x63c] sm:$0xf]
  %v415 = vld [vmem:[%s0 + $0x640] sm:$0xf]
  %v416 = vld [vmem:[%s0 + $0x644] sm:$0xf]
  %v417 = vld [vmem:[%s0 + $0x648] sm:$0xf]
  %v418 = vld [vmem:[%s0 + $0x64c] sm:$0xf]
  %v419 = vld [vmem:[%s0 + $0x650] sm:$0xf]
  %v420 = vld [vmem:[%s0 + $0x654] sm:$0xf]
  %v421 = vld [vmem:[%s0 + $0x658] sm:$0xf]
  %v422 = vld [vmem:[%s0 + $0x65c] sm:$0xf]
  %v423 = vld [vmem:[%s0 + $0x660] sm:$0xf]
  %v424 = vld [vmem:[%s0 + $0x664] sm:$0xf]
  %v425 = vld [vmem:[%s0 + $0x668] sm:$0xf]
  %v426 = vld [vmem:[%s0 + $0x66c] sm:$0xf]
  %v427 = vld [vmem:[%s0 + $0x670] sm:$0xf]
  %v428 = vld [vmem:[%s0 + $0x674] sm:$0xf]
  %v429 = vld [vmem:[%s0 + $0x678] sm:$0xf]
  %v430 = vld [vmem:[%s0 + $0x67c] sm:$0xf]
  %v431 = vld [vmem:[%s0 + $0x680] sm:$0xf]
  %v432 = vld [vmem:[%s0 + $0x684] sm:$0xf]
  %v433 = vld [vmem:[%s0 + $0x688] sm:$0xf]
  %v434 = vld [vmem:[%s0 + $0x68c] sm:$0xf]
  %v435 = vld [vmem:[%s0 + $0x690] sm:$0xf]
  %v436 = vld [vmem:[%s0 + $0x694] sm:$0xf]
  %v437 = vld [vmem:[%s0 + $0x698] sm:$0xf]
  %v438 = vld [vmem:[%s0 + $0x69c] sm:$0xf]
  %v439 = vld [vmem:[%s0 + $0x6a0] sm:$0xf]
  %v440 = vld [vmem:[%s0 + $0x6a4] sm:$0xf]
  %v441 = vld [vmem:[%s0 + $0x6a8] sm:$0xf]
  %v442 = vld [vmem:[%s0 + $0x6ac] sm:$0xf]
  %v443 = vld [vmem:[%s0 + $0x6b0] sm:$0xf]
  %v444 = vld [vmem:[%s0 + $0x6b4] sm:$0xf]
  %v445 = vld [vmem:[%s0 + $0x6b8] sm:$0xf]
  %v446 = vld [vmem:[%s0 + $0x6bc] sm:$0xf]
  %v447 = vld [vmem:[%s0 + $0x6c0] sm:$0xf]
  %v448 = vld [vmem:[%s0 + $0x6c4] sm:$0xf]
  %v449 = vld [vmem:[%s0 + $0x6c8] sm:$0xf]
  %v450 = vld [vmem:[%s0 + $0x6cc] sm:$0xf]
  %v451 = vld [vmem:[%s0 + $0x6d0] sm:$0xf]
  %v452 = vld [vmem:[%s0 + $0x6d4] sm:$0xf]
  %v453 = vld [vmem:[%s0 + $0x6d8] sm:$0xf]
  %v454 = vld [vmem:[%s0 + $0x6dc] sm:$0xf]
  %v455 = vld [vmem:[%s0 + $0x6e0] sm:$0xf]
  %v456 = vld [vmem:[%s0 + $0x6e4] sm:$0xf]
  %v457 = vld [vmem:[%s0 + $0x6e8] sm:$0xf]
  %v458 = vld [vmem:[%s0 + $0x6ec] sm:$0xf]
  %v459 = vld [vmem:[%s0 + $0x6f0] sm:$0xf]
  %v460 = vld [vmem:[%s0 + $0x6f4] sm:$0xf]
  %v461 = vld [vmem:[%s0 + $0x6f8] sm:$0xf]
  %v462 = vld [vmem:[%s0 + $0x6fc] sm:$0xf]
  %v463 = vld [vmem:[%s0 + $0x700] sm:$0xf]
  %v464 = vld [vmem:[%s0 + $0x704] sm:$0xf]
  %v465 = vld [vmem:[%s0 + $0x708] sm:$0xf]
  %v466 = vld [vmem:[%s0 + $0x70c] sm:$0xf]
  %v467 = vld [vmem:[%s0 + $0x710] sm:$0xf]
  %v468 = vld [vmem:[%s0 + $0x714] sm:$0xf]
  %v469 = vld [vmem:[%s0 + $0x718] sm:$0xf]
  %v470 = vld [vmem:[%s0 + $0x71c] sm:$0xf]
  %v471 = vld [vmem:[%s0 + $0x720] sm:$0xf]
  %v472 = vld [vmem:[%s0 + $0x724] sm:$0xf]
  %v473 = vld [vmem:[%s0 + $0x728] sm:$0xf]
  %v474 = vld [vmem:[%s0 + $0x72c] sm:$0xf]
  %v475 = vld [vmem:[%s0 + $0x730] sm:$0xf]
  %v476 = vld [vmem:[%s0 + $0x734] sm:$0xf]
  %v477 = vld [vmem:[%s0 + $0x738] sm:$0xf]
  %v478 = vld [vmem:[%s0 + $0x73c] sm:$0xf]
  %v479 = vld [vmem:[%s0 + $0x740] sm:$0xf]
  %v480 = vld [vmem:[%s0 + $0x744] sm:$0xf]
  %v481 = vld [vmem:[%s0 + $0x748] sm:$0xf]
  %v482 = vld [vmem:[%s0 + $0x74c] sm:$0xf]
  %v483 = vld [vmem:[%s0 + $0x750] sm:$0xf]
  %v484 = vld [vmem:[%s0 + $0x754] sm:$0xf]
  %v485 = vld [vmem:[%s0 + $0x758] sm:$0xf]
  %v486 = vld [vmem:[%s0 + $0x75c] sm:$0xf]
  %v487 = vld [vmem:[%s0 + $0x760] sm:$0xf]
  %v488 = vld [vmem:[%s0 + $0x764] sm:$0xf]
  %v489 = vld [vmem:[%s0 + $0x768] sm:$0xf]
  %v490 = vld [vmem:[%s0 + $0x76c] sm:$0xf]
  %v491 = vld [vmem:[%s0 + $0x770] sm:$0xf]
  %v492 = vld [vmem:[%s0 + $0x774] sm:$0xf]
  %v493 = vld [vmem:[%s0 + $0x778] sm:$0xf]
  %v494 = vld [vmem:[%s0 + $0x77c] sm:$0xf]
  %v495 = vld [vmem:[%s0 + $0x780] sm:$0xf]
  %v496 = vld [vmem:[%s0 + $0x784] sm:$0xf]
  %v497 = vld [vmem:[%s0 + $0x788] sm:$0xf]
  %v498 = vld [vmem:[%s0 + $0x78c] sm:$0xf]
  %v499 = vld [vmem:[%s0 + $0x790] sm:$0xf]
  %v500 = vld [vmem:[%s0 + $0x794] sm:$0xf]
  %v501 = vld [vmem:[%s0 + $0x798] sm:$0xf]
  %v502 = vld [vmem:[%s0 + $0x79c] sm:$0xf]
  %v503 = vld [vmem:[%s0 + $0x7a0] sm:$0xf]
  %v504 = vld [vmem:[%s0 + $0x7a4] sm:$0xf]
  %v505 = vld [vmem:[%s0 + $0x7a8] sm:$0xf]
  %v506 = vld [vmem:[%s0 + $0x7ac] sm:$0xf]
  %v507 = vld [vmem:[%s0 + $0x7b0] sm:$0xf]
  %v508 = vld [vmem:[%s0 + $0x7b4] sm:$0xf]
  %v509 = vld [vmem:[%s0 + $0x7b8] sm:$0xf]
  %v510 = vld [vmem:[%s0 + $0x7bc] sm:$0xf]
  %v511 = vld [vmem:[%s0 + $0x7c0] sm:$0xf]
  %v512 = vld [vmem:[%s0 + $0x7c4] sm:$0xf]
  %v513 = vld [vmem:[%s0 + $0x7c8] sm:$0xf]
  %v514 = vld [vmem:[%s0 + $0x7cc] sm:$0xf]
  %v515 = vld [vmem:[%s0 + $0x7d0] sm:$0xf]
  %v516 = vld [vmem:[%s0 + $0x7d4] sm:$0xf]
  %v517 = vld [vmem:[%s0 + $0x7d8] sm:$0xf]
  %v518 = vld [vmem:[%s0 + $0x7dc] sm:$0xf]
  %v519 = vld [vmem:[%s0 + $0x7e0] sm:$0xf]
  %v520 = vld [vmem:[%s0 + $0x7e4] sm:$0xf]
  %v521 = vld [vmem:[%s0 + $0x7e8] sm:$0xf]
  %v522 = vld [vmem:[%s0 + $0x7ec] sm:$0xf]
  %v523 = vld [vmem:[%s0 + $0x7f0] sm:$0xf]
  %v524 = vld [vmem:[%s0 + $0x7f4] sm:$0xf]
  %v525 = vld [vmem:[%s0 + $0x7f8] sm:$0xf]
  %v526 = vld [vmem:[%s0 + $0x7fc] sm:$0xf]
  %v527 = vld [vmem:[%s0 + $0x800] sm:$0xf]
  %v528 = vld [vmem:[%s0 + $0x804] sm:$0xf]
  %v529 = vld [vmem:[%s0 + $0x808] sm:$0xf]
  %v530 = vld [vmem:[%s0 + $0x80c] sm:$0xf]
  %v531 = vld [vmem:[%s0 + $0x810] sm:$0xf]
  %v532 = vld [vmem:[%s0 + $0x814] sm:$0xf]
  %v533 = vld [vmem:[%s0 + $0x818] sm:$0xf]
  %v534 = vld [vmem:[%s0 + $0x81c] sm:$0xf]
  %v535 = vld [vmem:[%s0 + $0x820] sm:$0xf]
  %v536 = vld [vmem:[%s0 + $0x824] sm:$0xf]
  %v537 = vld [vmem:[%s0 + $0x828] sm:$0xf]
  %v538 = vld [vmem:[%s0 + $0x82c] sm:$0xf]
  %v539 = vld [vmem:[%s0 + $0x830] sm:$0xf]
  %v540 = vld [vmem:[%s0 + $0x834] sm:$0xf]
  %v541 = vld [vmem:[%s0 + $0x838] sm:$0xf]
  %v542 = vld [vmem:[%s0 + $0x83c] sm:$0xf]
  %v543 = vld [vmem:[%s0 + $0x840] sm:$0xf]
  %v544 = vld [vmem:[%s0 + $0x844] sm:$0xf]
  %v545 = vld [vmem:[%s0 + $0x848] sm:$0xf]
  %v546 = vld [vmem:[%s0 + $0x84c] sm:$0xf]
  %v547 = vld [vmem:[%s0 + $0x850] sm:$0xf]
  %v548 = vld [vmem:[%s0 + $0x854] sm:$0xf]
  %v549 = vld [vmem:[%s0 + $0x858] sm:$0xf]
  %v550 = vld [vmem:[%s0 + $0x85c] sm:$0xf]
  %v551 = vld [vmem:[%s0 + $0x860] sm:$0xf]
  %v552 = vld [vmem:[%s0 + $0x864] sm:$0xf]
  %v553 = vld [vmem:[%s0 + $0x868] sm:$0xf]
  %v554 = vld [vmem:[%s0 + $0x86c] sm:$0xf]
  %v555 = vld [vmem:[%s0 + $0x870] sm:$0xf]
  %v556 = vld [vmem:[%s0 + $0x874] sm:$0xf]
  %v557 = vld [vmem:[%s0 + $0x878] sm:$0xf]
  %v558 = vld [vmem:[%s0 + $0x87c] sm:$0xf]
  %v559 = vld [vmem:[%s0 + $0x880] sm:$0xf]
  %v560 = vld [vmem:[%s0 + $0x884] sm:$0xf]
  %v561 = vld [vmem:[%s0 + $0x888] sm:$0xf]
  %v562 = vld [vmem:[%s0 + $0x88c] sm:$0xf]
  %v563 = vld [vmem:[%s0 + $0x890] sm:$0xf]
  %v564 = vld [vmem:[%s0 + $0x894] sm:$0xf]
  %v565 = vld [vmem:[%s0 + $0x898] sm:$0xf]
  %v566 = vld [vmem:[%s0 + $0x89c] sm:$0xf]
  %v567 = vld [vmem:[%s0 + $0x8a0] sm:$0x1]
  %v568 = vld [vmem:[%s1] sm:$0xf]
  %v569 = vld [vmem:[%s1 + $0x4] sm:$0xf]
  %v570 = vld [vmem:[%s1 + $0x8] sm:$0xf]
  %v571 = vld [vmem:[%s1 + $0xc] sm:$0xf]
  %v572 = vld [vmem:[%s1 + $0x10] sm:$0xf]
  %v573 = vld [vmem:[%s1 + $0x14] sm:$0xf]
  %v574 = vld [vmem:[%s1 + $0x18] sm:$0xf]
  %v575 = vld [vmem:[%s1 + $0x1c] sm:$0xf]
  %v576 = vld [vmem:[%s2] sm:$0x1]
  %v578 = vperm.slane %v576, 0
  %v1133 = vunpack.c.l.b16 %v15
  %v1134 = vunpack.c.l.b16 %v16
  %v1135 = vunpack.c.l.b16 %v17
  %v1136 = vunpack.c.l.b16 %v18
  %v1137 = vunpack.c.l.b16 %v19
  %v1138 = vunpack.c.l.b16 %v20
  %v1139 = vunpack.c.l.b16 %v21
  %v1140 = vunpack.c.l.b16 %v22
  %v1141 = vunpack.c.l.b16 %v23
  %v1142 = vunpack.c.l.b16 %v24
  %v1143 = vunpack.c.l.b16 %v25
  %v1144 = vunpack.c.l.b16 %v26
  %v1145 = vunpack.c.l.b16 %v27
  %v1146 = vunpack.c.l.b16 %v28
  %v1147 = vunpack.c.l.b16 %v29
  %v1148 = vunpack.c.l.b16 %v30
  %v1149 = vunpack.c.l.b16 %v31
  %v1150 = vunpack.c.l.b16 %v32
  %v1151 = vunpack.c.l.b16 %v33
  %v1152 = vunpack.c.l.b16 %v34
  %v1153 = vunpack.c.l.b16 %v35
  %v1154 = vunpack.c.l.b16 %v36
  %v1155 = vunpack.c.l.b16 %v37
  %v1156 = vunpack.c.l.b16 %v38
  %v1157 = vunpack.c.l.b16 %v39
  %v1158 = vunpack.c.l.b16 %v40
  %v1159 = vunpack.c.l.b16 %v41
  %v1160 = vunpack.c.l.b16 %v42
  %v1161 = vunpack.c.l.b16 %v43
  %v1162 = vunpack.c.l.b16 %v44
  %v1163 = vunpack.c.l.b16 %v45
  %v1164 = vunpack.c.l.b16 %v46
  %v1165 = vunpack.c.l.b16 %v47
  %v1166 = vunpack.c.l.b16 %v48
  %v1167 = vunpack.c.l.b16 %v49
  %v1168 = vunpack.c.l.b16 %v50
  %v1169 = vunpack.c.l.b16 %v51
  %v1170 = vunpack.c.l.b16 %v52
  %v1171 = vunpack.c.l.b16 %v53
  %v1172 = vunpack.c.l.b16 %v54
  %v1173 = vunpack.c.l.b16 %v55
  %v1174 = vunpack.c.l.b16 %v56
  %v1175 = vunpack.c.l.b16 %v57
  %v1176 = vunpack.c.l.b16 %v58
  %v1177 = vunpack.c.l.b16 %v59
  %v1178 = vunpack.c.l.b16 %v60
  %v1179 = vunpack.c.l.b16 %v61
  %v1180 = vunpack.c.l.b16 %v62
  %v1181 = vunpack.c.l.b16 %v63
  %v1182 = vunpack.c.l.b16 %v64
  %v1183 = vunpack.c.l.b16 %v65
  %v1184 = vunpack.c.l.b16 %v66
  %v1185 = vunpack.c.l.b16 %v67
  %v1186 = vunpack.c.l.b16 %v68
  %v1187 = vunpack.c.l.b16 %v69
  %v1188 = vunpack.c.l.b16 %v70
  %v1189 = vunpack.c.l.b16 %v71
  %v1190 = vunpack.c.l.b16 %v72
  %v1191 = vunpack.c.l.b16 %v73
  %v1192 = vunpack.c.l.b16 %v74
  %v1193 = vunpack.c.l.b16 %v75
  %v1194 = vunpack.c.l.b16 %v76
  %v1195 = vunpack.c.l.b16 %v77
  %v1196 = vunpack.c.l.b16 %v78
  %v1197 = vunpack.c.l.b16 %v79
  %v1198 = vunpack.c.l.b16 %v80
  %v1199 = vunpack.c.l.b16 %v81
  %v1200 = vunpack.c.l.b16 %v82
  %v1201 = vunpack.c.l.b16 %v83
  %v1202 = vunpack.c.l.b16 %v84
  %v1203 = vunpack.c.l.b16 %v85
  %v1204 = vunpack.c.l.b16 %v86
  %v1205 = vunpack.c.l.b16 %v87
  %v1206 = vunpack.c.l.b16 %v88
  %v1207 = vunpack.c.l.b16 %v89
  %v1208 = vunpack.c.l.b16 %v90
  %v1209 = vunpack.c.l.b16 %v91
  %v1210 = vunpack.c.l.b16 %v92
  %v1211 = vunpack.c.l.b16 %v93
  %v1212 = vunpack.c.l.b16 %v94
  %v1213 = vunpack.c.l.b16 %v95
  %v1214 = vunpack.c.l.b16 %v96
  %v1215 = vunpack.c.l.b16 %v97
  %v1216 = vunpack.c.l.b16 %v98
  %v1217 = vunpack.c.l.b16 %v99
  %v1218 = vunpack.c.l.b16 %v100
  %v1219 = vunpack.c.l.b16 %v101
  %v1220 = vunpack.c.l.b16 %v102
  %v1221 = vunpack.c.l.b16 %v103
  %v1222 = vunpack.c.l.b16 %v104
  %v1223 = vunpack.c.l.b16 %v105
  %v1224 = vunpack.c.l.b16 %v106
  %v1225 = vunpack.c.l.b16 %v107
  %v1226 = vunpack.c.l.b16 %v108
  %v1227 = vunpack.c.l.b16 %v109
  %v1228 = vunpack.c.l.b16 %v110
  %v1229 = vunpack.c.l.b16 %v111
  %v1230 = vunpack.c.l.b16 %v112
  %v1231 = vunpack.c.l.b16 %v113
  %v1232 = vunpack.c.l.b16 %v114
  %v1233 = vunpack.c.l.b16 %v115
  %v1234 = vunpack.c.l.b16 %v116
  %v1235 = vunpack.c.l.b16 %v117
  %v1236 = vunpack.c.l.b16 %v118
  %v1237 = vunpack.c.l.b16 %v119
  %v1238 = vunpack.c.l.b16 %v120
  %v1239 = vunpack.c.l.b16 %v121
  %v1240 = vunpack.c.l.b16 %v122
  %v1241 = vunpack.c.l.b16 %v123
  %v1242 = vunpack.c.l.b16 %v124
  %v1243 = vunpack.c.l.b16 %v125
  %v1244 = vunpack.c.l.b16 %v126
  %v1245 = vunpack.c.l.b16 %v127
  %v1246 = vunpack.c.l.b16 %v128
  %v1247 = vunpack.c.l.b16 %v129
  %v1248 = vunpack.c.l.b16 %v130
  %v1249 = vunpack.c.l.b16 %v131
  %v1250 = vunpack.c.l.b16 %v132
  %v1251 = vunpack.c.l.b16 %v133
  %v1252 = vunpack.c.l.b16 %v134
  %v1253 = vunpack.c.l.b16 %v135
  %v1254 = vunpack.c.l.b16 %v136
  %v1255 = vunpack.c.l.b16 %v137
  %v1256 = vunpack.c.l.b16 %v138
  %v1257 = vunpack.c.l.b16 %v139
  %v1258 = vunpack.c.l.b16 %v140
  %v1259 = vunpack.c.l.b16 %v141
  %v1260 = vunpack.c.l.b16 %v142
  %v1261 = vunpack.c.l.b16 %v143
  %v1262 = vunpack.c.l.b16 %v144
  %v1263 = vunpack.c.l.b16 %v145
  %v1264 = vunpack.c.l.b16 %v146
  %v1265 = vunpack.c.l.b16 %v147
  %v1266 = vunpack.c.l.b16 %v148
  %v1267 = vunpack.c.l.b16 %v149
  %v1268 = vunpack.c.l.b16 %v150
  %v1269 = vunpack.c.l.b16 %v151
  %v1270 = vunpack.c.l.b16 %v152
  %v1271 = vunpack.c.l.b16 %v153
  %v1272 = vunpack.c.l.b16 %v154
  %v1273 = vunpack.c.l.b16 %v155
  %v1274 = vunpack.c.l.b16 %v156
  %v1275 = vunpack.c.l.b16 %v157
  %v1276 = vunpack.c.l.b16 %v158
  %v1277 = vunpack.c.l.b16 %v159
  %v1278 = vunpack.c.l.b16 %v160
  %v1279 = vunpack.c.l.b16 %v161
  %v1280 = vunpack.c.l.b16 %v162
  %v1281 = vunpack.c.l.b16 %v163
  %v1282 = vunpack.c.l.b16 %v164
  %v1283 = vunpack.c.l.b16 %v165
  %v1284 = vunpack.c.l.b16 %v166
  %v1285 = vunpack.c.l.b16 %v167
  %v1286 = vunpack.c.l.b16 %v168
  %v1287 = vunpack.c.l.b16 %v169
  %v1288 = vunpack.c.l.b16 %v170
  %v1289 = vunpack.c.l.b16 %v171
  %v1290 = vunpack.c.l.b16 %v172
  %v1291 = vunpack.c.l.b16 %v173
  %v1292 = vunpack.c.l.b16 %v174
  %v1293 = vunpack.c.l.b16 %v175
  %v1294 = vunpack.c.l.b16 %v176
  %v1295 = vunpack.c.l.b16 %v177
  %v1296 = vunpack.c.l.b16 %v178
  %v1297 = vunpack.c.l.b16 %v179
  %v1298 = vunpack.c.l.b16 %v180
  %v1299 = vunpack.c.l.b16 %v181
  %v1300 = vunpack.c.l.b16 %v182
  %v1301 = vunpack.c.l.b16 %v183
  %v1302 = vunpack.c.l.b16 %v184
  %v1303 = vunpack.c.l.b16 %v185
  %v1304 = vunpack.c.l.b16 %v186
  %v1305 = vunpack.c.l.b16 %v187
  %v1306 = vunpack.c.l.b16 %v188
  %v1307 = vunpack.c.l.b16 %v189
  %v1308 = vunpack.c.l.b16 %v190
  %v1309 = vunpack.c.l.b16 %v191
  %v1310 = vunpack.c.l.b16 %v192
  %v1311 = vunpack.c.l.b16 %v193
  %v1312 = vunpack.c.l.b16 %v194
  %v1313 = vunpack.c.l.b16 %v195
  %v1314 = vunpack.c.l.b16 %v196
  %v1315 = vunpack.c.l.b16 %v197
  %v1316 = vunpack.c.l.b16 %v198
  %v1317 = vunpack.c.l.b16 %v199
  %v1318 = vunpack.c.l.b16 %v200
  %v1319 = vunpack.c.l.b16 %v201
  %v1320 = vunpack.c.l.b16 %v202
  %v1321 = vunpack.c.l.b16 %v203
  %v1322 = vunpack.c.l.b16 %v204
  %v1323 = vunpack.c.l.b16 %v205
  %v1324 = vunpack.c.l.b16 %v206
  %v1325 = vunpack.c.l.b16 %v207
  %v1326 = vunpack.c.l.b16 %v208
  %v1327 = vunpack.c.l.b16 %v209
  %v1328 = vunpack.c.l.b16 %v210
  %v1329 = vunpack.c.l.b16 %v211
  %v1330 = vunpack.c.l.b16 %v212
  %v1331 = vunpack.c.l.b16 %v213
  %v1332 = vunpack.c.l.b16 %v214
  %v1333 = vunpack.c.l.b16 %v215
  %v1334 = vunpack.c.l.b16 %v216
  %v1335 = vunpack.c.l.b16 %v217
  %v1336 = vunpack.c.l.b16 %v218
  %v1337 = vunpack.c.l.b16 %v219
  %v1338 = vunpack.c.l.b16 %v220
  %v1339 = vunpack.c.l.b16 %v221
  %v1340 = vunpack.c.l.b16 %v222
  %v1341 = vunpack.c.l.b16 %v223
  %v1342 = vunpack.c.l.b16 %v224
  %v1343 = vunpack.c.l.b16 %v225
  %v1344 = vunpack.c.l.b16 %v226
  %v1345 = vunpack.c.l.b16 %v227
  %v1346 = vunpack.c.l.b16 %v228
  %v1347 = vunpack.c.l.b16 %v229
  %v1348 = vunpack.c.l.b16 %v230
  %v1349 = vunpack.c.l.b16 %v231
  %v1350 = vunpack.c.l.b16 %v232
  %v1351 = vunpack.c.l.b16 %v233
  %v1352 = vunpack.c.l.b16 %v234
  %v1353 = vunpack.c.l.b16 %v235
  %v1354 = vunpack.c.l.b16 %v236
  %v1355 = vunpack.c.l.b16 %v237
  %v1356 = vunpack.c.l.b16 %v238
  %v1357 = vunpack.c.l.b16 %v239
  %v1358 = vunpack.c.l.b16 %v240
  %v1359 = vunpack.c.l.b16 %v241
  %v1360 = vunpack.c.l.b16 %v242
  %v1361 = vunpack.c.l.b16 %v243
  %v1362 = vunpack.c.l.b16 %v244
  %v1363 = vunpack.c.l.b16 %v245
  %v1364 = vunpack.c.l.b16 %v246
  %v1365 = vunpack.c.l.b16 %v247
  %v1366 = vunpack.c.l.b16 %v248
  %v1367 = vunpack.c.l.b16 %v249
  %v1368 = vunpack.c.l.b16 %v250
  %v1369 = vunpack.c.l.b16 %v251
  %v1370 = vunpack.c.l.b16 %v252
  %v1371 = vunpack.c.l.b16 %v253
  %v1372 = vunpack.c.l.b16 %v254
  %v1373 = vunpack.c.l.b16 %v255
  %v1374 = vunpack.c.l.b16 %v256
  %v1375 = vunpack.c.l.b16 %v257
  %v1376 = vunpack.c.l.b16 %v258
  %v1377 = vunpack.c.l.b16 %v259
  %v1378 = vunpack.c.l.b16 %v260
  %v1379 = vunpack.c.l.b16 %v261
  %v1380 = vunpack.c.l.b16 %v262
  %v1381 = vunpack.c.l.b16 %v263
  %v1382 = vunpack.c.l.b16 %v264
  %v1383 = vunpack.c.l.b16 %v265
  %v1384 = vunpack.c.l.b16 %v266
  %v1385 = vunpack.c.l.b16 %v267
  %v1386 = vunpack.c.l.b16 %v268
  %v1387 = vunpack.c.l.b16 %v269
  %v1388 = vunpack.c.l.b16 %v270
  %v1389 = vunpack.c.l.b16 %v271
  %v1390 = vunpack.c.l.b16 %v272
  %v1391 = vunpack.c.l.b16 %v273
  %v1392 = vunpack.c.l.b16 %v274
  %v1393 = vunpack.c.l.b16 %v275
  %v1394 = vunpack.c.l.b16 %v276
  %v1395 = vunpack.c.l.b16 %v277
  %v1396 = vunpack.c.l.b16 %v278
  %v1397 = vunpack.c.l.b16 %v279
  %v1398 = vunpack.c.l.b16 %v280
  %v1399 = vunpack.c.l.b16 %v281
  %v1400 = vunpack.c.l.b16 %v282
  %v1401 = vunpack.c.l.b16 %v283
  %v1402 = vunpack.c.l.b16 %v284
  %v1403 = vunpack.c.l.b16 %v285
  %v1404 = vunpack.c.l.b16 %v286
  %v1405 = vunpack.c.l.b16 %v287
  %v1406 = vunpack.c.l.b16 %v288
  %v1407 = vunpack.c.l.b16 %v289
  %v1408 = vunpack.c.l.b16 %v290
  %v1409 = vunpack.c.l.b16 %v291
  %v1410 = vunpack.c.l.b16 %v292
  %v1411 = vunpack.c.l.b16 %v293
  %v1412 = vunpack.c.l.b16 %v294
  %v1413 = vunpack.c.l.b16 %v295
  %v1414 = vunpack.c.l.b16 %v296
  %v1415 = vunpack.c.l.b16 %v297
  %v1416 = vunpack.c.l.b16 %v298
  %v1417 = vunpack.c.l.b16 %v299
  %v1418 = vunpack.c.l.b16 %v300
  %v1419 = vunpack.c.l.b16 %v301
  %v1420 = vunpack.c.l.b16 %v302
  %v1421 = vunpack.c.l.b16 %v303
  %v1422 = vunpack.c.l.b16 %v304
  %v1423 = vunpack.c.l.b16 %v305
  %v1424 = vunpack.c.l.b16 %v306
  %v1425 = vunpack.c.l.b16 %v307
  %v1426 = vunpack.c.l.b16 %v308
  %v1427 = vunpack.c.l.b16 %v309
  %v1428 = vunpack.c.l.b16 %v310
  %v1429 = vunpack.c.l.b16 %v311
  %v1430 = vunpack.c.l.b16 %v312
  %v1431 = vunpack.c.l.b16 %v313
  %v1432 = vunpack.c.l.b16 %v314
  %v1433 = vunpack.c.l.b16 %v315
  %v1434 = vunpack.c.l.b16 %v316
  %v1435 = vunpack.c.l.b16 %v317
  %v1436 = vunpack.c.l.b16 %v318
  %v1437 = vunpack.c.l.b16 %v319
  %v1438 = vunpack.c.l.b16 %v320
  %v1439 = vunpack.c.l.b16 %v321
  %v1440 = vunpack.c.l.b16 %v322
  %v1441 = vunpack.c.l.b16 %v323
  %v1442 = vunpack.c.l.b16 %v324
  %v1443 = vunpack.c.l.b16 %v325
  %v1444 = vunpack.c.l.b16 %v326
  %v1445 = vunpack.c.l.b16 %v327
  %v1446 = vunpack.c.l.b16 %v328
  %v1447 = vunpack.c.l.b16 %v329
  %v1448 = vunpack.c.l.b16 %v330
  %v1449 = vunpack.c.l.b16 %v331
  %v1450 = vunpack.c.l.b16 %v332
  %v1451 = vunpack.c.l.b16 %v333
  %v1452 = vunpack.c.l.b16 %v334
  %v1453 = vunpack.c.l.b16 %v335
  %v1454 = vunpack.c.l.b16 %v336
  %v1455 = vunpack.c.l.b16 %v337
  %v1456 = vunpack.c.l.b16 %v338
  %v1457 = vunpack.c.l.b16 %v339
  %v1458 = vunpack.c.l.b16 %v340
  %v1459 = vunpack.c.l.b16 %v341
  %v1460 = vunpack.c.l.b16 %v342
  %v1461 = vunpack.c.l.b16 %v343
  %v1462 = vunpack.c.l.b16 %v344
  %v1463 = vunpack.c.l.b16 %v345
  %v1464 = vunpack.c.l.b16 %v346
  %v1465 = vunpack.c.l.b16 %v347
  %v1466 = vunpack.c.l.b16 %v348
  %v1467 = vunpack.c.l.b16 %v349
  %v1468 = vunpack.c.l.b16 %v350
  %v1469 = vunpack.c.l.b16 %v351
  %v1470 = vunpack.c.l.b16 %v352
  %v1471 = vunpack.c.l.b16 %v353
  %v1472 = vunpack.c.l.b16 %v354
  %v1473 = vunpack.c.l.b16 %v355
  %v1474 = vunpack.c.l.b16 %v356
  %v1475 = vunpack.c.l.b16 %v357
  %v1476 = vunpack.c.l.b16 %v358
  %v1477 = vunpack.c.l.b16 %v359
  %v1478 = vunpack.c.l.b16 %v360
  %v1479 = vunpack.c.l.b16 %v361
  %v1480 = vunpack.c.l.b16 %v362
  %v1481 = vunpack.c.l.b16 %v363
  %v1482 = vunpack.c.l.b16 %v364
  %v1483 = vunpack.c.l.b16 %v365
  %v1484 = vunpack.c.l.b16 %v366
  %v1485 = vunpack.c.l.b16 %v367
  %v1486 = vunpack.c.l.b16 %v368
  %v1487 = vunpack.c.l.b16 %v369
  %v1488 = vunpack.c.l.b16 %v370
  %v1489 = vunpack.c.l.b16 %v371
  %v1490 = vunpack.c.l.b16 %v372
  %v1491 = vunpack.c.l.b16 %v373
  %v1492 = vunpack.c.l.b16 %v374
  %v1493 = vunpack.c.l.b16 %v375
  %v1494 = vunpack.c.l.b16 %v376
  %v1495 = vunpack.c.l.b16 %v377
  %v1496 = vunpack.c.l.b16 %v378
  %v1497 = vunpack.c.l.b16 %v379
  %v1498 = vunpack.c.l.b16 %v380
  %v1499 = vunpack.c.l.b16 %v381
  %v1500 = vunpack.c.l.b16 %v382
  %v1501 = vunpack.c.l.b16 %v383
  %v1502 = vunpack.c.l.b16 %v384
  %v1503 = vunpack.c.l.b16 %v385
  %v1504 = vunpack.c.l.b16 %v386
  %v1505 = vunpack.c.l.b16 %v387
  %v1506 = vunpack.c.l.b16 %v388
  %v1507 = vunpack.c.l.b16 %v389
  %v1508 = vunpack.c.l.b16 %v390
  %v1509 = vunpack.c.l.b16 %v391
  %v1510 = vunpack.c.l.b16 %v392
  %v1511 = vunpack.c.l.b16 %v393
  %v1512 = vunpack.c.l.b16 %v394
  %v1513 = vunpack.c.l.b16 %v395
  %v1514 = vunpack.c.l.b16 %v396
  %v1515 = vunpack.c.l.b16 %v397
  %v1516 = vunpack.c.l.b16 %v398
  %v1517 = vunpack.c.l.b16 %v399
  %v1518 = vunpack.c.l.b16 %v400
  %v1519 = vunpack.c.l.b16 %v401
  %v1520 = vunpack.c.l.b16 %v402
  %v1521 = vunpack.c.l.b16 %v403
  %v1522 = vunpack.c.l.b16 %v404
  %v1523 = vunpack.c.l.b16 %v405
  %v1524 = vunpack.c.l.b16 %v406
  %v1525 = vunpack.c.l.b16 %v407
  %v1526 = vunpack.c.l.b16 %v408
  %v1527 = vunpack.c.l.b16 %v409
  %v1528 = vunpack.c.l.b16 %v410
  %v1529 = vunpack.c.l.b16 %v411
  %v1530 = vunpack.c.l.b16 %v412
  %v1531 = vunpack.c.l.b16 %v413
  %v1532 = vunpack.c.l.b16 %v414
  %v1533 = vunpack.c.l.b16 %v415
  %v1534 = vunpack.c.l.b16 %v416
  %v1535 = vunpack.c.l.b16 %v417
  %v1536 = vunpack.c.l.b16 %v418
  %v1537 = vunpack.c.l.b16 %v419
  %v1538 = vunpack.c.l.b16 %v420
  %v1539 = vunpack.c.l.b16 %v421
  %v1540 = vunpack.c.l.b16 %v422
  %v1541 = vunpack.c.l.b16 %v423
  %v1542 = vunpack.c.l.b16 %v424
  %v1543 = vunpack.c.l.b16 %v425
  %v1544 = vunpack.c.l.b16 %v426
  %v1545 = vunpack.c.l.b16 %v427
  %v1546 = vunpack.c.l.b16 %v428
  %v1547 = vunpack.c.l.b16 %v429
  %v1548 = vunpack.c.l.b16 %v430
  %v1549 = vunpack.c.l.b16 %v431
  %v1550 = vunpack.c.l.b16 %v432
  %v1551 = vunpack.c.l.b16 %v433
  %v1552 = vunpack.c.l.b16 %v434
  %v1553 = vunpack.c.l.b16 %v435
  %v1554 = vunpack.c.l.b16 %v436
  %v1555 = vunpack.c.l.b16 %v437
  %v1556 = vunpack.c.l.b16 %v438
  %v1557 = vunpack.c.l.b16 %v439
  %v1558 = vunpack.c.l.b16 %v440
  %v1559 = vunpack.c.l.b16 %v441
  %v1560 = vunpack.c.l.b16 %v442
  %v1561 = vunpack.c.l.b16 %v443
  %v1562 = vunpack.c.l.b16 %v444
  %v1563 = vunpack.c.l.b16 %v445
  %v1564 = vunpack.c.l.b16 %v446
  %v1565 = vunpack.c.l.b16 %v447
  %v1566 = vunpack.c.l.b16 %v448
  %v1567 = vunpack.c.l.b16 %v449
  %v1568 = vunpack.c.l.b16 %v450
  %v1569 = vunpack.c.l.b16 %v451
  %v1570 = vunpack.c.l.b16 %v452
  %v1571 = vunpack.c.l.b16 %v453
  %v1572 = vunpack.c.l.b16 %v454
  %v1573 = vunpack.c.l.b16 %v455
  %v1574 = vunpack.c.l.b16 %v456
  %v1575 = vunpack.c.l.b16 %v457
  %v1576 = vunpack.c.l.b16 %v458
  %v1577 = vunpack.c.l.b16 %v459
  %v1578 = vunpack.c.l.b16 %v460
  %v1579 = vunpack.c.l.b16 %v461
  %v1580 = vunpack.c.l.b16 %v462
  %v1581 = vunpack.c.l.b16 %v463
  %v1582 = vunpack.c.l.b16 %v464
  %v1583 = vunpack.c.l.b16 %v465
  %v1584 = vunpack.c.l.b16 %v466
  %v1585 = vunpack.c.l.b16 %v467
  %v1586 = vunpack.c.l.b16 %v468
  %v1587 = vunpack.c.l.b16 %v469
  %v1588 = vunpack.c.l.b16 %v470
  %v1589 = vunpack.c.l.b16 %v471
  %v1590 = vunpack.c.l.b16 %v472
  %v1591 = vunpack.c.l.b16 %v473
  %v1592 = vunpack.c.l.b16 %v474
  %v1593 = vunpack.c.l.b16 %v475
  %v1594 = vunpack.c.l.b16 %v476
  %v1595 = vunpack.c.l.b16 %v477
  %v1596 = vunpack.c.l.b16 %v478
  %v1597 = vunpack.c.l.b16 %v479
  %v1598 = vunpack.c.l.b16 %v480
  %v1599 = vunpack.c.l.b16 %v481
  %v1600 = vunpack.c.l.b16 %v482
  %v1601 = vunpack.c.l.b16 %v483
  %v1602 = vunpack.c.l.b16 %v484
  %v1603 = vunpack.c.l.b16 %v485
  %v1604 = vunpack.c.l.b16 %v486
  %v1605 = vunpack.c.l.b16 %v487
  %v1606 = vunpack.c.l.b16 %v488
  %v1607 = vunpack.c.l.b16 %v489
  %v1608 = vunpack.c.l.b16 %v490
  %v1609 = vunpack.c.l.b16 %v491
  %v1610 = vunpack.c.l.b16 %v492
  %v1611 = vunpack.c.l.b16 %v493
  %v1612 = vunpack.c.l.b16 %v494
  %v1613 = vunpack.c.l.b16 %v495
  %v1614 = vunpack.c.l.b16 %v496
  %v1615 = vunpack.c.l.b16 %v497
  %v1616 = vunpack.c.l.b16 %v498
  %v1617 = vunpack.c.l.b16 %v499
  %v1618 = vunpack.c.l.b16 %v500
  %v1619 = vunpack.c.l.b16 %v501
  %v1620 = vunpack.c.l.b16 %v502
  %v1621 = vunpack.c.l.b16 %v503
  %v1622 = vunpack.c.l.b16 %v504
  %v1623 = vunpack.c.l.b16 %v505
  %v1624 = vunpack.c.l.b16 %v506
  %v1625 = vunpack.c.l.b16 %v507
  %v1626 = vunpack.c.l.b16 %v508
  %v1627 = vunpack.c.l.b16 %v509
  %v1628 = vunpack.c.l.b16 %v510
  %v1629 = vunpack.c.l.b16 %v511
  %v1630 = vunpack.c.l.b16 %v512
  %v1631 = vunpack.c.l.b16 %v513
  %v1632 = vunpack.c.l.b16 %v514
  %v1633 = vunpack.c.l.b16 %v515
  %v1634 = vunpack.c.l.b16 %v516
  %v1635 = vunpack.c.l.b16 %v517
  %v1636 = vunpack.c.l.b16 %v518
  %v1637 = vunpack.c.l.b16 %v519
  %v1638 = vunpack.c.l.b16 %v520
  %v1639 = vunpack.c.l.b16 %v521
  %v1640 = vunpack.c.l.b16 %v522
  %v1641 = vunpack.c.l.b16 %v523
  %v1642 = vunpack.c.l.b16 %v524
  %v1643 = vunpack.c.l.b16 %v525
  %v1644 = vunpack.c.l.b16 %v526
  %v1645 = vunpack.c.l.b16 %v527
  %v1646 = vunpack.c.l.b16 %v528
  %v1647 = vunpack.c.l.b16 %v529
  %v1648 = vunpack.c.l.b16 %v530
  %v1649 = vunpack.c.l.b16 %v531
  %v1650 = vunpack.c.l.b16 %v532
  %v1651 = vunpack.c.l.b16 %v533
  %v1652 = vunpack.c.l.b16 %v534
  %v1653 = vunpack.c.l.b16 %v535
  %v1654 = vunpack.c.l.b16 %v536
  %v1655 = vunpack.c.l.b16 %v537
  %v1656 = vunpack.c.l.b16 %v538
  %v1657 = vunpack.c.l.b16 %v539
  %v1658 = vunpack.c.l.b16 %v540
  %v1659 = vunpack.c.l.b16 %v541
  %v1660 = vunpack.c.l.b16 %v542
  %v1661 = vunpack.c.l.b16 %v543
  %v1662 = vunpack.c.l.b16 %v544
  %v1663 = vunpack.c.l.b16 %v545
  %v1664 = vunpack.c.l.b16 %v546
  %v1665 = vunpack.c.l.b16 %v547
  %v1666 = vunpack.c.l.b16 %v548
  %v1667 = vunpack.c.l.b16 %v549
  %v1668 = vunpack.c.l.b16 %v550
  %v1669 = vunpack.c.l.b16 %v551
  %v1670 = vunpack.c.l.b16 %v552
  %v1671 = vunpack.c.l.b16 %v553
  %v1672 = vunpack.c.l.b16 %v554
  %v1673 = vunpack.c.l.b16 %v555
  %v1674 = vunpack.c.l.b16 %v556
  %v1675 = vunpack.c.l.b16 %v557
  %v1676 = vunpack.c.l.b16 %v558
  %v1677 = vunpack.c.l.b16 %v559
  %v1678 = vunpack.c.l.b16 %v560
  %v1679 = vunpack.c.l.b16 %v561
  %v1680 = vunpack.c.l.b16 %v562
  %v1681 = vunpack.c.l.b16 %v563
  %v1682 = vunpack.c.l.b16 %v564
  %v1683 = vunpack.c.l.b16 %v565
  %v1684 = vunpack.c.l.b16 %v566
  %v1685 = vunpack.c.l.b16 %v567
  %v1686 = vpack.c.b16 %v1134, %v1133
  %v1687 = vpack.c.b16 %v1136, %v1135
  %v1688 = vpack.c.b16 %v1138, %v1137
  %v1689 = vpack.c.b16 %v1140, %v1139
  %v1690 = vpack.c.b16 %v1142, %v1141
  %v1691 = vpack.c.b16 %v1144, %v1143
  %v1692 = vpack.c.b16 %v1146, %v1145
  %v1693 = vpack.c.b16 %v1148, %v1147
  %v1694 = vpack.c.b16 %v1150, %v1149
  %v1695 = vpack.c.b16 %v1152, %v1151
  %v1696 = vpack.c.b16 %v1154, %v1153
  %v1697 = vpack.c.b16 %v1156, %v1155
  %v1698 = vpack.c.b16 %v1158, %v1157
  %v1699 = vpack.c.b16 %v1160, %v1159
  %v1700 = vpack.c.b16 %v1162, %v1161
  %v1701 = vpack.c.b16 %v1164, %v1163
  %v1702 = vpack.c.b16 %v1166, %v1165
  %v1703 = vpack.c.b16 %v1168, %v1167
  %v1704 = vpack.c.b16 %v1170, %v1169
  %v1705 = vpack.c.b16 %v1172, %v1171
  %v1706 = vpack.c.b16 %v1174, %v1173
  %v1707 = vpack.c.b16 %v1176, %v1175
  %v1708 = vpack.c.b16 %v1178, %v1177
  %v1709 = vpack.c.b16 %v1180, %v1179
  %v1710 = vpack.c.b16 %v1182, %v1181
  %v1711 = vpack.c.b16 %v1184, %v1183
  %v1712 = vpack.c.b16 %v1186, %v1185
  %v1713 = vpack.c.b16 %v1188, %v1187
  %v1714 = vpack.c.b16 %v1190, %v1189
  %v1715 = vpack.c.b16 %v1192, %v1191
  %v1716 = vpack.c.b16 %v1194, %v1193
  %v1717 = vpack.c.b16 %v1196, %v1195
  %v1718 = vpack.c.b16 %v1198, %v1197
  %v1719 = vpack.c.b16 %v1200, %v1199
  %v1720 = vpack.c.b16 %v1202, %v1201
  %v1721 = vpack.c.b16 %v1204, %v1203
  %v1722 = vpack.c.b16 %v1206, %v1205
  %v1723 = vpack.c.b16 %v1208, %v1207
  %v1724 = vpack.c.b16 %v1210, %v1209
  %v1725 = vpack.c.b16 %v1212, %v1211
  %v1726 = vpack.c.b16 %v1214, %v1213
  %v1727 = vpack.c.b16 %v1216, %v1215
  %v1728 = vpack.c.b16 %v1218, %v1217
  %v1729 = vpack.c.b16 %v1220, %v1219
  %v1730 = vpack.c.b16 %v1222, %v1221
  %v1731 = vpack.c.b16 %v1224, %v1223
  %v1732 = vpack.c.b16 %v1226, %v1225
  %v1733 = vpack.c.b16 %v1228, %v1227
  %v1734 = vpack.c.b16 %v1230, %v1229
  %v1735 = vpack.c.b16 %v1232, %v1231
  %v1736 = vpack.c.b16 %v1234, %v1233
  %v1737 = vpack.c.b16 %v1236, %v1235
  %v1738 = vpack.c.b16 %v1238, %v1237
  %v1739 = vpack.c.b16 %v1240, %v1239
  %v1740 = vpack.c.b16 %v1242, %v1241
  %v1741 = vpack.c.b16 %v1244, %v1243
  %v1742 = vpack.c.b16 %v1246, %v1245
  %v1743 = vpack.c.b16 %v1248, %v1247
  %v1744 = vpack.c.b16 %v1250, %v1249
  %v1745 = vpack.c.b16 %v1252, %v1251
  %v1746 = vpack.c.b16 %v1254, %v1253
  %v1747 = vpack.c.b16 %v1256, %v1255
  %v1748 = vpack.c.b16 %v1258, %v1257
  %v1749 = vpack.c.b16 %v1260, %v1259
  %v1750 = vpack.c.b16 %v1262, %v1261
  %v1751 = vpack.c.b16 %v1264, %v1263
  %v1752 = vpack.c.b16 %v1266, %v1265
  %v1753 = vpack.c.b16 %v1268, %v1267
  %v1754 = vpack.c.b16 %v1270, %v1269
  %v1755 = vpack.c.b16 %v1272, %v1271
  %v1756 = vpack.c.b16 %v1274, %v1273
  %v1757 = vpack.c.b16 %v1276, %v1275
  %v1758 = vpack.c.b16 %v1278, %v1277
  %v1759 = vpack.c.b16 %v1280, %v1279
  %v1760 = vpack.c.b16 %v1282, %v1281
  %v1761 = vpack.c.b16 %v1284, %v1283
  %v1762 = vpack.c.b16 %v1286, %v1285
  %v1763 = vpack.c.b16 %v1288, %v1287
  %v1764 = vpack.c.b16 %v1290, %v1289
  %v1765 = vpack.c.b16 %v1292, %v1291
  %v1766 = vpack.c.b16 %v1294, %v1293
  %v1767 = vpack.c.b16 %v1296, %v1295
  %v1768 = vpack.c.b16 %v1298, %v1297
  %v1769 = vpack.c.b16 %v1300, %v1299
  %v1770 = vpack.c.b16 %v1302, %v1301
  %v1771 = vpack.c.b16 %v1304, %v1303
  %v1772 = vpack.c.b16 %v1306, %v1305
  %v1773 = vpack.c.b16 %v1308, %v1307
  %v1774 = vpack.c.b16 %v1310, %v1309
  %v1775 = vpack.c.b16 %v1312, %v1311
  %v1776 = vpack.c.b16 %v1314, %v1313
  %v1777 = vpack.c.b16 %v1316, %v1315
  %v1778 = vpack.c.b16 %v1318, %v1317
  %v1779 = vpack.c.b16 %v1320, %v1319
  %v1780 = vpack.c.b16 %v1322, %v1321
  %v1781 = vpack.c.b16 %v1324, %v1323
  %v1782 = vpack.c.b16 %v1326, %v1325
  %v1783 = vpack.c.b16 %v1328, %v1327
  %v1784 = vpack.c.b16 %v1330, %v1329
  %v1785 = vpack.c.b16 %v1332, %v1331
  %v1786 = vpack.c.b16 %v1334, %v1333
  %v1787 = vpack.c.b16 %v1336, %v1335
  %v1788 = vpack.c.b16 %v1338, %v1337
  %v1789 = vpack.c.b16 %v1340, %v1339
  %v1790 = vpack.c.b16 %v1342, %v1341
  %v1791 = vpack.c.b16 %v1344, %v1343
  %v1792 = vpack.c.b16 %v1346, %v1345
  %v1793 = vpack.c.b16 %v1348, %v1347
  %v1794 = vpack.c.b16 %v1350, %v1349
  %v1795 = vpack.c.b16 %v1352, %v1351
  %v1796 = vpack.c.b16 %v1354, %v1353
  %v1797 = vpack.c.b16 %v1356, %v1355
  %v1798 = vpack.c.b16 %v1358, %v1357
  %v1799 = vpack.c.b16 %v1360, %v1359
  %v1800 = vpack.c.b16 %v1362, %v1361
  %v1801 = vpack.c.b16 %v1364, %v1363
  %v1802 = vpack.c.b16 %v1366, %v1365
  %v1803 = vpack.c.b16 %v1368, %v1367
  %v1804 = vpack.c.b16 %v1370, %v1369
  %v1805 = vpack.c.b16 %v1372, %v1371
  %v1806 = vpack.c.b16 %v1374, %v1373
  %v1807 = vpack.c.b16 %v1376, %v1375
  %v1808 = vpack.c.b16 %v1378, %v1377
  %v1809 = vpack.c.b16 %v1380, %v1379
  %v1810 = vpack.c.b16 %v1382, %v1381
  %v1811 = vpack.c.b16 %v1384, %v1383
  %v1812 = vpack.c.b16 %v1386, %v1385
  %v1813 = vpack.c.b16 %v1388, %v1387
  %v1814 = vpack.c.b16 %v1390, %v1389
  %v1815 = vpack.c.b16 %v1392, %v1391
  %v1816 = vpack.c.b16 %v1394, %v1393
  %v1817 = vpack.c.b16 %v1396, %v1395
  %v1818 = vpack.c.b16 %v1398, %v1397
  %v1819 = vpack.c.b16 %v1400, %v1399
  %v1820 = vpack.c.b16 %v1402, %v1401
  %v1821 = vpack.c.b16 %v1404, %v1403
  %v1822 = vpack.c.b16 %v1406, %v1405
  %v1823 = vpack.c.b16 %v1408, %v1407
  %v1824 = vpack.c.b16 %v1410, %v1409
  %v1825 = vpack.c.b16 %v1412, %v1411
  %v1826 = vpack.c.b16 %v1414, %v1413
  %v1827 = vpack.c.b16 %v1416, %v1415
  %v1828 = vpack.c.b16 %v1418, %v1417
  %v1829 = vpack.c.b16 %v1420, %v1419
  %v1830 = vpack.c.b16 %v1422, %v1421
  %v1831 = vpack.c.b16 %v1424, %v1423
  %v1832 = vpack.c.b16 %v1426, %v1425
  %v1833 = vpack.c.b16 %v1428, %v1427
  %v1834 = vpack.c.b16 %v1430, %v1429
  %v1835 = vpack.c.b16 %v1432, %v1431
  %v1836 = vpack.c.b16 %v1434, %v1433
  %v1837 = vpack.c.b16 %v1436, %v1435
  %v1838 = vpack.c.b16 %v1438, %v1437
  %v1839 = vpack.c.b16 %v1440, %v1439
  %v1840 = vpack.c.b16 %v1442, %v1441
  %v1841 = vpack.c.b16 %v1444, %v1443
  %v1842 = vpack.c.b16 %v1446, %v1445
  %v1843 = vpack.c.b16 %v1448, %v1447
  %v1844 = vpack.c.b16 %v1450, %v1449
  %v1845 = vpack.c.b16 %v1452, %v1451
  %v1846 = vpack.c.b16 %v1454, %v1453
  %v1847 = vpack.c.b16 %v1456, %v1455
  %v1848 = vpack.c.b16 %v1458, %v1457
  %v1849 = vpack.c.b16 %v1460, %v1459
  %v1850 = vpack.c.b16 %v1462, %v1461
  %v1851 = vpack.c.b16 %v1464, %v1463
  %v1852 = vpack.c.b16 %v1466, %v1465
  %v1853 = vpack.c.b16 %v1468, %v1467
  %v1854 = vpack.c.b16 %v1470, %v1469
  %v1855 = vpack.c.b16 %v1472, %v1471
  %v1856 = vpack.c.b16 %v1474, %v1473
  %v1857 = vpack.c.b16 %v1476, %v1475
  %v1858 = vpack.c.b16 %v1478, %v1477
  %v1859 = vpack.c.b16 %v1480, %v1479
  %v1860 = vpack.c.b16 %v1482, %v1481
  %v1861 = vpack.c.b16 %v1484, %v1483
  %v1862 = vpack.c.b16 %v1486, %v1485
  %v1863 = vpack.c.b16 %v1488, %v1487
  %v1864 = vpack.c.b16 %v1490, %v1489
  %v1865 = vpack.c.b16 %v1492, %v1491
  %v1866 = vpack.c.b16 %v1494, %v1493
  %v1867 = vpack.c.b16 %v1496, %v1495
  %v1868 = vpack.c.b16 %v1498, %v1497
  %v1869 = vpack.c.b16 %v1500, %v1499
  %v1870 = vpack.c.b16 %v1502, %v1501
  %v1871 = vpack.c.b16 %v1504, %v1503
  %v1872 = vpack.c.b16 %v1506, %v1505
  %v1873 = vpack.c.b16 %v1508, %v1507
  %v1874 = vpack.c.b16 %v1510, %v1509
  %v1875 = vpack.c.b16 %v1512, %v1511
  %v1876 = vpack.c.b16 %v1514, %v1513
  %v1877 = vpack.c.b16 %v1516, %v1515
  %v1878 = vpack.c.b16 %v1518, %v1517
  %v1879 = vpack.c.b16 %v1520, %v1519
  %v1880 = vpack.c.b16 %v1522, %v1521
  %v1881 = vpack.c.b16 %v1524, %v1523
  %v1882 = vpack.c.b16 %v1526, %v1525
  %v1883 = vpack.c.b16 %v1528, %v1527
  %v1884 = vpack.c.b16 %v1530, %v1529
  %v1885 = vpack.c.b16 %v1532, %v1531
  %v1886 = vpack.c.b16 %v1534, %v1533
  %v1887 = vpack.c.b16 %v1536, %v1535
  %v1888 = vpack.c.b16 %v1538, %v1537
  %v1889 = vpack.c.b16 %v1540, %v1539
  %v1890 = vpack.c.b16 %v1542, %v1541
  %v1891 = vpack.c.b16 %v1544, %v1543
  %v1892 = vpack.c.b16 %v1546, %v1545
  %v1893 = vpack.c.b16 %v1548, %v1547
  %v1894 = vpack.c.b16 %v1550, %v1549
  %v1895 = vpack.c.b16 %v1552, %v1551
  %v1896 = vpack.c.b16 %v1554, %v1553
  %v1897 = vpack.c.b16 %v1556, %v1555
  %v1898 = vpack.c.b16 %v1558, %v1557
  %v1899 = vpack.c.b16 %v1560, %v1559
  %v1900 = vpack.c.b16 %v1562, %v1561
  %v1901 = vpack.c.b16 %v1564, %v1563
  %v1902 = vpack.c.b16 %v1566, %v1565
  %v1903 = vpack.c.b16 %v1568, %v1567
  %v1904 = vpack.c.b16 %v1570, %v1569
  %v1905 = vpack.c.b16 %v1572, %v1571
  %v1906 = vpack.c.b16 %v1574, %v1573
  %v1907 = vpack.c.b16 %v1576, %v1575
  %v1908 = vpack.c.b16 %v1578, %v1577
  %v1909 = vpack.c.b16 %v1580, %v1579
  %v1910 = vpack.c.b16 %v1582, %v1581
  %v1911 = vpack.c.b16 %v1584, %v1583
  %v1912 = vpack.c.b16 %v1586, %v1585
  %v1913 = vpack.c.b16 %v1588, %v1587
  %v1914 = vpack.c.b16 %v1590, %v1589
  %v1915 = vpack.c.b16 %v1592, %v1591
  %v1916 = vpack.c.b16 %v1594, %v1593
  %v1917 = vpack.c.b16 %v1596, %v1595
  %v1918 = vpack.c.b16 %v1598, %v1597
  %v1919 = vpack.c.b16 %v1600, %v1599
  %v1920 = vpack.c.b16 %v1602, %v1601
  %v1921 = vpack.c.b16 %v1604, %v1603
  %v1922 = vpack.c.b16 %v1606, %v1605
  %v1923 = vpack.c.b16 %v1608, %v1607
  %v1924 = vpack.c.b16 %v1610, %v1609
  %v1925 = vpack.c.b16 %v1612, %v1611
  %v1926 = vpack.c.b16 %v1614, %v1613
  %v1927 = vpack.c.b16 %v1616, %v1615
  %v1928 = vpack.c.b16 %v1618, %v1617
  %v1929 = vpack.c.b16 %v1620, %v1619
  %v1930 = vpack.c.b16 %v1622, %v1621
  %v1931 = vpack.c.b16 %v1624, %v1623
  %v1932 = vpack.c.b16 %v1626, %v1625
  %v1933 = vpack.c.b16 %v1628, %v1627
  %v1934 = vpack.c.b16 %v1630, %v1629
  %v1935 = vpack.c.b16 %v1632, %v1631
  %v1936 = vpack.c.b16 %v1634, %v1633
  %v1937 = vpack.c.b16 %v1636, %v1635
  %v1938 = vpack.c.b16 %v1638, %v1637
  %v1939 = vpack.c.b16 %v1640, %v1639
  %v1940 = vpack.c.b16 %v1642, %v1641
  %v1941 = vpack.c.b16 %v1644, %v1643
  %v1942 = vpack.c.b16 %v1646, %v1645
  %v1943 = vpack.c.b16 %v1648, %v1647
  %v1944 = vpack.c.b16 %v1650, %v1649
  %v1945 = vpack.c.b16 %v1652, %v1651
  %v1946 = vpack.c.b16 %v1654, %v1653
  %v1947 = vpack.c.b16 %v1656, %v1655
  %v1948 = vpack.c.b16 %v1658, %v1657
  %v1949 = vpack.c.b16 %v1660, %v1659
  %v1950 = vpack.c.b16 %v1662, %v1661
  %v1951 = vpack.c.b16 %v1664, %v1663
  %v1952 = vpack.c.b16 %v1666, %v1665
  %v1953 = vpack.c.b16 %v1668, %v1667
  %v1954 = vpack.c.b16 %v1670, %v1669
  %v1955 = vpack.c.b16 %v1672, %v1671
  %v1956 = vpack.c.b16 %v1674, %v1673
  %v1957 = vpack.c.b16 %v1676, %v1675
  %v1958 = vpack.c.b16 %v1678, %v1677
  %v1959 = vpack.c.b16 %v1680, %v1679
  %v1960 = vpack.c.b16 %v1682, %v1681
  %v1961 = vpack.c.b16 %v1684, %v1683
  %v1962 = vpack.c.b16 %v1685, %v1685
  %v1971 = vunpack.c.l.b16 %v568
  %v1972 = vunpack.c.l.b16 %v569
  %v1973 = vunpack.c.l.b16 %v570
  %v1974 = vunpack.c.l.b16 %v571
  %v1975 = vunpack.c.l.b16 %v572
  %v1976 = vunpack.c.l.b16 %v573
  %v1977 = vunpack.c.l.b16 %v574
  %v1978 = vunpack.c.l.b16 %v575
  %v1979 = vpack.c.b16 %v1972, %v1971
  %v1980 = vpack.c.b16 %v1974, %v1973
  %v1981 = vpack.c.b16 %v1976, %v1975
  %v1982 = vpack.c.b16 %v1978, %v1977
  %vm1987 = vcmask 523264
  %v1989 = vsel %vm1987, %v1686, 0
  %v1992 = vsel %vm1987, %v1687, 0
  %v1995 = vsel %vm1987, %v1688, 0
  %v1998 = vsel %vm1987, %v1689, 0
  %v2001 = vsel %vm1987, %v1690, 0
  %v2004 = vsel %vm1987, %v1691, 0
  %v2007 = vsel %vm1987, %v1692, 0
  %v2010 = vsel %vm1987, %v1693, 0
  %v2013 = vsel %vm1987, %v1694, 0
  %v2016 = vsel %vm1987, %v1695, 0
  %v2019 = vsel %vm1987, %v1696, 0
  %v2022 = vsel %vm1987, %v1697, 0
  %v2025 = vsel %vm1987, %v1698, 0
  %v2028 = vsel %vm1987, %v1699, 0
  %v2031 = vsel %vm1987, %v1700, 0
  %v2034 = vsel %vm1987, %v1701, 0
  %v2037 = vsel %vm1987, %v1702, 0
  %v2040 = vsel %vm1987, %v1703, 0
  %v2043 = vsel %vm1987, %v1704, 0
  %v2046 = vsel %vm1987, %v1705, 0
  %v2049 = vsel %vm1987, %v1706, 0
  %v2052 = vsel %vm1987, %v1707, 0
  %v2055 = vsel %vm1987, %v1708, 0
  %v2058 = vsel %vm1987, %v1709, 0
  %v2061 = vsel %vm1987, %v1710, 0
  %v2064 = vsel %vm1987, %v1711, 0
  %v2067 = vsel %vm1987, %v1712, 0
  %v2070 = vsel %vm1987, %v1713, 0
  %v2073 = vsel %vm1987, %v1714, 0
  %v2076 = vsel %vm1987, %v1715, 0
  %v2079 = vsel %vm1987, %v1716, 0
  %v2082 = vsel %vm1987, %v1717, 0
  %v2085 = vsel %vm1987, %v1718, 0
  %v2088 = vsel %vm1987, %v1719, 0
  %v2091 = vsel %vm1987, %v1720, 0
  %v2094 = vsel %vm1987, %v1721, 0
  %v2097 = vsel %vm1987, %v1722, 0
  %v2100 = vsel %vm1987, %v1723, 0
  %v2103 = vsel %vm1987, %v1724, 0
  %v2106 = vsel %vm1987, %v1725, 0
  %v2109 = vsel %vm1987, %v1726, 0
  %v2112 = vsel %vm1987, %v1727, 0
  %v2115 = vsel %vm1987, %v1728, 0
  %v2118 = vsel %vm1987, %v1729, 0
  %v2121 = vsel %vm1987, %v1730, 0
  %v2124 = vsel %vm1987, %v1731, 0
  %v2127 = vsel %vm1987, %v1732, 0
  %v2130 = vsel %vm1987, %v1733, 0
  %v2133 = vsel %vm1987, %v1734, 0
  %v2136 = vsel %vm1987, %v1735, 0
  %v2139 = vsel %vm1987, %v1736, 0
  %v2142 = vsel %vm1987, %v1737, 0
  %v2145 = vsel %vm1987, %v1738, 0
  %v2148 = vsel %vm1987, %v1739, 0
  %v2151 = vsel %vm1987, %v1740, 0
  %v2154 = vsel %vm1987, %v1741, 0
  %v2157 = vsel %vm1987, %v1742, 0
  %v2160 = vsel %vm1987, %v1743, 0
  %v2163 = vsel %vm1987, %v1744, 0
  %v2166 = vsel %vm1987, %v1745, 0
  %v2169 = vsel %vm1987, %v1746, 0
  %v2172 = vsel %vm1987, %v1747, 0
  %v2175 = vsel %vm1987, %v1748, 0
  %v2178 = vsel %vm1987, %v1749, 0
  %v2181 = vsel %vm1987, %v1750, 0
  %v2184 = vsel %vm1987, %v1751, 0
  %v2187 = vsel %vm1987, %v1752, 0
  %v2190 = vsel %vm1987, %v1753, 0
  %v2193 = vsel %vm1987, %v1754, 0
  %v2196 = vsel %vm1987, %v1755, 0
  %v2199 = vsel %vm1987, %v1756, 0
  %v2202 = vsel %vm1987, %v1757, 0
  %v2205 = vsel %vm1987, %v1758, 0
  %v2208 = vsel %vm1987, %v1759, 0
  %v2211 = vsel %vm1987, %v1760, 0
  %v2214 = vsel %vm1987, %v1761, 0
  %v2217 = vsel %vm1987, %v1762, 0
  %v2220 = vsel %vm1987, %v1763, 0
  %v2223 = vsel %vm1987, %v1764, 0
  %v2226 = vsel %vm1987, %v1765, 0
  %v2229 = vsel %vm1987, %v1766, 0
  %v2232 = vsel %vm1987, %v1767, 0
  %v2235 = vsel %vm1987, %v1768, 0
  %v2238 = vsel %vm1987, %v1769, 0
  %v2241 = vsel %vm1987, %v1770, 0
  %v2244 = vsel %vm1987, %v1771, 0
  %v2247 = vsel %vm1987, %v1772, 0
  %v2250 = vsel %vm1987, %v1773, 0
  %v2253 = vsel %vm1987, %v1774, 0
  %v2256 = vsel %vm1987, %v1775, 0
  %v2259 = vsel %vm1987, %v1776, 0
  %v2262 = vsel %vm1987, %v1777, 0
  %v2265 = vsel %vm1987, %v1778, 0
  %v2268 = vsel %vm1987, %v1779, 0
  %v2271 = vsel %vm1987, %v1780, 0
  %v2274 = vsel %vm1987, %v1781, 0
  %v2277 = vsel %vm1987, %v1782, 0
  %v2280 = vsel %vm1987, %v1783, 0
  %v2283 = vsel %vm1987, %v1784, 0
  %v2286 = vsel %vm1987, %v1785, 0
  %v2289 = vsel %vm1987, %v1786, 0
  %v2292 = vsel %vm1987, %v1787, 0
  %v2295 = vsel %vm1987, %v1788, 0
  %v2298 = vsel %vm1987, %v1789, 0
  %v2301 = vsel %vm1987, %v1790, 0
  %v2304 = vsel %vm1987, %v1791, 0
  %v2307 = vsel %vm1987, %v1792, 0
  %v2310 = vsel %vm1987, %v1793, 0
  %v2313 = vsel %vm1987, %v1794, 0
  %v2316 = vsel %vm1987, %v1795, 0
  %v2319 = vsel %vm1987, %v1796, 0
  %v2322 = vsel %vm1987, %v1797, 0
  %v2325 = vsel %vm1987, %v1798, 0
  %v2328 = vsel %vm1987, %v1799, 0
  %v2331 = vsel %vm1987, %v1800, 0
  %v2334 = vsel %vm1987, %v1801, 0
  %v2337 = vsel %vm1987, %v1802, 0
  %v2340 = vsel %vm1987, %v1803, 0
  %v2343 = vsel %vm1987, %v1804, 0
  %v2346 = vsel %vm1987, %v1805, 0
  %v2349 = vsel %vm1987, %v1806, 0
  %v2352 = vsel %vm1987, %v1807, 0
  %v2355 = vsel %vm1987, %v1808, 0
  %v2358 = vsel %vm1987, %v1809, 0
  %v2361 = vsel %vm1987, %v1810, 0
  %v2364 = vsel %vm1987, %v1811, 0
  %v2367 = vsel %vm1987, %v1812, 0
  %v2370 = vsel %vm1987, %v1813, 0
  %v2373 = vsel %vm1987, %v1814, 0
  %v2376 = vsel %vm1987, %v1815, 0
  %v2379 = vsel %vm1987, %v1816, 0
  %v2382 = vsel %vm1987, %v1817, 0
  %v2385 = vsel %vm1987, %v1818, 0
  %v2388 = vsel %vm1987, %v1819, 0
  %v2391 = vsel %vm1987, %v1820, 0
  %v2394 = vsel %vm1987, %v1821, 0
  %v2397 = vsel %vm1987, %v1822, 0
  %v2400 = vsel %vm1987, %v1823, 0
  %v2403 = vsel %vm1987, %v1824, 0
  %v2406 = vsel %vm1987, %v1825, 0
  %v2409 = vsel %vm1987, %v1826, 0
  %v2412 = vsel %vm1987, %v1827, 0
  %v2415 = vsel %vm1987, %v1828, 0
  %v2418 = vsel %vm1987, %v1829, 0
  %v2421 = vsel %vm1987, %v1830, 0
  %v2424 = vsel %vm1987, %v1831, 0
  %v2427 = vsel %vm1987, %v1832, 0
  %v2430 = vsel %vm1987, %v1833, 0
  %v2433 = vsel %vm1987, %v1834, 0
  %v2436 = vsel %vm1987, %v1835, 0
  %v2439 = vsel %vm1987, %v1836, 0
  %v2442 = vsel %vm1987, %v1837, 0
  %v2445 = vsel %vm1987, %v1838, 0
  %v2448 = vsel %vm1987, %v1839, 0
  %v2451 = vsel %vm1987, %v1840, 0
  %v2454 = vsel %vm1987, %v1841, 0
  %v2457 = vsel %vm1987, %v1842, 0
  %v2460 = vsel %vm1987, %v1843, 0
  %v2463 = vsel %vm1987, %v1844, 0
  %v2466 = vsel %vm1987, %v1845, 0
  %v2469 = vsel %vm1987, %v1846, 0
  %v2472 = vsel %vm1987, %v1847, 0
  %v2475 = vsel %vm1987, %v1848, 0
  %v2478 = vsel %vm1987, %v1849, 0
  %v2481 = vsel %vm1987, %v1850, 0
  %v2484 = vsel %vm1987, %v1851, 0
  %v2487 = vsel %vm1987, %v1852, 0
  %v2490 = vsel %vm1987, %v1853, 0
  %v2493 = vsel %vm1987, %v1854, 0
  %v2496 = vsel %vm1987, %v1855, 0
  %v2499 = vsel %vm1987, %v1856, 0
  %v2502 = vsel %vm1987, %v1857, 0
  %v2505 = vsel %vm1987, %v1858, 0
  %v2508 = vsel %vm1987, %v1859, 0
  %v2511 = vsel %vm1987, %v1860, 0
  %v2514 = vsel %vm1987, %v1861, 0
  %v2517 = vsel %vm1987, %v1862, 0
  %v2520 = vsel %vm1987, %v1863, 0
  %v2523 = vsel %vm1987, %v1864, 0
  %v2526 = vsel %vm1987, %v1865, 0
  %v2529 = vsel %vm1987, %v1866, 0
  %v2532 = vsel %vm1987, %v1867, 0
  %v2535 = vsel %vm1987, %v1868, 0
  %v2538 = vsel %vm1987, %v1869, 0
  %v2541 = vsel %vm1987, %v1870, 0
  %v2544 = vsel %vm1987, %v1871, 0
  %v2547 = vsel %vm1987, %v1872, 0
  %v2550 = vsel %vm1987, %v1873, 0
  %v2553 = vsel %vm1987, %v1874, 0
  %v2556 = vsel %vm1987, %v1875, 0
  %v2559 = vsel %vm1987, %v1876, 0
  %v2562 = vsel %vm1987, %v1877, 0
  %v2565 = vsel %vm1987, %v1878, 0
  %v2568 = vsel %vm1987, %v1879, 0
  %v2571 = vsel %vm1987, %v1880, 0
  %v2574 = vsel %vm1987, %v1881, 0
  %v2577 = vsel %vm1987, %v1882, 0
  %v2580 = vsel %vm1987, %v1883, 0
  %v2583 = vsel %vm1987, %v1884, 0
  %v2586 = vsel %vm1987, %v1885, 0
  %v2589 = vsel %vm1987, %v1886, 0
  %v2592 = vsel %vm1987, %v1887, 0
  %v2595 = vsel %vm1987, %v1888, 0
  %v2598 = vsel %vm1987, %v1889, 0
  %v2601 = vsel %vm1987, %v1890, 0
  %v2604 = vsel %vm1987, %v1891, 0
  %v2607 = vsel %vm1987, %v1892, 0
  %v2610 = vsel %vm1987, %v1893, 0
  %v2613 = vsel %vm1987, %v1894, 0
  %v2616 = vsel %vm1987, %v1895, 0
  %v2619 = vsel %vm1987, %v1896, 0
  %v2622 = vsel %vm1987, %v1897, 0
  %v2625 = vsel %vm1987, %v1898, 0
  %v2628 = vsel %vm1987, %v1899, 0
  %v2631 = vsel %vm1987, %v1900, 0
  %v2634 = vsel %vm1987, %v1901, 0
  %v2637 = vsel %vm1987, %v1902, 0
  %v2640 = vsel %vm1987, %v1903, 0
  %v2643 = vsel %vm1987, %v1904, 0
  %v2646 = vsel %vm1987, %v1905, 0
  %v2649 = vsel %vm1987, %v1906, 0
  %v2652 = vsel %vm1987, %v1907, 0
  %v2655 = vsel %vm1987, %v1908, 0
  %v2658 = vsel %vm1987, %v1909, 0
  %v2661 = vsel %vm1987, %v1910, 0
  %v2664 = vsel %vm1987, %v1911, 0
  %v2667 = vsel %vm1987, %v1912, 0
  %v2670 = vsel %vm1987, %v1913, 0
  %v2673 = vsel %vm1987, %v1914, 0
  %v2676 = vsel %vm1987, %v1915, 0
  %v2679 = vsel %vm1987, %v1916, 0
  %v2682 = vsel %vm1987, %v1917, 0
  %v2685 = vsel %vm1987, %v1918, 0
  %v2688 = vsel %vm1987, %v1919, 0
  %v2691 = vsel %vm1987, %v1920, 0
  %v2694 = vsel %vm1987, %v1921, 0
  %v2697 = vsel %vm1987, %v1922, 0
  %v2700 = vsel %vm1987, %v1923, 0
  %v2703 = vsel %vm1987, %v1924, 0
  %v2706 = vsel %vm1987, %v1925, 0
  %v2709 = vsel %vm1987, %v1926, 0
  %v2712 = vsel %vm1987, %v1927, 0
  %v2715 = vsel %vm1987, %v1928, 0
  %v2718 = vsel %vm1987, %v1929, 0
  %v2721 = vsel %vm1987, %v1930, 0
  %v2724 = vsel %vm1987, %v1931, 0
  %v2727 = vsel %vm1987, %v1932, 0
  %v2730 = vsel %vm1987, %v1933, 0
  %v2733 = vsel %vm1987, %v1934, 0
  %v2736 = vsel %vm1987, %v1935, 0
  %v2739 = vsel %vm1987, %v1936, 0
  %v2742 = vsel %vm1987, %v1937, 0
  %v2745 = vsel %vm1987, %v1938, 0
  %v2748 = vsel %vm1987, %v1939, 0
  %v2751 = vsel %vm1987, %v1940, 0
  %v2754 = vsel %vm1987, %v1941, 0
  %v2757 = vsel %vm1987, %v1942, 0
  %v2760 = vsel %vm1987, %v1943, 0
  %v2763 = vsel %vm1987, %v1944, 0
  %v2766 = vsel %vm1987, %v1945, 0
  %v2769 = vsel %vm1987, %v1946, 0
  %v2772 = vsel %vm1987, %v1947, 0
  %v2775 = vsel %vm1987, %v1948, 0
  %v2778 = vsel %vm1987, %v1949, 0
  %v2781 = vsel %vm1987, %v1950, 0
  %v2784 = vsel %vm1987, %v1951, 0
  %v2787 = vsel %vm1987, %v1952, 0
  %v2790 = vsel %vm1987, %v1953, 0
  %v2793 = vsel %vm1987, %v1954, 0
  %v2796 = vsel %vm1987, %v1955, 0
  %v2799 = vsel %vm1987, %v1956, 0
  %v2802 = vsel %vm1987, %v1957, 0
  %v2805 = vsel %vm1987, %v1958, 0
  %v2808 = vsel %vm1987, %v1959, 0
  %v2811 = vsel %vm1987, %v1960, 0
  %v2814 = vsel %vm1987, %v1961, 0
  %v2817 = vsel %vm1987, %v1962, 0
  %2819 = vmatpush.bf16.msra.mxu0 0
  %2820 = vmatpush.bf16.msra.mxu0 0
  %2821 = vmatpush.bf16.msra.mxu0 0
  %2822 = vmatpush.bf16.msra.mxu0 0
  %2823 = vmatpush.bf16.msra.mxu0 %v1982
  %2824 = vmatpush.bf16.msra.mxu0 %v1981
  %2825 = vmatpush.bf16.msra.mxu0 %v1980
  %2826 = vmatpush.bf16.msra.mxu0 %v1979
  %2827 = vmatmul.bf16.gmra.mxu0 %v1989
  %v2828 = vpop.f32.mrf.mxu0
  %v2829 = vadd.f32 %v578, %v2828
  %v2830 = vpop.f32.mrf.mxu0
  %v2831 = vadd.f32 %v578, %v2830
  %2832 = vmatmul.bf16.gmra.mxu0 %v1992
  %v2833 = vpop.f32.mrf.mxu0
  %v2834 = vadd.f32 %v578, %v2833
  %v2835 = vpop.f32.mrf.mxu0
  %v2836 = vadd.f32 %v578, %v2835
  %2837 = vmatmul.bf16.gmra.mxu0 %v1995
  %v2838 = vpop.f32.mrf.mxu0
  %v2839 = vadd.f32 %v578, %v2838
  %v2840 = vpop.f32.mrf.mxu0
  %v2841 = vadd.f32 %v578, %v2840
  %2842 = vmatmul.bf16.gmra.mxu0 %v1998
  %v2843 = vpop.f32.mrf.mxu0
  %v2844 = vadd.f32 %v578, %v2843
  %v2845 = vpop.f32.mrf.mxu0
  %v2846 = vadd.f32 %v578, %v2845
  %2847 = vmatmul.bf16.gmra.mxu0 %v2001
  %v2848 = vpop.f32.mrf.mxu0
  %v2849 = vadd.f32 %v578, %v2848
  %v2850 = vpop.f32.mrf.mxu0
  %v2851 = vadd.f32 %v578, %v2850
  %2852 = vmatmul.bf16.gmra.mxu0 %v2004
  %v2853 = vpop.f32.mrf.mxu0
  %v2854 = vadd.f32 %v578, %v2853
  %v2855 = vpop.f32.mrf.mxu0
  %v2856 = vadd.f32 %v578, %v2855
  %2857 = vmatmul.bf16.gmra.mxu0 %v2007
  %v2858 = vpop.f32.mrf.mxu0
  %v2859 = vadd.f32 %v578, %v2858
  %v2860 = vpop.f32.mrf.mxu0
  %v2861 = vadd.f32 %v578, %v2860
  %2862 = vmatmul.bf16.gmra.mxu0 %v2010
  %v2863 = vpop.f32.mrf.mxu0
  %v2864 = vadd.f32 %v578, %v2863
  %v2865 = vpop.f32.mrf.mxu0
  %v2866 = vadd.f32 %v578, %v2865
  %2867 = vmatmul.bf16.gmra.mxu0 %v2013
  %v2868 = vpop.f32.mrf.mxu0
  %v2869 = vadd.f32 %v578, %v2868
  %v2870 = vpop.f32.mrf.mxu0
  %v2871 = vadd.f32 %v578, %v2870
  %2872 = vmatmul.bf16.gmra.mxu0 %v2016
  %v2873 = vpop.f32.mrf.mxu0
  %v2874 = vadd.f32 %v578, %v2873
  %v2875 = vpop.f32.mrf.mxu0
  %v2876 = vadd.f32 %v578, %v2875
  %2877 = vmatmul.bf16.gmra.mxu0 %v2019
  %v2878 = vpop.f32.mrf.mxu0
  %v2879 = vadd.f32 %v578, %v2878
  %v2880 = vpop.f32.mrf.mxu0
  %v2881 = vadd.f32 %v578, %v2880
  %2882 = vmatmul.bf16.gmra.mxu0 %v2022
  %v2883 = vpop.f32.mrf.mxu0
  %v2884 = vadd.f32 %v578, %v2883
  %v2885 = vpop.f32.mrf.mxu0
  %v2886 = vadd.f32 %v578, %v2885
  %2887 = vmatmul.bf16.gmra.mxu0 %v2025
  %v2888 = vpop.f32.mrf.mxu0
  %v2889 = vadd.f32 %v578, %v2888
  %v2890 = vpop.f32.mrf.mxu0
  %v2891 = vadd.f32 %v578, %v2890
  %2892 = vmatmul.bf16.gmra.mxu0 %v2028
  %v2893 = vpop.f32.mrf.mxu0
  %v2894 = vadd.f32 %v578, %v2893
  %v2895 = vpop.f32.mrf.mxu0
  %v2896 = vadd.f32 %v578, %v2895
  %2897 = vmatmul.bf16.gmra.mxu0 %v2031
  %v2898 = vpop.f32.mrf.mxu0
  %v2899 = vadd.f32 %v578, %v2898
  %v2900 = vpop.f32.mrf.mxu0
  %v2901 = vadd.f32 %v578, %v2900
  %2902 = vmatmul.bf16.gmra.mxu0 %v2034
  %v2903 = vpop.f32.mrf.mxu0
  %v2904 = vadd.f32 %v578, %v2903
  %v2905 = vpop.f32.mrf.mxu0
  %v2906 = vadd.f32 %v578, %v2905
  %2907 = vmatmul.bf16.gmra.mxu0 %v2037
  %v2908 = vpop.f32.mrf.mxu0
  %v2909 = vadd.f32 %v578, %v2908
  %v2910 = vpop.f32.mrf.mxu0
  %v2911 = vadd.f32 %v578, %v2910
  %2912 = vmatmul.bf16.gmra.mxu0 %v2040
  %v2913 = vpop.f32.mrf.mxu0
  %v2914 = vadd.f32 %v578, %v2913
  %v2915 = vpop.f32.mrf.mxu0
  %v2916 = vadd.f32 %v578, %v2915
  %2917 = vmatmul.bf16.gmra.mxu0 %v2043
  %v2918 = vpop.f32.mrf.mxu0
  %v2919 = vadd.f32 %v578, %v2918
  %v2920 = vpop.f32.mrf.mxu0
  %v2921 = vadd.f32 %v578, %v2920
  %2922 = vmatmul.bf16.gmra.mxu0 %v2046
  %v2923 = vpop.f32.mrf.mxu0
  %v2924 = vadd.f32 %v578, %v2923
  %v2925 = vpop.f32.mrf.mxu0
  %v2926 = vadd.f32 %v578, %v2925
  %2927 = vmatmul.bf16.gmra.mxu0 %v2049
  %v2928 = vpop.f32.mrf.mxu0
  %v2929 = vadd.f32 %v578, %v2928
  %v2930 = vpop.f32.mrf.mxu0
  %v2931 = vadd.f32 %v578, %v2930
  %2932 = vmatmul.bf16.gmra.mxu0 %v2052
  %v2933 = vpop.f32.mrf.mxu0
  %v2934 = vadd.f32 %v578, %v2933
  %v2935 = vpop.f32.mrf.mxu0
  %v2936 = vadd.f32 %v578, %v2935
  %2937 = vmatmul.bf16.gmra.mxu0 %v2055
  %v2938 = vpop.f32.mrf.mxu0
  %v2939 = vadd.f32 %v578, %v2938
  %v2940 = vpop.f32.mrf.mxu0
  %v2941 = vadd.f32 %v578, %v2940
  %2942 = vmatmul.bf16.gmra.mxu0 %v2058
  %v2943 = vpop.f32.mrf.mxu0
  %v2944 = vadd.f32 %v578, %v2943
  %v2945 = vpop.f32.mrf.mxu0
  %v2946 = vadd.f32 %v578, %v2945
  %2947 = vmatmul.bf16.gmra.mxu0 %v2061
  %v2948 = vpop.f32.mrf.mxu0
  %v2949 = vadd.f32 %v578, %v2948
  %v2950 = vpop.f32.mrf.mxu0
  %v2951 = vadd.f32 %v578, %v2950
  %2952 = vmatmul.bf16.gmra.mxu0 %v2064
  %v2953 = vpop.f32.mrf.mxu0
  %v2954 = vadd.f32 %v578, %v2953
  %v2955 = vpop.f32.mrf.mxu0
  %v2956 = vadd.f32 %v578, %v2955
  %2957 = vmatmul.bf16.gmra.mxu0 %v2067
  %v2958 = vpop.f32.mrf.mxu0
  %v2959 = vadd.f32 %v578, %v2958
  %v2960 = vpop.f32.mrf.mxu0
  %v2961 = vadd.f32 %v578, %v2960
  %2962 = vmatmul.bf16.gmra.mxu0 %v2070
  %v2963 = vpop.f32.mrf.mxu0
  %v2964 = vadd.f32 %v578, %v2963
  %v2965 = vpop.f32.mrf.mxu0
  %v2966 = vadd.f32 %v578, %v2965
  %2967 = vmatmul.bf16.gmra.mxu0 %v2073
  %v2968 = vpop.f32.mrf.mxu0
  %v2969 = vadd.f32 %v578, %v2968
  %v2970 = vpop.f32.mrf.mxu0
  %v2971 = vadd.f32 %v578, %v2970
  %2972 = vmatmul.bf16.gmra.mxu0 %v2076
  %v2973 = vpop.f32.mrf.mxu0
  %v2974 = vadd.f32 %v578, %v2973
  %v2975 = vpop.f32.mrf.mxu0
  %v2976 = vadd.f32 %v578, %v2975
  %2977 = vmatmul.bf16.gmra.mxu0 %v2079
  %v2978 = vpop.f32.mrf.mxu0
  %v2979 = vadd.f32 %v578, %v2978
  %v2980 = vpop.f32.mrf.mxu0
  %v2981 = vadd.f32 %v578, %v2980
  %2982 = vmatmul.bf16.gmra.mxu0 %v2082
  %v2983 = vpop.f32.mrf.mxu0
  %v2984 = vadd.f32 %v578, %v2983
  %v2985 = vpop.f32.mrf.mxu0
  %v2986 = vadd.f32 %v578, %v2985
  %2987 = vmatmul.bf16.gmra.mxu0 %v2085
  %v2988 = vpop.f32.mrf.mxu0
  %v2989 = vadd.f32 %v578, %v2988
  %v2990 = vpop.f32.mrf.mxu0
  %v2991 = vadd.f32 %v578, %v2990
  %2992 = vmatmul.bf16.gmra.mxu0 %v2088
  %v2993 = vpop.f32.mrf.mxu0
  %v2994 = vadd.f32 %v578, %v2993
  %v2995 = vpop.f32.mrf.mxu0
  %v2996 = vadd.f32 %v578, %v2995
  %2997 = vmatmul.bf16.gmra.mxu0 %v2091
  %v2998 = vpop.f32.mrf.mxu0
  %v2999 = vadd.f32 %v578, %v2998
  %v3000 = vpop.f32.mrf.mxu0
  %v3001 = vadd.f32 %v578, %v3000
  %3002 = vmatmul.bf16.gmra.mxu0 %v2094
  %v3003 = vpop.f32.mrf.mxu0
  %v3004 = vadd.f32 %v578, %v3003
  %v3005 = vpop.f32.mrf.mxu0
  %v3006 = vadd.f32 %v578, %v3005
  %3007 = vmatmul.bf16.gmra.mxu0 %v2097
  %v3008 = vpop.f32.mrf.mxu0
  %v3009 = vadd.f32 %v578, %v3008
  %v3010 = vpop.f32.mrf.mxu0
  %v3011 = vadd.f32 %v578, %v3010
  %3012 = vmatmul.bf16.gmra.mxu0 %v2100
  %v3013 = vpop.f32.mrf.mxu0
  %v3014 = vadd.f32 %v578, %v3013
  %v3015 = vpop.f32.mrf.mxu0
  %v3016 = vadd.f32 %v578, %v3015
  %3017 = vmatmul.bf16.gmra.mxu0 %v2103
  %v3018 = vpop.f32.mrf.mxu0
  %v3019 = vadd.f32 %v578, %v3018
  %v3020 = vpop.f32.mrf.mxu0
  %v3021 = vadd.f32 %v578, %v3020
  %3022 = vmatmul.bf16.gmra.mxu0 %v2106
  %v3023 = vpop.f32.mrf.mxu0
  %v3024 = vadd.f32 %v578, %v3023
  %v3025 = vpop.f32.mrf.mxu0
  %v3026 = vadd.f32 %v578, %v3025
  %3027 = vmatmul.bf16.gmra.mxu0 %v2109
  %v3028 = vpop.f32.mrf.mxu0
  %v3029 = vadd.f32 %v578, %v3028
  %v3030 = vpop.f32.mrf.mxu0
  %v3031 = vadd.f32 %v578, %v3030
  %3032 = vmatmul.bf16.gmra.mxu0 %v2112
  %v3033 = vpop.f32.mrf.mxu0
  %v3034 = vadd.f32 %v578, %v3033
  %v3035 = vpop.f32.mrf.mxu0
  %v3036 = vadd.f32 %v578, %v3035
  %3037 = vmatmul.bf16.gmra.mxu0 %v2115
  %v3038 = vpop.f32.mrf.mxu0
  %v3039 = vadd.f32 %v578, %v3038
  %v3040 = vpop.f32.mrf.mxu0
  %v3041 = vadd.f32 %v578, %v3040
  %3042 = vmatmul.bf16.gmra.mxu0 %v2118
  %v3043 = vpop.f32.mrf.mxu0
  %v3044 = vadd.f32 %v578, %v3043
  %v3045 = vpop.f32.mrf.mxu0
  %v3046 = vadd.f32 %v578, %v3045
  %3047 = vmatmul.bf16.gmra.mxu0 %v2121
  %v3048 = vpop.f32.mrf.mxu0
  %v3049 = vadd.f32 %v578, %v3048
  %v3050 = vpop.f32.mrf.mxu0
  %v3051 = vadd.f32 %v578, %v3050
  %3052 = vmatmul.bf16.gmra.mxu0 %v2124
  %v3053 = vpop.f32.mrf.mxu0
  %v3054 = vadd.f32 %v578, %v3053
  %v3055 = vpop.f32.mrf.mxu0
  %v3056 = vadd.f32 %v578, %v3055
  %3057 = vmatmul.bf16.gmra.mxu0 %v2127
  %v3058 = vpop.f32.mrf.mxu0
  %v3059 = vadd.f32 %v578, %v3058
  %v3060 = vpop.f32.mrf.mxu0
  %v3061 = vadd.f32 %v578, %v3060
  %3062 = vmatmul.bf16.gmra.mxu0 %v2130
  %v3063 = vpop.f32.mrf.mxu0
  %v3064 = vadd.f32 %v578, %v3063
  %v3065 = vpop.f32.mrf.mxu0
  %v3066 = vadd.f32 %v578, %v3065
  %3067 = vmatmul.bf16.gmra.mxu0 %v2133
  %v3068 = vpop.f32.mrf.mxu0
  %v3069 = vadd.f32 %v578, %v3068
  %v3070 = vpop.f32.mrf.mxu0
  %v3071 = vadd.f32 %v578, %v3070
  %3072 = vmatmul.bf16.gmra.mxu0 %v2136
  %v3073 = vpop.f32.mrf.mxu0
  %v3074 = vadd.f32 %v578, %v3073
  %v3075 = vpop.f32.mrf.mxu0
  %v3076 = vadd.f32 %v578, %v3075
  %3077 = vmatmul.bf16.gmra.mxu0 %v2139
  %v3078 = vpop.f32.mrf.mxu0
  %v3079 = vadd.f32 %v578, %v3078
  %v3080 = vpop.f32.mrf.mxu0
  %v3081 = vadd.f32 %v578, %v3080
  %3082 = vmatmul.bf16.gmra.mxu0 %v2142
  %v3083 = vpop.f32.mrf.mxu0
  %v3084 = vadd.f32 %v578, %v3083
  %v3085 = vpop.f32.mrf.mxu0
  %v3086 = vadd.f32 %v578, %v3085
  %3087 = vmatmul.bf16.gmra.mxu0 %v2145
  %v3088 = vpop.f32.mrf.mxu0
  %v3089 = vadd.f32 %v578, %v3088
  %v3090 = vpop.f32.mrf.mxu0
  %v3091 = vadd.f32 %v578, %v3090
  %3092 = vmatmul.bf16.gmra.mxu0 %v2148
  %v3093 = vpop.f32.mrf.mxu0
  %v3094 = vadd.f32 %v578, %v3093
  %v3095 = vpop.f32.mrf.mxu0
  %v3096 = vadd.f32 %v578, %v3095
  %3097 = vmatmul.bf16.gmra.mxu0 %v2151
  %v3098 = vpop.f32.mrf.mxu0
  %v3099 = vadd.f32 %v578, %v3098
  %v3100 = vpop.f32.mrf.mxu0
  %v3101 = vadd.f32 %v578, %v3100
  %3102 = vmatmul.bf16.gmra.mxu0 %v2154
  %v3103 = vpop.f32.mrf.mxu0
  %v3104 = vadd.f32 %v578, %v3103
  %v3105 = vpop.f32.mrf.mxu0
  %v3106 = vadd.f32 %v578, %v3105
  %3107 = vmatmul.bf16.gmra.mxu0 %v2157
  %v3108 = vpop.f32.mrf.mxu0
  %v3109 = vadd.f32 %v578, %v3108
  %v3110 = vpop.f32.mrf.mxu0
  %v3111 = vadd.f32 %v578, %v3110
  %3112 = vmatmul.bf16.gmra.mxu0 %v2160
  %v3113 = vpop.f32.mrf.mxu0
  %v3114 = vadd.f32 %v578, %v3113
  %v3115 = vpop.f32.mrf.mxu0
  %v3116 = vadd.f32 %v578, %v3115
  %3117 = vmatmul.bf16.gmra.mxu0 %v2163
  %v3118 = vpop.f32.mrf.mxu0
  %v3119 = vadd.f32 %v578, %v3118
  %v3120 = vpop.f32.mrf.mxu0
  %v3121 = vadd.f32 %v578, %v3120
  %3122 = vmatmul.bf16.gmra.mxu0 %v2166
  %v3123 = vpop.f32.mrf.mxu0
  %v3124 = vadd.f32 %v578, %v3123
  %v3125 = vpop.f32.mrf.mxu0
  %v3126 = vadd.f32 %v578, %v3125
  %3127 = vmatmul.bf16.gmra.mxu0 %v2169
  %v3128 = vpop.f32.mrf.mxu0
  %v3129 = vadd.f32 %v578, %v3128
  %v3130 = vpop.f32.mrf.mxu0
  %v3131 = vadd.f32 %v578, %v3130
  %3132 = vmatmul.bf16.gmra.mxu0 %v2172
  %v3133 = vpop.f32.mrf.mxu0
  %v3134 = vadd.f32 %v578, %v3133
  %v3135 = vpop.f32.mrf.mxu0
  %v3136 = vadd.f32 %v578, %v3135
  %3137 = vmatmul.bf16.gmra.mxu0 %v2175
  %v3138 = vpop.f32.mrf.mxu0
  %v3139 = vadd.f32 %v578, %v3138
  %v3140 = vpop.f32.mrf.mxu0
  %v3141 = vadd.f32 %v578, %v3140
  %3142 = vmatmul.bf16.gmra.mxu0 %v2178
  %v3143 = vpop.f32.mrf.mxu0
  %v3144 = vadd.f32 %v578, %v3143
  %v3145 = vpop.f32.mrf.mxu0
  %v3146 = vadd.f32 %v578, %v3145
  %3147 = vmatmul.bf16.gmra.mxu0 %v2181
  %v3148 = vpop.f32.mrf.mxu0
  %v3149 = vadd.f32 %v578, %v3148
  %v3150 = vpop.f32.mrf.mxu0
  %v3151 = vadd.f32 %v578, %v3150
  %3152 = vmatmul.bf16.gmra.mxu0 %v2184
  %v3153 = vpop.f32.mrf.mxu0
  %v3154 = vadd.f32 %v578, %v3153
  %v3155 = vpop.f32.mrf.mxu0
  %v3156 = vadd.f32 %v578, %v3155
  %3157 = vmatmul.bf16.gmra.mxu0 %v2187
  %v3158 = vpop.f32.mrf.mxu0
  %v3159 = vadd.f32 %v578, %v3158
  %v3160 = vpop.f32.mrf.mxu0
  %v3161 = vadd.f32 %v578, %v3160
  %3162 = vmatmul.bf16.gmra.mxu0 %v2190
  %v3163 = vpop.f32.mrf.mxu0
  %v3164 = vadd.f32 %v578, %v3163
  %v3165 = vpop.f32.mrf.mxu0
  %v3166 = vadd.f32 %v578, %v3165
  %3167 = vmatmul.bf16.gmra.mxu0 %v2193
  %v3168 = vpop.f32.mrf.mxu0
  %v3169 = vadd.f32 %v578, %v3168
  %v3170 = vpop.f32.mrf.mxu0
  %v3171 = vadd.f32 %v578, %v3170
  %3172 = vmatmul.bf16.gmra.mxu0 %v2196
  %v3173 = vpop.f32.mrf.mxu0
  %v3174 = vadd.f32 %v578, %v3173
  %v3175 = vpop.f32.mrf.mxu0
  %v3176 = vadd.f32 %v578, %v3175
  %3177 = vmatmul.bf16.gmra.mxu0 %v2199
  %v3178 = vpop.f32.mrf.mxu0
  %v3179 = vadd.f32 %v578, %v3178
  %v3180 = vpop.f32.mrf.mxu0
  %v3181 = vadd.f32 %v578, %v3180
  %3182 = vmatmul.bf16.gmra.mxu0 %v2202
  %v3183 = vpop.f32.mrf.mxu0
  %v3184 = vadd.f32 %v578, %v3183
  %v3185 = vpop.f32.mrf.mxu0
  %v3186 = vadd.f32 %v578, %v3185
  %3187 = vmatmul.bf16.gmra.mxu0 %v2205
  %v3188 = vpop.f32.mrf.mxu0
  %v3189 = vadd.f32 %v578, %v3188
  %v3190 = vpop.f32.mrf.mxu0
  %v3191 = vadd.f32 %v578, %v3190
  %3192 = vmatmul.bf16.gmra.mxu0 %v2208
  %v3193 = vpop.f32.mrf.mxu0
  %v3194 = vadd.f32 %v578, %v3193
  %v3195 = vpop.f32.mrf.mxu0
  %v3196 = vadd.f32 %v578, %v3195
  %3197 = vmatmul.bf16.gmra.mxu0 %v2211
  %v3198 = vpop.f32.mrf.mxu0
  %v3199 = vadd.f32 %v578, %v3198
  %v3200 = vpop.f32.mrf.mxu0
  %v3201 = vadd.f32 %v578, %v3200
  %3202 = vmatmul.bf16.gmra.mxu0 %v2214
  %v3203 = vpop.f32.mrf.mxu0
  %v3204 = vadd.f32 %v578, %v3203
  %v3205 = vpop.f32.mrf.mxu0
  %v3206 = vadd.f32 %v578, %v3205
  %3207 = vmatmul.bf16.gmra.mxu0 %v2217
  %v3208 = vpop.f32.mrf.mxu0
  %v3209 = vadd.f32 %v578, %v3208
  %v3210 = vpop.f32.mrf.mxu0
  %v3211 = vadd.f32 %v578, %v3210
  %3212 = vmatmul.bf16.gmra.mxu0 %v2220
  %v3213 = vpop.f32.mrf.mxu0
  %v3214 = vadd.f32 %v578, %v3213
  %v3215 = vpop.f32.mrf.mxu0
  %v3216 = vadd.f32 %v578, %v3215
  %3217 = vmatmul.bf16.gmra.mxu0 %v2223
  %v3218 = vpop.f32.mrf.mxu0
  %v3219 = vadd.f32 %v578, %v3218
  %v3220 = vpop.f32.mrf.mxu0
  %v3221 = vadd.f32 %v578, %v3220
  %3222 = vmatmul.bf16.gmra.mxu0 %v2226
  %v3223 = vpop.f32.mrf.mxu0
  %v3224 = vadd.f32 %v578, %v3223
  %v3225 = vpop.f32.mrf.mxu0
  %v3226 = vadd.f32 %v578, %v3225
  %3227 = vmatmul.bf16.gmra.mxu0 %v2229
  %v3228 = vpop.f32.mrf.mxu0
  %v3229 = vadd.f32 %v578, %v3228
  %v3230 = vpop.f32.mrf.mxu0
  %v3231 = vadd.f32 %v578, %v3230
  %3232 = vmatmul.bf16.gmra.mxu0 %v2232
  %v3233 = vpop.f32.mrf.mxu0
  %v3234 = vadd.f32 %v578, %v3233
  %v3235 = vpop.f32.mrf.mxu0
  %v3236 = vadd.f32 %v578, %v3235
  %3237 = vmatmul.bf16.gmra.mxu0 %v2235
  %v3238 = vpop.f32.mrf.mxu0
  %v3239 = vadd.f32 %v578, %v3238
  %v3240 = vpop.f32.mrf.mxu0
  %v3241 = vadd.f32 %v578, %v3240
  %3242 = vmatmul.bf16.gmra.mxu0 %v2238
  %v3243 = vpop.f32.mrf.mxu0
  %v3244 = vadd.f32 %v578, %v3243
  %v3245 = vpop.f32.mrf.mxu0
  %v3246 = vadd.f32 %v578, %v3245
  %3247 = vmatmul.bf16.gmra.mxu0 %v2241
  %v3248 = vpop.f32.mrf.mxu0
  %v3249 = vadd.f32 %v578, %v3248
  %v3250 = vpop.f32.mrf.mxu0
  %v3251 = vadd.f32 %v578, %v3250
  %3252 = vmatmul.bf16.gmra.mxu0 %v2244
  %v3253 = vpop.f32.mrf.mxu0
  %v3254 = vadd.f32 %v578, %v3253
  %v3255 = vpop.f32.mrf.mxu0
  %v3256 = vadd.f32 %v578, %v3255
  %3257 = vmatmul.bf16.gmra.mxu0 %v2247
  %v3258 = vpop.f32.mrf.mxu0
  %v3259 = vadd.f32 %v578, %v3258
  %v3260 = vpop.f32.mrf.mxu0
  %v3261 = vadd.f32 %v578, %v3260
  %3262 = vmatmul.bf16.gmra.mxu0 %v2250
  %v3263 = vpop.f32.mrf.mxu0
  %v3264 = vadd.f32 %v578, %v3263
  %v3265 = vpop.f32.mrf.mxu0
  %v3266 = vadd.f32 %v578, %v3265
  %3267 = vmatmul.bf16.gmra.mxu0 %v2253
  %v3268 = vpop.f32.mrf.mxu0
  %v3269 = vadd.f32 %v578, %v3268
  %v3270 = vpop.f32.mrf.mxu0
  %v3271 = vadd.f32 %v578, %v3270
  %3272 = vmatmul.bf16.gmra.mxu0 %v2256
  %v3273 = vpop.f32.mrf.mxu0
  %v3274 = vadd.f32 %v578, %v3273
  %v3275 = vpop.f32.mrf.mxu0
  %v3276 = vadd.f32 %v578, %v3275
  %3277 = vmatmul.bf16.gmra.mxu0 %v2259
  %v3278 = vpop.f32.mrf.mxu0
  %v3279 = vadd.f32 %v578, %v3278
  %v3280 = vpop.f32.mrf.mxu0
  %v3281 = vadd.f32 %v578, %v3280
  %3282 = vmatmul.bf16.gmra.mxu0 %v2262
  %v3283 = vpop.f32.mrf.mxu0
  %v3284 = vadd.f32 %v578, %v3283
  %v3285 = vpop.f32.mrf.mxu0
  %v3286 = vadd.f32 %v578, %v3285
  %3287 = vmatmul.bf16.gmra.mxu0 %v2265
  %v3288 = vpop.f32.mrf.mxu0
  %v3289 = vadd.f32 %v578, %v3288
  %v3290 = vpop.f32.mrf.mxu0
  %v3291 = vadd.f32 %v578, %v3290
  %3292 = vmatmul.bf16.gmra.mxu0 %v2268
  %v3293 = vpop.f32.mrf.mxu0
  %v3294 = vadd.f32 %v578, %v3293
  %v3295 = vpop.f32.mrf.mxu0
  %v3296 = vadd.f32 %v578, %v3295
  %3297 = vmatmul.bf16.gmra.mxu0 %v2271
  %v3298 = vpop.f32.mrf.mxu0
  %v3299 = vadd.f32 %v578, %v3298
  %v3300 = vpop.f32.mrf.mxu0
  %v3301 = vadd.f32 %v578, %v3300
  %3302 = vmatmul.bf16.gmra.mxu0 %v2274
  %v3303 = vpop.f32.mrf.mxu0
  %v3304 = vadd.f32 %v578, %v3303
  %v3305 = vpop.f32.mrf.mxu0
  %v3306 = vadd.f32 %v578, %v3305
  %3307 = vmatmul.bf16.gmra.mxu0 %v2277
  %v3308 = vpop.f32.mrf.mxu0
  %v3309 = vadd.f32 %v578, %v3308
  %v3310 = vpop.f32.mrf.mxu0
  %v3311 = vadd.f32 %v578, %v3310
  %3312 = vmatmul.bf16.gmra.mxu0 %v2280
  %v3313 = vpop.f32.mrf.mxu0
  %v3314 = vadd.f32 %v578, %v3313
  %v3315 = vpop.f32.mrf.mxu0
  %v3316 = vadd.f32 %v578, %v3315
  %3317 = vmatmul.bf16.gmra.mxu0 %v2283
  %v3318 = vpop.f32.mrf.mxu0
  %v3319 = vadd.f32 %v578, %v3318
  %v3320 = vpop.f32.mrf.mxu0
  %v3321 = vadd.f32 %v578, %v3320
  %3322 = vmatmul.bf16.gmra.mxu0 %v2286
  %v3323 = vpop.f32.mrf.mxu0
  %v3324 = vadd.f32 %v578, %v3323
  %v3325 = vpop.f32.mrf.mxu0
  %v3326 = vadd.f32 %v578, %v3325
  %3327 = vmatmul.bf16.gmra.mxu0 %v2289
  %v3328 = vpop.f32.mrf.mxu0
  %v3329 = vadd.f32 %v578, %v3328
  %v3330 = vpop.f32.mrf.mxu0
  %v3331 = vadd.f32 %v578, %v3330
  %3332 = vmatmul.bf16.gmra.mxu0 %v2292
  %v3333 = vpop.f32.mrf.mxu0
  %v3334 = vadd.f32 %v578, %v3333
  %v3335 = vpop.f32.mrf.mxu0
  %v3336 = vadd.f32 %v578, %v3335
  %3337 = vmatmul.bf16.gmra.mxu0 %v2295
  %v3338 = vpop.f32.mrf.mxu0
  %v3339 = vadd.f32 %v578, %v3338
  %v3340 = vpop.f32.mrf.mxu0
  %v3341 = vadd.f32 %v578, %v3340
  %3342 = vmatmul.bf16.gmra.mxu0 %v2298
  %v3343 = vpop.f32.mrf.mxu0
  %v3344 = vadd.f32 %v578, %v3343
  %v3345 = vpop.f32.mrf.mxu0
  %v3346 = vadd.f32 %v578, %v3345
  %3347 = vmatmul.bf16.gmra.mxu0 %v2301
  %v3348 = vpop.f32.mrf.mxu0
  %v3349 = vadd.f32 %v578, %v3348
  %v3350 = vpop.f32.mrf.mxu0
  %v3351 = vadd.f32 %v578, %v3350
  %3352 = vmatmul.bf16.gmra.mxu0 %v2304
  %v3353 = vpop.f32.mrf.mxu0
  %v3354 = vadd.f32 %v578, %v3353
  %v3355 = vpop.f32.mrf.mxu0
  %v3356 = vadd.f32 %v578, %v3355
  %3357 = vmatmul.bf16.gmra.mxu0 %v2307
  %v3358 = vpop.f32.mrf.mxu0
  %v3359 = vadd.f32 %v578, %v3358
  %v3360 = vpop.f32.mrf.mxu0
  %v3361 = vadd.f32 %v578, %v3360
  %3362 = vmatmul.bf16.gmra.mxu0 %v2310
  %v3363 = vpop.f32.mrf.mxu0
  %v3364 = vadd.f32 %v578, %v3363
  %v3365 = vpop.f32.mrf.mxu0
  %v3366 = vadd.f32 %v578, %v3365
  %3367 = vmatmul.bf16.gmra.mxu0 %v2313
  %v3368 = vpop.f32.mrf.mxu0
  %v3369 = vadd.f32 %v578, %v3368
  %v3370 = vpop.f32.mrf.mxu0
  %v3371 = vadd.f32 %v578, %v3370
  %3372 = vmatmul.bf16.gmra.mxu0 %v2316
  %v3373 = vpop.f32.mrf.mxu0
  %v3374 = vadd.f32 %v578, %v3373
  %v3375 = vpop.f32.mrf.mxu0
  %v3376 = vadd.f32 %v578, %v3375
  %3377 = vmatmul.bf16.gmra.mxu0 %v2319
  %v3378 = vpop.f32.mrf.mxu0
  %v3379 = vadd.f32 %v578, %v3378
  %v3380 = vpop.f32.mrf.mxu0
  %v3381 = vadd.f32 %v578, %v3380
  %3382 = vmatmul.bf16.gmra.mxu0 %v2322
  %v3383 = vpop.f32.mrf.mxu0
  %v3384 = vadd.f32 %v578, %v3383
  %v3385 = vpop.f32.mrf.mxu0
  %v3386 = vadd.f32 %v578, %v3385
  %3387 = vmatmul.bf16.gmra.mxu0 %v2325
  %v3388 = vpop.f32.mrf.mxu0
  %v3389 = vadd.f32 %v578, %v3388
  %v3390 = vpop.f32.mrf.mxu0
  %v3391 = vadd.f32 %v578, %v3390
  %3392 = vmatmul.bf16.gmra.mxu0 %v2328
  %v3393 = vpop.f32.mrf.mxu0
  %v3394 = vadd.f32 %v578, %v3393
  %v3395 = vpop.f32.mrf.mxu0
  %v3396 = vadd.f32 %v578, %v3395
  %3397 = vmatmul.bf16.gmra.mxu0 %v2331
  %v3398 = vpop.f32.mrf.mxu0
  %v3399 = vadd.f32 %v578, %v3398
  %v3400 = vpop.f32.mrf.mxu0
  %v3401 = vadd.f32 %v578, %v3400
  %3402 = vmatmul.bf16.gmra.mxu0 %v2334
  %v3403 = vpop.f32.mrf.mxu0
  %v3404 = vadd.f32 %v578, %v3403
  %v3405 = vpop.f32.mrf.mxu0
  %v3406 = vadd.f32 %v578, %v3405
  %3407 = vmatmul.bf16.gmra.mxu0 %v2337
  %v3408 = vpop.f32.mrf.mxu0
  %v3409 = vadd.f32 %v578, %v3408
  %v3410 = vpop.f32.mrf.mxu0
  %v3411 = vadd.f32 %v578, %v3410
  %3412 = vmatmul.bf16.gmra.mxu0 %v2340
  %v3413 = vpop.f32.mrf.mxu0
  %v3414 = vadd.f32 %v578, %v3413
  %v3415 = vpop.f32.mrf.mxu0
  %v3416 = vadd.f32 %v578, %v3415
  %3417 = vmatmul.bf16.gmra.mxu0 %v2343
  %v3418 = vpop.f32.mrf.mxu0
  %v3419 = vadd.f32 %v578, %v3418
  %v3420 = vpop.f32.mrf.mxu0
  %v3421 = vadd.f32 %v578, %v3420
  %3422 = vmatmul.bf16.gmra.mxu0 %v2346
  %v3423 = vpop.f32.mrf.mxu0
  %v3424 = vadd.f32 %v578, %v3423
  %v3425 = vpop.f32.mrf.mxu0
  %v3426 = vadd.f32 %v578, %v3425
  %3427 = vmatmul.bf16.gmra.mxu0 %v2349
  %v3428 = vpop.f32.mrf.mxu0
  %v3429 = vadd.f32 %v578, %v3428
  %v3430 = vpop.f32.mrf.mxu0
  %v3431 = vadd.f32 %v578, %v3430
  %3432 = vmatmul.bf16.gmra.mxu0 %v2352
  %v3433 = vpop.f32.mrf.mxu0
  %v3434 = vadd.f32 %v578, %v3433
  %v3435 = vpop.f32.mrf.mxu0
  %v3436 = vadd.f32 %v578, %v3435
  %3437 = vmatmul.bf16.gmra.mxu0 %v2355
  %v3438 = vpop.f32.mrf.mxu0
  %v3439 = vadd.f32 %v578, %v3438
  %v3440 = vpop.f32.mrf.mxu0
  %v3441 = vadd.f32 %v578, %v3440
  %3442 = vmatmul.bf16.gmra.mxu0 %v2358
  %v3443 = vpop.f32.mrf.mxu0
  %v3444 = vadd.f32 %v578, %v3443
  %v3445 = vpop.f32.mrf.mxu0
  %v3446 = vadd.f32 %v578, %v3445
  %3447 = vmatmul.bf16.gmra.mxu0 %v2361
  %v3448 = vpop.f32.mrf.mxu0
  %v3449 = vadd.f32 %v578, %v3448
  %v3450 = vpop.f32.mrf.mxu0
  %v3451 = vadd.f32 %v578, %v3450
  %3452 = vmatmul.bf16.gmra.mxu0 %v2364
  %v3453 = vpop.f32.mrf.mxu0
  %v3454 = vadd.f32 %v578, %v3453
  %v3455 = vpop.f32.mrf.mxu0
  %v3456 = vadd.f32 %v578, %v3455
  %3457 = vmatmul.bf16.gmra.mxu0 %v2367
  %v3458 = vpop.f32.mrf.mxu0
  %v3459 = vadd.f32 %v578, %v3458
  %v3460 = vpop.f32.mrf.mxu0
  %v3461 = vadd.f32 %v578, %v3460
  %3462 = vmatmul.bf16.gmra.mxu0 %v2370
  %v3463 = vpop.f32.mrf.mxu0
  %v3464 = vadd.f32 %v578, %v3463
  %v3465 = vpop.f32.mrf.mxu0
  %v3466 = vadd.f32 %v578, %v3465
  %3467 = vmatmul.bf16.gmra.mxu0 %v2373
  %v3468 = vpop.f32.mrf.mxu0
  %v3469 = vadd.f32 %v578, %v3468
  %v3470 = vpop.f32.mrf.mxu0
  %v3471 = vadd.f32 %v578, %v3470
  %3472 = vmatmul.bf16.gmra.mxu0 %v2376
  %v3473 = vpop.f32.mrf.mxu0
  %v3474 = vadd.f32 %v578, %v3473
  %v3475 = vpop.f32.mrf.mxu0
  %v3476 = vadd.f32 %v578, %v3475
  %3477 = vmatmul.bf16.gmra.mxu0 %v2379
  %v3478 = vpop.f32.mrf.mxu0
  %v3479 = vadd.f32 %v578, %v3478
  %v3480 = vpop.f32.mrf.mxu0
  %v3481 = vadd.f32 %v578, %v3480
  %3482 = vmatmul.bf16.gmra.mxu0 %v2382
  %v3483 = vpop.f32.mrf.mxu0
  %v3484 = vadd.f32 %v578, %v3483
  %v3485 = vpop.f32.mrf.mxu0
  %v3486 = vadd.f32 %v578, %v3485
  %3487 = vmatmul.bf16.gmra.mxu0 %v2385
  %v3488 = vpop.f32.mrf.mxu0
  %v3489 = vadd.f32 %v578, %v3488
  %v3490 = vpop.f32.mrf.mxu0
  %v3491 = vadd.f32 %v578, %v3490
  %3492 = vmatmul.bf16.gmra.mxu0 %v2388
  %v3493 = vpop.f32.mrf.mxu0
  %v3494 = vadd.f32 %v578, %v3493
  %v3495 = vpop.f32.mrf.mxu0
  %v3496 = vadd.f32 %v578, %v3495
  %3497 = vmatmul.bf16.gmra.mxu0 %v2391
  %v3498 = vpop.f32.mrf.mxu0
  %v3499 = vadd.f32 %v578, %v3498
  %v3500 = vpop.f32.mrf.mxu0
  %v3501 = vadd.f32 %v578, %v3500
  %3502 = vmatmul.bf16.gmra.mxu0 %v2394
  %v3503 = vpop.f32.mrf.mxu0
  %v3504 = vadd.f32 %v578, %v3503
  %v3505 = vpop.f32.mrf.mxu0
  %v3506 = vadd.f32 %v578, %v3505
  %3507 = vmatmul.bf16.gmra.mxu0 %v2397
  %v3508 = vpop.f32.mrf.mxu0
  %v3509 = vadd.f32 %v578, %v3508
  %v3510 = vpop.f32.mrf.mxu0
  %v3511 = vadd.f32 %v578, %v3510
  %3512 = vmatmul.bf16.gmra.mxu0 %v2400
  %v3513 = vpop.f32.mrf.mxu0
  %v3514 = vadd.f32 %v578, %v3513
  %v3515 = vpop.f32.mrf.mxu0
  %v3516 = vadd.f32 %v578, %v3515
  %3517 = vmatmul.bf16.gmra.mxu0 %v2403
  %v3518 = vpop.f32.mrf.mxu0
  %v3519 = vadd.f32 %v578, %v3518
  %v3520 = vpop.f32.mrf.mxu0
  %v3521 = vadd.f32 %v578, %v3520
  %3522 = vmatmul.bf16.gmra.mxu0 %v2406
  %v3523 = vpop.f32.mrf.mxu0
  %v3524 = vadd.f32 %v578, %v3523
  %v3525 = vpop.f32.mrf.mxu0
  %v3526 = vadd.f32 %v578, %v3525
  %3527 = vmatmul.bf16.gmra.mxu0 %v2409
  %v3528 = vpop.f32.mrf.mxu0
  %v3529 = vadd.f32 %v578, %v3528
  %v3530 = vpop.f32.mrf.mxu0
  %v3531 = vadd.f32 %v578, %v3530
  %3532 = vmatmul.bf16.gmra.mxu0 %v2412
  %v3533 = vpop.f32.mrf.mxu0
  %v3534 = vadd.f32 %v578, %v3533
  %v3535 = vpop.f32.mrf.mxu0
  %v3536 = vadd.f32 %v578, %v3535
  %3537 = vmatmul.bf16.gmra.mxu0 %v2415
  %v3538 = vpop.f32.mrf.mxu0
  %v3539 = vadd.f32 %v578, %v3538
  %v3540 = vpop.f32.mrf.mxu0
  %v3541 = vadd.f32 %v578, %v3540
  %3542 = vmatmul.bf16.gmra.mxu0 %v2418
  %v3543 = vpop.f32.mrf.mxu0
  %v3544 = vadd.f32 %v578, %v3543
  %v3545 = vpop.f32.mrf.mxu0
  %v3546 = vadd.f32 %v578, %v3545
  %3547 = vmatmul.bf16.gmra.mxu0 %v2421
  %v3548 = vpop.f32.mrf.mxu0
  %v3549 = vadd.f32 %v578, %v3548
  %v3550 = vpop.f32.mrf.mxu0
  %v3551 = vadd.f32 %v578, %v3550
  %3552 = vmatmul.bf16.gmra.mxu0 %v2424
  %v3553 = vpop.f32.mrf.mxu0
  %v3554 = vadd.f32 %v578, %v3553
  %v3555 = vpop.f32.mrf.mxu0
  %v3556 = vadd.f32 %v578, %v3555
  %3557 = vmatmul.bf16.gmra.mxu0 %v2427
  %v3558 = vpop.f32.mrf.mxu0
  %v3559 = vadd.f32 %v578, %v3558
  %v3560 = vpop.f32.mrf.mxu0
  %v3561 = vadd.f32 %v578, %v3560
  %3562 = vmatmul.bf16.gmra.mxu0 %v2430
  %v3563 = vpop.f32.mrf.mxu0
  %v3564 = vadd.f32 %v578, %v3563
  %v3565 = vpop.f32.mrf.mxu0
  %v3566 = vadd.f32 %v578, %v3565
  %3567 = vmatmul.bf16.gmra.mxu0 %v2433
  %v3568 = vpop.f32.mrf.mxu0
  %v3569 = vadd.f32 %v578, %v3568
  %v3570 = vpop.f32.mrf.mxu0
  %v3571 = vadd.f32 %v578, %v3570
  %3572 = vmatmul.bf16.gmra.mxu0 %v2436
  %v3573 = vpop.f32.mrf.mxu0
  %v3574 = vadd.f32 %v578, %v3573
  %v3575 = vpop.f32.mrf.mxu0
  %v3576 = vadd.f32 %v578, %v3575
  %3577 = vmatmul.bf16.gmra.mxu0 %v2439
  %v3578 = vpop.f32.mrf.mxu0
  %v3579 = vadd.f32 %v578, %v3578
  %v3580 = vpop.f32.mrf.mxu0
  %v3581 = vadd.f32 %v578, %v3580
  %3582 = vmatmul.bf16.gmra.mxu0 %v2442
  %v3583 = vpop.f32.mrf.mxu0
  %v3584 = vadd.f32 %v578, %v3583
  %v3585 = vpop.f32.mrf.mxu0
  %v3586 = vadd.f32 %v578, %v3585
  %3587 = vmatmul.bf16.gmra.mxu0 %v2445
  %v3588 = vpop.f32.mrf.mxu0
  %v3589 = vadd.f32 %v578, %v3588
  %v3590 = vpop.f32.mrf.mxu0
  %v3591 = vadd.f32 %v578, %v3590
  %3592 = vmatmul.bf16.gmra.mxu0 %v2448
  %v3593 = vpop.f32.mrf.mxu0
  %v3594 = vadd.f32 %v578, %v3593
  %v3595 = vpop.f32.mrf.mxu0
  %v3596 = vadd.f32 %v578, %v3595
  %3597 = vmatmul.bf16.gmra.mxu0 %v2451
  %v3598 = vpop.f32.mrf.mxu0
  %v3599 = vadd.f32 %v578, %v3598
  %v3600 = vpop.f32.mrf.mxu0
  %v3601 = vadd.f32 %v578, %v3600
  %3602 = vmatmul.bf16.gmra.mxu0 %v2454
  %v3603 = vpop.f32.mrf.mxu0
  %v3604 = vadd.f32 %v578, %v3603
  %v3605 = vpop.f32.mrf.mxu0
  %v3606 = vadd.f32 %v578, %v3605
  %3607 = vmatmul.bf16.gmra.mxu0 %v2457
  %v3608 = vpop.f32.mrf.mxu0
  %v3609 = vadd.f32 %v578, %v3608
  %v3610 = vpop.f32.mrf.mxu0
  %v3611 = vadd.f32 %v578, %v3610
  %3612 = vmatmul.bf16.gmra.mxu0 %v2460
  %v3613 = vpop.f32.mrf.mxu0
  %v3614 = vadd.f32 %v578, %v3613
  %v3615 = vpop.f32.mrf.mxu0
  %v3616 = vadd.f32 %v578, %v3615
  %3617 = vmatmul.bf16.gmra.mxu0 %v2463
  %v3618 = vpop.f32.mrf.mxu0
  %v3619 = vadd.f32 %v578, %v3618
  %v3620 = vpop.f32.mrf.mxu0
  %v3621 = vadd.f32 %v578, %v3620
  %3622 = vmatmul.bf16.gmra.mxu0 %v2466
  %v3623 = vpop.f32.mrf.mxu0
  %v3624 = vadd.f32 %v578, %v3623
  %v3625 = vpop.f32.mrf.mxu0
  %v3626 = vadd.f32 %v578, %v3625
  %3627 = vmatmul.bf16.gmra.mxu0 %v2469
  %v3628 = vpop.f32.mrf.mxu0
  %v3629 = vadd.f32 %v578, %v3628
  %v3630 = vpop.f32.mrf.mxu0
  %v3631 = vadd.f32 %v578, %v3630
  %3632 = vmatmul.bf16.gmra.mxu0 %v2472
  %v3633 = vpop.f32.mrf.mxu0
  %v3634 = vadd.f32 %v578, %v3633
  %v3635 = vpop.f32.mrf.mxu0
  %v3636 = vadd.f32 %v578, %v3635
  %3637 = vmatmul.bf16.gmra.mxu0 %v2475
  %v3638 = vpop.f32.mrf.mxu0
  %v3639 = vadd.f32 %v578, %v3638
  %v3640 = vpop.f32.mrf.mxu0
  %v3641 = vadd.f32 %v578, %v3640
  %3642 = vmatmul.bf16.gmra.mxu0 %v2478
  %v3643 = vpop.f32.mrf.mxu0
  %v3644 = vadd.f32 %v578, %v3643
  %v3645 = vpop.f32.mrf.mxu0
  %v3646 = vadd.f32 %v578, %v3645
  %3647 = vmatmul.bf16.gmra.mxu0 %v2481
  %v3648 = vpop.f32.mrf.mxu0
  %v3649 = vadd.f32 %v578, %v3648
  %v3650 = vpop.f32.mrf.mxu0
  %v3651 = vadd.f32 %v578, %v3650
  %3652 = vmatmul.bf16.gmra.mxu0 %v2484
  %v3653 = vpop.f32.mrf.mxu0
  %v3654 = vadd.f32 %v578, %v3653
  %v3655 = vpop.f32.mrf.mxu0
  %v3656 = vadd.f32 %v578, %v3655
  %3657 = vmatmul.bf16.gmra.mxu0 %v2487
  %v3658 = vpop.f32.mrf.mxu0
  %v3659 = vadd.f32 %v578, %v3658
  %v3660 = vpop.f32.mrf.mxu0
  %v3661 = vadd.f32 %v578, %v3660
  %3662 = vmatmul.bf16.gmra.mxu0 %v2490
  %v3663 = vpop.f32.mrf.mxu0
  %v3664 = vadd.f32 %v578, %v3663
  %v3665 = vpop.f32.mrf.mxu0
  %v3666 = vadd.f32 %v578, %v3665
  %3667 = vmatmul.bf16.gmra.mxu0 %v2493
  %v3668 = vpop.f32.mrf.mxu0
  %v3669 = vadd.f32 %v578, %v3668
  %v3670 = vpop.f32.mrf.mxu0
  %v3671 = vadd.f32 %v578, %v3670
  %3672 = vmatmul.bf16.gmra.mxu0 %v2496
  %v3673 = vpop.f32.mrf.mxu0
  %v3674 = vadd.f32 %v578, %v3673
  %v3675 = vpop.f32.mrf.mxu0
  %v3676 = vadd.f32 %v578, %v3675
  %3677 = vmatmul.bf16.gmra.mxu0 %v2499
  %v3678 = vpop.f32.mrf.mxu0
  %v3679 = vadd.f32 %v578, %v3678
  %v3680 = vpop.f32.mrf.mxu0
  %v3681 = vadd.f32 %v578, %v3680
  %3682 = vmatmul.bf16.gmra.mxu0 %v2502
  %v3683 = vpop.f32.mrf.mxu0
  %v3684 = vadd.f32 %v578, %v3683
  %v3685 = vpop.f32.mrf.mxu0
  %v3686 = vadd.f32 %v578, %v3685
  %3687 = vmatmul.bf16.gmra.mxu0 %v2505
  %v3688 = vpop.f32.mrf.mxu0
  %v3689 = vadd.f32 %v578, %v3688
  %v3690 = vpop.f32.mrf.mxu0
  %v3691 = vadd.f32 %v578, %v3690
  %3692 = vmatmul.bf16.gmra.mxu0 %v2508
  %v3693 = vpop.f32.mrf.mxu0
  %v3694 = vadd.f32 %v578, %v3693
  %v3695 = vpop.f32.mrf.mxu0
  %v3696 = vadd.f32 %v578, %v3695
  %3697 = vmatmul.bf16.gmra.mxu0 %v2511
  %v3698 = vpop.f32.mrf.mxu0
  %v3699 = vadd.f32 %v578, %v3698
  %v3700 = vpop.f32.mrf.mxu0
  %v3701 = vadd.f32 %v578, %v3700
  %3702 = vmatmul.bf16.gmra.mxu0 %v2514
  %v3703 = vpop.f32.mrf.mxu0
  %v3704 = vadd.f32 %v578, %v3703
  %v3705 = vpop.f32.mrf.mxu0
  %v3706 = vadd.f32 %v578, %v3705
  %3707 = vmatmul.bf16.gmra.mxu0 %v2517
  %v3708 = vpop.f32.mrf.mxu0
  %v3709 = vadd.f32 %v578, %v3708
  %v3710 = vpop.f32.mrf.mxu0
  %v3711 = vadd.f32 %v578, %v3710
  %3712 = vmatmul.bf16.gmra.mxu0 %v2520
  %v3713 = vpop.f32.mrf.mxu0
  %v3714 = vadd.f32 %v578, %v3713
  %v3715 = vpop.f32.mrf.mxu0
  %v3716 = vadd.f32 %v578, %v3715
  %3717 = vmatmul.bf16.gmra.mxu0 %v2523
  %v3718 = vpop.f32.mrf.mxu0
  %v3719 = vadd.f32 %v578, %v3718
  %v3720 = vpop.f32.mrf.mxu0
  %v3721 = vadd.f32 %v578, %v3720
  %3722 = vmatmul.bf16.gmra.mxu0 %v2526
  %v3723 = vpop.f32.mrf.mxu0
  %v3724 = vadd.f32 %v578, %v3723
  %v3725 = vpop.f32.mrf.mxu0
  %v3726 = vadd.f32 %v578, %v3725
  %3727 = vmatmul.bf16.gmra.mxu0 %v2529
  %v3728 = vpop.f32.mrf.mxu0
  %v3729 = vadd.f32 %v578, %v3728
  %v3730 = vpop.f32.mrf.mxu0
  %v3731 = vadd.f32 %v578, %v3730
  %3732 = vmatmul.bf16.gmra.mxu0 %v2532
  %v3733 = vpop.f32.mrf.mxu0
  %v3734 = vadd.f32 %v578, %v3733
  %v3735 = vpop.f32.mrf.mxu0
  %v3736 = vadd.f32 %v578, %v3735
  %3737 = vmatmul.bf16.gmra.mxu0 %v2535
  %v3738 = vpop.f32.mrf.mxu0
  %v3739 = vadd.f32 %v578, %v3738
  %v3740 = vpop.f32.mrf.mxu0
  %v3741 = vadd.f32 %v578, %v3740
  %3742 = vmatmul.bf16.gmra.mxu0 %v2538
  %v3743 = vpop.f32.mrf.mxu0
  %v3744 = vadd.f32 %v578, %v3743
  %v3745 = vpop.f32.mrf.mxu0
  %v3746 = vadd.f32 %v578, %v3745
  %3747 = vmatmul.bf16.gmra.mxu0 %v2541
  %v3748 = vpop.f32.mrf.mxu0
  %v3749 = vadd.f32 %v578, %v3748
  %v3750 = vpop.f32.mrf.mxu0
  %v3751 = vadd.f32 %v578, %v3750
  %3752 = vmatmul.bf16.gmra.mxu0 %v2544
  %v3753 = vpop.f32.mrf.mxu0
  %v3754 = vadd.f32 %v578, %v3753
  %v3755 = vpop.f32.mrf.mxu0
  %v3756 = vadd.f32 %v578, %v3755
  %3757 = vmatmul.bf16.gmra.mxu0 %v2547
  %v3758 = vpop.f32.mrf.mxu0
  %v3759 = vadd.f32 %v578, %v3758
  %v3760 = vpop.f32.mrf.mxu0
  %v3761 = vadd.f32 %v578, %v3760
  %3762 = vmatmul.bf16.gmra.mxu0 %v2550
  %v3763 = vpop.f32.mrf.mxu0
  %v3764 = vadd.f32 %v578, %v3763
  %v3765 = vpop.f32.mrf.mxu0
  %v3766 = vadd.f32 %v578, %v3765
  %3767 = vmatmul.bf16.gmra.mxu0 %v2553
  %v3768 = vpop.f32.mrf.mxu0
  %v3769 = vadd.f32 %v578, %v3768
  %v3770 = vpop.f32.mrf.mxu0
  %v3771 = vadd.f32 %v578, %v3770
  %3772 = vmatmul.bf16.gmra.mxu0 %v2556
  %v3773 = vpop.f32.mrf.mxu0
  %v3774 = vadd.f32 %v578, %v3773
  %v3775 = vpop.f32.mrf.mxu0
  %v3776 = vadd.f32 %v578, %v3775
  %3777 = vmatmul.bf16.gmra.mxu0 %v2559
  %v3778 = vpop.f32.mrf.mxu0
  %v3779 = vadd.f32 %v578, %v3778
  %v3780 = vpop.f32.mrf.mxu0
  %v3781 = vadd.f32 %v578, %v3780
  %3782 = vmatmul.bf16.gmra.mxu0 %v2562
  %v3783 = vpop.f32.mrf.mxu0
  %v3784 = vadd.f32 %v578, %v3783
  %v3785 = vpop.f32.mrf.mxu0
  %v3786 = vadd.f32 %v578, %v3785
  %3787 = vmatmul.bf16.gmra.mxu0 %v2565
  %v3788 = vpop.f32.mrf.mxu0
  %v3789 = vadd.f32 %v578, %v3788
  %v3790 = vpop.f32.mrf.mxu0
  %v3791 = vadd.f32 %v578, %v3790
  %3792 = vmatmul.bf16.gmra.mxu0 %v2568
  %v3793 = vpop.f32.mrf.mxu0
  %v3794 = vadd.f32 %v578, %v3793
  %v3795 = vpop.f32.mrf.mxu0
  %v3796 = vadd.f32 %v578, %v3795
  %3797 = vmatmul.bf16.gmra.mxu0 %v2571
  %v3798 = vpop.f32.mrf.mxu0
  %v3799 = vadd.f32 %v578, %v3798
  %v3800 = vpop.f32.mrf.mxu0
  %v3801 = vadd.f32 %v578, %v3800
  %3802 = vmatmul.bf16.gmra.mxu0 %v2574
  %v3803 = vpop.f32.mrf.mxu0
  %v3804 = vadd.f32 %v578, %v3803
  %v3805 = vpop.f32.mrf.mxu0
  %v3806 = vadd.f32 %v578, %v3805
  %3807 = vmatmul.bf16.gmra.mxu0 %v2577
  %v3808 = vpop.f32.mrf.mxu0
  %v3809 = vadd.f32 %v578, %v3808
  %v3810 = vpop.f32.mrf.mxu0
  %v3811 = vadd.f32 %v578, %v3810
  %3812 = vmatmul.bf16.gmra.mxu0 %v2580
  %v3813 = vpop.f32.mrf.mxu0
  %v3814 = vadd.f32 %v578, %v3813
  %v3815 = vpop.f32.mrf.mxu0
  %v3816 = vadd.f32 %v578, %v3815
  %3817 = vmatmul.bf16.gmra.mxu0 %v2583
  %v3818 = vpop.f32.mrf.mxu0
  %v3819 = vadd.f32 %v578, %v3818
  %v3820 = vpop.f32.mrf.mxu0
  %v3821 = vadd.f32 %v578, %v3820
  %3822 = vmatmul.bf16.gmra.mxu0 %v2586
  %v3823 = vpop.f32.mrf.mxu0
  %v3824 = vadd.f32 %v578, %v3823
  %v3825 = vpop.f32.mrf.mxu0
  %v3826 = vadd.f32 %v578, %v3825
  %3827 = vmatmul.bf16.gmra.mxu0 %v2589
  %v3828 = vpop.f32.mrf.mxu0
  %v3829 = vadd.f32 %v578, %v3828
  %v3830 = vpop.f32.mrf.mxu0
  %v3831 = vadd.f32 %v578, %v3830
  %3832 = vmatmul.bf16.gmra.mxu0 %v2592
  %v3833 = vpop.f32.mrf.mxu0
  %v3834 = vadd.f32 %v578, %v3833
  %v3835 = vpop.f32.mrf.mxu0
  %v3836 = vadd.f32 %v578, %v3835
  %3837 = vmatmul.bf16.gmra.mxu0 %v2595
  %v3838 = vpop.f32.mrf.mxu0
  %v3839 = vadd.f32 %v578, %v3838
  %v3840 = vpop.f32.mrf.mxu0
  %v3841 = vadd.f32 %v578, %v3840
  %3842 = vmatmul.bf16.gmra.mxu0 %v2598
  %v3843 = vpop.f32.mrf.mxu0
  %v3844 = vadd.f32 %v578, %v3843
  %v3845 = vpop.f32.mrf.mxu0
  %v3846 = vadd.f32 %v578, %v3845
  %3847 = vmatmul.bf16.gmra.mxu0 %v2601
  %v3848 = vpop.f32.mrf.mxu0
  %v3849 = vadd.f32 %v578, %v3848
  %v3850 = vpop.f32.mrf.mxu0
  %v3851 = vadd.f32 %v578, %v3850
  %3852 = vmatmul.bf16.gmra.mxu0 %v2604
  %v3853 = vpop.f32.mrf.mxu0
  %v3854 = vadd.f32 %v578, %v3853
  %v3855 = vpop.f32.mrf.mxu0
  %v3856 = vadd.f32 %v578, %v3855
  %3857 = vmatmul.bf16.gmra.mxu0 %v2607
  %v3858 = vpop.f32.mrf.mxu0
  %v3859 = vadd.f32 %v578, %v3858
  %v3860 = vpop.f32.mrf.mxu0
  %v3861 = vadd.f32 %v578, %v3860
  %3862 = vmatmul.bf16.gmra.mxu0 %v2610
  %v3863 = vpop.f32.mrf.mxu0
  %v3864 = vadd.f32 %v578, %v3863
  %v3865 = vpop.f32.mrf.mxu0
  %v3866 = vadd.f32 %v578, %v3865
  %3867 = vmatmul.bf16.gmra.mxu0 %v2613
  %v3868 = vpop.f32.mrf.mxu0
  %v3869 = vadd.f32 %v578, %v3868
  %v3870 = vpop.f32.mrf.mxu0
  %v3871 = vadd.f32 %v578, %v3870
  %3872 = vmatmul.bf16.gmra.mxu0 %v2616
  %v3873 = vpop.f32.mrf.mxu0
  %v3874 = vadd.f32 %v578, %v3873
  %v3875 = vpop.f32.mrf.mxu0
  %v3876 = vadd.f32 %v578, %v3875
  %3877 = vmatmul.bf16.gmra.mxu0 %v2619
  %v3878 = vpop.f32.mrf.mxu0
  %v3879 = vadd.f32 %v578, %v3878
  %v3880 = vpop.f32.mrf.mxu0
  %v3881 = vadd.f32 %v578, %v3880
  %3882 = vmatmul.bf16.gmra.mxu0 %v2622
  %v3883 = vpop.f32.mrf.mxu0
  %v3884 = vadd.f32 %v578, %v3883
  %v3885 = vpop.f32.mrf.mxu0
  %v3886 = vadd.f32 %v578, %v3885
  %3887 = vmatmul.bf16.gmra.mxu0 %v2625
  %v3888 = vpop.f32.mrf.mxu0
  %v3889 = vadd.f32 %v578, %v3888
  %v3890 = vpop.f32.mrf.mxu0
  %v3891 = vadd.f32 %v578, %v3890
  %3892 = vmatmul.bf16.gmra.mxu0 %v2628
  %v3893 = vpop.f32.mrf.mxu0
  %v3894 = vadd.f32 %v578, %v3893
  %v3895 = vpop.f32.mrf.mxu0
  %v3896 = vadd.f32 %v578, %v3895
  %3897 = vmatmul.bf16.gmra.mxu0 %v2631
  %v3898 = vpop.f32.mrf.mxu0
  %v3899 = vadd.f32 %v578, %v3898
  %v3900 = vpop.f32.mrf.mxu0
  %v3901 = vadd.f32 %v578, %v3900
  %3902 = vmatmul.bf16.gmra.mxu0 %v2634
  %v3903 = vpop.f32.mrf.mxu0
  %v3904 = vadd.f32 %v578, %v3903
  %v3905 = vpop.f32.mrf.mxu0
  %v3906 = vadd.f32 %v578, %v3905
  %3907 = vmatmul.bf16.gmra.mxu0 %v2637
  %v3908 = vpop.f32.mrf.mxu0
  %v3909 = vadd.f32 %v578, %v3908
  %v3910 = vpop.f32.mrf.mxu0
  %v3911 = vadd.f32 %v578, %v3910
  %3912 = vmatmul.bf16.gmra.mxu0 %v2640
  %v3913 = vpop.f32.mrf.mxu0
  %v3914 = vadd.f32 %v578, %v3913
  %v3915 = vpop.f32.mrf.mxu0
  %v3916 = vadd.f32 %v578, %v3915
  %3917 = vmatmul.bf16.gmra.mxu0 %v2643
  %v3918 = vpop.f32.mrf.mxu0
  %v3919 = vadd.f32 %v578, %v3918
  %v3920 = vpop.f32.mrf.mxu0
  %v3921 = vadd.f32 %v578, %v3920
  %3922 = vmatmul.bf16.gmra.mxu0 %v2646
  %v3923 = vpop.f32.mrf.mxu0
  %v3924 = vadd.f32 %v578, %v3923
  %v3925 = vpop.f32.mrf.mxu0
  %v3926 = vadd.f32 %v578, %v3925
  %3927 = vmatmul.bf16.gmra.mxu0 %v2649
  %v3928 = vpop.f32.mrf.mxu0
  %v3929 = vadd.f32 %v578, %v3928
  %v3930 = vpop.f32.mrf.mxu0
  %v3931 = vadd.f32 %v578, %v3930
  %3932 = vmatmul.bf16.gmra.mxu0 %v2652
  %v3933 = vpop.f32.mrf.mxu0
  %v3934 = vadd.f32 %v578, %v3933
  %v3935 = vpop.f32.mrf.mxu0
  %v3936 = vadd.f32 %v578, %v3935
  %3937 = vmatmul.bf16.gmra.mxu0 %v2655
  %v3938 = vpop.f32.mrf.mxu0
  %v3939 = vadd.f32 %v578, %v3938
  %v3940 = vpop.f32.mrf.mxu0
  %v3941 = vadd.f32 %v578, %v3940
  %3942 = vmatmul.bf16.gmra.mxu0 %v2658
  %v3943 = vpop.f32.mrf.mxu0
  %v3944 = vadd.f32 %v578, %v3943
  %v3945 = vpop.f32.mrf.mxu0
  %v3946 = vadd.f32 %v578, %v3945
  %3947 = vmatmul.bf16.gmra.mxu0 %v2661
  %v3948 = vpop.f32.mrf.mxu0
  %v3949 = vadd.f32 %v578, %v3948
  %v3950 = vpop.f32.mrf.mxu0
  %v3951 = vadd.f32 %v578, %v3950
  %3952 = vmatmul.bf16.gmra.mxu0 %v2664
  %v3953 = vpop.f32.mrf.mxu0
  %v3954 = vadd.f32 %v578, %v3953
  %v3955 = vpop.f32.mrf.mxu0
  %v3956 = vadd.f32 %v578, %v3955
  %3957 = vmatmul.bf16.gmra.mxu0 %v2667
  %v3958 = vpop.f32.mrf.mxu0
  %v3959 = vadd.f32 %v578, %v3958
  %v3960 = vpop.f32.mrf.mxu0
  %v3961 = vadd.f32 %v578, %v3960
  %3962 = vmatmul.bf16.gmra.mxu0 %v2670
  %v3963 = vpop.f32.mrf.mxu0
  %v3964 = vadd.f32 %v578, %v3963
  %v3965 = vpop.f32.mrf.mxu0
  %v3966 = vadd.f32 %v578, %v3965
  %3967 = vmatmul.bf16.gmra.mxu0 %v2673
  %v3968 = vpop.f32.mrf.mxu0
  %v3969 = vadd.f32 %v578, %v3968
  %v3970 = vpop.f32.mrf.mxu0
  %v3971 = vadd.f32 %v578, %v3970
  %3972 = vmatmul.bf16.gmra.mxu0 %v2676
  %v3973 = vpop.f32.mrf.mxu0
  %v3974 = vadd.f32 %v578, %v3973
  %v3975 = vpop.f32.mrf.mxu0
  %v3976 = vadd.f32 %v578, %v3975
  %3977 = vmatmul.bf16.gmra.mxu0 %v2679
  %v3978 = vpop.f32.mrf.mxu0
  %v3979 = vadd.f32 %v578, %v3978
  %v3980 = vpop.f32.mrf.mxu0
  %v3981 = vadd.f32 %v578, %v3980
  %3982 = vmatmul.bf16.gmra.mxu0 %v2682
  %v3983 = vpop.f32.mrf.mxu0
  %v3984 = vadd.f32 %v578, %v3983
  %v3985 = vpop.f32.mrf.mxu0
  %v3986 = vadd.f32 %v578, %v3985
  %3987 = vmatmul.bf16.gmra.mxu0 %v2685
  %v3988 = vpop.f32.mrf.mxu0
  %v3989 = vadd.f32 %v578, %v3988
  %v3990 = vpop.f32.mrf.mxu0
  %v3991 = vadd.f32 %v578, %v3990
  %3992 = vmatmul.bf16.gmra.mxu0 %v2688
  %v3993 = vpop.f32.mrf.mxu0
  %v3994 = vadd.f32 %v578, %v3993
  %v3995 = vpop.f32.mrf.mxu0
  %v3996 = vadd.f32 %v578, %v3995
  %3997 = vmatmul.bf16.gmra.mxu0 %v2691
  %v3998 = vpop.f32.mrf.mxu0
  %v3999 = vadd.f32 %v578, %v3998
  %v4000 = vpop.f32.mrf.mxu0
  %v4001 = vadd.f32 %v578, %v4000
  %4002 = vmatmul.bf16.gmra.mxu0 %v2694
  %v4003 = vpop.f32.mrf.mxu0
  %v4004 = vadd.f32 %v578, %v4003
  %v4005 = vpop.f32.mrf.mxu0
  %v4006 = vadd.f32 %v578, %v4005
  %4007 = vmatmul.bf16.gmra.mxu0 %v2697
  %v4008 = vpop.f32.mrf.mxu0
  %v4009 = vadd.f32 %v578, %v4008
  %v4010 = vpop.f32.mrf.mxu0
  %v4011 = vadd.f32 %v578, %v4010
  %4012 = vmatmul.bf16.gmra.mxu0 %v2700
  %v4013 = vpop.f32.mrf.mxu0
  %v4014 = vadd.f32 %v578, %v4013
  %v4015 = vpop.f32.mrf.mxu0
  %v4016 = vadd.f32 %v578, %v4015
  %4017 = vmatmul.bf16.gmra.mxu0 %v2703
  %v4018 = vpop.f32.mrf.mxu0
  %v4019 = vadd.f32 %v578, %v4018
  %v4020 = vpop.f32.mrf.mxu0
  %v4021 = vadd.f32 %v578, %v4020
  %4022 = vmatmul.bf16.gmra.mxu0 %v2706
  %v4023 = vpop.f32.mrf.mxu0
  %v4024 = vadd.f32 %v578, %v4023
  %v4025 = vpop.f32.mrf.mxu0
  %v4026 = vadd.f32 %v578, %v4025
  %4027 = vmatmul.bf16.gmra.mxu0 %v2709
  %v4028 = vpop.f32.mrf.mxu0
  %v4029 = vadd.f32 %v578, %v4028
  %v4030 = vpop.f32.mrf.mxu0
  %v4031 = vadd.f32 %v578, %v4030
  %4032 = vmatmul.bf16.gmra.mxu0 %v2712
  %v4033 = vpop.f32.mrf.mxu0
  %v4034 = vadd.f32 %v578, %v4033
  %v4035 = vpop.f32.mrf.mxu0
  %v4036 = vadd.f32 %v578, %v4035
  %4037 = vmatmul.bf16.gmra.mxu0 %v2715
  %v4038 = vpop.f32.mrf.mxu0
  %v4039 = vadd.f32 %v578, %v4038
  %v4040 = vpop.f32.mrf.mxu0
  %v4041 = vadd.f32 %v578, %v4040
  %4042 = vmatmul.bf16.gmra.mxu0 %v2718
  %v4043 = vpop.f32.mrf.mxu0
  %v4044 = vadd.f32 %v578, %v4043
  %v4045 = vpop.f32.mrf.mxu0
  %v4046 = vadd.f32 %v578, %v4045
  %4047 = vmatmul.bf16.gmra.mxu0 %v2721
  %v4048 = vpop.f32.mrf.mxu0
  %v4049 = vadd.f32 %v578, %v4048
  %v4050 = vpop.f32.mrf.mxu0
  %v4051 = vadd.f32 %v578, %v4050
  %4052 = vmatmul.bf16.gmra.mxu0 %v2724
  %v4053 = vpop.f32.mrf.mxu0
  %v4054 = vadd.f32 %v578, %v4053
  %v4055 = vpop.f32.mrf.mxu0
  %v4056 = vadd.f32 %v578, %v4055
  %4057 = vmatmul.bf16.gmra.mxu0 %v2727
  %v4058 = vpop.f32.mrf.mxu0
  %v4059 = vadd.f32 %v578, %v4058
  %v4060 = vpop.f32.mrf.mxu0
  %v4061 = vadd.f32 %v578, %v4060
  %4062 = vmatmul.bf16.gmra.mxu0 %v2730
  %v4063 = vpop.f32.mrf.mxu0
  %v4064 = vadd.f32 %v578, %v4063
  %v4065 = vpop.f32.mrf.mxu0
  %v4066 = vadd.f32 %v578, %v4065
  %4067 = vmatmul.bf16.gmra.mxu0 %v2733
  %v4068 = vpop.f32.mrf.mxu0
  %v4069 = vadd.f32 %v578, %v4068
  %v4070 = vpop.f32.mrf.mxu0
  %v4071 = vadd.f32 %v578, %v4070
  %4072 = vmatmul.bf16.gmra.mxu0 %v2736
  %v4073 = vpop.f32.mrf.mxu0
  %v4074 = vadd.f32 %v578, %v4073
  %v4075 = vpop.f32.mrf.mxu0
  %v4076 = vadd.f32 %v578, %v4075
  %4077 = vmatmul.bf16.gmra.mxu0 %v2739
  %v4078 = vpop.f32.mrf.mxu0
  %v4079 = vadd.f32 %v578, %v4078
  %v4080 = vpop.f32.mrf.mxu0
  %v4081 = vadd.f32 %v578, %v4080
  %4082 = vmatmul.bf16.gmra.mxu0 %v2742
  %v4083 = vpop.f32.mrf.mxu0
  %v4084 = vadd.f32 %v578, %v4083
  %v4085 = vpop.f32.mrf.mxu0
  %v4086 = vadd.f32 %v578, %v4085
  %4087 = vmatmul.bf16.gmra.mxu0 %v2745
  %v4088 = vpop.f32.mrf.mxu0
  %v4089 = vadd.f32 %v578, %v4088
  %v4090 = vpop.f32.mrf.mxu0
  %v4091 = vadd.f32 %v578, %v4090
  %4092 = vmatmul.bf16.gmra.mxu0 %v2748
  %v4093 = vpop.f32.mrf.mxu0
  %v4094 = vadd.f32 %v578, %v4093
  %v4095 = vpop.f32.mrf.mxu0
  %v4096 = vadd.f32 %v578, %v4095
  %4097 = vmatmul.bf16.gmra.mxu0 %v2751
  %v4098 = vpop.f32.mrf.mxu0
  %v4099 = vadd.f32 %v578, %v4098
  %v4100 = vpop.f32.mrf.mxu0
  %v4101 = vadd.f32 %v578, %v4100
  %4102 = vmatmul.bf16.gmra.mxu0 %v2754
  %v4103 = vpop.f32.mrf.mxu0
  %v4104 = vadd.f32 %v578, %v4103
  %v4105 = vpop.f32.mrf.mxu0
  %v4106 = vadd.f32 %v578, %v4105
  %4107 = vmatmul.bf16.gmra.mxu0 %v2757
  %v4108 = vpop.f32.mrf.mxu0
  %v4109 = vadd.f32 %v578, %v4108
  %v4110 = vpop.f32.mrf.mxu0
  %v4111 = vadd.f32 %v578, %v4110
  %4112 = vmatmul.bf16.gmra.mxu0 %v2760
  %v4113 = vpop.f32.mrf.mxu0
  %v4114 = vadd.f32 %v578, %v4113
  %v4115 = vpop.f32.mrf.mxu0
  %v4116 = vadd.f32 %v578, %v4115
  %4117 = vmatmul.bf16.gmra.mxu0 %v2763
  %v4118 = vpop.f32.mrf.mxu0
  %v4119 = vadd.f32 %v578, %v4118
  %v4120 = vpop.f32.mrf.mxu0
  %v4121 = vadd.f32 %v578, %v4120
  %4122 = vmatmul.bf16.gmra.mxu0 %v2766
  %v4123 = vpop.f32.mrf.mxu0
  %v4124 = vadd.f32 %v578, %v4123
  %v4125 = vpop.f32.mrf.mxu0
  %v4126 = vadd.f32 %v578, %v4125
  %4127 = vmatmul.bf16.gmra.mxu0 %v2769
  %v4128 = vpop.f32.mrf.mxu0
  %v4129 = vadd.f32 %v578, %v4128
  %v4130 = vpop.f32.mrf.mxu0
  %v4131 = vadd.f32 %v578, %v4130
  %4132 = vmatmul.bf16.gmra.mxu0 %v2772
  %v4133 = vpop.f32.mrf.mxu0
  %v4134 = vadd.f32 %v578, %v4133
  %v4135 = vpop.f32.mrf.mxu0
  %v4136 = vadd.f32 %v578, %v4135
  %4137 = vmatmul.bf16.gmra.mxu0 %v2775
  %v4138 = vpop.f32.mrf.mxu0
  %v4139 = vadd.f32 %v578, %v4138
  %v4140 = vpop.f32.mrf.mxu0
  %v4141 = vadd.f32 %v578, %v4140
  %4142 = vmatmul.bf16.gmra.mxu0 %v2778
  %v4143 = vpop.f32.mrf.mxu0
  %v4144 = vadd.f32 %v578, %v4143
  %v4145 = vpop.f32.mrf.mxu0
  %v4146 = vadd.f32 %v578, %v4145
  %4147 = vmatmul.bf16.gmra.mxu0 %v2781
  %v4148 = vpop.f32.mrf.mxu0
  %v4149 = vadd.f32 %v578, %v4148
  %v4150 = vpop.f32.mrf.mxu0
  %v4151 = vadd.f32 %v578, %v4150
  %4152 = vmatmul.bf16.gmra.mxu0 %v2784
  %v4153 = vpop.f32.mrf.mxu0
  %v4154 = vadd.f32 %v578, %v4153
  %v4155 = vpop.f32.mrf.mxu0
  %v4156 = vadd.f32 %v578, %v4155
  %4157 = vmatmul.bf16.gmra.mxu0 %v2787
  %v4158 = vpop.f32.mrf.mxu0
  %v4159 = vadd.f32 %v578, %v4158
  %v4160 = vpop.f32.mrf.mxu0
  %v4161 = vadd.f32 %v578, %v4160
  %4162 = vmatmul.bf16.gmra.mxu0 %v2790
  %v4163 = vpop.f32.mrf.mxu0
  %v4164 = vadd.f32 %v578, %v4163
  %v4165 = vpop.f32.mrf.mxu0
  %v4166 = vadd.f32 %v578, %v4165
  %4167 = vmatmul.bf16.gmra.mxu0 %v2793
  %v4168 = vpop.f32.mrf.mxu0
  %v4169 = vadd.f32 %v578, %v4168
  %v4170 = vpop.f32.mrf.mxu0
  %v4171 = vadd.f32 %v578, %v4170
  %4172 = vmatmul.bf16.gmra.mxu0 %v2796
  %v4173 = vpop.f32.mrf.mxu0
  %v4174 = vadd.f32 %v578, %v4173
  %v4175 = vpop.f32.mrf.mxu0
  %v4176 = vadd.f32 %v578, %v4175
  %4177 = vmatmul.bf16.gmra.mxu0 %v2799
  %v4178 = vpop.f32.mrf.mxu0
  %v4179 = vadd.f32 %v578, %v4178
  %v4180 = vpop.f32.mrf.mxu0
  %v4181 = vadd.f32 %v578, %v4180
  %4182 = vmatmul.bf16.gmra.mxu0 %v2802
  %v4183 = vpop.f32.mrf.mxu0
  %v4184 = vadd.f32 %v578, %v4183
  %v4185 = vpop.f32.mrf.mxu0
  %v4186 = vadd.f32 %v578, %v4185
  %4187 = vmatmul.bf16.gmra.mxu0 %v2805
  %v4188 = vpop.f32.mrf.mxu0
  %v4189 = vadd.f32 %v578, %v4188
  %v4190 = vpop.f32.mrf.mxu0
  %v4191 = vadd.f32 %v578, %v4190
  %4192 = vmatmul.bf16.gmra.mxu0 %v2808
  %v4193 = vpop.f32.mrf.mxu0
  %v4194 = vadd.f32 %v578, %v4193
  %v4195 = vpop.f32.mrf.mxu0
  %v4196 = vadd.f32 %v578, %v4195
  %4197 = vmatmul.bf16.gmra.mxu0 %v2811
  %v4198 = vpop.f32.mrf.mxu0
  %v4199 = vadd.f32 %v578, %v4198
  %v4200 = vpop.f32.mrf.mxu0
  %v4201 = vadd.f32 %v578, %v4200
  %4202 = vmatmul.bf16.gmra.mxu0 %v2814
  %v4203 = vpop.f32.mrf.mxu0
  %v4204 = vadd.f32 %v578, %v4203
  %v4205 = vpop.f32.mrf.mxu0
  %v4206 = vadd.f32 %v578, %v4205
  %4207 = vmatmul.bf16.gmra.mxu0 %v2817
  %v4208 = vpop.f32.mrf.mxu0
  %v4209 = vadd.f32 %v578, %v4208
  %v4210 = vpop.f32.mrf.mxu0
  %4211 = vdwg.mxu0
  %v4212 = vmax.f32 %v2829, 0.0
  %v4213 = vmax.f32 %v2831, 0.0
  %v4214 = vmax.f32 %v2834, 0.0
  %v4215 = vmax.f32 %v2836, 0.0
  %v4216 = vmax.f32 %v2839, 0.0
  %v4217 = vmax.f32 %v2841, 0.0
  %v4218 = vmax.f32 %v2844, 0.0
  %v4219 = vmax.f32 %v2846, 0.0
  %v4220 = vmax.f32 %v2849, 0.0
  %v4221 = vmax.f32 %v2851, 0.0
  %v4222 = vmax.f32 %v2854, 0.0
  %v4223 = vmax.f32 %v2856, 0.0
  %v4224 = vmax.f32 %v2859, 0.0
  %v4225 = vmax.f32 %v2861, 0.0
  %v4226 = vmax.f32 %v2864, 0.0
  %v4227 = vmax.f32 %v2866, 0.0
  %v4228 = vmax.f32 %v2869, 0.0
  %v4229 = vmax.f32 %v2871, 0.0
  %v4230 = vmax.f32 %v2874, 0.0
  %v4231 = vmax.f32 %v2876, 0.0
  %v4232 = vmax.f32 %v2879, 0.0
  %v4233 = vmax.f32 %v2881, 0.0
  %v4234 = vmax.f32 %v2884, 0.0
  %v4235 = vmax.f32 %v2886, 0.0
  %v4236 = vmax.f32 %v2889, 0.0
  %v4237 = vmax.f32 %v2891, 0.0
  %v4238 = vmax.f32 %v2894, 0.0
  %v4239 = vmax.f32 %v2896, 0.0
  %v4240 = vmax.f32 %v2899, 0.0
  %v4241 = vmax.f32 %v2901, 0.0
  %v4242 = vmax.f32 %v2904, 0.0
  %v4243 = vmax.f32 %v2906, 0.0
  %v4244 = vmax.f32 %v2909, 0.0
  %v4245 = vmax.f32 %v2911, 0.0
  %v4246 = vmax.f32 %v2914, 0.0
  %v4247 = vmax.f32 %v2916, 0.0
  %v4248 = vmax.f32 %v2919, 0.0
  %v4249 = vmax.f32 %v2921, 0.0
  %v4250 = vmax.f32 %v2924, 0.0
  %v4251 = vmax.f32 %v2926, 0.0
  %v4252 = vmax.f32 %v2929, 0.0
  %v4253 = vmax.f32 %v2931, 0.0
  %v4254 = vmax.f32 %v2934, 0.0
  %v4255 = vmax.f32 %v2936, 0.0
  %v4256 = vmax.f32 %v2939, 0.0
  %v4257 = vmax.f32 %v2941, 0.0
  %v4258 = vmax.f32 %v2944, 0.0
  %v4259 = vmax.f32 %v2946, 0.0
  %v4260 = vmax.f32 %v2949, 0.0
  %v4261 = vmax.f32 %v2951, 0.0
  %v4262 = vmax.f32 %v2954, 0.0
  %v4263 = vmax.f32 %v2956, 0.0
  %v4264 = vmax.f32 %v2959, 0.0
  %v4265 = vmax.f32 %v2961, 0.0
  %v4266 = vmax.f32 %v2964, 0.0
  %v4267 = vmax.f32 %v2966, 0.0
  %v4268 = vmax.f32 %v2969, 0.0
  %v4269 = vmax.f32 %v2971, 0.0
  %v4270 = vmax.f32 %v2974, 0.0
  %v4271 = vmax.f32 %v2976, 0.0
  %v4272 = vmax.f32 %v2979, 0.0
  %v4273 = vmax.f32 %v2981, 0.0
  %v4274 = vmax.f32 %v2984, 0.0
  %v4275 = vmax.f32 %v2986, 0.0
  %v4276 = vmax.f32 %v2989, 0.0
  %v4277 = vmax.f32 %v2991, 0.0
  %v4278 = vmax.f32 %v2994, 0.0
  %v4279 = vmax.f32 %v2996, 0.0
  %v4280 = vmax.f32 %v2999, 0.0
  %v4281 = vmax.f32 %v3001, 0.0
  %v4282 = vmax.f32 %v3004, 0.0
  %v4283 = vmax.f32 %v3006, 0.0
  %v4284 = vmax.f32 %v3009, 0.0
  %v4285 = vmax.f32 %v3011, 0.0
  %v4286 = vmax.f32 %v3014, 0.0
  %v4287 = vmax.f32 %v3016, 0.0
  %v4288 = vmax.f32 %v3019, 0.0
  %v4289 = vmax.f32 %v3021, 0.0
  %v4290 = vmax.f32 %v3024, 0.0
  %v4291 = vmax.f32 %v3026, 0.0
  %v4292 = vmax.f32 %v3029, 0.0
  %v4293 = vmax.f32 %v3031, 0.0
  %v4294 = vmax.f32 %v3034, 0.0
  %v4295 = vmax.f32 %v3036, 0.0
  %v4296 = vmax.f32 %v3039, 0.0
  %v4297 = vmax.f32 %v3041, 0.0
  %v4298 = vmax.f32 %v3044, 0.0
  %v4299 = vmax.f32 %v3046, 0.0
  %v4300 = vmax.f32 %v3049, 0.0
  %v4301 = vmax.f32 %v3051, 0.0
  %v4302 = vmax.f32 %v3054, 0.0
  %v4303 = vmax.f32 %v3056, 0.0
  %v4304 = vmax.f32 %v3059, 0.0
  %v4305 = vmax.f32 %v3061, 0.0
  %v4306 = vmax.f32 %v3064, 0.0
  %v4307 = vmax.f32 %v3066, 0.0
  %v4308 = vmax.f32 %v3069, 0.0
  %v4309 = vmax.f32 %v3071, 0.0
  %v4310 = vmax.f32 %v3074, 0.0
  %v4311 = vmax.f32 %v3076, 0.0
  %v4312 = vmax.f32 %v3079, 0.0
  %v4313 = vmax.f32 %v3081, 0.0
  %v4314 = vmax.f32 %v3084, 0.0
  %v4315 = vmax.f32 %v3086, 0.0
  %v4316 = vmax.f32 %v3089, 0.0
  %v4317 = vmax.f32 %v3091, 0.0
  %v4318 = vmax.f32 %v3094, 0.0
  %v4319 = vmax.f32 %v3096, 0.0
  %v4320 = vmax.f32 %v3099, 0.0
  %v4321 = vmax.f32 %v3101, 0.0
  %v4322 = vmax.f32 %v3104, 0.0
  %v4323 = vmax.f32 %v3106, 0.0
  %v4324 = vmax.f32 %v3109, 0.0
  %v4325 = vmax.f32 %v3111, 0.0
  %v4326 = vmax.f32 %v3114, 0.0
  %v4327 = vmax.f32 %v3116, 0.0
  %v4328 = vmax.f32 %v3119, 0.0
  %v4329 = vmax.f32 %v3121, 0.0
  %v4330 = vmax.f32 %v3124, 0.0
  %v4331 = vmax.f32 %v3126, 0.0
  %v4332 = vmax.f32 %v3129, 0.0
  %v4333 = vmax.f32 %v3131, 0.0
  %v4334 = vmax.f32 %v3134, 0.0
  %v4335 = vmax.f32 %v3136, 0.0
  %v4336 = vmax.f32 %v3139, 0.0
  %v4337 = vmax.f32 %v3141, 0.0
  %v4338 = vmax.f32 %v3144, 0.0
  %v4339 = vmax.f32 %v3146, 0.0
  %v4340 = vmax.f32 %v3149, 0.0
  %v4341 = vmax.f32 %v3151, 0.0
  %v4342 = vmax.f32 %v3154, 0.0
  %v4343 = vmax.f32 %v3156, 0.0
  %v4344 = vmax.f32 %v3159, 0.0
  %v4345 = vmax.f32 %v3161, 0.0
  %v4346 = vmax.f32 %v3164, 0.0
  %v4347 = vmax.f32 %v3166, 0.0
  %v4348 = vmax.f32 %v3169, 0.0
  %v4349 = vmax.f32 %v3171, 0.0
  %v4350 = vmax.f32 %v3174, 0.0
  %v4351 = vmax.f32 %v3176, 0.0
  %v4352 = vmax.f32 %v3179, 0.0
  %v4353 = vmax.f32 %v3181, 0.0
  %v4354 = vmax.f32 %v3184, 0.0
  %v4355 = vmax.f32 %v3186, 0.0
  %v4356 = vmax.f32 %v3189, 0.0
  %v4357 = vmax.f32 %v3191, 0.0
  %v4358 = vmax.f32 %v3194, 0.0
  %v4359 = vmax.f32 %v3196, 0.0
  %v4360 = vmax.f32 %v3199, 0.0
  %v4361 = vmax.f32 %v3201, 0.0
  %v4362 = vmax.f32 %v3204, 0.0
  %v4363 = vmax.f32 %v3206, 0.0
  %v4364 = vmax.f32 %v3209, 0.0
  %v4365 = vmax.f32 %v3211, 0.0
  %v4366 = vmax.f32 %v3214, 0.0
  %v4367 = vmax.f32 %v3216, 0.0
  %v4368 = vmax.f32 %v3219, 0.0
  %v4369 = vmax.f32 %v3221, 0.0
  %v4370 = vmax.f32 %v3224, 0.0
  %v4371 = vmax.f32 %v3226, 0.0
  %v4372 = vmax.f32 %v3229, 0.0
  %v4373 = vmax.f32 %v3231, 0.0
  %v4374 = vmax.f32 %v3234, 0.0
  %v4375 = vmax.f32 %v3236, 0.0
  %v4376 = vmax.f32 %v3239, 0.0
  %v4377 = vmax.f32 %v3241, 0.0
  %v4378 = vmax.f32 %v3244, 0.0
  %v4379 = vmax.f32 %v3246, 0.0
  %v4380 = vmax.f32 %v3249, 0.0
  %v4381 = vmax.f32 %v3251, 0.0
  %v4382 = vmax.f32 %v3254, 0.0
  %v4383 = vmax.f32 %v3256, 0.0
  %v4384 = vmax.f32 %v3259, 0.0
  %v4385 = vmax.f32 %v3261, 0.0
  %v4386 = vmax.f32 %v3264, 0.0
  %v4387 = vmax.f32 %v3266, 0.0
  %v4388 = vmax.f32 %v3269, 0.0
  %v4389 = vmax.f32 %v3271, 0.0
  %v4390 = vmax.f32 %v3274, 0.0
  %v4391 = vmax.f32 %v3276, 0.0
  %v4392 = vmax.f32 %v3279, 0.0
  %v4393 = vmax.f32 %v3281, 0.0
  %v4394 = vmax.f32 %v3284, 0.0
  %v4395 = vmax.f32 %v3286, 0.0
  %v4396 = vmax.f32 %v3289, 0.0
  %v4397 = vmax.f32 %v3291, 0.0
  %v4398 = vmax.f32 %v3294, 0.0
  %v4399 = vmax.f32 %v3296, 0.0
  %v4400 = vmax.f32 %v3299, 0.0
  %v4401 = vmax.f32 %v3301, 0.0
  %v4402 = vmax.f32 %v3304, 0.0
  %v4403 = vmax.f32 %v3306, 0.0
  %v4404 = vmax.f32 %v3309, 0.0
  %v4405 = vmax.f32 %v3311, 0.0
  %v4406 = vmax.f32 %v3314, 0.0
  %v4407 = vmax.f32 %v3316, 0.0
  %v4408 = vmax.f32 %v3319, 0.0
  %v4409 = vmax.f32 %v3321, 0.0
  %v4410 = vmax.f32 %v3324, 0.0
  %v4411 = vmax.f32 %v3326, 0.0
  %v4412 = vmax.f32 %v3329, 0.0
  %v4413 = vmax.f32 %v3331, 0.0
  %v4414 = vmax.f32 %v3334, 0.0
  %v4415 = vmax.f32 %v3336, 0.0
  %v4416 = vmax.f32 %v3339, 0.0
  %v4417 = vmax.f32 %v3341, 0.0
  %v4418 = vmax.f32 %v3344, 0.0
  %v4419 = vmax.f32 %v3346, 0.0
  %v4420 = vmax.f32 %v3349, 0.0
  %v4421 = vmax.f32 %v3351, 0.0
  %v4422 = vmax.f32 %v3354, 0.0
  %v4423 = vmax.f32 %v3356, 0.0
  %v4424 = vmax.f32 %v3359, 0.0
  %v4425 = vmax.f32 %v3361, 0.0
  %v4426 = vmax.f32 %v3364, 0.0
  %v4427 = vmax.f32 %v3366, 0.0
  %v4428 = vmax.f32 %v3369, 0.0
  %v4429 = vmax.f32 %v3371, 0.0
  %v4430 = vmax.f32 %v3374, 0.0
  %v4431 = vmax.f32 %v3376, 0.0
  %v4432 = vmax.f32 %v3379, 0.0
  %v4433 = vmax.f32 %v3381, 0.0
  %v4434 = vmax.f32 %v3384, 0.0
  %v4435 = vmax.f32 %v3386, 0.0
  %v4436 = vmax.f32 %v3389, 0.0
  %v4437 = vmax.f32 %v3391, 0.0
  %v4438 = vmax.f32 %v3394, 0.0
  %v4439 = vmax.f32 %v3396, 0.0
  %v4440 = vmax.f32 %v3399, 0.0
  %v4441 = vmax.f32 %v3401, 0.0
  %v4442 = vmax.f32 %v3404, 0.0
  %v4443 = vmax.f32 %v3406, 0.0
  %v4444 = vmax.f32 %v3409, 0.0
  %v4445 = vmax.f32 %v3411, 0.0
  %v4446 = vmax.f32 %v3414, 0.0
  %v4447 = vmax.f32 %v3416, 0.0
  %v4448 = vmax.f32 %v3419, 0.0
  %v4449 = vmax.f32 %v3421, 0.0
  %v4450 = vmax.f32 %v3424, 0.0
  %v4451 = vmax.f32 %v3426, 0.0
  %v4452 = vmax.f32 %v3429, 0.0
  %v4453 = vmax.f32 %v3431, 0.0
  %v4454 = vmax.f32 %v3434, 0.0
  %v4455 = vmax.f32 %v3436, 0.0
  %v4456 = vmax.f32 %v3439, 0.0
  %v4457 = vmax.f32 %v3441, 0.0
  %v4458 = vmax.f32 %v3444, 0.0
  %v4459 = vmax.f32 %v3446, 0.0
  %v4460 = vmax.f32 %v3449, 0.0
  %v4461 = vmax.f32 %v3451, 0.0
  %v4462 = vmax.f32 %v3454, 0.0
  %v4463 = vmax.f32 %v3456, 0.0
  %v4464 = vmax.f32 %v3459, 0.0
  %v4465 = vmax.f32 %v3461, 0.0
  %v4466 = vmax.f32 %v3464, 0.0
  %v4467 = vmax.f32 %v3466, 0.0
  %v4468 = vmax.f32 %v3469, 0.0
  %v4469 = vmax.f32 %v3471, 0.0
  %v4470 = vmax.f32 %v3474, 0.0
  %v4471 = vmax.f32 %v3476, 0.0
  %v4472 = vmax.f32 %v3479, 0.0
  %v4473 = vmax.f32 %v3481, 0.0
  %v4474 = vmax.f32 %v3484, 0.0
  %v4475 = vmax.f32 %v3486, 0.0
  %v4476 = vmax.f32 %v3489, 0.0
  %v4477 = vmax.f32 %v3491, 0.0
  %v4478 = vmax.f32 %v3494, 0.0
  %v4479 = vmax.f32 %v3496, 0.0
  %v4480 = vmax.f32 %v3499, 0.0
  %v4481 = vmax.f32 %v3501, 0.0
  %v4482 = vmax.f32 %v3504, 0.0
  %v4483 = vmax.f32 %v3506, 0.0
  %v4484 = vmax.f32 %v3509, 0.0
  %v4485 = vmax.f32 %v3511, 0.0
  %v4486 = vmax.f32 %v3514, 0.0
  %v4487 = vmax.f32 %v3516, 0.0
  %v4488 = vmax.f32 %v3519, 0.0
  %v4489 = vmax.f32 %v3521, 0.0
  %v4490 = vmax.f32 %v3524, 0.0
  %v4491 = vmax.f32 %v3526, 0.0
  %v4492 = vmax.f32 %v3529, 0.0
  %v4493 = vmax.f32 %v3531, 0.0
  %v4494 = vmax.f32 %v3534, 0.0
  %v4495 = vmax.f32 %v3536, 0.0
  %v4496 = vmax.f32 %v3539, 0.0
  %v4497 = vmax.f32 %v3541, 0.0
  %v4498 = vmax.f32 %v3544, 0.0
  %v4499 = vmax.f32 %v3546, 0.0
  %v4500 = vmax.f32 %v3549, 0.0
  %v4501 = vmax.f32 %v3551, 0.0
  %v4502 = vmax.f32 %v3554, 0.0
  %v4503 = vmax.f32 %v3556, 0.0
  %v4504 = vmax.f32 %v3559, 0.0
  %v4505 = vmax.f32 %v3561, 0.0
  %v4506 = vmax.f32 %v3564, 0.0
  %v4507 = vmax.f32 %v3566, 0.0
  %v4508 = vmax.f32 %v3569, 0.0
  %v4509 = vmax.f32 %v3571, 0.0
  %v4510 = vmax.f32 %v3574, 0.0
  %v4511 = vmax.f32 %v3576, 0.0
  %v4512 = vmax.f32 %v3579, 0.0
  %v4513 = vmax.f32 %v3581, 0.0
  %v4514 = vmax.f32 %v3584, 0.0
  %v4515 = vmax.f32 %v3586, 0.0
  %v4516 = vmax.f32 %v3589, 0.0
  %v4517 = vmax.f32 %v3591, 0.0
  %v4518 = vmax.f32 %v3594, 0.0
  %v4519 = vmax.f32 %v3596, 0.0
  %v4520 = vmax.f32 %v3599, 0.0
  %v4521 = vmax.f32 %v3601, 0.0
  %v4522 = vmax.f32 %v3604, 0.0
  %v4523 = vmax.f32 %v3606, 0.0
  %v4524 = vmax.f32 %v3609, 0.0
  %v4525 = vmax.f32 %v3611, 0.0
  %v4526 = vmax.f32 %v3614, 0.0
  %v4527 = vmax.f32 %v3616, 0.0
  %v4528 = vmax.f32 %v3619, 0.0
  %v4529 = vmax.f32 %v3621, 0.0
  %v4530 = vmax.f32 %v3624, 0.0
  %v4531 = vmax.f32 %v3626, 0.0
  %v4532 = vmax.f32 %v3629, 0.0
  %v4533 = vmax.f32 %v3631, 0.0
  %v4534 = vmax.f32 %v3634, 0.0
  %v4535 = vmax.f32 %v3636, 0.0
  %v4536 = vmax.f32 %v3639, 0.0
  %v4537 = vmax.f32 %v3641, 0.0
  %v4538 = vmax.f32 %v3644, 0.0
  %v4539 = vmax.f32 %v3646, 0.0
  %v4540 = vmax.f32 %v3649, 0.0
  %v4541 = vmax.f32 %v3651, 0.0
  %v4542 = vmax.f32 %v3654, 0.0
  %v4543 = vmax.f32 %v3656, 0.0
  %v4544 = vmax.f32 %v3659, 0.0
  %v4545 = vmax.f32 %v3661, 0.0
  %v4546 = vmax.f32 %v3664, 0.0
  %v4547 = vmax.f32 %v3666, 0.0
  %v4548 = vmax.f32 %v3669, 0.0
  %v4549 = vmax.f32 %v3671, 0.0
  %v4550 = vmax.f32 %v3674, 0.0
  %v4551 = vmax.f32 %v3676, 0.0
  %v4552 = vmax.f32 %v3679, 0.0
  %v4553 = vmax.f32 %v3681, 0.0
  %v4554 = vmax.f32 %v3684, 0.0
  %v4555 = vmax.f32 %v3686, 0.0
  %v4556 = vmax.f32 %v3689, 0.0
  %v4557 = vmax.f32 %v3691, 0.0
  %v4558 = vmax.f32 %v3694, 0.0
  %v4559 = vmax.f32 %v3696, 0.0
  %v4560 = vmax.f32 %v3699, 0.0
  %v4561 = vmax.f32 %v3701, 0.0
  %v4562 = vmax.f32 %v3704, 0.0
  %v4563 = vmax.f32 %v3706, 0.0
  %v4564 = vmax.f32 %v3709, 0.0
  %v4565 = vmax.f32 %v3711, 0.0
  %v4566 = vmax.f32 %v3714, 0.0
  %v4567 = vmax.f32 %v3716, 0.0
  %v4568 = vmax.f32 %v3719, 0.0
  %v4569 = vmax.f32 %v3721, 0.0
  %v4570 = vmax.f32 %v3724, 0.0
  %v4571 = vmax.f32 %v3726, 0.0
  %v4572 = vmax.f32 %v3729, 0.0
  %v4573 = vmax.f32 %v3731, 0.0
  %v4574 = vmax.f32 %v3734, 0.0
  %v4575 = vmax.f32 %v3736, 0.0
  %v4576 = vmax.f32 %v3739, 0.0
  %v4577 = vmax.f32 %v3741, 0.0
  %v4578 = vmax.f32 %v3744, 0.0
  %v4579 = vmax.f32 %v3746, 0.0
  %v4580 = vmax.f32 %v3749, 0.0
  %v4581 = vmax.f32 %v3751, 0.0
  %v4582 = vmax.f32 %v3754, 0.0
  %v4583 = vmax.f32 %v3756, 0.0
  %v4584 = vmax.f32 %v3759, 0.0
  %v4585 = vmax.f32 %v3761, 0.0
  %v4586 = vmax.f32 %v3764, 0.0
  %v4587 = vmax.f32 %v3766, 0.0
  %v4588 = vmax.f32 %v3769, 0.0
  %v4589 = vmax.f32 %v3771, 0.0
  %v4590 = vmax.f32 %v3774, 0.0
  %v4591 = vmax.f32 %v3776, 0.0
  %v4592 = vmax.f32 %v3779, 0.0
  %v4593 = vmax.f32 %v3781, 0.0
  %v4594 = vmax.f32 %v3784, 0.0
  %v4595 = vmax.f32 %v3786, 0.0
  %v4596 = vmax.f32 %v3789, 0.0
  %v4597 = vmax.f32 %v3791, 0.0
  %v4598 = vmax.f32 %v3794, 0.0
  %v4599 = vmax.f32 %v3796, 0.0
  %v4600 = vmax.f32 %v3799, 0.0
  %v4601 = vmax.f32 %v3801, 0.0
  %v4602 = vmax.f32 %v3804, 0.0
  %v4603 = vmax.f32 %v3806, 0.0
  %v4604 = vmax.f32 %v3809, 0.0
  %v4605 = vmax.f32 %v3811, 0.0
  %v4606 = vmax.f32 %v3814, 0.0
  %v4607 = vmax.f32 %v3816, 0.0
  %v4608 = vmax.f32 %v3819, 0.0
  %v4609 = vmax.f32 %v3821, 0.0
  %v4610 = vmax.f32 %v3824, 0.0
  %v4611 = vmax.f32 %v3826, 0.0
  %v4612 = vmax.f32 %v3829, 0.0
  %v4613 = vmax.f32 %v3831, 0.0
  %v4614 = vmax.f32 %v3834, 0.0
  %v4615 = vmax.f32 %v3836, 0.0
  %v4616 = vmax.f32 %v3839, 0.0
  %v4617 = vmax.f32 %v3841, 0.0
  %v4618 = vmax.f32 %v3844, 0.0
  %v4619 = vmax.f32 %v3846, 0.0
  %v4620 = vmax.f32 %v3849, 0.0
  %v4621 = vmax.f32 %v3851, 0.0
  %v4622 = vmax.f32 %v3854, 0.0
  %v4623 = vmax.f32 %v3856, 0.0
  %v4624 = vmax.f32 %v3859, 0.0
  %v4625 = vmax.f32 %v3861, 0.0
  %v4626 = vmax.f32 %v3864, 0.0
  %v4627 = vmax.f32 %v3866, 0.0
  %v4628 = vmax.f32 %v3869, 0.0
  %v4629 = vmax.f32 %v3871, 0.0
  %v4630 = vmax.f32 %v3874, 0.0
  %v4631 = vmax.f32 %v3876, 0.0
  %v4632 = vmax.f32 %v3879, 0.0
  %v4633 = vmax.f32 %v3881, 0.0
  %v4634 = vmax.f32 %v3884, 0.0
  %v4635 = vmax.f32 %v3886, 0.0
  %v4636 = vmax.f32 %v3889, 0.0
  %v4637 = vmax.f32 %v3891, 0.0
  %v4638 = vmax.f32 %v3894, 0.0
  %v4639 = vmax.f32 %v3896, 0.0
  %v4640 = vmax.f32 %v3899, 0.0
  %v4641 = vmax.f32 %v3901, 0.0
  %v4642 = vmax.f32 %v3904, 0.0
  %v4643 = vmax.f32 %v3906, 0.0
  %v4644 = vmax.f32 %v3909, 0.0
  %v4645 = vmax.f32 %v3911, 0.0
  %v4646 = vmax.f32 %v3914, 0.0
  %v4647 = vmax.f32 %v3916, 0.0
  %v4648 = vmax.f32 %v3919, 0.0
  %v4649 = vmax.f32 %v3921, 0.0
  %v4650 = vmax.f32 %v3924, 0.0
  %v4651 = vmax.f32 %v3926, 0.0
  %v4652 = vmax.f32 %v3929, 0.0
  %v4653 = vmax.f32 %v3931, 0.0
  %v4654 = vmax.f32 %v3934, 0.0
  %v4655 = vmax.f32 %v3936, 0.0
  %v4656 = vmax.f32 %v3939, 0.0
  %v4657 = vmax.f32 %v3941, 0.0
  %v4658 = vmax.f32 %v3944, 0.0
  %v4659 = vmax.f32 %v3946, 0.0
  %v4660 = vmax.f32 %v3949, 0.0
  %v4661 = vmax.f32 %v3951, 0.0
  %v4662 = vmax.f32 %v3954, 0.0
  %v4663 = vmax.f32 %v3956, 0.0
  %v4664 = vmax.f32 %v3959, 0.0
  %v4665 = vmax.f32 %v3961, 0.0
  %v4666 = vmax.f32 %v3964, 0.0
  %v4667 = vmax.f32 %v3966, 0.0
  %v4668 = vmax.f32 %v3969, 0.0
  %v4669 = vmax.f32 %v3971, 0.0
  %v4670 = vmax.f32 %v3974, 0.0
  %v4671 = vmax.f32 %v3976, 0.0
  %v4672 = vmax.f32 %v3979, 0.0
  %v4673 = vmax.f32 %v3981, 0.0
  %v4674 = vmax.f32 %v3984, 0.0
  %v4675 = vmax.f32 %v3986, 0.0
  %v4676 = vmax.f32 %v3989, 0.0
  %v4677 = vmax.f32 %v3991, 0.0
  %v4678 = vmax.f32 %v3994, 0.0
  %v4679 = vmax.f32 %v3996, 0.0
  %v4680 = vmax.f32 %v3999, 0.0
  %v4681 = vmax.f32 %v4001, 0.0
  %v4682 = vmax.f32 %v4004, 0.0
  %v4683 = vmax.f32 %v4006, 0.0
  %v4684 = vmax.f32 %v4009, 0.0
  %v4685 = vmax.f32 %v4011, 0.0
  %v4686 = vmax.f32 %v4014, 0.0
  %v4687 = vmax.f32 %v4016, 0.0
  %v4688 = vmax.f32 %v4019, 0.0
  %v4689 = vmax.f32 %v4021, 0.0
  %v4690 = vmax.f32 %v4024, 0.0
  %v4691 = vmax.f32 %v4026, 0.0
  %v4692 = vmax.f32 %v4029, 0.0
  %v4693 = vmax.f32 %v4031, 0.0
  %v4694 = vmax.f32 %v4034, 0.0
  %v4695 = vmax.f32 %v4036, 0.0
  %v4696 = vmax.f32 %v4039, 0.0
  %v4697 = vmax.f32 %v4041, 0.0
  %v4698 = vmax.f32 %v4044, 0.0
  %v4699 = vmax.f32 %v4046, 0.0
  %v4700 = vmax.f32 %v4049, 0.0
  %v4701 = vmax.f32 %v4051, 0.0
  %v4702 = vmax.f32 %v4054, 0.0
  %v4703 = vmax.f32 %v4056, 0.0
  %v4704 = vmax.f32 %v4059, 0.0
  %v4705 = vmax.f32 %v4061, 0.0
  %v4706 = vmax.f32 %v4064, 0.0
  %v4707 = vmax.f32 %v4066, 0.0
  %v4708 = vmax.f32 %v4069, 0.0
  %v4709 = vmax.f32 %v4071, 0.0
  %v4710 = vmax.f32 %v4074, 0.0
  %v4711 = vmax.f32 %v4076, 0.0
  %v4712 = vmax.f32 %v4079, 0.0
  %v4713 = vmax.f32 %v4081, 0.0
  %v4714 = vmax.f32 %v4084, 0.0
  %v4715 = vmax.f32 %v4086, 0.0
  %v4716 = vmax.f32 %v4089, 0.0
  %v4717 = vmax.f32 %v4091, 0.0
  %v4718 = vmax.f32 %v4094, 0.0
  %v4719 = vmax.f32 %v4096, 0.0
  %v4720 = vmax.f32 %v4099, 0.0
  %v4721 = vmax.f32 %v4101, 0.0
  %v4722 = vmax.f32 %v4104, 0.0
  %v4723 = vmax.f32 %v4106, 0.0
  %v4724 = vmax.f32 %v4109, 0.0
  %v4725 = vmax.f32 %v4111, 0.0
  %v4726 = vmax.f32 %v4114, 0.0
  %v4727 = vmax.f32 %v4116, 0.0
  %v4728 = vmax.f32 %v4119, 0.0
  %v4729 = vmax.f32 %v4121, 0.0
  %v4730 = vmax.f32 %v4124, 0.0
  %v4731 = vmax.f32 %v4126, 0.0
  %v4732 = vmax.f32 %v4129, 0.0
  %v4733 = vmax.f32 %v4131, 0.0
  %v4734 = vmax.f32 %v4134, 0.0
  %v4735 = vmax.f32 %v4136, 0.0
  %v4736 = vmax.f32 %v4139, 0.0
  %v4737 = vmax.f32 %v4141, 0.0
  %v4738 = vmax.f32 %v4144, 0.0
  %v4739 = vmax.f32 %v4146, 0.0
  %v4740 = vmax.f32 %v4149, 0.0
  %v4741 = vmax.f32 %v4151, 0.0
  %v4742 = vmax.f32 %v4154, 0.0
  %v4743 = vmax.f32 %v4156, 0.0
  %v4744 = vmax.f32 %v4159, 0.0
  %v4745 = vmax.f32 %v4161, 0.0
  %v4746 = vmax.f32 %v4164, 0.0
  %v4747 = vmax.f32 %v4166, 0.0
  %v4748 = vmax.f32 %v4169, 0.0
  %v4749 = vmax.f32 %v4171, 0.0
  %v4750 = vmax.f32 %v4174, 0.0
  %v4751 = vmax.f32 %v4176, 0.0
  %v4752 = vmax.f32 %v4179, 0.0
  %v4753 = vmax.f32 %v4181, 0.0
  %v4754 = vmax.f32 %v4184, 0.0
  %v4755 = vmax.f32 %v4186, 0.0
  %v4756 = vmax.f32 %v4189, 0.0
  %v4757 = vmax.f32 %v4191, 0.0
  %v4758 = vmax.f32 %v4194, 0.0
  %v4759 = vmax.f32 %v4196, 0.0
  %v4760 = vmax.f32 %v4199, 0.0
  %v4761 = vmax.f32 %v4201, 0.0
  %v4762 = vmax.f32 %v4204, 0.0
  %v4763 = vmax.f32 %v4206, 0.0
  %v4764 = vmax.f32 %v4209, 0.0
  %v4765 = vpack.c.bf16 %v4212, %v4212
  %v4766 = vpack.c.bf16 %v4213, %v4213
  %v4767 = vpack.c.bf16 %v4214, %v4214
  %v4768 = vpack.c.bf16 %v4215, %v4215
  %v4769 = vpack.c.bf16 %v4216, %v4216
  %v4770 = vpack.c.bf16 %v4217, %v4217
  %v4771 = vpack.c.bf16 %v4218, %v4218
  %v4772 = vpack.c.bf16 %v4219, %v4219
  %v4773 = vpack.c.bf16 %v4220, %v4220
  %v4774 = vpack.c.bf16 %v4221, %v4221
  %v4775 = vpack.c.bf16 %v4222, %v4222
  %v4776 = vpack.c.bf16 %v4223, %v4223
  %v4777 = vpack.c.bf16 %v4224, %v4224
  %v4778 = vpack.c.bf16 %v4225, %v4225
  %v4779 = vpack.c.bf16 %v4226, %v4226
  %v4780 = vpack.c.bf16 %v4227, %v4227
  %v4781 = vpack.c.bf16 %v4228, %v4228
  %v4782 = vpack.c.bf16 %v4229, %v4229
  %v4783 = vpack.c.bf16 %v4230, %v4230
  %v4784 = vpack.c.bf16 %v4231, %v4231
  %v4785 = vpack.c.bf16 %v4232, %v4232
  %v4786 = vpack.c.bf16 %v4233, %v4233
  %v4787 = vpack.c.bf16 %v4234, %v4234
  %v4788 = vpack.c.bf16 %v4235, %v4235
  %v4789 = vpack.c.bf16 %v4236, %v4236
  %v4790 = vpack.c.bf16 %v4237, %v4237
  %v4791 = vpack.c.bf16 %v4238, %v4238
  %v4792 = vpack.c.bf16 %v4239, %v4239
  %v4793 = vpack.c.bf16 %v4240, %v4240
  %v4794 = vpack.c.bf16 %v4241, %v4241
  %v4795 = vpack.c.bf16 %v4242, %v4242
  %v4796 = vpack.c.bf16 %v4243, %v4243
  %v4797 = vpack.c.bf16 %v4244, %v4244
  %v4798 = vpack.c.bf16 %v4245, %v4245
  %v4799 = vpack.c.bf16 %v4246, %v4246
  %v4800 = vpack.c.bf16 %v4247, %v4247
  %v4801 = vpack.c.bf16 %v4248, %v4248
  %v4802 = vpack.c.bf16 %v4249, %v4249
  %v4803 = vpack.c.bf16 %v4250, %v4250
  %v4804 = vpack.c.bf16 %v4251, %v4251
  %v4805 = vpack.c.bf16 %v4252, %v4252
  %v4806 = vpack.c.bf16 %v4253, %v4253
  %v4807 = vpack.c.bf16 %v4254, %v4254
  %v4808 = vpack.c.bf16 %v4255, %v4255
  %v4809 = vpack.c.bf16 %v4256, %v4256
  %v4810 = vpack.c.bf16 %v4257, %v4257
  %v4811 = vpack.c.bf16 %v4258, %v4258
  %v4812 = vpack.c.bf16 %v4259, %v4259
  %v4813 = vpack.c.bf16 %v4260, %v4260
  %v4814 = vpack.c.bf16 %v4261, %v4261
  %v4815 = vpack.c.bf16 %v4262, %v4262
  %v4816 = vpack.c.bf16 %v4263, %v4263
  %v4817 = vpack.c.bf16 %v4264, %v4264
  %v4818 = vpack.c.bf16 %v4265, %v4265
  %v4819 = vpack.c.bf16 %v4266, %v4266
  %v4820 = vpack.c.bf16 %v4267, %v4267
  %v4821 = vpack.c.bf16 %v4268, %v4268
  %v4822 = vpack.c.bf16 %v4269, %v4269
  %v4823 = vpack.c.bf16 %v4270, %v4270
  %v4824 = vpack.c.bf16 %v4271, %v4271
  %v4825 = vpack.c.bf16 %v4272, %v4272
  %v4826 = vpack.c.bf16 %v4273, %v4273
  %v4827 = vpack.c.bf16 %v4274, %v4274
  %v4828 = vpack.c.bf16 %v4275, %v4275
  %v4829 = vpack.c.bf16 %v4276, %v4276
  %v4830 = vpack.c.bf16 %v4277, %v4277
  %v4831 = vpack.c.bf16 %v4278, %v4278
  %v4832 = vpack.c.bf16 %v4279, %v4279
  %v4833 = vpack.c.bf16 %v4280, %v4280
  %v4834 = vpack.c.bf16 %v4281, %v4281
  %v4835 = vpack.c.bf16 %v4282, %v4282
  %v4836 = vpack.c.bf16 %v4283, %v4283
  %v4837 = vpack.c.bf16 %v4284, %v4284
  %v4838 = vpack.c.bf16 %v4285, %v4285
  %v4839 = vpack.c.bf16 %v4286, %v4286
  %v4840 = vpack.c.bf16 %v4287, %v4287
  %v4841 = vpack.c.bf16 %v4288, %v4288
  %v4842 = vpack.c.bf16 %v4289, %v4289
  %v4843 = vpack.c.bf16 %v4290, %v4290
  %v4844 = vpack.c.bf16 %v4291, %v4291
  %v4845 = vpack.c.bf16 %v4292, %v4292
  %v4846 = vpack.c.bf16 %v4293, %v4293
  %v4847 = vpack.c.bf16 %v4294, %v4294
  %v4848 = vpack.c.bf16 %v4295, %v4295
  %v4849 = vpack.c.bf16 %v4296, %v4296
  %v4850 = vpack.c.bf16 %v4297, %v4297
  %v4851 = vpack.c.bf16 %v4298, %v4298
  %v4852 = vpack.c.bf16 %v4299, %v4299
  %v4853 = vpack.c.bf16 %v4300, %v4300
  %v4854 = vpack.c.bf16 %v4301, %v4301
  %v4855 = vpack.c.bf16 %v4302, %v4302
  %v4856 = vpack.c.bf16 %v4303, %v4303
  %v4857 = vpack.c.bf16 %v4304, %v4304
  %v4858 = vpack.c.bf16 %v4305, %v4305
  %v4859 = vpack.c.bf16 %v4306, %v4306
  %v4860 = vpack.c.bf16 %v4307, %v4307
  %v4861 = vpack.c.bf16 %v4308, %v4308
  %v4862 = vpack.c.bf16 %v4309, %v4309
  %v4863 = vpack.c.bf16 %v4310, %v4310
  %v4864 = vpack.c.bf16 %v4311, %v4311
  %v4865 = vpack.c.bf16 %v4312, %v4312
  %v4866 = vpack.c.bf16 %v4313, %v4313
  %v4867 = vpack.c.bf16 %v4314, %v4314
  %v4868 = vpack.c.bf16 %v4315, %v4315
  %v4869 = vpack.c.bf16 %v4316, %v4316
  %v4870 = vpack.c.bf16 %v4317, %v4317
  %v4871 = vpack.c.bf16 %v4318, %v4318
  %v4872 = vpack.c.bf16 %v4319, %v4319
  %v4873 = vpack.c.bf16 %v4320, %v4320
  %v4874 = vpack.c.bf16 %v4321, %v4321
  %v4875 = vpack.c.bf16 %v4322, %v4322
  %v4876 = vpack.c.bf16 %v4323, %v4323
  %v4877 = vpack.c.bf16 %v4324, %v4324
  %v4878 = vpack.c.bf16 %v4325, %v4325
  %v4879 = vpack.c.bf16 %v4326, %v4326
  %v4880 = vpack.c.bf16 %v4327, %v4327
  %v4881 = vpack.c.bf16 %v4328, %v4328
  %v4882 = vpack.c.bf16 %v4329, %v4329
  %v4883 = vpack.c.bf16 %v4330, %v4330
  %v4884 = vpack.c.bf16 %v4331, %v4331
  %v4885 = vpack.c.bf16 %v4332, %v4332
  %v4886 = vpack.c.bf16 %v4333, %v4333
  %v4887 = vpack.c.bf16 %v4334, %v4334
  %v4888 = vpack.c.bf16 %v4335, %v4335
  %v4889 = vpack.c.bf16 %v4336, %v4336
  %v4890 = vpack.c.bf16 %v4337, %v4337
  %v4891 = vpack.c.bf16 %v4338, %v4338
  %v4892 = vpack.c.bf16 %v4339, %v4339
  %v4893 = vpack.c.bf16 %v4340, %v4340
  %v4894 = vpack.c.bf16 %v4341, %v4341
  %v4895 = vpack.c.bf16 %v4342, %v4342
  %v4896 = vpack.c.bf16 %v4343, %v4343
  %v4897 = vpack.c.bf16 %v4344, %v4344
  %v4898 = vpack.c.bf16 %v4345, %v4345
  %v4899 = vpack.c.bf16 %v4346, %v4346
  %v4900 = vpack.c.bf16 %v4347, %v4347
  %v4901 = vpack.c.bf16 %v4348, %v4348
  %v4902 = vpack.c.bf16 %v4349, %v4349
  %v4903 = vpack.c.bf16 %v4350, %v4350
  %v4904 = vpack.c.bf16 %v4351, %v4351
  %v4905 = vpack.c.bf16 %v4352, %v4352
  %v4906 = vpack.c.bf16 %v4353, %v4353
  %v4907 = vpack.c.bf16 %v4354, %v4354
  %v4908 = vpack.c.bf16 %v4355, %v4355
  %v4909 = vpack.c.bf16 %v4356, %v4356
  %v4910 = vpack.c.bf16 %v4357, %v4357
  %v4911 = vpack.c.bf16 %v4358, %v4358
  %v4912 = vpack.c.bf16 %v4359, %v4359
  %v4913 = vpack.c.bf16 %v4360, %v4360
  %v4914 = vpack.c.bf16 %v4361, %v4361
  %v4915 = vpack.c.bf16 %v4362, %v4362
  %v4916 = vpack.c.bf16 %v4363, %v4363
  %v4917 = vpack.c.bf16 %v4364, %v4364
  %v4918 = vpack.c.bf16 %v4365, %v4365
  %v4919 = vpack.c.bf16 %v4366, %v4366
  %v4920 = vpack.c.bf16 %v4367, %v4367
  %v4921 = vpack.c.bf16 %v4368, %v4368
  %v4922 = vpack.c.bf16 %v4369, %v4369
  %v4923 = vpack.c.bf16 %v4370, %v4370
  %v4924 = vpack.c.bf16 %v4371, %v4371
  %v4925 = vpack.c.bf16 %v4372, %v4372
  %v4926 = vpack.c.bf16 %v4373, %v4373
  %v4927 = vpack.c.bf16 %v4374, %v4374
  %v4928 = vpack.c.bf16 %v4375, %v4375
  %v4929 = vpack.c.bf16 %v4376, %v4376
  %v4930 = vpack.c.bf16 %v4377, %v4377
  %v4931 = vpack.c.bf16 %v4378, %v4378
  %v4932 = vpack.c.bf16 %v4379, %v4379
  %v4933 = vpack.c.bf16 %v4380, %v4380
  %v4934 = vpack.c.bf16 %v4381, %v4381
  %v4935 = vpack.c.bf16 %v4382, %v4382
  %v4936 = vpack.c.bf16 %v4383, %v4383
  %v4937 = vpack.c.bf16 %v4384, %v4384
  %v4938 = vpack.c.bf16 %v4385, %v4385
  %v4939 = vpack.c.bf16 %v4386, %v4386
  %v4940 = vpack.c.bf16 %v4387, %v4387
  %v4941 = vpack.c.bf16 %v4388, %v4388
  %v4942 = vpack.c.bf16 %v4389, %v4389
  %v4943 = vpack.c.bf16 %v4390, %v4390
  %v4944 = vpack.c.bf16 %v4391, %v4391
  %v4945 = vpack.c.bf16 %v4392, %v4392
  %v4946 = vpack.c.bf16 %v4393, %v4393
  %v4947 = vpack.c.bf16 %v4394, %v4394
  %v4948 = vpack.c.bf16 %v4395, %v4395
  %v4949 = vpack.c.bf16 %v4396, %v4396
  %v4950 = vpack.c.bf16 %v4397, %v4397
  %v4951 = vpack.c.bf16 %v4398, %v4398
  %v4952 = vpack.c.bf16 %v4399, %v4399
  %v4953 = vpack.c.bf16 %v4400, %v4400
  %v4954 = vpack.c.bf16 %v4401, %v4401
  %v4955 = vpack.c.bf16 %v4402, %v4402
  %v4956 = vpack.c.bf16 %v4403, %v4403
  %v4957 = vpack.c.bf16 %v4404, %v4404
  %v4958 = vpack.c.bf16 %v4405, %v4405
  %v4959 = vpack.c.bf16 %v4406, %v4406
  %v4960 = vpack.c.bf16 %v4407, %v4407
  %v4961 = vpack.c.bf16 %v4408, %v4408
  %v4962 = vpack.c.bf16 %v4409, %v4409
  %v4963 = vpack.c.bf16 %v4410, %v4410
  %v4964 = vpack.c.bf16 %v4411, %v4411
  %v4965 = vpack.c.bf16 %v4412, %v4412
  %v4966 = vpack.c.bf16 %v4413, %v4413
  %v4967 = vpack.c.bf16 %v4414, %v4414
  %v4968 = vpack.c.bf16 %v4415, %v4415
  %v4969 = vpack.c.bf16 %v4416, %v4416
  %v4970 = vpack.c.bf16 %v4417, %v4417
  %v4971 = vpack.c.bf16 %v4418, %v4418
  %v4972 = vpack.c.bf16 %v4419, %v4419
  %v4973 = vpack.c.bf16 %v4420, %v4420
  %v4974 = vpack.c.bf16 %v4421, %v4421
  %v4975 = vpack.c.bf16 %v4422, %v4422
  %v4976 = vpack.c.bf16 %v4423, %v4423
  %v4977 = vpack.c.bf16 %v4424, %v4424
  %v4978 = vpack.c.bf16 %v4425, %v4425
  %v4979 = vpack.c.bf16 %v4426, %v4426
  %v4980 = vpack.c.bf16 %v4427, %v4427
  %v4981 = vpack.c.bf16 %v4428, %v4428
  %v4982 = vpack.c.bf16 %v4429, %v4429
  %v4983 = vpack.c.bf16 %v4430, %v4430
  %v4984 = vpack.c.bf16 %v4431, %v4431
  %v4985 = vpack.c.bf16 %v4432, %v4432
  %v4986 = vpack.c.bf16 %v4433, %v4433
  %v4987 = vpack.c.bf16 %v4434, %v4434
  %v4988 = vpack.c.bf16 %v4435, %v4435
  %v4989 = vpack.c.bf16 %v4436, %v4436
  %v4990 = vpack.c.bf16 %v4437, %v4437
  %v4991 = vpack.c.bf16 %v4438, %v4438
  %v4992 = vpack.c.bf16 %v4439, %v4439
  %v4993 = vpack.c.bf16 %v4440, %v4440
  %v4994 = vpack.c.bf16 %v4441, %v4441
  %v4995 = vpack.c.bf16 %v4442, %v4442
  %v4996 = vpack.c.bf16 %v4443, %v4443
  %v4997 = vpack.c.bf16 %v4444, %v4444
  %v4998 = vpack.c.bf16 %v4445, %v4445
  %v4999 = vpack.c.bf16 %v4446, %v4446
  %v5000 = vpack.c.bf16 %v4447, %v4447
  %v5001 = vpack.c.bf16 %v4448, %v4448
  %v5002 = vpack.c.bf16 %v4449, %v4449
  %v5003 = vpack.c.bf16 %v4450, %v4450
  %v5004 = vpack.c.bf16 %v4451, %v4451
  %v5005 = vpack.c.bf16 %v4452, %v4452
  %v5006 = vpack.c.bf16 %v4453, %v4453
  %v5007 = vpack.c.bf16 %v4454, %v4454
  %v5008 = vpack.c.bf16 %v4455, %v4455
  %v5009 = vpack.c.bf16 %v4456, %v4456
  %v5010 = vpack.c.bf16 %v4457, %v4457
  %v5011 = vpack.c.bf16 %v4458, %v4458
  %v5012 = vpack.c.bf16 %v4459, %v4459
  %v5013 = vpack.c.bf16 %v4460, %v4460
  %v5014 = vpack.c.bf16 %v4461, %v4461
  %v5015 = vpack.c.bf16 %v4462, %v4462
  %v5016 = vpack.c.bf16 %v4463, %v4463
  %v5017 = vpack.c.bf16 %v4464, %v4464
  %v5018 = vpack.c.bf16 %v4465, %v4465
  %v5019 = vpack.c.bf16 %v4466, %v4466
  %v5020 = vpack.c.bf16 %v4467, %v4467
  %v5021 = vpack.c.bf16 %v4468, %v4468
  %v5022 = vpack.c.bf16 %v4469, %v4469
  %v5023 = vpack.c.bf16 %v4470, %v4470
  %v5024 = vpack.c.bf16 %v4471, %v4471
  %v5025 = vpack.c.bf16 %v4472, %v4472
  %v5026 = vpack.c.bf16 %v4473, %v4473
  %v5027 = vpack.c.bf16 %v4474, %v4474
  %v5028 = vpack.c.bf16 %v4475, %v4475
  %v5029 = vpack.c.bf16 %v4476, %v4476
  %v5030 = vpack.c.bf16 %v4477, %v4477
  %v5031 = vpack.c.bf16 %v4478, %v4478
  %v5032 = vpack.c.bf16 %v4479, %v4479
  %v5033 = vpack.c.bf16 %v4480, %v4480
  %v5034 = vpack.c.bf16 %v4481, %v4481
  %v5035 = vpack.c.bf16 %v4482, %v4482
  %v5036 = vpack.c.bf16 %v4483, %v4483
  %v5037 = vpack.c.bf16 %v4484, %v4484
  %v5038 = vpack.c.bf16 %v4485, %v4485
  %v5039 = vpack.c.bf16 %v4486, %v4486
  %v5040 = vpack.c.bf16 %v4487, %v4487
  %v5041 = vpack.c.bf16 %v4488, %v4488
  %v5042 = vpack.c.bf16 %v4489, %v4489
  %v5043 = vpack.c.bf16 %v4490, %v4490
  %v5044 = vpack.c.bf16 %v4491, %v4491
  %v5045 = vpack.c.bf16 %v4492, %v4492
  %v5046 = vpack.c.bf16 %v4493, %v4493
  %v5047 = vpack.c.bf16 %v4494, %v4494
  %v5048 = vpack.c.bf16 %v4495, %v4495
  %v5049 = vpack.c.bf16 %v4496, %v4496
  %v5050 = vpack.c.bf16 %v4497, %v4497
  %v5051 = vpack.c.bf16 %v4498, %v4498
  %v5052 = vpack.c.bf16 %v4499, %v4499
  %v5053 = vpack.c.bf16 %v4500, %v4500
  %v5054 = vpack.c.bf16 %v4501, %v4501
  %v5055 = vpack.c.bf16 %v4502, %v4502
  %v5056 = vpack.c.bf16 %v4503, %v4503
  %v5057 = vpack.c.bf16 %v4504, %v4504
  %v5058 = vpack.c.bf16 %v4505, %v4505
  %v5059 = vpack.c.bf16 %v4506, %v4506
  %v5060 = vpack.c.bf16 %v4507, %v4507
  %v5061 = vpack.c.bf16 %v4508, %v4508
  %v5062 = vpack.c.bf16 %v4509, %v4509
  %v5063 = vpack.c.bf16 %v4510, %v4510
  %v5064 = vpack.c.bf16 %v4511, %v4511
  %v5065 = vpack.c.bf16 %v4512, %v4512
  %v5066 = vpack.c.bf16 %v4513, %v4513
  %v5067 = vpack.c.bf16 %v4514, %v4514
  %v5068 = vpack.c.bf16 %v4515, %v4515
  %v5069 = vpack.c.bf16 %v4516, %v4516
  %v5070 = vpack.c.bf16 %v4517, %v4517
  %v5071 = vpack.c.bf16 %v4518, %v4518
  %v5072 = vpack.c.bf16 %v4519, %v4519
  %v5073 = vpack.c.bf16 %v4520, %v4520
  %v5074 = vpack.c.bf16 %v4521, %v4521
  %v5075 = vpack.c.bf16 %v4522, %v4522
  %v5076 = vpack.c.bf16 %v4523, %v4523
  %v5077 = vpack.c.bf16 %v4524, %v4524
  %v5078 = vpack.c.bf16 %v4525, %v4525
  %v5079 = vpack.c.bf16 %v4526, %v4526
  %v5080 = vpack.c.bf16 %v4527, %v4527
  %v5081 = vpack.c.bf16 %v4528, %v4528
  %v5082 = vpack.c.bf16 %v4529, %v4529
  %v5083 = vpack.c.bf16 %v4530, %v4530
  %v5084 = vpack.c.bf16 %v4531, %v4531
  %v5085 = vpack.c.bf16 %v4532, %v4532
  %v5086 = vpack.c.bf16 %v4533, %v4533
  %v5087 = vpack.c.bf16 %v4534, %v4534
  %v5088 = vpack.c.bf16 %v4535, %v4535
  %v5089 = vpack.c.bf16 %v4536, %v4536
  %v5090 = vpack.c.bf16 %v4537, %v4537
  %v5091 = vpack.c.bf16 %v4538, %v4538
  %v5092 = vpack.c.bf16 %v4539, %v4539
  %v5093 = vpack.c.bf16 %v4540, %v4540
  %v5094 = vpack.c.bf16 %v4541, %v4541
  %v5095 = vpack.c.bf16 %v4542, %v4542
  %v5096 = vpack.c.bf16 %v4543, %v4543
  %v5097 = vpack.c.bf16 %v4544, %v4544
  %v5098 = vpack.c.bf16 %v4545, %v4545
  %v5099 = vpack.c.bf16 %v4546, %v4546
  %v5100 = vpack.c.bf16 %v4547, %v4547
  %v5101 = vpack.c.bf16 %v4548, %v4548
  %v5102 = vpack.c.bf16 %v4549, %v4549
  %v5103 = vpack.c.bf16 %v4550, %v4550
  %v5104 = vpack.c.bf16 %v4551, %v4551
  %v5105 = vpack.c.bf16 %v4552, %v4552
  %v5106 = vpack.c.bf16 %v4553, %v4553
  %v5107 = vpack.c.bf16 %v4554, %v4554
  %v5108 = vpack.c.bf16 %v4555, %v4555
  %v5109 = vpack.c.bf16 %v4556, %v4556
  %v5110 = vpack.c.bf16 %v4557, %v4557
  %v5111 = vpack.c.bf16 %v4558, %v4558
  %v5112 = vpack.c.bf16 %v4559, %v4559
  %v5113 = vpack.c.bf16 %v4560, %v4560
  %v5114 = vpack.c.bf16 %v4561, %v4561
  %v5115 = vpack.c.bf16 %v4562, %v4562
  %v5116 = vpack.c.bf16 %v4563, %v4563
  %v5117 = vpack.c.bf16 %v4564, %v4564
  %v5118 = vpack.c.bf16 %v4565, %v4565
  %v5119 = vpack.c.bf16 %v4566, %v4566
  %v5120 = vpack.c.bf16 %v4567, %v4567
  %v5121 = vpack.c.bf16 %v4568, %v4568
  %v5122 = vpack.c.bf16 %v4569, %v4569
  %v5123 = vpack.c.bf16 %v4570, %v4570
  %v5124 = vpack.c.bf16 %v4571, %v4571
  %v5125 = vpack.c.bf16 %v4572, %v4572
  %v5126 = vpack.c.bf16 %v4573, %v4573
  %v5127 = vpack.c.bf16 %v4574, %v4574
  %v5128 = vpack.c.bf16 %v4575, %v4575
  %v5129 = vpack.c.bf16 %v4576, %v4576
  %v5130 = vpack.c.bf16 %v4577, %v4577
  %v5131 = vpack.c.bf16 %v4578, %v4578
  %v5132 = vpack.c.bf16 %v4579, %v4579
  %v5133 = vpack.c.bf16 %v4580, %v4580
  %v5134 = vpack.c.bf16 %v4581, %v4581
  %v5135 = vpack.c.bf16 %v4582, %v4582
  %v5136 = vpack.c.bf16 %v4583, %v4583
  %v5137 = vpack.c.bf16 %v4584, %v4584
  %v5138 = vpack.c.bf16 %v4585, %v4585
  %v5139 = vpack.c.bf16 %v4586, %v4586
  %v5140 = vpack.c.bf16 %v4587, %v4587
  %v5141 = vpack.c.bf16 %v4588, %v4588
  %v5142 = vpack.c.bf16 %v4589, %v4589
  %v5143 = vpack.c.bf16 %v4590, %v4590
  %v5144 = vpack.c.bf16 %v4591, %v4591
  %v5145 = vpack.c.bf16 %v4592, %v4592
  %v5146 = vpack.c.bf16 %v4593, %v4593
  %v5147 = vpack.c.bf16 %v4594, %v4594
  %v5148 = vpack.c.bf16 %v4595, %v4595
  %v5149 = vpack.c.bf16 %v4596, %v4596
  %v5150 = vpack.c.bf16 %v4597, %v4597
  %v5151 = vpack.c.bf16 %v4598, %v4598
  %v5152 = vpack.c.bf16 %v4599, %v4599
  %v5153 = vpack.c.bf16 %v4600, %v4600
  %v5154 = vpack.c.bf16 %v4601, %v4601
  %v5155 = vpack.c.bf16 %v4602, %v4602
  %v5156 = vpack.c.bf16 %v4603, %v4603
  %v5157 = vpack.c.bf16 %v4604, %v4604
  %v5158 = vpack.c.bf16 %v4605, %v4605
  %v5159 = vpack.c.bf16 %v4606, %v4606
  %v5160 = vpack.c.bf16 %v4607, %v4607
  %v5161 = vpack.c.bf16 %v4608, %v4608
  %v5162 = vpack.c.bf16 %v4609, %v4609
  %v5163 = vpack.c.bf16 %v4610, %v4610
  %v5164 = vpack.c.bf16 %v4611, %v4611
  %v5165 = vpack.c.bf16 %v4612, %v4612
  %v5166 = vpack.c.bf16 %v4613, %v4613
  %v5167 = vpack.c.bf16 %v4614, %v4614
  %v5168 = vpack.c.bf16 %v4615, %v4615
  %v5169 = vpack.c.bf16 %v4616, %v4616
  %v5170 = vpack.c.bf16 %v4617, %v4617
  %v5171 = vpack.c.bf16 %v4618, %v4618
  %v5172 = vpack.c.bf16 %v4619, %v4619
  %v5173 = vpack.c.bf16 %v4620, %v4620
  %v5174 = vpack.c.bf16 %v4621, %v4621
  %v5175 = vpack.c.bf16 %v4622, %v4622
  %v5176 = vpack.c.bf16 %v4623, %v4623
  %v5177 = vpack.c.bf16 %v4624, %v4624
  %v5178 = vpack.c.bf16 %v4625, %v4625
  %v5179 = vpack.c.bf16 %v4626, %v4626
  %v5180 = vpack.c.bf16 %v4627, %v4627
  %v5181 = vpack.c.bf16 %v4628, %v4628
  %v5182 = vpack.c.bf16 %v4629, %v4629
  %v5183 = vpack.c.bf16 %v4630, %v4630
  %v5184 = vpack.c.bf16 %v4631, %v4631
  %v5185 = vpack.c.bf16 %v4632, %v4632
  %v5186 = vpack.c.bf16 %v4633, %v4633
  %v5187 = vpack.c.bf16 %v4634, %v4634
  %v5188 = vpack.c.bf16 %v4635, %v4635
  %v5189 = vpack.c.bf16 %v4636, %v4636
  %v5190 = vpack.c.bf16 %v4637, %v4637
  %v5191 = vpack.c.bf16 %v4638, %v4638
  %v5192 = vpack.c.bf16 %v4639, %v4639
  %v5193 = vpack.c.bf16 %v4640, %v4640
  %v5194 = vpack.c.bf16 %v4641, %v4641
  %v5195 = vpack.c.bf16 %v4642, %v4642
  %v5196 = vpack.c.bf16 %v4643, %v4643
  %v5197 = vpack.c.bf16 %v4644, %v4644
  %v5198 = vpack.c.bf16 %v4645, %v4645
  %v5199 = vpack.c.bf16 %v4646, %v4646
  %v5200 = vpack.c.bf16 %v4647, %v4647
  %v5201 = vpack.c.bf16 %v4648, %v4648
  %v5202 = vpack.c.bf16 %v4649, %v4649
  %v5203 = vpack.c.bf16 %v4650, %v4650
  %v5204 = vpack.c.bf16 %v4651, %v4651
  %v5205 = vpack.c.bf16 %v4652, %v4652
  %v5206 = vpack.c.bf16 %v4653, %v4653
  %v5207 = vpack.c.bf16 %v4654, %v4654
  %v5208 = vpack.c.bf16 %v4655, %v4655
  %v5209 = vpack.c.bf16 %v4656, %v4656
  %v5210 = vpack.c.bf16 %v4657, %v4657
  %v5211 = vpack.c.bf16 %v4658, %v4658
  %v5212 = vpack.c.bf16 %v4659, %v4659
  %v5213 = vpack.c.bf16 %v4660, %v4660
  %v5214 = vpack.c.bf16 %v4661, %v4661
  %v5215 = vpack.c.bf16 %v4662, %v4662
  %v5216 = vpack.c.bf16 %v4663, %v4663
  %v5217 = vpack.c.bf16 %v4664, %v4664
  %v5218 = vpack.c.bf16 %v4665, %v4665
  %v5219 = vpack.c.bf16 %v4666, %v4666
  %v5220 = vpack.c.bf16 %v4667, %v4667
  %v5221 = vpack.c.bf16 %v4668, %v4668
  %v5222 = vpack.c.bf16 %v4669, %v4669
  %v5223 = vpack.c.bf16 %v4670, %v4670
  %v5224 = vpack.c.bf16 %v4671, %v4671
  %v5225 = vpack.c.bf16 %v4672, %v4672
  %v5226 = vpack.c.bf16 %v4673, %v4673
  %v5227 = vpack.c.bf16 %v4674, %v4674
  %v5228 = vpack.c.bf16 %v4675, %v4675
  %v5229 = vpack.c.bf16 %v4676, %v4676
  %v5230 = vpack.c.bf16 %v4677, %v4677
  %v5231 = vpack.c.bf16 %v4678, %v4678
  %v5232 = vpack.c.bf16 %v4679, %v4679
  %v5233 = vpack.c.bf16 %v4680, %v4680
  %v5234 = vpack.c.bf16 %v4681, %v4681
  %v5235 = vpack.c.bf16 %v4682, %v4682
  %v5236 = vpack.c.bf16 %v4683, %v4683
  %v5237 = vpack.c.bf16 %v4684, %v4684
  %v5238 = vpack.c.bf16 %v4685, %v4685
  %v5239 = vpack.c.bf16 %v4686, %v4686
  %v5240 = vpack.c.bf16 %v4687, %v4687
  %v5241 = vpack.c.bf16 %v4688, %v4688
  %v5242 = vpack.c.bf16 %v4689, %v4689
  %v5243 = vpack.c.bf16 %v4690, %v4690
  %v5244 = vpack.c.bf16 %v4691, %v4691
  %v5245 = vpack.c.bf16 %v4692, %v4692
  %v5246 = vpack.c.bf16 %v4693, %v4693
  %v5247 = vpack.c.bf16 %v4694, %v4694
  %v5248 = vpack.c.bf16 %v4695, %v4695
  %v5249 = vpack.c.bf16 %v4696, %v4696
  %v5250 = vpack.c.bf16 %v4697, %v4697
  %v5251 = vpack.c.bf16 %v4698, %v4698
  %v5252 = vpack.c.bf16 %v4699, %v4699
  %v5253 = vpack.c.bf16 %v4700, %v4700
  %v5254 = vpack.c.bf16 %v4701, %v4701
  %v5255 = vpack.c.bf16 %v4702, %v4702
  %v5256 = vpack.c.bf16 %v4703, %v4703
  %v5257 = vpack.c.bf16 %v4704, %v4704
  %v5258 = vpack.c.bf16 %v4705, %v4705
  %v5259 = vpack.c.bf16 %v4706, %v4706
  %v5260 = vpack.c.bf16 %v4707, %v4707
  %v5261 = vpack.c.bf16 %v4708, %v4708
  %v5262 = vpack.c.bf16 %v4709, %v4709
  %v5263 = vpack.c.bf16 %v4710, %v4710
  %v5264 = vpack.c.bf16 %v4711, %v4711
  %v5265 = vpack.c.bf16 %v4712, %v4712
  %v5266 = vpack.c.bf16 %v4713, %v4713
  %v5267 = vpack.c.bf16 %v4714, %v4714
  %v5268 = vpack.c.bf16 %v4715, %v4715
  %v5269 = vpack.c.bf16 %v4716, %v4716
  %v5270 = vpack.c.bf16 %v4717, %v4717
  %v5271 = vpack.c.bf16 %v4718, %v4718
  %v5272 = vpack.c.bf16 %v4719, %v4719
  %v5273 = vpack.c.bf16 %v4720, %v4720
  %v5274 = vpack.c.bf16 %v4721, %v4721
  %v5275 = vpack.c.bf16 %v4722, %v4722
  %v5276 = vpack.c.bf16 %v4723, %v4723
  %v5277 = vpack.c.bf16 %v4724, %v4724
  %v5278 = vpack.c.bf16 %v4725, %v4725
  %v5279 = vpack.c.bf16 %v4726, %v4726
  %v5280 = vpack.c.bf16 %v4727, %v4727
  %v5281 = vpack.c.bf16 %v4728, %v4728
  %v5282 = vpack.c.bf16 %v4729, %v4729
  %v5283 = vpack.c.bf16 %v4730, %v4730
  %v5284 = vpack.c.bf16 %v4731, %v4731
  %v5285 = vpack.c.bf16 %v4732, %v4732
  %v5286 = vpack.c.bf16 %v4733, %v4733
  %v5287 = vpack.c.bf16 %v4734, %v4734
  %v5288 = vpack.c.bf16 %v4735, %v4735
  %v5289 = vpack.c.bf16 %v4736, %v4736
  %v5290 = vpack.c.bf16 %v4737, %v4737
  %v5291 = vpack.c.bf16 %v4738, %v4738
  %v5292 = vpack.c.bf16 %v4739, %v4739
  %v5293 = vpack.c.bf16 %v4740, %v4740
  %v5294 = vpack.c.bf16 %v4741, %v4741
  %v5295 = vpack.c.bf16 %v4742, %v4742
  %v5296 = vpack.c.bf16 %v4743, %v4743
  %v5297 = vpack.c.bf16 %v4744, %v4744
  %v5298 = vpack.c.bf16 %v4745, %v4745
  %v5299 = vpack.c.bf16 %v4746, %v4746
  %v5300 = vpack.c.bf16 %v4747, %v4747
  %v5301 = vpack.c.bf16 %v4748, %v4748
  %v5302 = vpack.c.bf16 %v4749, %v4749
  %v5303 = vpack.c.bf16 %v4750, %v4750
  %v5304 = vpack.c.bf16 %v4751, %v4751
  %v5305 = vpack.c.bf16 %v4752, %v4752
  %v5306 = vpack.c.bf16 %v4753, %v4753
  %v5307 = vpack.c.bf16 %v4754, %v4754
  %v5308 = vpack.c.bf16 %v4755, %v4755
  %v5309 = vpack.c.bf16 %v4756, %v4756
  %v5310 = vpack.c.bf16 %v4757, %v4757
  %v5311 = vpack.c.bf16 %v4758, %v4758
  %v5312 = vpack.c.bf16 %v4759, %v4759
  %v5313 = vpack.c.bf16 %v4760, %v4760
  %v5314 = vpack.c.bf16 %v4761, %v4761
  %v5315 = vpack.c.bf16 %v4762, %v4762
  %v5316 = vpack.c.bf16 %v4763, %v4763
  %v5317 = vpack.c.bf16 %v4764, %v4764
  %vm5318 = vcmask 60416
  %5319 = vst.msk [vmem:[%s3] sm:$0xf] %vm5318, %v4765
  %5320 = vst.msk [vmem:[%s3 + $0x4] sm:$0xf] %vm5318, %v4766
  %5321 = vst.msk [vmem:[%s3 + $0x8] sm:$0xf] %vm5318, %v4767
  %5322 = vst.msk [vmem:[%s3 + $0xc] sm:$0xf] %vm5318, %v4768
  %5323 = vst.msk [vmem:[%s3 + $0x10] sm:$0xf] %vm5318, %v4769
  %5324 = vst.msk [vmem:[%s3 + $0x14] sm:$0xf] %vm5318, %v4770
  %5325 = vst.msk [vmem:[%s3 + $0x18] sm:$0xf] %vm5318, %v4771
  %5326 = vst.msk [vmem:[%s3 + $0x1c] sm:$0xf] %vm5318, %v4772
  %5327 = vst.msk [vmem:[%s3 + $0x20] sm:$0xf] %vm5318, %v4773
  %5328 = vst.msk [vmem:[%s3 + $0x24] sm:$0xf] %vm5318, %v4774
  %5329 = vst.msk [vmem:[%s3 + $0x28] sm:$0xf] %vm5318, %v4775
  %5330 = vst.msk [vmem:[%s3 + $0x2c] sm:$0xf] %vm5318, %v4776
  %5331 = vst.msk [vmem:[%s3 + $0x30] sm:$0xf] %vm5318, %v4777
  %5332 = vst.msk [vmem:[%s3 + $0x34] sm:$0xf] %vm5318, %v4778
  %5333 = vst.msk [vmem:[%s3 + $0x38] sm:$0xf] %vm5318, %v4779
  %5334 = vst.msk [vmem:[%s3 + $0x3c] sm:$0xf] %vm5318, %v4780
  %5335 = vst.msk [vmem:[%s3 + $0x40] sm:$0xf] %vm5318, %v4781
  %5336 = vst.msk [vmem:[%s3 + $0x44] sm:$0xf] %vm5318, %v4782
  %5337 = vst.msk [vmem:[%s3 + $0x48] sm:$0xf] %vm5318, %v4783
  %5338 = vst.msk [vmem:[%s3 + $0x4c] sm:$0xf] %vm5318, %v4784
  %5339 = vst.msk [vmem:[%s3 + $0x50] sm:$0xf] %vm5318, %v4785
  %5340 = vst.msk [vmem:[%s3 + $0x54] sm:$0xf] %vm5318, %v4786
  %5341 = vst.msk [vmem:[%s3 + $0x58] sm:$0xf] %vm5318, %v4787
  %5342 = vst.msk [vmem:[%s3 + $0x5c] sm:$0xf] %vm5318, %v4788
  %5343 = vst.msk [vmem:[%s3 + $0x60] sm:$0xf] %vm5318, %v4789
  %5344 = vst.msk [vmem:[%s3 + $0x64] sm:$0xf] %vm5318, %v4790
  %5345 = vst.msk [vmem:[%s3 + $0x68] sm:$0xf] %vm5318, %v4791
  %5346 = vst.msk [vmem:[%s3 + $0x6c] sm:$0xf] %vm5318, %v4792
  %5347 = vst.msk [vmem:[%s3 + $0x70] sm:$0xf] %vm5318, %v4793
  %5348 = vst.msk [vmem:[%s3 + $0x74] sm:$0xf] %vm5318, %v4794
  %5349 = vst.msk [vmem:[%s3 + $0x78] sm:$0xf] %vm5318, %v4795
  %5350 = vst.msk [vmem:[%s3 + $0x7c] sm:$0xf] %vm5318, %v4796
  %5351 = vst.msk [vmem:[%s3 + $0x80] sm:$0xf] %vm5318, %v4797
  %5352 = vst.msk [vmem:[%s3 + $0x84] sm:$0xf] %vm5318, %v4798
  %5353 = vst.msk [vmem:[%s3 + $0x88] sm:$0xf] %vm5318, %v4799
  %5354 = vst.msk [vmem:[%s3 + $0x8c] sm:$0xf] %vm5318, %v4800
  %5355 = vst.msk [vmem:[%s3 + $0x90] sm:$0xf] %vm5318, %v4801
  %5356 = vst.msk [vmem:[%s3 + $0x94] sm:$0xf] %vm5318, %v4802
  %5357 = vst.msk [vmem:[%s3 + $0x98] sm:$0xf] %vm5318, %v4803
  %5358 = vst.msk [vmem:[%s3 + $0x9c] sm:$0xf] %vm5318, %v4804
  %5359 = vst.msk [vmem:[%s3 + $0xa0] sm:$0xf] %vm5318, %v4805
  %5360 = vst.msk [vmem:[%s3 + $0xa4] sm:$0xf] %vm5318, %v4806
  %5361 = vst.msk [vmem:[%s3 + $0xa8] sm:$0xf] %vm5318, %v4807
  %5362 = vst.msk [vmem:[%s3 + $0xac] sm:$0xf] %vm5318, %v4808
  %5363 = vst.msk [vmem:[%s3 + $0xb0] sm:$0xf] %vm5318, %v4809
  %5364 = vst.msk [vmem:[%s3 + $0xb4] sm:$0xf] %vm5318, %v4810
  %5365 = vst.msk [vmem:[%s3 + $0xb8] sm:$0xf] %vm5318, %v4811
  %5366 = vst.msk [vmem:[%s3 + $0xbc] sm:$0xf] %vm5318, %v4812
  %5367 = vst.msk [vmem:[%s3 + $0xc0] sm:$0xf] %vm5318, %v4813
  %5368 = vst.msk [vmem:[%s3 + $0xc4] sm:$0xf] %vm5318, %v4814
  %5369 = vst.msk [vmem:[%s3 + $0xc8] sm:$0xf] %vm5318, %v4815
  %5370 = vst.msk [vmem:[%s3 + $0xcc] sm:$0xf] %vm5318, %v4816
  %5371 = vst.msk [vmem:[%s3 + $0xd0] sm:$0xf] %vm5318, %v4817
  %5372 = vst.msk [vmem:[%s3 + $0xd4] sm:$0xf] %vm5318, %v4818
  %5373 = vst.msk [vmem:[%s3 + $0xd8] sm:$0xf] %vm5318, %v4819
  %5374 = vst.msk [vmem:[%s3 + $0xdc] sm:$0xf] %vm5318, %v4820
  %5375 = vst.msk [vmem:[%s3 + $0xe0] sm:$0xf] %vm5318, %v4821
  %5376 = vst.msk [vmem:[%s3 + $0xe4] sm:$0xf] %vm5318, %v4822
  %5377 = vst.msk [vmem:[%s3 + $0xe8] sm:$0xf] %vm5318, %v4823
  %5378 = vst.msk [vmem:[%s3 + $0xec] sm:$0xf] %vm5318, %v4824
  %5379 = vst.msk [vmem:[%s3 + $0xf0] sm:$0xf] %vm5318, %v4825
  %5380 = vst.msk [vmem:[%s3 + $0xf4] sm:$0xf] %vm5318, %v4826
  %5381 = vst.msk [vmem:[%s3 + $0xf8] sm:$0xf] %vm5318, %v4827
  %5382 = vst.msk [vmem:[%s3 + $0xfc] sm:$0xf] %vm5318, %v4828
  %5383 = vst.msk [vmem:[%s3 + $0x100] sm:$0xf] %vm5318, %v4829
  %5384 = vst.msk [vmem:[%s3 + $0x104] sm:$0xf] %vm5318, %v4830
  %5385 = vst.msk [vmem:[%s3 + $0x108] sm:$0xf] %vm5318, %v4831
  %5386 = vst.msk [vmem:[%s3 + $0x10c] sm:$0xf] %vm5318, %v4832
  %5387 = vst.msk [vmem:[%s3 + $0x110] sm:$0xf] %vm5318, %v4833
  %5388 = vst.msk [vmem:[%s3 + $0x114] sm:$0xf] %vm5318, %v4834
  %5389 = vst.msk [vmem:[%s3 + $0x118] sm:$0xf] %vm5318, %v4835
  %5390 = vst.msk [vmem:[%s3 + $0x11c] sm:$0xf] %vm5318, %v4836
  %5391 = vst.msk [vmem:[%s3 + $0x120] sm:$0xf] %vm5318, %v4837
  %5392 = vst.msk [vmem:[%s3 + $0x124] sm:$0xf] %vm5318, %v4838
  %5393 = vst.msk [vmem:[%s3 + $0x128] sm:$0xf] %vm5318, %v4839
  %5394 = vst.msk [vmem:[%s3 + $0x12c] sm:$0xf] %vm5318, %v4840
  %5395 = vst.msk [vmem:[%s3 + $0x130] sm:$0xf] %vm5318, %v4841
  %5396 = vst.msk [vmem:[%s3 + $0x134] sm:$0xf] %vm5318, %v4842
  %5397 = vst.msk [vmem:[%s3 + $0x138] sm:$0xf] %vm5318, %v4843
  %5398 = vst.msk [vmem:[%s3 + $0x13c] sm:$0xf] %vm5318, %v4844
  %5399 = vst.msk [vmem:[%s3 + $0x140] sm:$0xf] %vm5318, %v4845
  %5400 = vst.msk [vmem:[%s3 + $0x144] sm:$0xf] %vm5318, %v4846
  %5401 = vst.msk [vmem:[%s3 + $0x148] sm:$0xf] %vm5318, %v4847
  %5402 = vst.msk [vmem:[%s3 + $0x14c] sm:$0xf] %vm5318, %v4848
  %5403 = vst.msk [vmem:[%s3 + $0x150] sm:$0xf] %vm5318, %v4849
  %5404 = vst.msk [vmem:[%s3 + $0x154] sm:$0xf] %vm5318, %v4850
  %5405 = vst.msk [vmem:[%s3 + $0x158] sm:$0xf] %vm5318, %v4851
  %5406 = vst.msk [vmem:[%s3 + $0x15c] sm:$0xf] %vm5318, %v4852
  %5407 = vst.msk [vmem:[%s3 + $0x160] sm:$0xf] %vm5318, %v4853
  %5408 = vst.msk [vmem:[%s3 + $0x164] sm:$0xf] %vm5318, %v4854
  %5409 = vst.msk [vmem:[%s3 + $0x168] sm:$0xf] %vm5318, %v4855
  %5410 = vst.msk [vmem:[%s3 + $0x16c] sm:$0xf] %vm5318, %v4856
  %5411 = vst.msk [vmem:[%s3 + $0x170] sm:$0xf] %vm5318, %v4857
  %5412 = vst.msk [vmem:[%s3 + $0x174] sm:$0xf] %vm5318, %v4858
  %5413 = vst.msk [vmem:[%s3 + $0x178] sm:$0xf] %vm5318, %v4859
  %5414 = vst.msk [vmem:[%s3 + $0x17c] sm:$0xf] %vm5318, %v4860
  %5415 = vst.msk [vmem:[%s3 + $0x180] sm:$0xf] %vm5318, %v4861
  %5416 = vst.msk [vmem:[%s3 + $0x184] sm:$0xf] %vm5318, %v4862
  %5417 = vst.msk [vmem:[%s3 + $0x188] sm:$0xf] %vm5318, %v4863
  %5418 = vst.msk [vmem:[%s3 + $0x18c] sm:$0xf] %vm5318, %v4864
  %5419 = vst.msk [vmem:[%s3 + $0x190] sm:$0xf] %vm5318, %v4865
  %5420 = vst.msk [vmem:[%s3 + $0x194] sm:$0xf] %vm5318, %v4866
  %5421 = vst.msk [vmem:[%s3 + $0x198] sm:$0xf] %vm5318, %v4867
  %5422 = vst.msk [vmem:[%s3 + $0x19c] sm:$0xf] %vm5318, %v4868
  %5423 = vst.msk [vmem:[%s3 + $0x1a0] sm:$0xf] %vm5318, %v4869
  %5424 = vst.msk [vmem:[%s3 + $0x1a4] sm:$0xf] %vm5318, %v4870
  %5425 = vst.msk [vmem:[%s3 + $0x1a8] sm:$0xf] %vm5318, %v4871
  %5426 = vst.msk [vmem:[%s3 + $0x1ac] sm:$0xf] %vm5318, %v4872
  %5427 = vst.msk [vmem:[%s3 + $0x1b0] sm:$0xf] %vm5318, %v4873
  %5428 = vst.msk [vmem:[%s3 + $0x1b4] sm:$0xf] %vm5318, %v4874
  %5429 = vst.msk [vmem:[%s3 + $0x1b8] sm:$0xf] %vm5318, %v4875
  %5430 = vst.msk [vmem:[%s3 + $0x1bc] sm:$0xf] %vm5318, %v4876
  %5431 = vst.msk [vmem:[%s3 + $0x1c0] sm:$0xf] %vm5318, %v4877
  %5432 = vst.msk [vmem:[%s3 + $0x1c4] sm:$0xf] %vm5318, %v4878
  %5433 = vst.msk [vmem:[%s3 + $0x1c8] sm:$0xf] %vm5318, %v4879
  %5434 = vst.msk [vmem:[%s3 + $0x1cc] sm:$0xf] %vm5318, %v4880
  %5435 = vst.msk [vmem:[%s3 + $0x1d0] sm:$0xf] %vm5318, %v4881
  %5436 = vst.msk [vmem:[%s3 + $0x1d4] sm:$0xf] %vm5318, %v4882
  %5437 = vst.msk [vmem:[%s3 + $0x1d8] sm:$0xf] %vm5318, %v4883
  %5438 = vst.msk [vmem:[%s3 + $0x1dc] sm:$0xf] %vm5318, %v4884
  %5439 = vst.msk [vmem:[%s3 + $0x1e0] sm:$0xf] %vm5318, %v4885
  %5440 = vst.msk [vmem:[%s3 + $0x1e4] sm:$0xf] %vm5318, %v4886
  %5441 = vst.msk [vmem:[%s3 + $0x1e8] sm:$0xf] %vm5318, %v4887
  %5442 = vst.msk [vmem:[%s3 + $0x1ec] sm:$0xf] %vm5318, %v4888
  %5443 = vst.msk [vmem:[%s3 + $0x1f0] sm:$0xf] %vm5318, %v4889
  %5444 = vst.msk [vmem:[%s3 + $0x1f4] sm:$0xf] %vm5318, %v4890
  %5445 = vst.msk [vmem:[%s3 + $0x1f8] sm:$0xf] %vm5318, %v4891
  %5446 = vst.msk [vmem:[%s3 + $0x1fc] sm:$0xf] %vm5318, %v4892
  %5447 = vst.msk [vmem:[%s3 + $0x200] sm:$0xf] %vm5318, %v4893
  %5448 = vst.msk [vmem:[%s3 + $0x204] sm:$0xf] %vm5318, %v4894
  %5449 = vst.msk [vmem:[%s3 + $0x208] sm:$0xf] %vm5318, %v4895
  %5450 = vst.msk [vmem:[%s3 + $0x20c] sm:$0xf] %vm5318, %v4896
  %5451 = vst.msk [vmem:[%s3 + $0x210] sm:$0xf] %vm5318, %v4897
  %5452 = vst.msk [vmem:[%s3 + $0x214] sm:$0xf] %vm5318, %v4898
  %5453 = vst.msk [vmem:[%s3 + $0x218] sm:$0xf] %vm5318, %v4899
  %5454 = vst.msk [vmem:[%s3 + $0x21c] sm:$0xf] %vm5318, %v4900
  %5455 = vst.msk [vmem:[%s3 + $0x220] sm:$0xf] %vm5318, %v4901
  %5456 = vst.msk [vmem:[%s3 + $0x224] sm:$0xf] %vm5318, %v4902
  %5457 = vst.msk [vmem:[%s3 + $0x228] sm:$0xf] %vm5318, %v4903
  %5458 = vst.msk [vmem:[%s3 + $0x22c] sm:$0xf] %vm5318, %v4904
  %5459 = vst.msk [vmem:[%s3 + $0x230] sm:$0xf] %vm5318, %v4905
  %5460 = vst.msk [vmem:[%s3 + $0x234] sm:$0xf] %vm5318, %v4906
  %5461 = vst.msk [vmem:[%s3 + $0x238] sm:$0xf] %vm5318, %v4907
  %5462 = vst.msk [vmem:[%s3 + $0x23c] sm:$0xf] %vm5318, %v4908
  %5463 = vst.msk [vmem:[%s3 + $0x240] sm:$0xf] %vm5318, %v4909
  %5464 = vst.msk [vmem:[%s3 + $0x244] sm:$0xf] %vm5318, %v4910
  %5465 = vst.msk [vmem:[%s3 + $0x248] sm:$0xf] %vm5318, %v4911
  %5466 = vst.msk [vmem:[%s3 + $0x24c] sm:$0xf] %vm5318, %v4912
  %5467 = vst.msk [vmem:[%s3 + $0x250] sm:$0xf] %vm5318, %v4913
  %5468 = vst.msk [vmem:[%s3 + $0x254] sm:$0xf] %vm5318, %v4914
  %5469 = vst.msk [vmem:[%s3 + $0x258] sm:$0xf] %vm5318, %v4915
  %5470 = vst.msk [vmem:[%s3 + $0x25c] sm:$0xf] %vm5318, %v4916
  %5471 = vst.msk [vmem:[%s3 + $0x260] sm:$0xf] %vm5318, %v4917
  %5472 = vst.msk [vmem:[%s3 + $0x264] sm:$0xf] %vm5318, %v4918
  %5473 = vst.msk [vmem:[%s3 + $0x268] sm:$0xf] %vm5318, %v4919
  %5474 = vst.msk [vmem:[%s3 + $0x26c] sm:$0xf] %vm5318, %v4920
  %5475 = vst.msk [vmem:[%s3 + $0x270] sm:$0xf] %vm5318, %v4921
  %5476 = vst.msk [vmem:[%s3 + $0x274] sm:$0xf] %vm5318, %v4922
  %5477 = vst.msk [vmem:[%s3 + $0x278] sm:$0xf] %vm5318, %v4923
  %5478 = vst.msk [vmem:[%s3 + $0x27c] sm:$0xf] %vm5318, %v4924
  %5479 = vst.msk [vmem:[%s3 + $0x280] sm:$0xf] %vm5318, %v4925
  %5480 = vst.msk [vmem:[%s3 + $0x284] sm:$0xf] %vm5318, %v4926
  %5481 = vst.msk [vmem:[%s3 + $0x288] sm:$0xf] %vm5318, %v4927
  %5482 = vst.msk [vmem:[%s3 + $0x28c] sm:$0xf] %vm5318, %v4928
  %5483 = vst.msk [vmem:[%s3 + $0x290] sm:$0xf] %vm5318, %v4929
  %5484 = vst.msk [vmem:[%s3 + $0x294] sm:$0xf] %vm5318, %v4930
  %5485 = vst.msk [vmem:[%s3 + $0x298] sm:$0xf] %vm5318, %v4931
  %5486 = vst.msk [vmem:[%s3 + $0x29c] sm:$0xf] %vm5318, %v4932
  %5487 = vst.msk [vmem:[%s3 + $0x2a0] sm:$0xf] %vm5318, %v4933
  %5488 = vst.msk [vmem:[%s3 + $0x2a4] sm:$0xf] %vm5318, %v4934
  %5489 = vst.msk [vmem:[%s3 + $0x2a8] sm:$0xf] %vm5318, %v4935
  %5490 = vst.msk [vmem:[%s3 + $0x2ac] sm:$0xf] %vm5318, %v4936
  %5491 = vst.msk [vmem:[%s3 + $0x2b0] sm:$0xf] %vm5318, %v4937
  %5492 = vst.msk [vmem:[%s3 + $0x2b4] sm:$0xf] %vm5318, %v4938
  %5493 = vst.msk [vmem:[%s3 + $0x2b8] sm:$0xf] %vm5318, %v4939
  %5494 = vst.msk [vmem:[%s3 + $0x2bc] sm:$0xf] %vm5318, %v4940
  %5495 = vst.msk [vmem:[%s3 + $0x2c0] sm:$0xf] %vm5318, %v4941
  %5496 = vst.msk [vmem:[%s3 + $0x2c4] sm:$0xf] %vm5318, %v4942
  %5497 = vst.msk [vmem:[%s3 + $0x2c8] sm:$0xf] %vm5318, %v4943
  %5498 = vst.msk [vmem:[%s3 + $0x2cc] sm:$0xf] %vm5318, %v4944
  %5499 = vst.msk [vmem:[%s3 + $0x2d0] sm:$0xf] %vm5318, %v4945
  %5500 = vst.msk [vmem:[%s3 + $0x2d4] sm:$0xf] %vm5318, %v4946
  %5501 = vst.msk [vmem:[%s3 + $0x2d8] sm:$0xf] %vm5318, %v4947
  %5502 = vst.msk [vmem:[%s3 + $0x2dc] sm:$0xf] %vm5318, %v4948
  %5503 = vst.msk [vmem:[%s3 + $0x2e0] sm:$0xf] %vm5318, %v4949
  %5504 = vst.msk [vmem:[%s3 + $0x2e4] sm:$0xf] %vm5318, %v4950
  %5505 = vst.msk [vmem:[%s3 + $0x2e8] sm:$0xf] %vm5318, %v4951
  %5506 = vst.msk [vmem:[%s3 + $0x2ec] sm:$0xf] %vm5318, %v4952
  %5507 = vst.msk [vmem:[%s3 + $0x2f0] sm:$0xf] %vm5318, %v4953
  %5508 = vst.msk [vmem:[%s3 + $0x2f4] sm:$0xf] %vm5318, %v4954
  %5509 = vst.msk [vmem:[%s3 + $0x2f8] sm:$0xf] %vm5318, %v4955
  %5510 = vst.msk [vmem:[%s3 + $0x2fc] sm:$0xf] %vm5318, %v4956
  %5511 = vst.msk [vmem:[%s3 + $0x300] sm:$0xf] %vm5318, %v4957
  %5512 = vst.msk [vmem:[%s3 + $0x304] sm:$0xf] %vm5318, %v4958
  %5513 = vst.msk [vmem:[%s3 + $0x308] sm:$0xf] %vm5318, %v4959
  %5514 = vst.msk [vmem:[%s3 + $0x30c] sm:$0xf] %vm5318, %v4960
  %5515 = vst.msk [vmem:[%s3 + $0x310] sm:$0xf] %vm5318, %v4961
  %5516 = vst.msk [vmem:[%s3 + $0x314] sm:$0xf] %vm5318, %v4962
  %5517 = vst.msk [vmem:[%s3 + $0x318] sm:$0xf] %vm5318, %v4963
  %5518 = vst.msk [vmem:[%s3 + $0x31c] sm:$0xf] %vm5318, %v4964
  %5519 = vst.msk [vmem:[%s3 + $0x320] sm:$0xf] %vm5318, %v4965
  %5520 = vst.msk [vmem:[%s3 + $0x324] sm:$0xf] %vm5318, %v4966
  %5521 = vst.msk [vmem:[%s3 + $0x328] sm:$0xf] %vm5318, %v4967
  %5522 = vst.msk [vmem:[%s3 + $0x32c] sm:$0xf] %vm5318, %v4968
  %5523 = vst.msk [vmem:[%s3 + $0x330] sm:$0xf] %vm5318, %v4969
  %5524 = vst.msk [vmem:[%s3 + $0x334] sm:$0xf] %vm5318, %v4970
  %5525 = vst.msk [vmem:[%s3 + $0x338] sm:$0xf] %vm5318, %v4971
  %5526 = vst.msk [vmem:[%s3 + $0x33c] sm:$0xf] %vm5318, %v4972
  %5527 = vst.msk [vmem:[%s3 + $0x340] sm:$0xf] %vm5318, %v4973
  %5528 = vst.msk [vmem:[%s3 + $0x344] sm:$0xf] %vm5318, %v4974
  %5529 = vst.msk [vmem:[%s3 + $0x348] sm:$0xf] %vm5318, %v4975
  %5530 = vst.msk [vmem:[%s3 + $0x34c] sm:$0xf] %vm5318, %v4976
  %5531 = vst.msk [vmem:[%s3 + $0x350] sm:$0xf] %vm5318, %v4977
  %5532 = vst.msk [vmem:[%s3 + $0x354] sm:$0xf] %vm5318, %v4978
  %5533 = vst.msk [vmem:[%s3 + $0x358] sm:$0xf] %vm5318, %v4979
  %5534 = vst.msk [vmem:[%s3 + $0x35c] sm:$0xf] %vm5318, %v4980
  %5535 = vst.msk [vmem:[%s3 + $0x360] sm:$0xf] %vm5318, %v4981
  %5536 = vst.msk [vmem:[%s3 + $0x364] sm:$0xf] %vm5318, %v4982
  %5537 = vst.msk [vmem:[%s3 + $0x368] sm:$0xf] %vm5318, %v4983
  %5538 = vst.msk [vmem:[%s3 + $0x36c] sm:$0xf] %vm5318, %v4984
  %5539 = vst.msk [vmem:[%s3 + $0x370] sm:$0xf] %vm5318, %v4985
  %5540 = vst.msk [vmem:[%s3 + $0x374] sm:$0xf] %vm5318, %v4986
  %5541 = vst.msk [vmem:[%s3 + $0x378] sm:$0xf] %vm5318, %v4987
  %5542 = vst.msk [vmem:[%s3 + $0x37c] sm:$0xf] %vm5318, %v4988
  %5543 = vst.msk [vmem:[%s3 + $0x380] sm:$0xf] %vm5318, %v4989
  %5544 = vst.msk [vmem:[%s3 + $0x384] sm:$0xf] %vm5318, %v4990
  %5545 = vst.msk [vmem:[%s3 + $0x388] sm:$0xf] %vm5318, %v4991
  %5546 = vst.msk [vmem:[%s3 + $0x38c] sm:$0xf] %vm5318, %v4992
  %5547 = vst.msk [vmem:[%s3 + $0x390] sm:$0xf] %vm5318, %v4993
  %5548 = vst.msk [vmem:[%s3 + $0x394] sm:$0xf] %vm5318, %v4994
  %5549 = vst.msk [vmem:[%s3 + $0x398] sm:$0xf] %vm5318, %v4995
  %5550 = vst.msk [vmem:[%s3 + $0x39c] sm:$0xf] %vm5318, %v4996
  %5551 = vst.msk [vmem:[%s3 + $0x3a0] sm:$0xf] %vm5318, %v4997
  %5552 = vst.msk [vmem:[%s3 + $0x3a4] sm:$0xf] %vm5318, %v4998
  %5553 = vst.msk [vmem:[%s3 + $0x3a8] sm:$0xf] %vm5318, %v4999
  %5554 = vst.msk [vmem:[%s3 + $0x3ac] sm:$0xf] %vm5318, %v5000
  %5555 = vst.msk [vmem:[%s3 + $0x3b0] sm:$0xf] %vm5318, %v5001
  %5556 = vst.msk [vmem:[%s3 + $0x3b4] sm:$0xf] %vm5318, %v5002
  %5557 = vst.msk [vmem:[%s3 + $0x3b8] sm:$0xf] %vm5318, %v5003
  %5558 = vst.msk [vmem:[%s3 + $0x3bc] sm:$0xf] %vm5318, %v5004
  %5559 = vst.msk [vmem:[%s3 + $0x3c0] sm:$0xf] %vm5318, %v5005
  %5560 = vst.msk [vmem:[%s3 + $0x3c4] sm:$0xf] %vm5318, %v5006
  %5561 = vst.msk [vmem:[%s3 + $0x3c8] sm:$0xf] %vm5318, %v5007
  %5562 = vst.msk [vmem:[%s3 + $0x3cc] sm:$0xf] %vm5318, %v5008
  %5563 = vst.msk [vmem:[%s3 + $0x3d0] sm:$0xf] %vm5318, %v5009
  %5564 = vst.msk [vmem:[%s3 + $0x3d4] sm:$0xf] %vm5318, %v5010
  %5565 = vst.msk [vmem:[%s3 + $0x3d8] sm:$0xf] %vm5318, %v5011
  %5566 = vst.msk [vmem:[%s3 + $0x3dc] sm:$0xf] %vm5318, %v5012
  %5567 = vst.msk [vmem:[%s3 + $0x3e0] sm:$0xf] %vm5318, %v5013
  %5568 = vst.msk [vmem:[%s3 + $0x3e4] sm:$0xf] %vm5318, %v5014
  %5569 = vst.msk [vmem:[%s3 + $0x3e8] sm:$0xf] %vm5318, %v5015
  %5570 = vst.msk [vmem:[%s3 + $0x3ec] sm:$0xf] %vm5318, %v5016
  %5571 = vst.msk [vmem:[%s3 + $0x3f0] sm:$0xf] %vm5318, %v5017
  %5572 = vst.msk [vmem:[%s3 + $0x3f4] sm:$0xf] %vm5318, %v5018
  %5573 = vst.msk [vmem:[%s3 + $0x3f8] sm:$0xf] %vm5318, %v5019
  %5574 = vst.msk [vmem:[%s3 + $0x3fc] sm:$0xf] %vm5318, %v5020
  %5575 = vst.msk [vmem:[%s3 + $0x400] sm:$0xf] %vm5318, %v5021
  %5576 = vst.msk [vmem:[%s3 + $0x404] sm:$0xf] %vm5318, %v5022
  %5577 = vst.msk [vmem:[%s3 + $0x408] sm:$0xf] %vm5318, %v5023
  %5578 = vst.msk [vmem:[%s3 + $0x40c] sm:$0xf] %vm5318, %v5024
  %5579 = vst.msk [vmem:[%s3 + $0x410] sm:$0xf] %vm5318, %v5025
  %5580 = vst.msk [vmem:[%s3 + $0x414] sm:$0xf] %vm5318, %v5026
  %5581 = vst.msk [vmem:[%s3 + $0x418] sm:$0xf] %vm5318, %v5027
  %5582 = vst.msk [vmem:[%s3 + $0x41c] sm:$0xf] %vm5318, %v5028
  %5583 = vst.msk [vmem:[%s3 + $0x420] sm:$0xf] %vm5318, %v5029
  %5584 = vst.msk [vmem:[%s3 + $0x424] sm:$0xf] %vm5318, %v5030
  %5585 = vst.msk [vmem:[%s3 + $0x428] sm:$0xf] %vm5318, %v5031
  %5586 = vst.msk [vmem:[%s3 + $0x42c] sm:$0xf] %vm5318, %v5032
  %5587 = vst.msk [vmem:[%s3 + $0x430] sm:$0xf] %vm5318, %v5033
  %5588 = vst.msk [vmem:[%s3 + $0x434] sm:$0xf] %vm5318, %v5034
  %5589 = vst.msk [vmem:[%s3 + $0x438] sm:$0xf] %vm5318, %v5035
  %5590 = vst.msk [vmem:[%s3 + $0x43c] sm:$0xf] %vm5318, %v5036
  %5591 = vst.msk [vmem:[%s3 + $0x440] sm:$0xf] %vm5318, %v5037
  %5592 = vst.msk [vmem:[%s3 + $0x444] sm:$0xf] %vm5318, %v5038
  %5593 = vst.msk [vmem:[%s3 + $0x448] sm:$0xf] %vm5318, %v5039
  %5594 = vst.msk [vmem:[%s3 + $0x44c] sm:$0xf] %vm5318, %v5040
  %5595 = vst.msk [vmem:[%s3 + $0x450] sm:$0xf] %vm5318, %v5041
  %5596 = vst.msk [vmem:[%s3 + $0x454] sm:$0xf] %vm5318, %v5042
  %5597 = vst.msk [vmem:[%s3 + $0x458] sm:$0xf] %vm5318, %v5043
  %5598 = vst.msk [vmem:[%s3 + $0x45c] sm:$0xf] %vm5318, %v5044
  %5599 = vst.msk [vmem:[%s3 + $0x460] sm:$0xf] %vm5318, %v5045
  %5600 = vst.msk [vmem:[%s3 + $0x464] sm:$0xf] %vm5318, %v5046
  %5601 = vst.msk [vmem:[%s3 + $0x468] sm:$0xf] %vm5318, %v5047
  %5602 = vst.msk [vmem:[%s3 + $0x46c] sm:$0xf] %vm5318, %v5048
  %5603 = vst.msk [vmem:[%s3 + $0x470] sm:$0xf] %vm5318, %v5049
  %5604 = vst.msk [vmem:[%s3 + $0x474] sm:$0xf] %vm5318, %v5050
  %5605 = vst.msk [vmem:[%s3 + $0x478] sm:$0xf] %vm5318, %v5051
  %5606 = vst.msk [vmem:[%s3 + $0x47c] sm:$0xf] %vm5318, %v5052
  %5607 = vst.msk [vmem:[%s3 + $0x480] sm:$0xf] %vm5318, %v5053
  %5608 = vst.msk [vmem:[%s3 + $0x484] sm:$0xf] %vm5318, %v5054
  %5609 = vst.msk [vmem:[%s3 + $0x488] sm:$0xf] %vm5318, %v5055
  %5610 = vst.msk [vmem:[%s3 + $0x48c] sm:$0xf] %vm5318, %v5056
  %5611 = vst.msk [vmem:[%s3 + $0x490] sm:$0xf] %vm5318, %v5057
  %5612 = vst.msk [vmem:[%s3 + $0x494] sm:$0xf] %vm5318, %v5058
  %5613 = vst.msk [vmem:[%s3 + $0x498] sm:$0xf] %vm5318, %v5059
  %5614 = vst.msk [vmem:[%s3 + $0x49c] sm:$0xf] %vm5318, %v5060
  %5615 = vst.msk [vmem:[%s3 + $0x4a0] sm:$0xf] %vm5318, %v5061
  %5616 = vst.msk [vmem:[%s3 + $0x4a4] sm:$0xf] %vm5318, %v5062
  %5617 = vst.msk [vmem:[%s3 + $0x4a8] sm:$0xf] %vm5318, %v5063
  %5618 = vst.msk [vmem:[%s3 + $0x4ac] sm:$0xf] %vm5318, %v5064
  %5619 = vst.msk [vmem:[%s3 + $0x4b0] sm:$0xf] %vm5318, %v5065
  %5620 = vst.msk [vmem:[%s3 + $0x4b4] sm:$0xf] %vm5318, %v5066
  %5621 = vst.msk [vmem:[%s3 + $0x4b8] sm:$0xf] %vm5318, %v5067
  %5622 = vst.msk [vmem:[%s3 + $0x4bc] sm:$0xf] %vm5318, %v5068
  %5623 = vst.msk [vmem:[%s3 + $0x4c0] sm:$0xf] %vm5318, %v5069
  %5624 = vst.msk [vmem:[%s3 + $0x4c4] sm:$0xf] %vm5318, %v5070
  %5625 = vst.msk [vmem:[%s3 + $0x4c8] sm:$0xf] %vm5318, %v5071
  %5626 = vst.msk [vmem:[%s3 + $0x4cc] sm:$0xf] %vm5318, %v5072
  %5627 = vst.msk [vmem:[%s3 + $0x4d0] sm:$0xf] %vm5318, %v5073
  %5628 = vst.msk [vmem:[%s3 + $0x4d4] sm:$0xf] %vm5318, %v5074
  %5629 = vst.msk [vmem:[%s3 + $0x4d8] sm:$0xf] %vm5318, %v5075
  %5630 = vst.msk [vmem:[%s3 + $0x4dc] sm:$0xf] %vm5318, %v5076
  %5631 = vst.msk [vmem:[%s3 + $0x4e0] sm:$0xf] %vm5318, %v5077
  %5632 = vst.msk [vmem:[%s3 + $0x4e4] sm:$0xf] %vm5318, %v5078
  %5633 = vst.msk [vmem:[%s3 + $0x4e8] sm:$0xf] %vm5318, %v5079
  %5634 = vst.msk [vmem:[%s3 + $0x4ec] sm:$0xf] %vm5318, %v5080
  %5635 = vst.msk [vmem:[%s3 + $0x4f0] sm:$0xf] %vm5318, %v5081
  %5636 = vst.msk [vmem:[%s3 + $0x4f4] sm:$0xf] %vm5318, %v5082
  %5637 = vst.msk [vmem:[%s3 + $0x4f8] sm:$0xf] %vm5318, %v5083
  %5638 = vst.msk [vmem:[%s3 + $0x4fc] sm:$0xf] %vm5318, %v5084
  %5639 = vst.msk [vmem:[%s3 + $0x500] sm:$0xf] %vm5318, %v5085
  %5640 = vst.msk [vmem:[%s3 + $0x504] sm:$0xf] %vm5318, %v5086
  %5641 = vst.msk [vmem:[%s3 + $0x508] sm:$0xf] %vm5318, %v5087
  %5642 = vst.msk [vmem:[%s3 + $0x50c] sm:$0xf] %vm5318, %v5088
  %5643 = vst.msk [vmem:[%s3 + $0x510] sm:$0xf] %vm5318, %v5089
  %5644 = vst.msk [vmem:[%s3 + $0x514] sm:$0xf] %vm5318, %v5090
  %5645 = vst.msk [vmem:[%s3 + $0x518] sm:$0xf] %vm5318, %v5091
  %5646 = vst.msk [vmem:[%s3 + $0x51c] sm:$0xf] %vm5318, %v5092
  %5647 = vst.msk [vmem:[%s3 + $0x520] sm:$0xf] %vm5318, %v5093
  %5648 = vst.msk [vmem:[%s3 + $0x524] sm:$0xf] %vm5318, %v5094
  %5649 = vst.msk [vmem:[%s3 + $0x528] sm:$0xf] %vm5318, %v5095
  %5650 = vst.msk [vmem:[%s3 + $0x52c] sm:$0xf] %vm5318, %v5096
  %5651 = vst.msk [vmem:[%s3 + $0x530] sm:$0xf] %vm5318, %v5097
  %5652 = vst.msk [vmem:[%s3 + $0x534] sm:$0xf] %vm5318, %v5098
  %5653 = vst.msk [vmem:[%s3 + $0x538] sm:$0xf] %vm5318, %v5099
  %5654 = vst.msk [vmem:[%s3 + $0x53c] sm:$0xf] %vm5318, %v5100
  %5655 = vst.msk [vmem:[%s3 + $0x540] sm:$0xf] %vm5318, %v5101
  %5656 = vst.msk [vmem:[%s3 + $0x544] sm:$0xf] %vm5318, %v5102
  %5657 = vst.msk [vmem:[%s3 + $0x548] sm:$0xf] %vm5318, %v5103
  %5658 = vst.msk [vmem:[%s3 + $0x54c] sm:$0xf] %vm5318, %v5104
  %5659 = vst.msk [vmem:[%s3 + $0x550] sm:$0xf] %vm5318, %v5105
  %5660 = vst.msk [vmem:[%s3 + $0x554] sm:$0xf] %vm5318, %v5106
  %5661 = vst.msk [vmem:[%s3 + $0x558] sm:$0xf] %vm5318, %v5107
  %5662 = vst.msk [vmem:[%s3 + $0x55c] sm:$0xf] %vm5318, %v5108
  %5663 = vst.msk [vmem:[%s3 + $0x560] sm:$0xf] %vm5318, %v5109
  %5664 = vst.msk [vmem:[%s3 + $0x564] sm:$0xf] %vm5318, %v5110
  %5665 = vst.msk [vmem:[%s3 + $0x568] sm:$0xf] %vm5318, %v5111
  %5666 = vst.msk [vmem:[%s3 + $0x56c] sm:$0xf] %vm5318, %v5112
  %5667 = vst.msk [vmem:[%s3 + $0x570] sm:$0xf] %vm5318, %v5113
  %5668 = vst.msk [vmem:[%s3 + $0x574] sm:$0xf] %vm5318, %v5114
  %5669 = vst.msk [vmem:[%s3 + $0x578] sm:$0xf] %vm5318, %v5115
  %5670 = vst.msk [vmem:[%s3 + $0x57c] sm:$0xf] %vm5318, %v5116
  %5671 = vst.msk [vmem:[%s3 + $0x580] sm:$0xf] %vm5318, %v5117
  %5672 = vst.msk [vmem:[%s3 + $0x584] sm:$0xf] %vm5318, %v5118
  %5673 = vst.msk [vmem:[%s3 + $0x588] sm:$0xf] %vm5318, %v5119
  %5674 = vst.msk [vmem:[%s3 + $0x58c] sm:$0xf] %vm5318, %v5120
  %5675 = vst.msk [vmem:[%s3 + $0x590] sm:$0xf] %vm5318, %v5121
  %5676 = vst.msk [vmem:[%s3 + $0x594] sm:$0xf] %vm5318, %v5122
  %5677 = vst.msk [vmem:[%s3 + $0x598] sm:$0xf] %vm5318, %v5123
  %5678 = vst.msk [vmem:[%s3 + $0x59c] sm:$0xf] %vm5318, %v5124
  %5679 = vst.msk [vmem:[%s3 + $0x5a0] sm:$0xf] %vm5318, %v5125
  %5680 = vst.msk [vmem:[%s3 + $0x5a4] sm:$0xf] %vm5318, %v5126
  %5681 = vst.msk [vmem:[%s3 + $0x5a8] sm:$0xf] %vm5318, %v5127
  %5682 = vst.msk [vmem:[%s3 + $0x5ac] sm:$0xf] %vm5318, %v5128
  %5683 = vst.msk [vmem:[%s3 + $0x5b0] sm:$0xf] %vm5318, %v5129
  %5684 = vst.msk [vmem:[%s3 + $0x5b4] sm:$0xf] %vm5318, %v5130
  %5685 = vst.msk [vmem:[%s3 + $0x5b8] sm:$0xf] %vm5318, %v5131
  %5686 = vst.msk [vmem:[%s3 + $0x5bc] sm:$0xf] %vm5318, %v5132
  %5687 = vst.msk [vmem:[%s3 + $0x5c0] sm:$0xf] %vm5318, %v5133
  %5688 = vst.msk [vmem:[%s3 + $0x5c4] sm:$0xf] %vm5318, %v5134
  %5689 = vst.msk [vmem:[%s3 + $0x5c8] sm:$0xf] %vm5318, %v5135
  %5690 = vst.msk [vmem:[%s3 + $0x5cc] sm:$0xf] %vm5318, %v5136
  %5691 = vst.msk [vmem:[%s3 + $0x5d0] sm:$0xf] %vm5318, %v5137
  %5692 = vst.msk [vmem:[%s3 + $0x5d4] sm:$0xf] %vm5318, %v5138
  %5693 = vst.msk [vmem:[%s3 + $0x5d8] sm:$0xf] %vm5318, %v5139
  %5694 = vst.msk [vmem:[%s3 + $0x5dc] sm:$0xf] %vm5318, %v5140
  %5695 = vst.msk [vmem:[%s3 + $0x5e0] sm:$0xf] %vm5318, %v5141
  %5696 = vst.msk [vmem:[%s3 + $0x5e4] sm:$0xf] %vm5318, %v5142
  %5697 = vst.msk [vmem:[%s3 + $0x5e8] sm:$0xf] %vm5318, %v5143
  %5698 = vst.msk [vmem:[%s3 + $0x5ec] sm:$0xf] %vm5318, %v5144
  %5699 = vst.msk [vmem:[%s3 + $0x5f0] sm:$0xf] %vm5318, %v5145
  %5700 = vst.msk [vmem:[%s3 + $0x5f4] sm:$0xf] %vm5318, %v5146
  %5701 = vst.msk [vmem:[%s3 + $0x5f8] sm:$0xf] %vm5318, %v5147
  %5702 = vst.msk [vmem:[%s3 + $0x5fc] sm:$0xf] %vm5318, %v5148
  %5703 = vst.msk [vmem:[%s3 + $0x600] sm:$0xf] %vm5318, %v5149
  %5704 = vst.msk [vmem:[%s3 + $0x604] sm:$0xf] %vm5318, %v5150
  %5705 = vst.msk [vmem:[%s3 + $0x608] sm:$0xf] %vm5318, %v5151
  %5706 = vst.msk [vmem:[%s3 + $0x60c] sm:$0xf] %vm5318, %v5152
  %5707 = vst.msk [vmem:[%s3 + $0x610] sm:$0xf] %vm5318, %v5153
  %5708 = vst.msk [vmem:[%s3 + $0x614] sm:$0xf] %vm5318, %v5154
  %5709 = vst.msk [vmem:[%s3 + $0x618] sm:$0xf] %vm5318, %v5155
  %5710 = vst.msk [vmem:[%s3 + $0x61c] sm:$0xf] %vm5318, %v5156
  %5711 = vst.msk [vmem:[%s3 + $0x620] sm:$0xf] %vm5318, %v5157
  %5712 = vst.msk [vmem:[%s3 + $0x624] sm:$0xf] %vm5318, %v5158
  %5713 = vst.msk [vmem:[%s3 + $0x628] sm:$0xf] %vm5318, %v5159
  %5714 = vst.msk [vmem:[%s3 + $0x62c] sm:$0xf] %vm5318, %v5160
  %5715 = vst.msk [vmem:[%s3 + $0x630] sm:$0xf] %vm5318, %v5161
  %5716 = vst.msk [vmem:[%s3 + $0x634] sm:$0xf] %vm5318, %v5162
  %5717 = vst.msk [vmem:[%s3 + $0x638] sm:$0xf] %vm5318, %v5163
  %5718 = vst.msk [vmem:[%s3 + $0x63c] sm:$0xf] %vm5318, %v5164
  %5719 = vst.msk [vmem:[%s3 + $0x640] sm:$0xf] %vm5318, %v5165
  %5720 = vst.msk [vmem:[%s3 + $0x644] sm:$0xf] %vm5318, %v5166
  %5721 = vst.msk [vmem:[%s3 + $0x648] sm:$0xf] %vm5318, %v5167
  %5722 = vst.msk [vmem:[%s3 + $0x64c] sm:$0xf] %vm5318, %v5168
  %5723 = vst.msk [vmem:[%s3 + $0x650] sm:$0xf] %vm5318, %v5169
  %5724 = vst.msk [vmem:[%s3 + $0x654] sm:$0xf] %vm5318, %v5170
  %5725 = vst.msk [vmem:[%s3 + $0x658] sm:$0xf] %vm5318, %v5171
  %5726 = vst.msk [vmem:[%s3 + $0x65c] sm:$0xf] %vm5318, %v5172
  %5727 = vst.msk [vmem:[%s3 + $0x660] sm:$0xf] %vm5318, %v5173
  %5728 = vst.msk [vmem:[%s3 + $0x664] sm:$0xf] %vm5318, %v5174
  %5729 = vst.msk [vmem:[%s3 + $0x668] sm:$0xf] %vm5318, %v5175
  %5730 = vst.msk [vmem:[%s3 + $0x66c] sm:$0xf] %vm5318, %v5176
  %5731 = vst.msk [vmem:[%s3 + $0x670] sm:$0xf] %vm5318, %v5177
  %5732 = vst.msk [vmem:[%s3 + $0x674] sm:$0xf] %vm5318, %v5178
  %5733 = vst.msk [vmem:[%s3 + $0x678] sm:$0xf] %vm5318, %v5179
  %5734 = vst.msk [vmem:[%s3 + $0x67c] sm:$0xf] %vm5318, %v5180
  %5735 = vst.msk [vmem:[%s3 + $0x680] sm:$0xf] %vm5318, %v5181
  %5736 = vst.msk [vmem:[%s3 + $0x684] sm:$0xf] %vm5318, %v5182
  %5737 = vst.msk [vmem:[%s3 + $0x688] sm:$0xf] %vm5318, %v5183
  %5738 = vst.msk [vmem:[%s3 + $0x68c] sm:$0xf] %vm5318, %v5184
  %5739 = vst.msk [vmem:[%s3 + $0x690] sm:$0xf] %vm5318, %v5185
  %5740 = vst.msk [vmem:[%s3 + $0x694] sm:$0xf] %vm5318, %v5186
  %5741 = vst.msk [vmem:[%s3 + $0x698] sm:$0xf] %vm5318, %v5187
  %5742 = vst.msk [vmem:[%s3 + $0x69c] sm:$0xf] %vm5318, %v5188
  %5743 = vst.msk [vmem:[%s3 + $0x6a0] sm:$0xf] %vm5318, %v5189
  %5744 = vst.msk [vmem:[%s3 + $0x6a4] sm:$0xf] %vm5318, %v5190
  %5745 = vst.msk [vmem:[%s3 + $0x6a8] sm:$0xf] %vm5318, %v5191
  %5746 = vst.msk [vmem:[%s3 + $0x6ac] sm:$0xf] %vm5318, %v5192
  %5747 = vst.msk [vmem:[%s3 + $0x6b0] sm:$0xf] %vm5318, %v5193
  %5748 = vst.msk [vmem:[%s3 + $0x6b4] sm:$0xf] %vm5318, %v5194
  %5749 = vst.msk [vmem:[%s3 + $0x6b8] sm:$0xf] %vm5318, %v5195
  %5750 = vst.msk [vmem:[%s3 + $0x6bc] sm:$0xf] %vm5318, %v5196
  %5751 = vst.msk [vmem:[%s3 + $0x6c0] sm:$0xf] %vm5318, %v5197
  %5752 = vst.msk [vmem:[%s3 + $0x6c4] sm:$0xf] %vm5318, %v5198
  %5753 = vst.msk [vmem:[%s3 + $0x6c8] sm:$0xf] %vm5318, %v5199
  %5754 = vst.msk [vmem:[%s3 + $0x6cc] sm:$0xf] %vm5318, %v5200
  %5755 = vst.msk [vmem:[%s3 + $0x6d0] sm:$0xf] %vm5318, %v5201
  %5756 = vst.msk [vmem:[%s3 + $0x6d4] sm:$0xf] %vm5318, %v5202
  %5757 = vst.msk [vmem:[%s3 + $0x6d8] sm:$0xf] %vm5318, %v5203
  %5758 = vst.msk [vmem:[%s3 + $0x6dc] sm:$0xf] %vm5318, %v5204
  %5759 = vst.msk [vmem:[%s3 + $0x6e0] sm:$0xf] %vm5318, %v5205
  %5760 = vst.msk [vmem:[%s3 + $0x6e4] sm:$0xf] %vm5318, %v5206
  %5761 = vst.msk [vmem:[%s3 + $0x6e8] sm:$0xf] %vm5318, %v5207
  %5762 = vst.msk [vmem:[%s3 + $0x6ec] sm:$0xf] %vm5318, %v5208
  %5763 = vst.msk [vmem:[%s3 + $0x6f0] sm:$0xf] %vm5318, %v5209
  %5764 = vst.msk [vmem:[%s3 + $0x6f4] sm:$0xf] %vm5318, %v5210
  %5765 = vst.msk [vmem:[%s3 + $0x6f8] sm:$0xf] %vm5318, %v5211
  %5766 = vst.msk [vmem:[%s3 + $0x6fc] sm:$0xf] %vm5318, %v5212
  %5767 = vst.msk [vmem:[%s3 + $0x700] sm:$0xf] %vm5318, %v5213
  %5768 = vst.msk [vmem:[%s3 + $0x704] sm:$0xf] %vm5318, %v5214
  %5769 = vst.msk [vmem:[%s3 + $0x708] sm:$0xf] %vm5318, %v5215
  %5770 = vst.msk [vmem:[%s3 + $0x70c] sm:$0xf] %vm5318, %v5216
  %5771 = vst.msk [vmem:[%s3 + $0x710] sm:$0xf] %vm5318, %v5217
  %5772 = vst.msk [vmem:[%s3 + $0x714] sm:$0xf] %vm5318, %v5218
  %5773 = vst.msk [vmem:[%s3 + $0x718] sm:$0xf] %vm5318, %v5219
  %5774 = vst.msk [vmem:[%s3 + $0x71c] sm:$0xf] %vm5318, %v5220
  %5775 = vst.msk [vmem:[%s3 + $0x720] sm:$0xf] %vm5318, %v5221
  %5776 = vst.msk [vmem:[%s3 + $0x724] sm:$0xf] %vm5318, %v5222
  %5777 = vst.msk [vmem:[%s3 + $0x728] sm:$0xf] %vm5318, %v5223
  %5778 = vst.msk [vmem:[%s3 + $0x72c] sm:$0xf] %vm5318, %v5224
  %5779 = vst.msk [vmem:[%s3 + $0x730] sm:$0xf] %vm5318, %v5225
  %5780 = vst.msk [vmem:[%s3 + $0x734] sm:$0xf] %vm5318, %v5226
  %5781 = vst.msk [vmem:[%s3 + $0x738] sm:$0xf] %vm5318, %v5227
  %5782 = vst.msk [vmem:[%s3 + $0x73c] sm:$0xf] %vm5318, %v5228
  %5783 = vst.msk [vmem:[%s3 + $0x740] sm:$0xf] %vm5318, %v5229
  %5784 = vst.msk [vmem:[%s3 + $0x744] sm:$0xf] %vm5318, %v5230
  %5785 = vst.msk [vmem:[%s3 + $0x748] sm:$0xf] %vm5318, %v5231
  %5786 = vst.msk [vmem:[%s3 + $0x74c] sm:$0xf] %vm5318, %v5232
  %5787 = vst.msk [vmem:[%s3 + $0x750] sm:$0xf] %vm5318, %v5233
  %5788 = vst.msk [vmem:[%s3 + $0x754] sm:$0xf] %vm5318, %v5234
  %5789 = vst.msk [vmem:[%s3 + $0x758] sm:$0xf] %vm5318, %v5235
  %5790 = vst.msk [vmem:[%s3 + $0x75c] sm:$0xf] %vm5318, %v5236
  %5791 = vst.msk [vmem:[%s3 + $0x760] sm:$0xf] %vm5318, %v5237
  %5792 = vst.msk [vmem:[%s3 + $0x764] sm:$0xf] %vm5318, %v5238
  %5793 = vst.msk [vmem:[%s3 + $0x768] sm:$0xf] %vm5318, %v5239
  %5794 = vst.msk [vmem:[%s3 + $0x76c] sm:$0xf] %vm5318, %v5240
  %5795 = vst.msk [vmem:[%s3 + $0x770] sm:$0xf] %vm5318, %v5241
  %5796 = vst.msk [vmem:[%s3 + $0x774] sm:$0xf] %vm5318, %v5242
  %5797 = vst.msk [vmem:[%s3 + $0x778] sm:$0xf] %vm5318, %v5243
  %5798 = vst.msk [vmem:[%s3 + $0x77c] sm:$0xf] %vm5318, %v5244
  %5799 = vst.msk [vmem:[%s3 + $0x780] sm:$0xf] %vm5318, %v5245
  %5800 = vst.msk [vmem:[%s3 + $0x784] sm:$0xf] %vm5318, %v5246
  %5801 = vst.msk [vmem:[%s3 + $0x788] sm:$0xf] %vm5318, %v5247
  %5802 = vst.msk [vmem:[%s3 + $0x78c] sm:$0xf] %vm5318, %v5248
  %5803 = vst.msk [vmem:[%s3 + $0x790] sm:$0xf] %vm5318, %v5249
  %5804 = vst.msk [vmem:[%s3 + $0x794] sm:$0xf] %vm5318, %v5250
  %5805 = vst.msk [vmem:[%s3 + $0x798] sm:$0xf] %vm5318, %v5251
  %5806 = vst.msk [vmem:[%s3 + $0x79c] sm:$0xf] %vm5318, %v5252
  %5807 = vst.msk [vmem:[%s3 + $0x7a0] sm:$0xf] %vm5318, %v5253
  %5808 = vst.msk [vmem:[%s3 + $0x7a4] sm:$0xf] %vm5318, %v5254
  %5809 = vst.msk [vmem:[%s3 + $0x7a8] sm:$0xf] %vm5318, %v5255
  %5810 = vst.msk [vmem:[%s3 + $0x7ac] sm:$0xf] %vm5318, %v5256
  %5811 = vst.msk [vmem:[%s3 + $0x7b0] sm:$0xf] %vm5318, %v5257
  %5812 = vst.msk [vmem:[%s3 + $0x7b4] sm:$0xf] %vm5318, %v5258
  %5813 = vst.msk [vmem:[%s3 + $0x7b8] sm:$0xf] %vm5318, %v5259
  %5814 = vst.msk [vmem:[%s3 + $0x7bc] sm:$0xf] %vm5318, %v5260
  %5815 = vst.msk [vmem:[%s3 + $0x7c0] sm:$0xf] %vm5318, %v5261
  %5816 = vst.msk [vmem:[%s3 + $0x7c4] sm:$0xf] %vm5318, %v5262
  %5817 = vst.msk [vmem:[%s3 + $0x7c8] sm:$0xf] %vm5318, %v5263
  %5818 = vst.msk [vmem:[%s3 + $0x7cc] sm:$0xf] %vm5318, %v5264
  %5819 = vst.msk [vmem:[%s3 + $0x7d0] sm:$0xf] %vm5318, %v5265
  %5820 = vst.msk [vmem:[%s3 + $0x7d4] sm:$0xf] %vm5318, %v5266
  %5821 = vst.msk [vmem:[%s3 + $0x7d8] sm:$0xf] %vm5318, %v5267
  %5822 = vst.msk [vmem:[%s3 + $0x7dc] sm:$0xf] %vm5318, %v5268
  %5823 = vst.msk [vmem:[%s3 + $0x7e0] sm:$0xf] %vm5318, %v5269
  %5824 = vst.msk [vmem:[%s3 + $0x7e4] sm:$0xf] %vm5318, %v5270
  %5825 = vst.msk [vmem:[%s3 + $0x7e8] sm:$0xf] %vm5318, %v5271
  %5826 = vst.msk [vmem:[%s3 + $0x7ec] sm:$0xf] %vm5318, %v5272
  %5827 = vst.msk [vmem:[%s3 + $0x7f0] sm:$0xf] %vm5318, %v5273
  %5828 = vst.msk [vmem:[%s3 + $0x7f4] sm:$0xf] %vm5318, %v5274
  %5829 = vst.msk [vmem:[%s3 + $0x7f8] sm:$0xf] %vm5318, %v5275
  %5830 = vst.msk [vmem:[%s3 + $0x7fc] sm:$0xf] %vm5318, %v5276
  %5831 = vst.msk [vmem:[%s3 + $0x800] sm:$0xf] %vm5318, %v5277
  %5832 = vst.msk [vmem:[%s3 + $0x804] sm:$0xf] %vm5318, %v5278
  %5833 = vst.msk [vmem:[%s3 + $0x808] sm:$0xf] %vm5318, %v5279
  %5834 = vst.msk [vmem:[%s3 + $0x80c] sm:$0xf] %vm5318, %v5280
  %5835 = vst.msk [vmem:[%s3 + $0x810] sm:$0xf] %vm5318, %v5281
  %5836 = vst.msk [vmem:[%s3 + $0x814] sm:$0xf] %vm5318, %v5282
  %5837 = vst.msk [vmem:[%s3 + $0x818] sm:$0xf] %vm5318, %v5283
  %5838 = vst.msk [vmem:[%s3 + $0x81c] sm:$0xf] %vm5318, %v5284
  %5839 = vst.msk [vmem:[%s3 + $0x820] sm:$0xf] %vm5318, %v5285
  %5840 = vst.msk [vmem:[%s3 + $0x824] sm:$0xf] %vm5318, %v5286
  %5841 = vst.msk [vmem:[%s3 + $0x828] sm:$0xf] %vm5318, %v5287
  %5842 = vst.msk [vmem:[%s3 + $0x82c] sm:$0xf] %vm5318, %v5288
  %5843 = vst.msk [vmem:[%s3 + $0x830] sm:$0xf] %vm5318, %v5289
  %5844 = vst.msk [vmem:[%s3 + $0x834] sm:$0xf] %vm5318, %v5290
  %5845 = vst.msk [vmem:[%s3 + $0x838] sm:$0xf] %vm5318, %v5291
  %5846 = vst.msk [vmem:[%s3 + $0x83c] sm:$0xf] %vm5318, %v5292
  %5847 = vst.msk [vmem:[%s3 + $0x840] sm:$0xf] %vm5318, %v5293
  %5848 = vst.msk [vmem:[%s3 + $0x844] sm:$0xf] %vm5318, %v5294
  %5849 = vst.msk [vmem:[%s3 + $0x848] sm:$0xf] %vm5318, %v5295
  %5850 = vst.msk [vmem:[%s3 + $0x84c] sm:$0xf] %vm5318, %v5296
  %5851 = vst.msk [vmem:[%s3 + $0x850] sm:$0xf] %vm5318, %v5297
  %5852 = vst.msk [vmem:[%s3 + $0x854] sm:$0xf] %vm5318, %v5298
  %5853 = vst.msk [vmem:[%s3 + $0x858] sm:$0xf] %vm5318, %v5299
  %5854 = vst.msk [vmem:[%s3 + $0x85c] sm:$0xf] %vm5318, %v5300
  %5855 = vst.msk [vmem:[%s3 + $0x860] sm:$0xf] %vm5318, %v5301
  %5856 = vst.msk [vmem:[%s3 + $0x864] sm:$0xf] %vm5318, %v5302
  %5857 = vst.msk [vmem:[%s3 + $0x868] sm:$0xf] %vm5318, %v5303
  %5858 = vst.msk [vmem:[%s3 + $0x86c] sm:$0xf] %vm5318, %v5304
  %5859 = vst.msk [vmem:[%s3 + $0x870] sm:$0xf] %vm5318, %v5305
  %5860 = vst.msk [vmem:[%s3 + $0x874] sm:$0xf] %vm5318, %v5306
  %5861 = vst.msk [vmem:[%s3 + $0x878] sm:$0xf] %vm5318, %v5307
  %5862 = vst.msk [vmem:[%s3 + $0x87c] sm:$0xf] %vm5318, %v5308
  %5863 = vst.msk [vmem:[%s3 + $0x880] sm:$0xf] %vm5318, %v5309
  %5864 = vst.msk [vmem:[%s3 + $0x884] sm:$0xf] %vm5318, %v5310
  %5865 = vst.msk [vmem:[%s3 + $0x888] sm:$0xf] %vm5318, %v5311
  %5866 = vst.msk [vmem:[%s3 + $0x88c] sm:$0xf] %vm5318, %v5312
  %5867 = vst.msk [vmem:[%s3 + $0x890] sm:$0xf] %vm5318, %v5313
  %5868 = vst.msk [vmem:[%s3 + $0x894] sm:$0xf] %vm5318, %v5314
  %5869 = vst.msk [vmem:[%s3 + $0x898] sm:$0xf] %vm5318, %v5315
  %5870 = vst.msk [vmem:[%s3 + $0x89c] sm:$0xf] %vm5318, %v5316
  %vm5871 = vcmask 57344
  %5872 = vst.msk [vmem:[%s3 + $0x8a0] sm:$0x1] %vm5871, %v5317
  // Predicated region
  $region14: #{net_forward.6} parent=0 // pred_check
    _
  $region15: #{net_forward.6} parent=0 // pred_check_branch
    %5874 = sbr.rel (0) target = $region17
  $region16: #{net_forward.6} parent=0 // pred_region
    _
  $region17: #{net_forward.6} parent=0 // pred_fallthru
    _
  // Predicated region
  $region18: #{net_forward.6} parent=0 // pred_check
    _
  $region19: #{net_forward.6} parent=0 // pred_check_branch
    %5876 = sbr.rel (0) target = $region21
  $region20: #{net_forward.6} parent=0 // pred_region
    _
  $region21: #{net_forward.6} parent=0 // pred_fallthru
    _

// kernel: net_forward.7
$region0: #{net_forward.7}
  #allocation0 [shape = 'u32[]', space=smem, size = 0x4, offset = 0x4, fixed_abs, tag = 'smem constant byte address 0x4 - core index']
  #allocation1 [shape = 'u32[72,128]{1,0:T(1,128)}', space=vmem, size = 0x9000, scoped, tag = 'internal scratch']
  %s0 = inlined_call_operand.vmem [shape: bf16[1058,72], index: 0, kind: input, shape index: {}]
  %s1 = inlined_call_operand.vmem [shape: bf16[72,16], index: 1, kind: input, shape index: {}]
  %s2 = inlined_call_operand.vmem [shape: f32[1,16], index: 2, kind: input, shape index: {}]
  %s3 = inlined_call_operand.vmem [shape: bf16[1058,16], index: 3, kind: output, shape index: {}]
  %s4 = sld [smem:[#allocation0]]
  $region22: #{net_forward.7} parent=0
    _
  %s6 = ssub.s32 1, %s4
  %s7 = scalar_select 0, %s6, %s4
  // Predicated region
  $region2: #{net_forward.7} parent=0 // pred_check
    _
  $region3: #{net_forward.7} parent=0 // pred_check_branch
    %9 = sbr.rel (0) target = $region5
  $region4: #{net_forward.7} parent=0 // pred_region
    _
  $region5: #{net_forward.7} parent=0 // pred_fallthru
    _
  // Predicated region
  $region6: #{net_forward.7} parent=0 // pred_check
    _
  $region7: #{net_forward.7} parent=0 // pred_check_branch
    %11 = sbr.rel (0) target = $region9
  $region8: #{net_forward.7} parent=0 // pred_region
    _
  $region9: #{net_forward.7} parent=0 // pred_fallthru
    _
  // Predicated region
  $region10: #{net_forward.7} parent=0 // pred_check
    _
  $region11: #{net_forward.7} parent=0 // pred_check_branch
    %13 = sbr.rel (0) target = $region13
  $region12: #{net_forward.7} parent=0 // pred_region
    _
  $region13: #{net_forward.7} parent=0 // pred_fallthru
    _
  %v15 = vld [vmem:[%s0] sm:$0xf]
  %v16 = vld [vmem:[%s0 + $0x4] sm:$0xf]
  %v17 = vld [vmem:[%s0 + $0x8] sm:$0xf]
  %v18 = vld [vmem:[%s0 + $0xc] sm:$0xf]
  %v19 = vld [vmem:[%s0 + $0x10] sm:$0xf]
  %v20 = vld [vmem:[%s0 + $0x14] sm:$0xf]
  %v21 = vld [vmem:[%s0 + $0x18] sm:$0xf]
  %v22 = vld [vmem:[%s0 + $0x1c] sm:$0xf]
  %v23 = vld [vmem:[%s0 + $0x20] sm:$0xf]
  %v24 = vld [vmem:[%s0 + $0x24] sm:$0xf]
  %v25 = vld [vmem:[%s0 + $0x28] sm:$0xf]
  %v26 = vld [vmem:[%s0 + $0x2c] sm:$0xf]
  %v27 = vld [vmem:[%s0 + $0x30] sm:$0xf]
  %v28 = vld [vmem:[%s0 + $0x34] sm:$0xf]
  %v29 = vld [vmem:[%s0 + $0x38] sm:$0xf]
  %v30 = vld [vmem:[%s0 + $0x3c] sm:$0xf]
  %v31 = vld [vmem:[%s0 + $0x40] sm:$0xf]
  %v32 = vld [vmem:[%s0 + $0x44] sm:$0xf]
  %v33 = vld [vmem:[%s0 + $0x48] sm:$0xf]
  %v34 = vld [vmem:[%s0 + $0x4c] sm:$0xf]
  %v35 = vld [vmem:[%s0 + $0x50] sm:$0xf]
  %v36 = vld [vmem:[%s0 + $0x54] sm:$0xf]
  %v37 = vld [vmem:[%s0 + $0x58] sm:$0xf]
  %v38 = vld [vmem:[%s0 + $0x5c] sm:$0xf]
  %v39 = vld [vmem:[%s0 + $0x60] sm:$0xf]
  %v40 = vld [vmem:[%s0 + $0x64] sm:$0xf]
  %v41 = vld [vmem:[%s0 + $0x68] sm:$0xf]
  %v42 = vld [vmem:[%s0 + $0x6c] sm:$0xf]
  %v43 = vld [vmem:[%s0 + $0x70] sm:$0xf]
  %v44 = vld [vmem:[%s0 + $0x74] sm:$0xf]
  %v45 = vld [vmem:[%s0 + $0x78] sm:$0xf]
  %v46 = vld [vmem:[%s0 + $0x7c] sm:$0xf]
  %v47 = vld [vmem:[%s0 + $0x80] sm:$0xf]
  %v48 = vld [vmem:[%s0 + $0x84] sm:$0xf]
  %v49 = vld [vmem:[%s0 + $0x88] sm:$0xf]
  %v50 = vld [vmem:[%s0 + $0x8c] sm:$0xf]
  %v51 = vld [vmem:[%s0 + $0x90] sm:$0xf]
  %v52 = vld [vmem:[%s0 + $0x94] sm:$0xf]
  %v53 = vld [vmem:[%s0 + $0x98] sm:$0xf]
  %v54 = vld [vmem:[%s0 + $0x9c] sm:$0xf]
  %v55 = vld [vmem:[%s0 + $0xa0] sm:$0xf]
  %v56 = vld [vmem:[%s0 + $0xa4] sm:$0xf]
  %v57 = vld [vmem:[%s0 + $0xa8] sm:$0xf]
  %v58 = vld [vmem:[%s0 + $0xac] sm:$0xf]
  %v59 = vld [vmem:[%s0 + $0xb0] sm:$0xf]
  %v60 = vld [vmem:[%s0 + $0xb4] sm:$0xf]
  %v61 = vld [vmem:[%s0 + $0xb8] sm:$0xf]
  %v62 = vld [vmem:[%s0 + $0xbc] sm:$0xf]
  %v63 = vld [vmem:[%s0 + $0xc0] sm:$0xf]
  %v64 = vld [vmem:[%s0 + $0xc4] sm:$0xf]
  %v65 = vld [vmem:[%s0 + $0xc8] sm:$0xf]
  %v66 = vld [vmem:[%s0 + $0xcc] sm:$0xf]
  %v67 = vld [vmem:[%s0 + $0xd0] sm:$0xf]
  %v68 = vld [vmem:[%s0 + $0xd4] sm:$0xf]
  %v69 = vld [vmem:[%s0 + $0xd8] sm:$0xf]
  %v70 = vld [vmem:[%s0 + $0xdc] sm:$0xf]
  %v71 = vld [vmem:[%s0 + $0xe0] sm:$0xf]
  %v72 = vld [vmem:[%s0 + $0xe4] sm:$0xf]
  %v73 = vld [vmem:[%s0 + $0xe8] sm:$0xf]
  %v74 = vld [vmem:[%s0 + $0xec] sm:$0xf]
  %v75 = vld [vmem:[%s0 + $0xf0] sm:$0xf]
  %v76 = vld [vmem:[%s0 + $0xf4] sm:$0xf]
  %v77 = vld [vmem:[%s0 + $0xf8] sm:$0xf]
  %v78 = vld [vmem:[%s0 + $0xfc] sm:$0xf]
  %v79 = vld [vmem:[%s0 + $0x100] sm:$0xf]
  %v80 = vld [vmem:[%s0 + $0x104] sm:$0xf]
  %v81 = vld [vmem:[%s0 + $0x108] sm:$0xf]
  %v82 = vld [vmem:[%s0 + $0x10c] sm:$0xf]
  %v83 = vld [vmem:[%s0 + $0x110] sm:$0xf]
  %v84 = vld [vmem:[%s0 + $0x114] sm:$0xf]
  %v85 = vld [vmem:[%s0 + $0x118] sm:$0xf]
  %v86 = vld [vmem:[%s0 + $0x11c] sm:$0xf]
  %v87 = vld [vmem:[%s0 + $0x120] sm:$0xf]
  %v88 = vld [vmem:[%s0 + $0x124] sm:$0xf]
  %v89 = vld [vmem:[%s0 + $0x128] sm:$0xf]
  %v90 = vld [vmem:[%s0 + $0x12c] sm:$0xf]
  %v91 = vld [vmem:[%s0 + $0x130] sm:$0xf]
  %v92 = vld [vmem:[%s0 + $0x134] sm:$0xf]
  %v93 = vld [vmem:[%s0 + $0x138] sm:$0xf]
  %v94 = vld [vmem:[%s0 + $0x13c] sm:$0xf]
  %v95 = vld [vmem:[%s0 + $0x140] sm:$0xf]
  %v96 = vld [vmem:[%s0 + $0x144] sm:$0xf]
  %v97 = vld [vmem:[%s0 + $0x148] sm:$0xf]
  %v98 = vld [vmem:[%s0 + $0x14c] sm:$0xf]
  %v99 = vld [vmem:[%s0 + $0x150] sm:$0xf]
  %v100 = vld [vmem:[%s0 + $0x154] sm:$0xf]
  %v101 = vld [vmem:[%s0 + $0x158] sm:$0xf]
  %v102 = vld [vmem:[%s0 + $0x15c] sm:$0xf]
  %v103 = vld [vmem:[%s0 + $0x160] sm:$0xf]
  %v104 = vld [vmem:[%s0 + $0x164] sm:$0xf]
  %v105 = vld [vmem:[%s0 + $0x168] sm:$0xf]
  %v106 = vld [vmem:[%s0 + $0x16c] sm:$0xf]
  %v107 = vld [vmem:[%s0 + $0x170] sm:$0xf]
  %v108 = vld [vmem:[%s0 + $0x174] sm:$0xf]
  %v109 = vld [vmem:[%s0 + $0x178] sm:$0xf]
  %v110 = vld [vmem:[%s0 + $0x17c] sm:$0xf]
  %v111 = vld [vmem:[%s0 + $0x180] sm:$0xf]
  %v112 = vld [vmem:[%s0 + $0x184] sm:$0xf]
  %v113 = vld [vmem:[%s0 + $0x188] sm:$0xf]
  %v114 = vld [vmem:[%s0 + $0x18c] sm:$0xf]
  %v115 = vld [vmem:[%s0 + $0x190] sm:$0xf]
  %v116 = vld [vmem:[%s0 + $0x194] sm:$0xf]
  %v117 = vld [vmem:[%s0 + $0x198] sm:$0xf]
  %v118 = vld [vmem:[%s0 + $0x19c] sm:$0xf]
  %v119 = vld [vmem:[%s0 + $0x1a0] sm:$0xf]
  %v120 = vld [vmem:[%s0 + $0x1a4] sm:$0xf]
  %v121 = vld [vmem:[%s0 + $0x1a8] sm:$0xf]
  %v122 = vld [vmem:[%s0 + $0x1ac] sm:$0xf]
  %v123 = vld [vmem:[%s0 + $0x1b0] sm:$0xf]
  %v124 = vld [vmem:[%s0 + $0x1b4] sm:$0xf]
  %v125 = vld [vmem:[%s0 + $0x1b8] sm:$0xf]
  %v126 = vld [vmem:[%s0 + $0x1bc] sm:$0xf]
  %v127 = vld [vmem:[%s0 + $0x1c0] sm:$0xf]
  %v128 = vld [vmem:[%s0 + $0x1c4] sm:$0xf]
  %v129 = vld [vmem:[%s0 + $0x1c8] sm:$0xf]
  %v130 = vld [vmem:[%s0 + $0x1cc] sm:$0xf]
  %v131 = vld [vmem:[%s0 + $0x1d0] sm:$0xf]
  %v132 = vld [vmem:[%s0 + $0x1d4] sm:$0xf]
  %v133 = vld [vmem:[%s0 + $0x1d8] sm:$0xf]
  %v134 = vld [vmem:[%s0 + $0x1dc] sm:$0xf]
  %v135 = vld [vmem:[%s0 + $0x1e0] sm:$0xf]
  %v136 = vld [vmem:[%s0 + $0x1e4] sm:$0xf]
  %v137 = vld [vmem:[%s0 + $0x1e8] sm:$0xf]
  %v138 = vld [vmem:[%s0 + $0x1ec] sm:$0xf]
  %v139 = vld [vmem:[%s0 + $0x1f0] sm:$0xf]
  %v140 = vld [vmem:[%s0 + $0x1f4] sm:$0xf]
  %v141 = vld [vmem:[%s0 + $0x1f8] sm:$0xf]
  %v142 = vld [vmem:[%s0 + $0x1fc] sm:$0xf]
  %v143 = vld [vmem:[%s0 + $0x200] sm:$0xf]
  %v144 = vld [vmem:[%s0 + $0x204] sm:$0xf]
  %v145 = vld [vmem:[%s0 + $0x208] sm:$0xf]
  %v146 = vld [vmem:[%s0 + $0x20c] sm:$0xf]
  %v147 = vld [vmem:[%s0 + $0x210] sm:$0x1]
  %v148 = vld [vmem:[%s1] sm:$0xf]
  %v149 = vld [vmem:[%s1 + $0x4] sm:$0xf]
  %v150 = vld [vmem:[%s1 + $0x8] sm:$0xf]
  %v151 = vld [vmem:[%s1 + $0xc] sm:$0xf]
  %v152 = vld [vmem:[%s1 + $0x10] sm:$0xf]
  %v153 = vld [vmem:[%s1 + $0x14] sm:$0xf]
  %v154 = vld [vmem:[%s1 + $0x18] sm:$0xf]
  %v155 = vld [vmem:[%s1 + $0x1c] sm:$0xf]
  %v156 = vld [vmem:[%s1 + $0x20] sm:$0xf]
  %v157 = vld [vmem:[%s2] sm:$0x1]
  %v159 = vperm.slane %v157, 0
  %v294 = vunpack.c.l.b16 %v15
  %v295 = vunpack.c.l.b16 %v16
  %v296 = vunpack.c.l.b16 %v17
  %v297 = vunpack.c.l.b16 %v18
  %v298 = vunpack.c.l.b16 %v19
  %v299 = vunpack.c.l.b16 %v20
  %v300 = vunpack.c.l.b16 %v21
  %v301 = vunpack.c.l.b16 %v22
  %v302 = vunpack.c.l.b16 %v23
  %v303 = vunpack.c.l.b16 %v24
  %v304 = vunpack.c.l.b16 %v25
  %v305 = vunpack.c.l.b16 %v26
  %v306 = vunpack.c.l.b16 %v27
  %v307 = vunpack.c.l.b16 %v28
  %v308 = vunpack.c.l.b16 %v29
  %v309 = vunpack.c.l.b16 %v30
  %v310 = vunpack.c.l.b16 %v31
  %v311 = vunpack.c.l.b16 %v32
  %v312 = vunpack.c.l.b16 %v33
  %v313 = vunpack.c.l.b16 %v34
  %v314 = vunpack.c.l.b16 %v35
  %v315 = vunpack.c.l.b16 %v36
  %v316 = vunpack.c.l.b16 %v37
  %v317 = vunpack.c.l.b16 %v38
  %v318 = vunpack.c.l.b16 %v39
  %v319 = vunpack.c.l.b16 %v40
  %v320 = vunpack.c.l.b16 %v41
  %v321 = vunpack.c.l.b16 %v42
  %v322 = vunpack.c.l.b16 %v43
  %v323 = vunpack.c.l.b16 %v44
  %v324 = vunpack.c.l.b16 %v45
  %v325 = vunpack.c.l.b16 %v46
  %v326 = vunpack.c.l.b16 %v47
  %v327 = vunpack.c.l.b16 %v48
  %v328 = vunpack.c.l.b16 %v49
  %v329 = vunpack.c.l.b16 %v50
  %v330 = vunpack.c.l.b16 %v51
  %v331 = vunpack.c.l.b16 %v52
  %v332 = vunpack.c.l.b16 %v53
  %v333 = vunpack.c.l.b16 %v54
  %v334 = vunpack.c.l.b16 %v55
  %v335 = vunpack.c.l.b16 %v56
  %v336 = vunpack.c.l.b16 %v57
  %v337 = vunpack.c.l.b16 %v58
  %v338 = vunpack.c.l.b16 %v59
  %v339 = vunpack.c.l.b16 %v60
  %v340 = vunpack.c.l.b16 %v61
  %v341 = vunpack.c.l.b16 %v62
  %v342 = vunpack.c.l.b16 %v63
  %v343 = vunpack.c.l.b16 %v64
  %v344 = vunpack.c.l.b16 %v65
  %v345 = vunpack.c.l.b16 %v66
  %v346 = vunpack.c.l.b16 %v67
  %v347 = vunpack.c.l.b16 %v68
  %v348 = vunpack.c.l.b16 %v69
  %v349 = vunpack.c.l.b16 %v70
  %v350 = vunpack.c.l.b16 %v71
  %v351 = vunpack.c.l.b16 %v72
  %v352 = vunpack.c.l.b16 %v73
  %v353 = vunpack.c.l.b16 %v74
  %v354 = vunpack.c.l.b16 %v75
  %v355 = vunpack.c.l.b16 %v76
  %v356 = vunpack.c.l.b16 %v77
  %v357 = vunpack.c.l.b16 %v78
  %v358 = vunpack.c.l.b16 %v79
  %v359 = vunpack.c.l.b16 %v80
  %v360 = vunpack.c.l.b16 %v81
  %v361 = vunpack.c.l.b16 %v82
  %v362 = vunpack.c.l.b16 %v83
  %v363 = vunpack.c.l.b16 %v84
  %v364 = vunpack.c.l.b16 %v85
  %v365 = vunpack.c.l.b16 %v86
  %v366 = vunpack.c.l.b16 %v87
  %v367 = vunpack.c.l.b16 %v88
  %v368 = vunpack.c.l.b16 %v89
  %v369 = vunpack.c.l.b16 %v90
  %v370 = vunpack.c.l.b16 %v91
  %v371 = vunpack.c.l.b16 %v92
  %v372 = vunpack.c.l.b16 %v93
  %v373 = vunpack.c.l.b16 %v94
  %v374 = vunpack.c.l.b16 %v95
  %v375 = vunpack.c.l.b16 %v96
  %v376 = vunpack.c.l.b16 %v97
  %v377 = vunpack.c.l.b16 %v98
  %v378 = vunpack.c.l.b16 %v99
  %v379 = vunpack.c.l.b16 %v100
  %v380 = vunpack.c.l.b16 %v101
  %v381 = vunpack.c.l.b16 %v102
  %v382 = vunpack.c.l.b16 %v103
  %v383 = vunpack.c.l.b16 %v104
  %v384 = vunpack.c.l.b16 %v105
  %v385 = vunpack.c.l.b16 %v106
  %v386 = vunpack.c.l.b16 %v107
  %v387 = vunpack.c.l.b16 %v108
  %v388 = vunpack.c.l.b16 %v109
  %v389 = vunpack.c.l.b16 %v110
  %v390 = vunpack.c.l.b16 %v111
  %v391 = vunpack.c.l.b16 %v112
  %v392 = vunpack.c.l.b16 %v113
  %v393 = vunpack.c.l.b16 %v114
  %v394 = vunpack.c.l.b16 %v115
  %v395 = vunpack.c.l.b16 %v116
  %v396 = vunpack.c.l.b16 %v117
  %v397 = vunpack.c.l.b16 %v118
  %v398 = vunpack.c.l.b16 %v119
  %v399 = vunpack.c.l.b16 %v120
  %v400 = vunpack.c.l.b16 %v121
  %v401 = vunpack.c.l.b16 %v122
  %v402 = vunpack.c.l.b16 %v123
  %v403 = vunpack.c.l.b16 %v124
  %v404 = vunpack.c.l.b16 %v125
  %v405 = vunpack.c.l.b16 %v126
  %v406 = vunpack.c.l.b16 %v127
  %v407 = vunpack.c.l.b16 %v128
  %v408 = vunpack.c.l.b16 %v129
  %v409 = vunpack.c.l.b16 %v130
  %v410 = vunpack.c.l.b16 %v131
  %v411 = vunpack.c.l.b16 %v132
  %v412 = vunpack.c.l.b16 %v133
  %v413 = vunpack.c.l.b16 %v134
  %v414 = vunpack.c.l.b16 %v135
  %v415 = vunpack.c.l.b16 %v136
  %v416 = vunpack.c.l.b16 %v137
  %v417 = vunpack.c.l.b16 %v138
  %v418 = vunpack.c.l.b16 %v139
  %v419 = vunpack.c.l.b16 %v140
  %v420 = vunpack.c.l.b16 %v141
  %v421 = vunpack.c.l.b16 %v142
  %v422 = vunpack.c.l.b16 %v143
  %v423 = vunpack.c.l.b16 %v144
  %v424 = vunpack.c.l.b16 %v145
  %v425 = vunpack.c.l.b16 %v146
  %v426 = vunpack.c.l.b16 %v147
  %v427 = vpack.c.b16 %v295, %v294
  %v428 = vpack.c.b16 %v297, %v296
  %v429 = vpack.c.b16 %v299, %v298
  %v430 = vpack.c.b16 %v301, %v300
  %v431 = vpack.c.b16 %v303, %v302
  %v432 = vpack.c.b16 %v305, %v304
  %v433 = vpack.c.b16 %v307, %v306
  %v434 = vpack.c.b16 %v309, %v308
  %v435 = vpack.c.b16 %v311, %v310
  %v436 = vpack.c.b16 %v313, %v312
  %v437 = vpack.c.b16 %v315, %v314
  %v438 = vpack.c.b16 %v317, %v316
  %v439 = vpack.c.b16 %v319, %v318
  %v440 = vpack.c.b16 %v321, %v320
  %v441 = vpack.c.b16 %v323, %v322
  %v442 = vpack.c.b16 %v325, %v324
  %v443 = vpack.c.b16 %v327, %v326
  %v444 = vpack.c.b16 %v329, %v328
  %v445 = vpack.c.b16 %v331, %v330
  %v446 = vpack.c.b16 %v333, %v332
  %v447 = vpack.c.b16 %v335, %v334
  %v448 = vpack.c.b16 %v337, %v336
  %v449 = vpack.c.b16 %v339, %v338
  %v450 = vpack.c.b16 %v341, %v340
  %v451 = vpack.c.b16 %v343, %v342
  %v452 = vpack.c.b16 %v345, %v344
  %v453 = vpack.c.b16 %v347, %v346
  %v454 = vpack.c.b16 %v349, %v348
  %v455 = vpack.c.b16 %v351, %v350
  %v456 = vpack.c.b16 %v353, %v352
  %v457 = vpack.c.b16 %v355, %v354
  %v458 = vpack.c.b16 %v357, %v356
  %v459 = vpack.c.b16 %v359, %v358
  %v460 = vpack.c.b16 %v361, %v360
  %v461 = vpack.c.b16 %v363, %v362
  %v462 = vpack.c.b16 %v365, %v364
  %v463 = vpack.c.b16 %v367, %v366
  %v464 = vpack.c.b16 %v369, %v368
  %v465 = vpack.c.b16 %v371, %v370
  %v466 = vpack.c.b16 %v373, %v372
  %v467 = vpack.c.b16 %v375, %v374
  %v468 = vpack.c.b16 %v377, %v376
  %v469 = vpack.c.b16 %v379, %v378
  %v470 = vpack.c.b16 %v381, %v380
  %v471 = vpack.c.b16 %v383, %v382
  %v472 = vpack.c.b16 %v385, %v384
  %v473 = vpack.c.b16 %v387, %v386
  %v474 = vpack.c.b16 %v389, %v388
  %v475 = vpack.c.b16 %v391, %v390
  %v476 = vpack.c.b16 %v393, %v392
  %v477 = vpack.c.b16 %v395, %v394
  %v478 = vpack.c.b16 %v397, %v396
  %v479 = vpack.c.b16 %v399, %v398
  %v480 = vpack.c.b16 %v401, %v400
  %v481 = vpack.c.b16 %v403, %v402
  %v482 = vpack.c.b16 %v405, %v404
  %v483 = vpack.c.b16 %v407, %v406
  %v484 = vpack.c.b16 %v409, %v408
  %v485 = vpack.c.b16 %v411, %v410
  %v486 = vpack.c.b16 %v413, %v412
  %v487 = vpack.c.b16 %v415, %v414
  %v488 = vpack.c.b16 %v417, %v416
  %v489 = vpack.c.b16 %v419, %v418
  %v490 = vpack.c.b16 %v421, %v420
  %v491 = vpack.c.b16 %v423, %v422
  %v492 = vpack.c.b16 %v425, %v424
  %v493 = vpack.c.b16 %v426, %v426
  %v503 = vunpack.c.l.b16 %v148
  %v504 = vunpack.c.l.b16 %v149
  %v505 = vunpack.c.l.b16 %v150
  %v506 = vunpack.c.l.b16 %v151
  %v507 = vunpack.c.l.b16 %v152
  %v508 = vunpack.c.l.b16 %v153
  %v509 = vunpack.c.l.b16 %v154
  %v510 = vunpack.c.l.b16 %v155
  %v511 = vunpack.c.l.b16 %v156
  %v512 = vpack.c.b16 %v504, %v503
  %v513 = vpack.c.b16 %v506, %v505
  %v514 = vpack.c.b16 %v508, %v507
  %v515 = vpack.c.b16 %v510, %v509
  %v516 = vpack.c.b16 %v511, %v511
  %vm521 = vcmask 588800
  %v523 = vsel %vm521, %v427, 0
  %v526 = vsel %vm521, %v428, 0
  %v529 = vsel %vm521, %v429, 0
  %v532 = vsel %vm521, %v430, 0
  %v535 = vsel %vm521, %v431, 0
  %v538 = vsel %vm521, %v432, 0
  %v541 = vsel %vm521, %v433, 0
  %v544 = vsel %vm521, %v434, 0
  %v547 = vsel %vm521, %v435, 0
  %v550 = vsel %vm521, %v436, 0
  %v553 = vsel %vm521, %v437, 0
  %v556 = vsel %vm521, %v438, 0
  %v559 = vsel %vm521, %v439, 0
  %v562 = vsel %vm521, %v440, 0
  %v565 = vsel %vm521, %v441, 0
  %v568 = vsel %vm521, %v442, 0
  %v571 = vsel %vm521, %v443, 0
  %v574 = vsel %vm521, %v444, 0
  %v577 = vsel %vm521, %v445, 0
  %v580 = vsel %vm521, %v446, 0
  %v583 = vsel %vm521, %v447, 0
  %v586 = vsel %vm521, %v448, 0
  %v589 = vsel %vm521, %v449, 0
  %v592 = vsel %vm521, %v450, 0
  %v595 = vsel %vm521, %v451, 0
  %v598 = vsel %vm521, %v452, 0
  %v601 = vsel %vm521, %v453, 0
  %v604 = vsel %vm521, %v454, 0
  %v607 = vsel %vm521, %v455, 0
  %v610 = vsel %vm521, %v456, 0
  %v613 = vsel %vm521, %v457, 0
  %v616 = vsel %vm521, %v458, 0
  %v619 = vsel %vm521, %v459, 0
  %v622 = vsel %vm521, %v460, 0
  %v625 = vsel %vm521, %v461, 0
  %v628 = vsel %vm521, %v462, 0
  %v631 = vsel %vm521, %v463, 0
  %v634 = vsel %vm521, %v464, 0
  %v637 = vsel %vm521, %v465, 0
  %v640 = vsel %vm521, %v466, 0
  %v643 = vsel %vm521, %v467, 0
  %v646 = vsel %vm521, %v468, 0
  %v649 = vsel %vm521, %v469, 0
  %v652 = vsel %vm521, %v470, 0
  %v655 = vsel %vm521, %v471, 0
  %v658 = vsel %vm521, %v472, 0
  %v661 = vsel %vm521, %v473, 0
  %v664 = vsel %vm521, %v474, 0
  %v667 = vsel %vm521, %v475, 0
  %v670 = vsel %vm521, %v476, 0
  %v673 = vsel %vm521, %v477, 0
  %v676 = vsel %vm521, %v478, 0
  %v679 = vsel %vm521, %v479, 0
  %v682 = vsel %vm521, %v480, 0
  %v685 = vsel %vm521, %v481, 0
  %v688 = vsel %vm521, %v482, 0
  %v691 = vsel %vm521, %v483, 0
  %v694 = vsel %vm521, %v484, 0
  %v697 = vsel %vm521, %v485, 0
  %v700 = vsel %vm521, %v486, 0
  %v703 = vsel %vm521, %v487, 0
  %v706 = vsel %vm521, %v488, 0
  %v709 = vsel %vm521, %v489, 0
  %v712 = vsel %vm521, %v490, 0
  %v715 = vsel %vm521, %v491, 0
  %v718 = vsel %vm521, %v492, 0
  %v721 = vsel %vm521, %v493, 0
  %vm723 = vcmask 1043456
  %v725 = vsel %vm723, %v516, 0
  %727 = vmatpush.bf16.msra.mxu0 0
  %728 = vmatpush.bf16.msra.mxu0 0
  %729 = vmatpush.bf16.msra.mxu0 0
  %730 = vmatpush.bf16.msra.mxu0 %v725
  %731 = vmatpush.bf16.msra.mxu0 %v515
  %732 = vmatpush.bf16.msra.mxu0 %v514
  %733 = vmatpush.bf16.msra.mxu0 %v513
  %734 = vmatpush.bf16.msra.mxu0 %v512
  %735 = vmatmul.bf16.gmra.mxu0 %v523
  %v736 = vpop.f32.mrf.mxu0
  %v737 = vadd.f32 %v159, %v736
  %v738 = vpop.f32.mrf.mxu0
  %v739 = vadd.f32 %v159, %v738
  %740 = vmatmul.bf16.gmra.mxu0 %v526
  %v741 = vpop.f32.mrf.mxu0
  %v742 = vadd.f32 %v159, %v741
  %v743 = vpop.f32.mrf.mxu0
  %v744 = vadd.f32 %v159, %v743
  %745 = vmatmul.bf16.gmra.mxu0 %v529
  %v746 = vpop.f32.mrf.mxu0
  %v747 = vadd.f32 %v159, %v746
  %v748 = vpop.f32.mrf.mxu0
  %v749 = vadd.f32 %v159, %v748
  %750 = vmatmul.bf16.gmra.mxu0 %v532
  %v751 = vpop.f32.mrf.mxu0
  %v752 = vadd.f32 %v159, %v751
  %v753 = vpop.f32.mrf.mxu0
  %v754 = vadd.f32 %v159, %v753
  %755 = vmatmul.bf16.gmra.mxu0 %v535
  %v756 = vpop.f32.mrf.mxu0
  %v757 = vadd.f32 %v159, %v756
  %v758 = vpop.f32.mrf.mxu0
  %v759 = vadd.f32 %v159, %v758
  %760 = vmatmul.bf16.gmra.mxu0 %v538
  %v761 = vpop.f32.mrf.mxu0
  %v762 = vadd.f32 %v159, %v761
  %v763 = vpop.f32.mrf.mxu0
  %v764 = vadd.f32 %v159, %v763
  %765 = vmatmul.bf16.gmra.mxu0 %v541
  %v766 = vpop.f32.mrf.mxu0
  %v767 = vadd.f32 %v159, %v766
  %v768 = vpop.f32.mrf.mxu0
  %v769 = vadd.f32 %v159, %v768
  %770 = vmatmul.bf16.gmra.mxu0 %v544
  %v771 = vpop.f32.mrf.mxu0
  %v772 = vadd.f32 %v159, %v771
  %v773 = vpop.f32.mrf.mxu0
  %v774 = vadd.f32 %v159, %v773
  %775 = vmatmul.bf16.gmra.mxu0 %v547
  %v776 = vpop.f32.mrf.mxu0
  %v777 = vadd.f32 %v159, %v776
  %v778 = vpop.f32.mrf.mxu0
  %v779 = vadd.f32 %v159, %v778
  %780 = vmatmul.bf16.gmra.mxu0 %v550
  %v781 = vpop.f32.mrf.mxu0
  %v782 = vadd.f32 %v159, %v781
  %v783 = vpop.f32.mrf.mxu0
  %v784 = vadd.f32 %v159, %v783
  %785 = vmatmul.bf16.gmra.mxu0 %v553
  %v786 = vpop.f32.mrf.mxu0
  %v787 = vadd.f32 %v159, %v786
  %v788 = vpop.f32.mrf.mxu0
  %v789 = vadd.f32 %v159, %v788
  %790 = vmatmul.bf16.gmra.mxu0 %v556
  %v791 = vpop.f32.mrf.mxu0
  %v792 = vadd.f32 %v159, %v791
  %v793 = vpop.f32.mrf.mxu0
  %v794 = vadd.f32 %v159, %v793
  %795 = vmatmul.bf16.gmra.mxu0 %v559
  %v796 = vpop.f32.mrf.mxu0
  %v797 = vadd.f32 %v159, %v796
  %v798 = vpop.f32.mrf.mxu0
  %v799 = vadd.f32 %v159, %v798
  %800 = vmatmul.bf16.gmra.mxu0 %v562
  %v801 = vpop.f32.mrf.mxu0
  %v802 = vadd.f32 %v159, %v801
  %v803 = vpop.f32.mrf.mxu0
  %v804 = vadd.f32 %v159, %v803
  %805 = vmatmul.bf16.gmra.mxu0 %v565
  %v806 = vpop.f32.mrf.mxu0
  %v807 = vadd.f32 %v159, %v806
  %v808 = vpop.f32.mrf.mxu0
  %v809 = vadd.f32 %v159, %v808
  %810 = vmatmul.bf16.gmra.mxu0 %v568
  %v811 = vpop.f32.mrf.mxu0
  %v812 = vadd.f32 %v159, %v811
  %v813 = vpop.f32.mrf.mxu0
  %v814 = vadd.f32 %v159, %v813
  %815 = vmatmul.bf16.gmra.mxu0 %v571
  %v816 = vpop.f32.mrf.mxu0
  %v817 = vadd.f32 %v159, %v816
  %v818 = vpop.f32.mrf.mxu0
  %v819 = vadd.f32 %v159, %v818
  %820 = vmatmul.bf16.gmra.mxu0 %v574
  %v821 = vpop.f32.mrf.mxu0
  %v822 = vadd.f32 %v159, %v821
  %v823 = vpop.f32.mrf.mxu0
  %v824 = vadd.f32 %v159, %v823
  %825 = vmatmul.bf16.gmra.mxu0 %v577
  %v826 = vpop.f32.mrf.mxu0
  %v827 = vadd.f32 %v159, %v826
  %v828 = vpop.f32.mrf.mxu0
  %v829 = vadd.f32 %v159, %v828
  %830 = vmatmul.bf16.gmra.mxu0 %v580
  %v831 = vpop.f32.mrf.mxu0
  %v832 = vadd.f32 %v159, %v831
  %v833 = vpop.f32.mrf.mxu0
  %v834 = vadd.f32 %v159, %v833
  %835 = vmatmul.bf16.gmra.mxu0 %v583
  %v836 = vpop.f32.mrf.mxu0
  %v837 = vadd.f32 %v159, %v836
  %v838 = vpop.f32.mrf.mxu0
  %v839 = vadd.f32 %v159, %v838
  %840 = vmatmul.bf16.gmra.mxu0 %v586
  %v841 = vpop.f32.mrf.mxu0
  %v842 = vadd.f32 %v159, %v841
  %v843 = vpop.f32.mrf.mxu0
  %v844 = vadd.f32 %v159, %v843
  %845 = vmatmul.bf16.gmra.mxu0 %v589
  %v846 = vpop.f32.mrf.mxu0
  %v847 = vadd.f32 %v159, %v846
  %v848 = vpop.f32.mrf.mxu0
  %v849 = vadd.f32 %v159, %v848
  %850 = vmatmul.bf16.gmra.mxu0 %v592
  %v851 = vpop.f32.mrf.mxu0
  %v852 = vadd.f32 %v159, %v851
  %v853 = vpop.f32.mrf.mxu0
  %v854 = vadd.f32 %v159, %v853
  %855 = vmatmul.bf16.gmra.mxu0 %v595
  %v856 = vpop.f32.mrf.mxu0
  %v857 = vadd.f32 %v159, %v856
  %v858 = vpop.f32.mrf.mxu0
  %v859 = vadd.f32 %v159, %v858
  %860 = vmatmul.bf16.gmra.mxu0 %v598
  %v861 = vpop.f32.mrf.mxu0
  %v862 = vadd.f32 %v159, %v861
  %v863 = vpop.f32.mrf.mxu0
  %v864 = vadd.f32 %v159, %v863
  %865 = vmatmul.bf16.gmra.mxu0 %v601
  %v866 = vpop.f32.mrf.mxu0
  %v867 = vadd.f32 %v159, %v866
  %v868 = vpop.f32.mrf.mxu0
  %v869 = vadd.f32 %v159, %v868
  %870 = vmatmul.bf16.gmra.mxu0 %v604
  %v871 = vpop.f32.mrf.mxu0
  %v872 = vadd.f32 %v159, %v871
  %v873 = vpop.f32.mrf.mxu0
  %v874 = vadd.f32 %v159, %v873
  %875 = vmatmul.bf16.gmra.mxu0 %v607
  %v876 = vpop.f32.mrf.mxu0
  %v877 = vadd.f32 %v159, %v876
  %v878 = vpop.f32.mrf.mxu0
  %v879 = vadd.f32 %v159, %v878
  %880 = vmatmul.bf16.gmra.mxu0 %v610
  %v881 = vpop.f32.mrf.mxu0
  %v882 = vadd.f32 %v159, %v881
  %v883 = vpop.f32.mrf.mxu0
  %v884 = vadd.f32 %v159, %v883
  %885 = vmatmul.bf16.gmra.mxu0 %v613
  %v886 = vpop.f32.mrf.mxu0
  %v887 = vadd.f32 %v159, %v886
  %v888 = vpop.f32.mrf.mxu0
  %v889 = vadd.f32 %v159, %v888
  %890 = vmatmul.bf16.gmra.mxu0 %v616
  %v891 = vpop.f32.mrf.mxu0
  %v892 = vadd.f32 %v159, %v891
  %v893 = vpop.f32.mrf.mxu0
  %v894 = vadd.f32 %v159, %v893
  %895 = vmatmul.bf16.gmra.mxu0 %v619
  %v896 = vpop.f32.mrf.mxu0
  %v897 = vadd.f32 %v159, %v896
  %v898 = vpop.f32.mrf.mxu0
  %v899 = vadd.f32 %v159, %v898
  %900 = vmatmul.bf16.gmra.mxu0 %v622
  %v901 = vpop.f32.mrf.mxu0
  %v902 = vadd.f32 %v159, %v901
  %v903 = vpop.f32.mrf.mxu0
  %v904 = vadd.f32 %v159, %v903
  %905 = vmatmul.bf16.gmra.mxu0 %v625
  %v906 = vpop.f32.mrf.mxu0
  %v907 = vadd.f32 %v159, %v906
  %v908 = vpop.f32.mrf.mxu0
  %v909 = vadd.f32 %v159, %v908
  %910 = vmatmul.bf16.gmra.mxu0 %v628
  %v911 = vpop.f32.mrf.mxu0
  %v912 = vadd.f32 %v159, %v911
  %v913 = vpop.f32.mrf.mxu0
  %v914 = vadd.f32 %v159, %v913
  %915 = vmatmul.bf16.gmra.mxu0 %v631
  %v916 = vpop.f32.mrf.mxu0
  %v917 = vadd.f32 %v159, %v916
  %v918 = vpop.f32.mrf.mxu0
  %v919 = vadd.f32 %v159, %v918
  %920 = vmatmul.bf16.gmra.mxu0 %v634
  %v921 = vpop.f32.mrf.mxu0
  %v922 = vadd.f32 %v159, %v921
  %v923 = vpop.f32.mrf.mxu0
  %v924 = vadd.f32 %v159, %v923
  %925 = vmatmul.bf16.gmra.mxu0 %v637
  %v926 = vpop.f32.mrf.mxu0
  %v927 = vadd.f32 %v159, %v926
  %v928 = vpop.f32.mrf.mxu0
  %v929 = vadd.f32 %v159, %v928
  %930 = vmatmul.bf16.gmra.mxu0 %v640
  %v931 = vpop.f32.mrf.mxu0
  %v932 = vadd.f32 %v159, %v931
  %v933 = vpop.f32.mrf.mxu0
  %v934 = vadd.f32 %v159, %v933
  %935 = vmatmul.bf16.gmra.mxu0 %v643
  %v936 = vpop.f32.mrf.mxu0
  %v937 = vadd.f32 %v159, %v936
  %v938 = vpop.f32.mrf.mxu0
  %v939 = vadd.f32 %v159, %v938
  %940 = vmatmul.bf16.gmra.mxu0 %v646
  %v941 = vpop.f32.mrf.mxu0
  %v942 = vadd.f32 %v159, %v941
  %v943 = vpop.f32.mrf.mxu0
  %v944 = vadd.f32 %v159, %v943
  %945 = vmatmul.bf16.gmra.mxu0 %v649
  %v946 = vpop.f32.mrf.mxu0
  %v947 = vadd.f32 %v159, %v946
  %v948 = vpop.f32.mrf.mxu0
  %v949 = vadd.f32 %v159, %v948
  %950 = vmatmul.bf16.gmra.mxu0 %v652
  %v951 = vpop.f32.mrf.mxu0
  %v952 = vadd.f32 %v159, %v951
  %v953 = vpop.f32.mrf.mxu0
  %v954 = vadd.f32 %v159, %v953
  %955 = vmatmul.bf16.gmra.mxu0 %v655
  %v956 = vpop.f32.mrf.mxu0
  %v957 = vadd.f32 %v159, %v956
  %v958 = vpop.f32.mrf.mxu0
  %v959 = vadd.f32 %v159, %v958
  %960 = vmatmul.bf16.gmra.mxu0 %v658
  %v961 = vpop.f32.mrf.mxu0
  %v962 = vadd.f32 %v159, %v961
  %v963 = vpop.f32.mrf.mxu0
  %v964 = vadd.f32 %v159, %v963
  %965 = vmatmul.bf16.gmra.mxu0 %v661
  %v966 = vpop.f32.mrf.mxu0
  %v967 = vadd.f32 %v159, %v966
  %v968 = vpop.f32.mrf.mxu0
  %v969 = vadd.f32 %v159, %v968
  %970 = vmatmul.bf16.gmra.mxu0 %v664
  %v971 = vpop.f32.mrf.mxu0
  %v972 = vadd.f32 %v159, %v971
  %v973 = vpop.f32.mrf.mxu0
  %v974 = vadd.f32 %v159, %v973
  %975 = vmatmul.bf16.gmra.mxu0 %v667
  %v976 = vpop.f32.mrf.mxu0
  %v977 = vadd.f32 %v159, %v976
  %v978 = vpop.f32.mrf.mxu0
  %v979 = vadd.f32 %v159, %v978
  %980 = vmatmul.bf16.gmra.mxu0 %v670
  %v981 = vpop.f32.mrf.mxu0
  %v982 = vadd.f32 %v159, %v981
  %v983 = vpop.f32.mrf.mxu0
  %v984 = vadd.f32 %v159, %v983
  %985 = vmatmul.bf16.gmra.mxu0 %v673
  %v986 = vpop.f32.mrf.mxu0
  %v987 = vadd.f32 %v159, %v986
  %v988 = vpop.f32.mrf.mxu0
  %v989 = vadd.f32 %v159, %v988
  %990 = vmatmul.bf16.gmra.mxu0 %v676
  %v991 = vpop.f32.mrf.mxu0
  %v992 = vadd.f32 %v159, %v991
  %v993 = vpop.f32.mrf.mxu0
  %v994 = vadd.f32 %v159, %v993
  %995 = vmatmul.bf16.gmra.mxu0 %v679
  %v996 = vpop.f32.mrf.mxu0
  %v997 = vadd.f32 %v159, %v996
  %v998 = vpop.f32.mrf.mxu0
  %v999 = vadd.f32 %v159, %v998
  %1000 = vmatmul.bf16.gmra.mxu0 %v682
  %v1001 = vpop.f32.mrf.mxu0
  %v1002 = vadd.f32 %v159, %v1001
  %v1003 = vpop.f32.mrf.mxu0
  %v1004 = vadd.f32 %v159, %v1003
  %1005 = vmatmul.bf16.gmra.mxu0 %v685
  %v1006 = vpop.f32.mrf.mxu0
  %v1007 = vadd.f32 %v159, %v1006
  %v1008 = vpop.f32.mrf.mxu0
  %v1009 = vadd.f32 %v159, %v1008
  %1010 = vmatmul.bf16.gmra.mxu0 %v688
  %v1011 = vpop.f32.mrf.mxu0
  %v1012 = vadd.f32 %v159, %v1011
  %v1013 = vpop.f32.mrf.mxu0
  %v1014 = vadd.f32 %v159, %v1013
  %1015 = vmatmul.bf16.gmra.mxu0 %v691
  %v1016 = vpop.f32.mrf.mxu0
  %v1017 = vadd.f32 %v159, %v1016
  %v1018 = vpop.f32.mrf.mxu0
  %v1019 = vadd.f32 %v159, %v1018
  %1020 = vmatmul.bf16.gmra.mxu0 %v694
  %v1021 = vpop.f32.mrf.mxu0
  %v1022 = vadd.f32 %v159, %v1021
  %v1023 = vpop.f32.mrf.mxu0
  %v1024 = vadd.f32 %v159, %v1023
  %1025 = vmatmul.bf16.gmra.mxu0 %v697
  %v1026 = vpop.f32.mrf.mxu0
  %v1027 = vadd.f32 %v159, %v1026
  %v1028 = vpop.f32.mrf.mxu0
  %v1029 = vadd.f32 %v159, %v1028
  %1030 = vmatmul.bf16.gmra.mxu0 %v700
  %v1031 = vpop.f32.mrf.mxu0
  %v1032 = vadd.f32 %v159, %v1031
  %v1033 = vpop.f32.mrf.mxu0
  %v1034 = vadd.f32 %v159, %v1033
  %1035 = vmatmul.bf16.gmra.mxu0 %v703
  %v1036 = vpop.f32.mrf.mxu0
  %v1037 = vadd.f32 %v159, %v1036
  %v1038 = vpop.f32.mrf.mxu0
  %v1039 = vadd.f32 %v159, %v1038
  %1040 = vmatmul.bf16.gmra.mxu0 %v706
  %v1041 = vpop.f32.mrf.mxu0
  %v1042 = vadd.f32 %v159, %v1041
  %v1043 = vpop.f32.mrf.mxu0
  %v1044 = vadd.f32 %v159, %v1043
  %1045 = vmatmul.bf16.gmra.mxu0 %v709
  %v1046 = vpop.f32.mrf.mxu0
  %v1047 = vadd.f32 %v159, %v1046
  %v1048 = vpop.f32.mrf.mxu0
  %v1049 = vadd.f32 %v159, %v1048
  %1050 = vmatmul.bf16.gmra.mxu0 %v712
  %v1051 = vpop.f32.mrf.mxu0
  %v1052 = vadd.f32 %v159, %v1051
  %v1053 = vpop.f32.mrf.mxu0
  %v1054 = vadd.f32 %v159, %v1053
  %1055 = vmatmul.bf16.gmra.mxu0 %v715
  %v1056 = vpop.f32.mrf.mxu0
  %v1057 = vadd.f32 %v159, %v1056
  %v1058 = vpop.f32.mrf.mxu0
  %v1059 = vadd.f32 %v159, %v1058
  %1060 = vmatmul.bf16.gmra.mxu0 %v718
  %v1061 = vpop.f32.mrf.mxu0
  %v1062 = vadd.f32 %v159, %v1061
  %v1063 = vpop.f32.mrf.mxu0
  %v1064 = vadd.f32 %v159, %v1063
  %1065 = vmatmul.bf16.gmra.mxu0 %v721
  %v1066 = vpop.f32.mrf.mxu0
  %v1067 = vadd.f32 %v159, %v1066
  %v1068 = vpop.f32.mrf.mxu0
  %1069 = vdwg.mxu0
  %v1070 = vmax.f32 %v737, 0.0
  %v1071 = vmax.f32 %v739, 0.0
  %v1072 = vmax.f32 %v742, 0.0
  %v1073 = vmax.f32 %v744, 0.0
  %v1074 = vmax.f32 %v747, 0.0
  %v1075 = vmax.f32 %v749, 0.0
  %v1076 = vmax.f32 %v752, 0.0
  %v1077 = vmax.f32 %v754, 0.0
  %v1078 = vmax.f32 %v757, 0.0
  %v1079 = vmax.f32 %v759, 0.0
  %v1080 = vmax.f32 %v762, 0.0
  %v1081 = vmax.f32 %v764, 0.0
  %v1082 = vmax.f32 %v767, 0.0
  %v1083 = vmax.f32 %v769, 0.0
  %v1084 = vmax.f32 %v772, 0.0
  %v1085 = vmax.f32 %v774, 0.0
  %v1086 = vmax.f32 %v777, 0.0
  %v1087 = vmax.f32 %v779, 0.0
  %v1088 = vmax.f32 %v782, 0.0
  %v1089 = vmax.f32 %v784, 0.0
  %v1090 = vmax.f32 %v787, 0.0
  %v1091 = vmax.f32 %v789, 0.0
  %v1092 = vmax.f32 %v792, 0.0
  %v1093 = vmax.f32 %v794, 0.0
  %v1094 = vmax.f32 %v797, 0.0
  %v1095 = vmax.f32 %v799, 0.0
  %v1096 = vmax.f32 %v802, 0.0
  %v1097 = vmax.f32 %v804, 0.0
  %v1098 = vmax.f32 %v807, 0.0
  %v1099 = vmax.f32 %v809, 0.0
  %v1100 = vmax.f32 %v812, 0.0
  %v1101 = vmax.f32 %v814, 0.0
  %v1102 = vmax.f32 %v817, 0.0
  %v1103 = vmax.f32 %v819, 0.0
  %v1104 = vmax.f32 %v822, 0.0
  %v1105 = vmax.f32 %v824, 0.0
  %v1106 = vmax.f32 %v827, 0.0
  %v1107 = vmax.f32 %v829, 0.0
  %v1108 = vmax.f32 %v832, 0.0
  %v1109 = vmax.f32 %v834, 0.0
  %v1110 = vmax.f32 %v837, 0.0
  %v1111 = vmax.f32 %v839, 0.0
  %v1112 = vmax.f32 %v842, 0.0
  %v1113 = vmax.f32 %v844, 0.0
  %v1114 = vmax.f32 %v847, 0.0
  %v1115 = vmax.f32 %v849, 0.0
  %v1116 = vmax.f32 %v852, 0.0
  %v1117 = vmax.f32 %v854, 0.0
  %v1118 = vmax.f32 %v857, 0.0
  %v1119 = vmax.f32 %v859, 0.0
  %v1120 = vmax.f32 %v862, 0.0
  %v1121 = vmax.f32 %v864, 0.0
  %v1122 = vmax.f32 %v867, 0.0
  %v1123 = vmax.f32 %v869, 0.0
  %v1124 = vmax.f32 %v872, 0.0
  %v1125 = vmax.f32 %v874, 0.0
  %v1126 = vmax.f32 %v877, 0.0
  %v1127 = vmax.f32 %v879, 0.0
  %v1128 = vmax.f32 %v882, 0.0
  %v1129 = vmax.f32 %v884, 0.0
  %v1130 = vmax.f32 %v887, 0.0
  %v1131 = vmax.f32 %v889, 0.0
  %v1132 = vmax.f32 %v892, 0.0
  %v1133 = vmax.f32 %v894, 0.0
  %v1134 = vmax.f32 %v897, 0.0
  %v1135 = vmax.f32 %v899, 0.0
  %v1136 = vmax.f32 %v902, 0.0
  %v1137 = vmax.f32 %v904, 0.0
  %v1138 = vmax.f32 %v907, 0.0
  %v1139 = vmax.f32 %v909, 0.0
  %v1140 = vmax.f32 %v912, 0.0
  %v1141 = vmax.f32 %v914, 0.0
  %v1142 = vmax.f32 %v917, 0.0
  %v1143 = vmax.f32 %v919, 0.0
  %v1144 = vmax.f32 %v922, 0.0
  %v1145 = vmax.f32 %v924, 0.0
  %v1146 = vmax.f32 %v927, 0.0
  %v1147 = vmax.f32 %v929, 0.0
  %v1148 = vmax.f32 %v932, 0.0
  %v1149 = vmax.f32 %v934, 0.0
  %v1150 = vmax.f32 %v937, 0.0
  %v1151 = vmax.f32 %v939, 0.0
  %v1152 = vmax.f32 %v942, 0.0
  %v1153 = vmax.f32 %v944, 0.0
  %v1154 = vmax.f32 %v947, 0.0
  %v1155 = vmax.f32 %v949, 0.0
  %v1156 = vmax.f32 %v952, 0.0
  %v1157 = vmax.f32 %v954, 0.0
  %v1158 = vmax.f32 %v957, 0.0
  %v1159 = vmax.f32 %v959, 0.0
  %v1160 = vmax.f32 %v962, 0.0
  %v1161 = vmax.f32 %v964, 0.0
  %v1162 = vmax.f32 %v967, 0.0
  %v1163 = vmax.f32 %v969, 0.0
  %v1164 = vmax.f32 %v972, 0.0
  %v1165 = vmax.f32 %v974, 0.0
  %v1166 = vmax.f32 %v977, 0.0
  %v1167 = vmax.f32 %v979, 0.0
  %v1168 = vmax.f32 %v982, 0.0
  %v1169 = vmax.f32 %v984, 0.0
  %v1170 = vmax.f32 %v987, 0.0
  %v1171 = vmax.f32 %v989, 0.0
  %v1172 = vmax.f32 %v992, 0.0
  %v1173 = vmax.f32 %v994, 0.0
  %v1174 = vmax.f32 %v997, 0.0
  %v1175 = vmax.f32 %v999, 0.0
  %v1176 = vmax.f32 %v1002, 0.0
  %v1177 = vmax.f32 %v1004, 0.0
  %v1178 = vmax.f32 %v1007, 0.0
  %v1179 = vmax.f32 %v1009, 0.0
  %v1180 = vmax.f32 %v1012, 0.0
  %v1181 = vmax.f32 %v1014, 0.0
  %v1182 = vmax.f32 %v1017, 0.0
  %v1183 = vmax.f32 %v1019, 0.0
  %v1184 = vmax.f32 %v1022, 0.0
  %v1185 = vmax.f32 %v1024, 0.0
  %v1186 = vmax.f32 %v1027, 0.0
  %v1187 = vmax.f32 %v1029, 0.0
  %v1188 = vmax.f32 %v1032, 0.0
  %v1189 = vmax.f32 %v1034, 0.0
  %v1190 = vmax.f32 %v1037, 0.0
  %v1191 = vmax.f32 %v1039, 0.0
  %v1192 = vmax.f32 %v1042, 0.0
  %v1193 = vmax.f32 %v1044, 0.0
  %v1194 = vmax.f32 %v1047, 0.0
  %v1195 = vmax.f32 %v1049, 0.0
  %v1196 = vmax.f32 %v1052, 0.0
  %v1197 = vmax.f32 %v1054, 0.0
  %v1198 = vmax.f32 %v1057, 0.0
  %v1199 = vmax.f32 %v1059, 0.0
  %v1200 = vmax.f32 %v1062, 0.0
  %v1201 = vmax.f32 %v1064, 0.0
  %v1202 = vmax.f32 %v1067, 0.0
  %v1203 = vpack.c.bf16 %v1070, %v1070
  %v1204 = vpack.c.bf16 %v1071, %v1071
  %v1205 = vpack.c.bf16 %v1072, %v1072
  %v1206 = vpack.c.bf16 %v1073, %v1073
  %v1207 = vpack.c.bf16 %v1074, %v1074
  %v1208 = vpack.c.bf16 %v1075, %v1075
  %v1209 = vpack.c.bf16 %v1076, %v1076
  %v1210 = vpack.c.bf16 %v1077, %v1077
  %v1211 = vpack.c.bf16 %v1078, %v1078
  %v1212 = vpack.c.bf16 %v1079, %v1079
  %v1213 = vpack.c.bf16 %v1080, %v1080
  %v1214 = vpack.c.bf16 %v1081, %v1081
  %v1215 = vpack.c.bf16 %v1082, %v1082
  %v1216 = vpack.c.bf16 %v1083, %v1083
  %v1217 = vpack.c.bf16 %v1084, %v1084
  %v1218 = vpack.c.bf16 %v1085, %v1085
  %v1219 = vpack.c.bf16 %v1086, %v1086
  %v1220 = vpack.c.bf16 %v1087, %v1087
  %v1221 = vpack.c.bf16 %v1088, %v1088
  %v1222 = vpack.c.bf16 %v1089, %v1089
  %v1223 = vpack.c.bf16 %v1090, %v1090
  %v1224 = vpack.c.bf16 %v1091, %v1091
  %v1225 = vpack.c.bf16 %v1092, %v1092
  %v1226 = vpack.c.bf16 %v1093, %v1093
  %v1227 = vpack.c.bf16 %v1094, %v1094
  %v1228 = vpack.c.bf16 %v1095, %v1095
  %v1229 = vpack.c.bf16 %v1096, %v1096
  %v1230 = vpack.c.bf16 %v1097, %v1097
  %v1231 = vpack.c.bf16 %v1098, %v1098
  %v1232 = vpack.c.bf16 %v1099, %v1099
  %v1233 = vpack.c.bf16 %v1100, %v1100
  %v1234 = vpack.c.bf16 %v1101, %v1101
  %v1235 = vpack.c.bf16 %v1102, %v1102
  %v1236 = vpack.c.bf16 %v1103, %v1103
  %v1237 = vpack.c.bf16 %v1104, %v1104
  %v1238 = vpack.c.bf16 %v1105, %v1105
  %v1239 = vpack.c.bf16 %v1106, %v1106
  %v1240 = vpack.c.bf16 %v1107, %v1107
  %v1241 = vpack.c.bf16 %v1108, %v1108
  %v1242 = vpack.c.bf16 %v1109, %v1109
  %v1243 = vpack.c.bf16 %v1110, %v1110
  %v1244 = vpack.c.bf16 %v1111, %v1111
  %v1245 = vpack.c.bf16 %v1112, %v1112
  %v1246 = vpack.c.bf16 %v1113, %v1113
  %v1247 = vpack.c.bf16 %v1114, %v1114
  %v1248 = vpack.c.bf16 %v1115, %v1115
  %v1249 = vpack.c.bf16 %v1116, %v1116
  %v1250 = vpack.c.bf16 %v1117, %v1117
  %v1251 = vpack.c.bf16 %v1118, %v1118
  %v1252 = vpack.c.bf16 %v1119, %v1119
  %v1253 = vpack.c.bf16 %v1120, %v1120
  %v1254 = vpack.c.bf16 %v1121, %v1121
  %v1255 = vpack.c.bf16 %v1122, %v1122
  %v1256 = vpack.c.bf16 %v1123, %v1123
  %v1257 = vpack.c.bf16 %v1124, %v1124
  %v1258 = vpack.c.bf16 %v1125, %v1125
  %v1259 = vpack.c.bf16 %v1126, %v1126
  %v1260 = vpack.c.bf16 %v1127, %v1127
  %v1261 = vpack.c.bf16 %v1128, %v1128
  %v1262 = vpack.c.bf16 %v1129, %v1129
  %v1263 = vpack.c.bf16 %v1130, %v1130
  %v1264 = vpack.c.bf16 %v1131, %v1131
  %v1265 = vpack.c.bf16 %v1132, %v1132
  %v1266 = vpack.c.bf16 %v1133, %v1133
  %v1267 = vpack.c.bf16 %v1134, %v1134
  %v1268 = vpack.c.bf16 %v1135, %v1135
  %v1269 = vpack.c.bf16 %v1136, %v1136
  %v1270 = vpack.c.bf16 %v1137, %v1137
  %v1271 = vpack.c.bf16 %v1138, %v1138
  %v1272 = vpack.c.bf16 %v1139, %v1139
  %v1273 = vpack.c.bf16 %v1140, %v1140
  %v1274 = vpack.c.bf16 %v1141, %v1141
  %v1275 = vpack.c.bf16 %v1142, %v1142
  %v1276 = vpack.c.bf16 %v1143, %v1143
  %v1277 = vpack.c.bf16 %v1144, %v1144
  %v1278 = vpack.c.bf16 %v1145, %v1145
  %v1279 = vpack.c.bf16 %v1146, %v1146
  %v1280 = vpack.c.bf16 %v1147, %v1147
  %v1281 = vpack.c.bf16 %v1148, %v1148
  %v1282 = vpack.c.bf16 %v1149, %v1149
  %v1283 = vpack.c.bf16 %v1150, %v1150
  %v1284 = vpack.c.bf16 %v1151, %v1151
  %v1285 = vpack.c.bf16 %v1152, %v1152
  %v1286 = vpack.c.bf16 %v1153, %v1153
  %v1287 = vpack.c.bf16 %v1154, %v1154
  %v1288 = vpack.c.bf16 %v1155, %v1155
  %v1289 = vpack.c.bf16 %v1156, %v1156
  %v1290 = vpack.c.bf16 %v1157, %v1157
  %v1291 = vpack.c.bf16 %v1158, %v1158
  %v1292 = vpack.c.bf16 %v1159, %v1159
  %v1293 = vpack.c.bf16 %v1160, %v1160
  %v1294 = vpack.c.bf16 %v1161, %v1161
  %v1295 = vpack.c.bf16 %v1162, %v1162
  %v1296 = vpack.c.bf16 %v1163, %v1163
  %v1297 = vpack.c.bf16 %v1164, %v1164
  %v1298 = vpack.c.bf16 %v1165, %v1165
  %v1299 = vpack.c.bf16 %v1166, %v1166
  %v1300 = vpack.c.bf16 %v1167, %v1167
  %v1301 = vpack.c.bf16 %v1168, %v1168
  %v1302 = vpack.c.bf16 %v1169, %v1169
  %v1303 = vpack.c.bf16 %v1170, %v1170
  %v1304 = vpack.c.bf16 %v1171, %v1171
  %v1305 = vpack.c.bf16 %v1172, %v1172
  %v1306 = vpack.c.bf16 %v1173, %v1173
  %v1307 = vpack.c.bf16 %v1174, %v1174
  %v1308 = vpack.c.bf16 %v1175, %v1175
  %v1309 = vpack.c.bf16 %v1176, %v1176
  %v1310 = vpack.c.bf16 %v1177, %v1177
  %v1311 = vpack.c.bf16 %v1178, %v1178
  %v1312 = vpack.c.bf16 %v1179, %v1179
  %v1313 = vpack.c.bf16 %v1180, %v1180
  %v1314 = vpack.c.bf16 %v1181, %v1181
  %v1315 = vpack.c.bf16 %v1182, %v1182
  %v1316 = vpack.c.bf16 %v1183, %v1183
  %v1317 = vpack.c.bf16 %v1184, %v1184
  %v1318 = vpack.c.bf16 %v1185, %v1185
  %v1319 = vpack.c.bf16 %v1186, %v1186
  %v1320 = vpack.c.bf16 %v1187, %v1187
  %v1321 = vpack.c.bf16 %v1188, %v1188
  %v1322 = vpack.c.bf16 %v1189, %v1189
  %v1323 = vpack.c.bf16 %v1190, %v1190
  %v1324 = vpack.c.bf16 %v1191, %v1191
  %v1325 = vpack.c.bf16 %v1192, %v1192
  %v1326 = vpack.c.bf16 %v1193, %v1193
  %v1327 = vpack.c.bf16 %v1194, %v1194
  %v1328 = vpack.c.bf16 %v1195, %v1195
  %v1329 = vpack.c.bf16 %v1196, %v1196
  %v1330 = vpack.c.bf16 %v1197, %v1197
  %v1331 = vpack.c.bf16 %v1198, %v1198
  %v1332 = vpack.c.bf16 %v1199, %v1199
  %v1333 = vpack.c.bf16 %v1200, %v1200
  %v1334 = vpack.c.bf16 %v1201, %v1201
  %v1335 = vpack.c.bf16 %v1202, %v1202
  %vm1336 = vcmask 125952
  %1337 = vst.msk [vmem:[%s3] sm:$0xf] %vm1336, %v1203
  %1338 = vst.msk [vmem:[%s3 + $0x4] sm:$0xf] %vm1336, %v1204
  %1339 = vst.msk [vmem:[%s3 + $0x8] sm:$0xf] %vm1336, %v1205
  %1340 = vst.msk [vmem:[%s3 + $0xc] sm:$0xf] %vm1336, %v1206
  %1341 = vst.msk [vmem:[%s3 + $0x10] sm:$0xf] %vm1336, %v1207
  %1342 = vst.msk [vmem:[%s3 + $0x14] sm:$0xf] %vm1336, %v1208
  %1343 = vst.msk [vmem:[%s3 + $0x18] sm:$0xf] %vm1336, %v1209
  %1344 = vst.msk [vmem:[%s3 + $0x1c] sm:$0xf] %vm1336, %v1210
  %1345 = vst.msk [vmem:[%s3 + $0x20] sm:$0xf] %vm1336, %v1211
  %1346 = vst.msk [vmem:[%s3 + $0x24] sm:$0xf] %vm1336, %v1212
  %1347 = vst.msk [vmem:[%s3 + $0x28] sm:$0xf] %vm1336, %v1213
  %1348 = vst.msk [vmem:[%s3 + $0x2c] sm:$0xf] %vm1336, %v1214
  %1349 = vst.msk [vmem:[%s3 + $0x30] sm:$0xf] %vm1336, %v1215
  %1350 = vst.msk [vmem:[%s3 + $0x34] sm:$0xf] %vm1336, %v1216
  %1351 = vst.msk [vmem:[%s3 + $0x38] sm:$0xf] %vm1336, %v1217
  %1352 = vst.msk [vmem:[%s3 + $0x3c] sm:$0xf] %vm1336, %v1218
  %1353 = vst.msk [vmem:[%s3 + $0x40] sm:$0xf] %vm1336, %v1219
  %1354 = vst.msk [vmem:[%s3 + $0x44] sm:$0xf] %vm1336, %v1220
  %1355 = vst.msk [vmem:[%s3 + $0x48] sm:$0xf] %vm1336, %v1221
  %1356 = vst.msk [vmem:[%s3 + $0x4c] sm:$0xf] %vm1336, %v1222
  %1357 = vst.msk [vmem:[%s3 + $0x50] sm:$0xf] %vm1336, %v1223
  %1358 = vst.msk [vmem:[%s3 + $0x54] sm:$0xf] %vm1336, %v1224
  %1359 = vst.msk [vmem:[%s3 + $0x58] sm:$0xf] %vm1336, %v1225
  %1360 = vst.msk [vmem:[%s3 + $0x5c] sm:$0xf] %vm1336, %v1226
  %1361 = vst.msk [vmem:[%s3 + $0x60] sm:$0xf] %vm1336, %v1227
  %1362 = vst.msk [vmem:[%s3 + $0x64] sm:$0xf] %vm1336, %v1228
  %1363 = vst.msk [vmem:[%s3 + $0x68] sm:$0xf] %vm1336, %v1229
  %1364 = vst.msk [vmem:[%s3 + $0x6c] sm:$0xf] %vm1336, %v1230
  %1365 = vst.msk [vmem:[%s3 + $0x70] sm:$0xf] %vm1336, %v1231
  %1366 = vst.msk [vmem:[%s3 + $0x74] sm:$0xf] %vm1336, %v1232
  %1367 = vst.msk [vmem:[%s3 + $0x78] sm:$0xf] %vm1336, %v1233
  %1368 = vst.msk [vmem:[%s3 + $0x7c] sm:$0xf] %vm1336, %v1234
  %1369 = vst.msk [vmem:[%s3 + $0x80] sm:$0xf] %vm1336, %v1235
  %1370 = vst.msk [vmem:[%s3 + $0x84] sm:$0xf] %vm1336, %v1236
  %1371 = vst.msk [vmem:[%s3 + $0x88] sm:$0xf] %vm1336, %v1237
  %1372 = vst.msk [vmem:[%s3 + $0x8c] sm:$0xf] %vm1336, %v1238
  %1373 = vst.msk [vmem:[%s3 + $0x90] sm:$0xf] %vm1336, %v1239
  %1374 = vst.msk [vmem:[%s3 + $0x94] sm:$0xf] %vm1336, %v1240
  %1375 = vst.msk [vmem:[%s3 + $0x98] sm:$0xf] %vm1336, %v1241
  %1376 = vst.msk [vmem:[%s3 + $0x9c] sm:$0xf] %vm1336, %v1242
  %1377 = vst.msk [vmem:[%s3 + $0xa0] sm:$0xf] %vm1336, %v1243
  %1378 = vst.msk [vmem:[%s3 + $0xa4] sm:$0xf] %vm1336, %v1244
  %1379 = vst.msk [vmem:[%s3 + $0xa8] sm:$0xf] %vm1336, %v1245
  %1380 = vst.msk [vmem:[%s3 + $0xac] sm:$0xf] %vm1336, %v1246
  %1381 = vst.msk [vmem:[%s3 + $0xb0] sm:$0xf] %vm1336, %v1247
  %1382 = vst.msk [vmem:[%s3 + $0xb4] sm:$0xf] %vm1336, %v1248
  %1383 = vst.msk [vmem:[%s3 + $0xb8] sm:$0xf] %vm1336, %v1249
  %1384 = vst.msk [vmem:[%s3 + $0xbc] sm:$0xf] %vm1336, %v1250
  %1385 = vst.msk [vmem:[%s3 + $0xc0] sm:$0xf] %vm1336, %v1251
  %1386 = vst.msk [vmem:[%s3 + $0xc4] sm:$0xf] %vm1336, %v1252
  %1387 = vst.msk [vmem:[%s3 + $0xc8] sm:$0xf] %vm1336, %v1253
  %1388 = vst.msk [vmem:[%s3 + $0xcc] sm:$0xf] %vm1336, %v1254
  %1389 = vst.msk [vmem:[%s3 + $0xd0] sm:$0xf] %vm1336, %v1255
  %1390 = vst.msk [vmem:[%s3 + $0xd4] sm:$0xf] %vm1336, %v1256
  %1391 = vst.msk [vmem:[%s3 + $0xd8] sm:$0xf] %vm1336, %v1257
  %1392 = vst.msk [vmem:[%s3 + $0xdc] sm:$0xf] %vm1336, %v1258
  %1393 = vst.msk [vmem:[%s3 + $0xe0] sm:$0xf] %vm1336, %v1259
  %1394 = vst.msk [vmem:[%s3 + $0xe4] sm:$0xf] %vm1336, %v1260
  %1395 = vst.msk [vmem:[%s3 + $0xe8] sm:$0xf] %vm1336, %v1261
  %1396 = vst.msk [vmem:[%s3 + $0xec] sm:$0xf] %vm1336, %v1262
  %1397 = vst.msk [vmem:[%s3 + $0xf0] sm:$0xf] %vm1336, %v1263
  %1398 = vst.msk [vmem:[%s3 + $0xf4] sm:$0xf] %vm1336, %v1264
  %1399 = vst.msk [vmem:[%s3 + $0xf8] sm:$0xf] %vm1336, %v1265
  %1400 = vst.msk [vmem:[%s3 + $0xfc] sm:$0xf] %vm1336, %v1266
  %1401 = vst.msk [vmem:[%s3 + $0x100] sm:$0xf] %vm1336, %v1267
  %1402 = vst.msk [vmem:[%s3 + $0x104] sm:$0xf] %vm1336, %v1268
  %1403 = vst.msk [vmem:[%s3 + $0x108] sm:$0xf] %vm1336, %v1269
  %1404 = vst.msk [vmem:[%s3 + $0x10c] sm:$0xf] %vm1336, %v1270
  %1405 = vst.msk [vmem:[%s3 + $0x110] sm:$0xf] %vm1336, %v1271
  %1406 = vst.msk [vmem:[%s3 + $0x114] sm:$0xf] %vm1336, %v1272
  %1407 = vst.msk [vmem:[%s3 + $0x118] sm:$0xf] %vm1336, %v1273
  %1408 = vst.msk [vmem:[%s3 + $0x11c] sm:$0xf] %vm1336, %v1274
  %1409 = vst.msk [vmem:[%s3 + $0x120] sm:$0xf] %vm1336, %v1275
  %1410 = vst.msk [vmem:[%s3 + $0x124] sm:$0xf] %vm1336, %v1276
  %1411 = vst.msk [vmem:[%s3 + $0x128] sm:$0xf] %vm1336, %v1277
  %1412 = vst.msk [vmem:[%s3 + $0x12c] sm:$0xf] %vm1336, %v1278
  %1413 = vst.msk [vmem:[%s3 + $0x130] sm:$0xf] %vm1336, %v1279
  %1414 = vst.msk [vmem:[%s3 + $0x134] sm:$0xf] %vm1336, %v1280
  %1415 = vst.msk [vmem:[%s3 + $0x138] sm:$0xf] %vm1336, %v1281
  %1416 = vst.msk [vmem:[%s3 + $0x13c] sm:$0xf] %vm1336, %v1282
  %1417 = vst.msk [vmem:[%s3 + $0x140] sm:$0xf] %vm1336, %v1283
  %1418 = vst.msk [vmem:[%s3 + $0x144] sm:$0xf] %vm1336, %v1284
  %1419 = vst.msk [vmem:[%s3 + $0x148] sm:$0xf] %vm1336, %v1285
  %1420 = vst.msk [vmem:[%s3 + $0x14c] sm:$0xf] %vm1336, %v1286
  %1421 = vst.msk [vmem:[%s3 + $0x150] sm:$0xf] %vm1336, %v1287
  %1422 = vst.msk [vmem:[%s3 + $0x154] sm:$0xf] %vm1336, %v1288
  %1423 = vst.msk [vmem:[%s3 + $0x158] sm:$0xf] %vm1336, %v1289
  %1424 = vst.msk [vmem:[%s3 + $0x15c] sm:$0xf] %vm1336, %v1290
  %1425 = vst.msk [vmem:[%s3 + $0x160] sm:$0xf] %vm1336, %v1291
  %1426 = vst.msk [vmem:[%s3 + $0x164] sm:$0xf] %vm1336, %v1292
  %1427 = vst.msk [vmem:[%s3 + $0x168] sm:$0xf] %vm1336, %v1293
  %1428 = vst.msk [vmem:[%s3 + $0x16c] sm:$0xf] %vm1336, %v1294
  %1429 = vst.msk [vmem:[%s3 + $0x170] sm:$0xf] %vm1336, %v1295
  %1430 = vst.msk [vmem:[%s3 + $0x174] sm:$0xf] %vm1336, %v1296
  %1431 = vst.msk [vmem:[%s3 + $0x178] sm:$0xf] %vm1336, %v1297
  %1432 = vst.msk [vmem:[%s3 + $0x17c] sm:$0xf] %vm1336, %v1298
  %1433 = vst.msk [vmem:[%s3 + $0x180] sm:$0xf] %vm1336, %v1299
  %1434 = vst.msk [vmem:[%s3 + $0x184] sm:$0xf] %vm1336, %v1300
  %1435 = vst.msk [vmem:[%s3 + $0x188] sm:$0xf] %vm1336, %v1301
  %1436 = vst.msk [vmem:[%s3 + $0x18c] sm:$0xf] %vm1336, %v1302
  %1437 = vst.msk [vmem:[%s3 + $0x190] sm:$0xf] %vm1336, %v1303
  %1438 = vst.msk [vmem:[%s3 + $0x194] sm:$0xf] %vm1336, %v1304
  %1439 = vst.msk [vmem:[%s3 + $0x198] sm:$0xf] %vm1336, %v1305
  %1440 = vst.msk [vmem:[%s3 + $0x19c] sm:$0xf] %vm1336, %v1306
  %1441 = vst.msk [vmem:[%s3 + $0x1a0] sm:$0xf] %vm1336, %v1307
  %1442 = vst.msk [vmem:[%s3 + $0x1a4] sm:$0xf] %vm1336, %v1308
  %1443 = vst.msk [vmem:[%s3 + $0x1a8] sm:$0xf] %vm1336, %v1309
  %1444 = vst.msk [vmem:[%s3 + $0x1ac] sm:$0xf] %vm1336, %v1310
  %1445 = vst.msk [vmem:[%s3 + $0x1b0] sm:$0xf] %vm1336, %v1311
  %1446 = vst.msk [vmem:[%s3 + $0x1b4] sm:$0xf] %vm1336, %v1312
  %1447 = vst.msk [vmem:[%s3 + $0x1b8] sm:$0xf] %vm1336, %v1313
  %1448 = vst.msk [vmem:[%s3 + $0x1bc] sm:$0xf] %vm1336, %v1314
  %1449 = vst.msk [vmem:[%s3 + $0x1c0] sm:$0xf] %vm1336, %v1315
  %1450 = vst.msk [vmem:[%s3 + $0x1c4] sm:$0xf] %vm1336, %v1316
  %1451 = vst.msk [vmem:[%s3 + $0x1c8] sm:$0xf] %vm1336, %v1317
  %1452 = vst.msk [vmem:[%s3 + $0x1cc] sm:$0xf] %vm1336, %v1318
  %1453 = vst.msk [vmem:[%s3 + $0x1d0] sm:$0xf] %vm1336, %v1319
  %1454 = vst.msk [vmem:[%s3 + $0x1d4] sm:$0xf] %vm1336, %v1320
  %1455 = vst.msk [vmem:[%s3 + $0x1d8] sm:$0xf] %vm1336, %v1321
  %1456 = vst.msk [vmem:[%s3 + $0x1dc] sm:$0xf] %vm1336, %v1322
  %1457 = vst.msk [vmem:[%s3 + $0x1e0] sm:$0xf] %vm1336, %v1323
  %1458 = vst.msk [vmem:[%s3 + $0x1e4] sm:$0xf] %vm1336, %v1324
  %1459 = vst.msk [vmem:[%s3 + $0x1e8] sm:$0xf] %vm1336, %v1325
  %1460 = vst.msk [vmem:[%s3 + $0x1ec] sm:$0xf] %vm1336, %v1326
  %1461 = vst.msk [vmem:[%s3 + $0x1f0] sm:$0xf] %vm1336, %v1327
  %1462 = vst.msk [vmem:[%s3 + $0x1f4] sm:$0xf] %vm1336, %v1328
  %1463 = vst.msk [vmem:[%s3 + $0x1f8] sm:$0xf] %vm1336, %v1329
  %1464 = vst.msk [vmem:[%s3 + $0x1fc] sm:$0xf] %vm1336, %v1330
  %1465 = vst.msk [vmem:[%s3 + $0x200] sm:$0xf] %vm1336, %v1331
  %1466 = vst.msk [vmem:[%s3 + $0x204] sm:$0xf] %vm1336, %v1332
  %1467 = vst.msk [vmem:[%s3 + $0x208] sm:$0xf] %vm1336, %v1333
  %1468 = vst.msk [vmem:[%s3 + $0x20c] sm:$0xf] %vm1336, %v1334
  %vm1469 = vcmask 122880
  %1470 = vst.msk [vmem:[%s3 + $0x210] sm:$0x1] %vm1469, %v1335
  // Predicated region
  $region14: #{net_forward.7} parent=0 // pred_check
    _
  $region15: #{net_forward.7} parent=0 // pred_check_branch
    %1472 = sbr.rel (0) target = $region17
  $region16: #{net_forward.7} parent=0 // pred_region
    _
  $region17: #{net_forward.7} parent=0 // pred_fallthru
    _
  // Predicated region
  $region18: #{net_forward.7} parent=0 // pred_check
    _
  $region19: #{net_forward.7} parent=0 // pred_check_branch
    %1474 = sbr.rel (0) target = $region21
  $region20: #{net_forward.7} parent=0 // pred_region
    _
  $region21: #{net_forward.7} parent=0 // pred_fallthru
    _

// kernel: net_forward.8
$region0: #{net_forward.8}
  #allocation0 [shape = 'u32[]', space=smem, size = 0x4, offset = 0x4, fixed_abs, tag = 'smem constant byte address 0x4 - core index']
  #allocation1 [shape = 'u32[72,128]{1,0:T(1,128)}', space=vmem, size = 0x9000, scoped, tag = 'internal scratch']
  %s0 = inlined_call_operand.vmem [shape: bf16[242,144], index: 0, kind: input, shape index: {}]
  %s1 = inlined_call_operand.vmem [shape: bf16[144,32], index: 1, kind: input, shape index: {}]
  %s2 = inlined_call_operand.vmem [shape: f32[1,32], index: 2, kind: input, shape index: {}]
  %s3 = inlined_call_operand.vmem [shape: bf16[242,32], index: 3, kind: output, shape index: {}]
  %s4 = sld [smem:[#allocation0]]
  $region22: #{net_forward.8} parent=0
    _
  %s6 = ssub.s32 1, %s4
  %s7 = scalar_select 0, %s6, %s4
  // Predicated region
  $region2: #{net_forward.8} parent=0 // pred_check
    _
  $region3: #{net_forward.8} parent=0 // pred_check_branch
    %9 = sbr.rel (0) target = $region5
  $region4: #{net_forward.8} parent=0 // pred_region
    _
  $region5: #{net_forward.8} parent=0 // pred_fallthru
    _
  // Predicated region
  $region6: #{net_forward.8} parent=0 // pred_check
    _
  $region7: #{net_forward.8} parent=0 // pred_check_branch
    %11 = sbr.rel (0) target = $region9
  $region8: #{net_forward.8} parent=0 // pred_region
    _
  $region9: #{net_forward.8} parent=0 // pred_fallthru
    _
  // Predicated region
  $region10: #{net_forward.8} parent=0 // pred_check
    _
  $region11: #{net_forward.8} parent=0 // pred_check_branch
    %13 = sbr.rel (0) target = $region13
  $region12: #{net_forward.8} parent=0 // pred_region
    _
  $region13: #{net_forward.8} parent=0 // pred_fallthru
    _
  %v15 = vld [vmem:[%s0] sm:$0xff]
  %v16 = vld [vmem:[%s0 + $0x8] sm:$0xff]
  %v17 = vld [vmem:[%s0 + $0x10] sm:$0xff]
  %v18 = vld [vmem:[%s0 + $0x18] sm:$0xff]
  %v19 = vld [vmem:[%s0 + $0x20] sm:$0xff]
  %v20 = vld [vmem:[%s0 + $0x28] sm:$0xff]
  %v21 = vld [vmem:[%s0 + $0x30] sm:$0xff]
  %v22 = vld [vmem:[%s0 + $0x38] sm:$0xff]
  %v23 = vld [vmem:[%s0 + $0x40] sm:$0xff]
  %v24 = vld [vmem:[%s0 + $0x48] sm:$0xff]
  %v25 = vld [vmem:[%s0 + $0x50] sm:$0xff]
  %v26 = vld [vmem:[%s0 + $0x58] sm:$0xff]
  %v27 = vld [vmem:[%s0 + $0x60] sm:$0xff]
  %v28 = vld [vmem:[%s0 + $0x68] sm:$0xff]
  %v29 = vld [vmem:[%s0 + $0x70] sm:$0xff]
  %v30 = vld [vmem:[%s0 + $0x78] sm:$0xff]
  %v31 = vld [vmem:[%s0 + $0x80] sm:$0xff]
  %v32 = vld [vmem:[%s0 + $0x88] sm:$0xff]
  %v33 = vld [vmem:[%s0 + $0x90] sm:$0xff]
  %v34 = vld [vmem:[%s0 + $0x98] sm:$0xff]
  %v35 = vld [vmem:[%s0 + $0xa0] sm:$0xff]
  %v36 = vld [vmem:[%s0 + $0xa8] sm:$0xff]
  %v37 = vld [vmem:[%s0 + $0xb0] sm:$0xff]
  %v38 = vld [vmem:[%s0 + $0xb8] sm:$0xff]
  %v39 = vld [vmem:[%s0 + $0xc0] sm:$0xff]
  %v40 = vld [vmem:[%s0 + $0xc8] sm:$0xff]
  %v41 = vld [vmem:[%s0 + $0xd0] sm:$0xff]
  %v42 = vld [vmem:[%s0 + $0xd8] sm:$0xff]
  %v43 = vld [vmem:[%s0 + $0xe0] sm:$0xff]
  %v44 = vld [vmem:[%s0 + $0xe8] sm:$0xff]
  %v45 = vld [vmem:[%s0 + $0xf0] sm:$0x11]
  %v46 = vld [vmem:[%s1] sm:$0xf]
  %v47 = vld [vmem:[%s1 + $0x4] sm:$0xf]
  %v48 = vld [vmem:[%s1 + $0x8] sm:$0xf]
  %v49 = vld [vmem:[%s1 + $0xc] sm:$0xf]
  %v50 = vld [vmem:[%s1 + $0x10] sm:$0xf]
  %v51 = vld [vmem:[%s1 + $0x14] sm:$0xf]
  %v52 = vld [vmem:[%s1 + $0x18] sm:$0xf]
  %v53 = vld [vmem:[%s1 + $0x1c] sm:$0xf]
  %v54 = vld [vmem:[%s1 + $0x20] sm:$0xf]
  %v55 = vld [vmem:[%s1 + $0x24] sm:$0xf]
  %v56 = vld [vmem:[%s1 + $0x28] sm:$0xf]
  %v57 = vld [vmem:[%s1 + $0x2c] sm:$0xf]
  %v58 = vld [vmem:[%s1 + $0x30] sm:$0xf]
  %v59 = vld [vmem:[%s1 + $0x34] sm:$0xf]
  %v60 = vld [vmem:[%s1 + $0x38] sm:$0xf]
  %v61 = vld [vmem:[%s1 + $0x3c] sm:$0xf]
  %v62 = vld [vmem:[%s1 + $0x40] sm:$0xf]
  %v63 = vld [vmem:[%s1 + $0x44] sm:$0xf]
  %v64 = vld [vmem:[%s2] sm:$0x1]
  %v66 = vperm.slane %v64, 0
  %v99 = vunpack.c.l.b16 %v15
  %v100 = vunpack.c.h.b16 %v15
  %v101 = vunpack.c.l.b16 %v16
  %v102 = vunpack.c.h.b16 %v16
  %v103 = vunpack.c.l.b16 %v17
  %v104 = vunpack.c.h.b16 %v17
  %v105 = vunpack.c.l.b16 %v18
  %v106 = vunpack.c.h.b16 %v18
  %v107 = vunpack.c.l.b16 %v19
  %v108 = vunpack.c.h.b16 %v19
  %v109 = vunpack.c.l.b16 %v20
  %v110 = vunpack.c.h.b16 %v20
  %v111 = vunpack.c.l.b16 %v21
  %v112 = vunpack.c.h.b16 %v21
  %v113 = vunpack.c.l.b16 %v22
  %v114 = vunpack.c.h.b16 %v22
  %v115 = vunpack.c.l.b16 %v23
  %v116 = vunpack.c.h.b16 %v23
  %v117 = vunpack.c.l.b16 %v24
  %v118 = vunpack.c.h.b16 %v24
  %v119 = vunpack.c.l.b16 %v25
  %v120 = vunpack.c.h.b16 %v25
  %v121 = vunpack.c.l.b16 %v26
  %v122 = vunpack.c.h.b16 %v26
  %v123 = vunpack.c.l.b16 %v27
  %v124 = vunpack.c.h.b16 %v27
  %v125 = vunpack.c.l.b16 %v28
  %v126 = vunpack.c.h.b16 %v28
  %v127 = vunpack.c.l.b16 %v29
  %v128 = vunpack.c.h.b16 %v29
  %v129 = vunpack.c.l.b16 %v30
  %v130 = vunpack.c.h.b16 %v30
  %v131 = vunpack.c.l.b16 %v31
  %v132 = vunpack.c.h.b16 %v31
  %v133 = vunpack.c.l.b16 %v32
  %v134 = vunpack.c.h.b16 %v32
  %v135 = vunpack.c.l.b16 %v33
  %v136 = vunpack.c.h.b16 %v33
  %v137 = vunpack.c.l.b16 %v34
  %v138 = vunpack.c.h.b16 %v34
  %v139 = vunpack.c.l.b16 %v35
  %v140 = vunpack.c.h.b16 %v35
  %v141 = vunpack.c.l.b16 %v36
  %v142 = vunpack.c.h.b16 %v36
  %v143 = vunpack.c.l.b16 %v37
  %v144 = vunpack.c.h.b16 %v37
  %v145 = vunpack.c.l.b16 %v38
  %v146 = vunpack.c.h.b16 %v38
  %v147 = vunpack.c.l.b16 %v39
  %v148 = vunpack.c.h.b16 %v39
  %v149 = vunpack.c.l.b16 %v40
  %v150 = vunpack.c.h.b16 %v40
  %v151 = vunpack.c.l.b16 %v41
  %v152 = vunpack.c.h.b16 %v41
  %v153 = vunpack.c.l.b16 %v42
  %v154 = vunpack.c.h.b16 %v42
  %v155 = vunpack.c.l.b16 %v43
  %v156 = vunpack.c.h.b16 %v43
  %v157 = vunpack.c.l.b16 %v44
  %v158 = vunpack.c.h.b16 %v44
  %v159 = vunpack.c.l.b16 %v45
  %v160 = vunpack.c.h.b16 %v45
  %v161 = vpack.c.b16 %v101, %v99
  %v162 = vpack.c.b16 %v102, %v100
  %v163 = vpack.c.b16 %v105, %v103
  %v164 = vpack.c.b16 %v106, %v104
  %v165 = vpack.c.b16 %v109, %v107
  %v166 = vpack.c.b16 %v110, %v108
  %v167 = vpack.c.b16 %v113, %v111
  %v168 = vpack.c.b16 %v114, %v112
  %v169 = vpack.c.b16 %v117, %v115
  %v170 = vpack.c.b16 %v118, %v116
  %v171 = vpack.c.b16 %v121, %v119
  %v172 = vpack.c.b16 %v122, %v120
  %v173 = vpack.c.b16 %v125, %v123
  %v174 = vpack.c.b16 %v126, %v124
  %v175 = vpack.c.b16 %v129, %v127
  %v176 = vpack.c.b16 %v130, %v128
  %v177 = vpack.c.b16 %v133, %v131
  %v178 = vpack.c.b16 %v134, %v132
  %v179 = vpack.c.b16 %v137, %v135
  %v180 = vpack.c.b16 %v138, %v136
  %v181 = vpack.c.b16 %v141, %v139
  %v182 = vpack.c.b16 %v142, %v140
  %v183 = vpack.c.b16 %v145, %v143
  %v184 = vpack.c.b16 %v146, %v144
  %v185 = vpack.c.b16 %v149, %v147
  %v186 = vpack.c.b16 %v150, %v148
  %v187 = vpack.c.b16 %v153, %v151
  %v188 = vpack.c.b16 %v154, %v152
  %v189 = vpack.c.b16 %v157, %v155
  %v190 = vpack.c.b16 %v158, %v156
  %v191 = vpack.c.b16 %v159, %v159
  %v192 = vpack.c.b16 %v160, %v160
  %v227 = vunpack.c.l.b16 %v46
  %v228 = vunpack.c.l.b16 %v47
  %v229 = vunpack.c.l.b16 %v48
  %v230 = vunpack.c.l.b16 %v49
  %v231 = vunpack.c.l.b16 %v50
  %v232 = vunpack.c.l.b16 %v51
  %v233 = vunpack.c.l.b16 %v52
  %v234 = vunpack.c.l.b16 %v53
  %v235 = vunpack.c.l.b16 %v54
  %v236 = vunpack.c.l.b16 %v55
  %v237 = vunpack.c.l.b16 %v56
  %v238 = vunpack.c.l.b16 %v57
  %v239 = vunpack.c.l.b16 %v58
  %v240 = vunpack.c.l.b16 %v59
  %v241 = vunpack.c.l.b16 %v60
  %v242 = vunpack.c.l.b16 %v61
  %v243 = vunpack.c.l.b16 %v62
  %v244 = vunpack.c.l.b16 %v63
  %v245 = vpack.c.b16 %v228, %v227
  %v246 = vpack.c.b16 %v230, %v229
  %v247 = vpack.c.b16 %v232, %v231
  %v248 = vpack.c.b16 %v234, %v233
  %v249 = vpack.c.b16 %v236, %v235
  %v250 = vpack.c.b16 %v238, %v237
  %v251 = vpack.c.b16 %v240, %v239
  %v252 = vpack.c.b16 %v242, %v241
  %v253 = vpack.c.b16 %v244, %v243
  %vm263 = vcmask 130048
  %v265 = vsel %vm263, %v162, 0
  %v268 = vsel %vm263, %v164, 0
  %v271 = vsel %vm263, %v166, 0
  %v274 = vsel %vm263, %v168, 0
  %v277 = vsel %vm263, %v170, 0
  %v280 = vsel %vm263, %v172, 0
  %v283 = vsel %vm263, %v174, 0
  %v286 = vsel %vm263, %v176, 0
  %v289 = vsel %vm263, %v178, 0
  %v292 = vsel %vm263, %v180, 0
  %v295 = vsel %vm263, %v182, 0
  %v298 = vsel %vm263, %v184, 0
  %v301 = vsel %vm263, %v186, 0
  %v304 = vsel %vm263, %v188, 0
  %v307 = vsel %vm263, %v190, 0
  %v310 = vsel %vm263, %v192, 0
  %312 = vmatpush.bf16.msra.mxu0 %v252
  %313 = vmatpush.bf16.msra.mxu0 %v251
  %314 = vmatpush.bf16.msra.mxu0 %v250
  %315 = vmatpush.bf16.msra.mxu0 %v249
  %316 = vmatpush.bf16.msra.mxu0 %v248
  %317 = vmatpush.bf16.msra.mxu0 %v247
  %318 = vmatpush.bf16.msra.mxu0 %v246
  %319 = vmatpush.bf16.msra.mxu0 %v245
  %320 = vmatmul.bf16.gmra.mxu0 %v161
  %v321 = vpop.f32.mrf.mxu0
  %v322 = vadd.f32 %v66, %v321
  %v323 = vpop.f32.mrf.mxu0
  %v324 = vadd.f32 %v66, %v323
  %325 = vmatmul.bf16.gmra.mxu0 %v163
  %v326 = vpop.f32.mrf.mxu0
  %v327 = vadd.f32 %v66, %v326
  %v328 = vpop.f32.mrf.mxu0
  %v329 = vadd.f32 %v66, %v328
  %330 = vmatmul.bf16.gmra.mxu0 %v165
  %v331 = vpop.f32.mrf.mxu0
  %v332 = vadd.f32 %v66, %v331
  %v333 = vpop.f32.mrf.mxu0
  %v334 = vadd.f32 %v66, %v333
  %335 = vmatmul.bf16.gmra.mxu0 %v167
  %v336 = vpop.f32.mrf.mxu0
  %v337 = vadd.f32 %v66, %v336
  %v338 = vpop.f32.mrf.mxu0
  %v339 = vadd.f32 %v66, %v338
  %340 = vmatmul.bf16.gmra.mxu0 %v169
  %v341 = vpop.f32.mrf.mxu0
  %v342 = vadd.f32 %v66, %v341
  %v343 = vpop.f32.mrf.mxu0
  %v344 = vadd.f32 %v66, %v343
  %345 = vmatmul.bf16.gmra.mxu0 %v171
  %v346 = vpop.f32.mrf.mxu0
  %v347 = vadd.f32 %v66, %v346
  %v348 = vpop.f32.mrf.mxu0
  %v349 = vadd.f32 %v66, %v348
  %350 = vmatmul.bf16.gmra.mxu0 %v173
  %v351 = vpop.f32.mrf.mxu0
  %v352 = vadd.f32 %v66, %v351
  %v353 = vpop.f32.mrf.mxu0
  %v354 = vadd.f32 %v66, %v353
  %355 = vmatmul.bf16.gmra.mxu0 %v175
  %v356 = vpop.f32.mrf.mxu0
  %v357 = vadd.f32 %v66, %v356
  %v358 = vpop.f32.mrf.mxu0
  %v359 = vadd.f32 %v66, %v358
  %360 = vmatmul.bf16.gmra.mxu0 %v177
  %v361 = vpop.f32.mrf.mxu0
  %v362 = vadd.f32 %v66, %v361
  %v363 = vpop.f32.mrf.mxu0
  %v364 = vadd.f32 %v66, %v363
  %365 = vmatmul.bf16.gmra.mxu0 %v179
  %v366 = vpop.f32.mrf.mxu0
  %v367 = vadd.f32 %v66, %v366
  %v368 = vpop.f32.mrf.mxu0
  %v369 = vadd.f32 %v66, %v368
  %370 = vmatmul.bf16.gmra.mxu0 %v181
  %v371 = vpop.f32.mrf.mxu0
  %v372 = vadd.f32 %v66, %v371
  %v373 = vpop.f32.mrf.mxu0
  %v374 = vadd.f32 %v66, %v373
  %375 = vmatmul.bf16.gmra.mxu0 %v183
  %v376 = vpop.f32.mrf.mxu0
  %v377 = vadd.f32 %v66, %v376
  %v378 = vpop.f32.mrf.mxu0
  %v379 = vadd.f32 %v66, %v378
  %380 = vmatmul.bf16.gmra.mxu0 %v185
  %v381 = vpop.f32.mrf.mxu0
  %v382 = vadd.f32 %v66, %v381
  %v383 = vpop.f32.mrf.mxu0
  %v384 = vadd.f32 %v66, %v383
  %385 = vmatmul.bf16.gmra.mxu0 %v187
  %v386 = vpop.f32.mrf.mxu0
  %v387 = vadd.f32 %v66, %v386
  %v388 = vpop.f32.mrf.mxu0
  %v389 = vadd.f32 %v66, %v388
  %390 = vmatmul.bf16.gmra.mxu0 %v189
  %v391 = vpop.f32.mrf.mxu0
  %v392 = vadd.f32 %v66, %v391
  %v393 = vpop.f32.mrf.mxu0
  %v394 = vadd.f32 %v66, %v393
  %395 = vmatmul.bf16.gmra.mxu0 %v191
  %v396 = vpop.f32.mrf.mxu0
  %v397 = vadd.f32 %v66, %v396
  %v398 = vpop.f32.mrf.mxu0
  %399 = vdwg.mxu0
  %400 = vmatpush.bf16.msra.mxu0 0
  %401 = vmatpush.bf16.msra.mxu0 0
  %402 = vmatpush.bf16.msra.mxu0 0
  %403 = vmatpush.bf16.msra.mxu0 0
  %404 = vmatpush.bf16.msra.mxu0 0
  %405 = vmatpush.bf16.msra.mxu0 0
  %406 = vmatpush.bf16.msra.mxu0 0
  %407 = vmatpush.bf16.msra.mxu0 %v253
  %408 = vmatmul.bf16.gmra.mxu0 %v265
  %v409 = vpop.f32.mrf.mxu0
  %v410 = vadd.f32 %v322, %v409
  %v411 = vpop.f32.mrf.mxu0
  %v412 = vadd.f32 %v324, %v411
  %413 = vmatmul.bf16.gmra.mxu0 %v268
  %v414 = vpop.f32.mrf.mxu0
  %v415 = vadd.f32 %v327, %v414
  %v416 = vpop.f32.mrf.mxu0
  %v417 = vadd.f32 %v329, %v416
  %418 = vmatmul.bf16.gmra.mxu0 %v271
  %v419 = vpop.f32.mrf.mxu0
  %v420 = vadd.f32 %v332, %v419
  %v421 = vpop.f32.mrf.mxu0
  %v422 = vadd.f32 %v334, %v421
  %423 = vmatmul.bf16.gmra.mxu0 %v274
  %v424 = vpop.f32.mrf.mxu0
  %v425 = vadd.f32 %v337, %v424
  %v426 = vpop.f32.mrf.mxu0
  %v427 = vadd.f32 %v339, %v426
  %428 = vmatmul.bf16.gmra.mxu0 %v277
  %v429 = vpop.f32.mrf.mxu0
  %v430 = vadd.f32 %v342, %v429
  %v431 = vpop.f32.mrf.mxu0
  %v432 = vadd.f32 %v344, %v431
  %433 = vmatmul.bf16.gmra.mxu0 %v280
  %v434 = vpop.f32.mrf.mxu0
  %v435 = vadd.f32 %v347, %v434
  %v436 = vpop.f32.mrf.mxu0
  %v437 = vadd.f32 %v349, %v436
  %438 = vmatmul.bf16.gmra.mxu0 %v283
  %v439 = vpop.f32.mrf.mxu0
  %v440 = vadd.f32 %v352, %v439
  %v441 = vpop.f32.mrf.mxu0
  %v442 = vadd.f32 %v354, %v441
  %443 = vmatmul.bf16.gmra.mxu0 %v286
  %v444 = vpop.f32.mrf.mxu0
  %v445 = vadd.f32 %v357, %v444
  %v446 = vpop.f32.mrf.mxu0
  %v447 = vadd.f32 %v359, %v446
  %448 = vmatmul.bf16.gmra.mxu0 %v289
  %v449 = vpop.f32.mrf.mxu0
  %v450 = vadd.f32 %v362, %v449
  %v451 = vpop.f32.mrf.mxu0
  %v452 = vadd.f32 %v364, %v451
  %453 = vmatmul.bf16.gmra.mxu0 %v292
  %v454 = vpop.f32.mrf.mxu0
  %v455 = vadd.f32 %v367, %v454
  %v456 = vpop.f32.mrf.mxu0
  %v457 = vadd.f32 %v369, %v456
  %458 = vmatmul.bf16.gmra.mxu0 %v295
  %v459 = vpop.f32.mrf.mxu0
  %v460 = vadd.f32 %v372, %v459
  %v461 = vpop.f32.mrf.mxu0
  %v462 = vadd.f32 %v374, %v461
  %463 = vmatmul.bf16.gmra.mxu0 %v298
  %v464 = vpop.f32.mrf.mxu0
  %v465 = vadd.f32 %v377, %v464
  %v466 = vpop.f32.mrf.mxu0
  %v467 = vadd.f32 %v379, %v466
  %468 = vmatmul.bf16.gmra.mxu0 %v301
  %v469 = vpop.f32.mrf.mxu0
  %v470 = vadd.f32 %v382, %v469
  %v471 = vpop.f32.mrf.mxu0
  %v472 = vadd.f32 %v384, %v471
  %473 = vmatmul.bf16.gmra.mxu0 %v304
  %v474 = vpop.f32.mrf.mxu0
  %v475 = vadd.f32 %v387, %v474
  %v476 = vpop.f32.mrf.mxu0
  %v477 = vadd.f32 %v389, %v476
  %478 = vmatmul.bf16.gmra.mxu0 %v307
  %v479 = vpop.f32.mrf.mxu0
  %v480 = vadd.f32 %v392, %v479
  %v481 = vpop.f32.mrf.mxu0
  %v482 = vadd.f32 %v394, %v481
  %483 = vmatmul.bf16.gmra.mxu0 %v310
  %v484 = vpop.f32.mrf.mxu0
  %v485 = vadd.f32 %v397, %v484
  %v486 = vpop.f32.mrf.mxu0
  %487 = vdwg.mxu0
  %v488 = vmax.f32 %v410, 0.0
  %v489 = vmax.f32 %v412, 0.0
  %v490 = vmax.f32 %v415, 0.0
  %v491 = vmax.f32 %v417, 0.0
  %v492 = vmax.f32 %v420, 0.0
  %v493 = vmax.f32 %v422, 0.0
  %v494 = vmax.f32 %v425, 0.0
  %v495 = vmax.f32 %v427, 0.0
  %v496 = vmax.f32 %v430, 0.0
  %v497 = vmax.f32 %v432, 0.0
  %v498 = vmax.f32 %v435, 0.0
  %v499 = vmax.f32 %v437, 0.0
  %v500 = vmax.f32 %v440, 0.0
  %v501 = vmax.f32 %v442, 0.0
  %v502 = vmax.f32 %v445, 0.0
  %v503 = vmax.f32 %v447, 0.0
  %v504 = vmax.f32 %v450, 0.0
  %v505 = vmax.f32 %v452, 0.0
  %v506 = vmax.f32 %v455, 0.0
  %v507 = vmax.f32 %v457, 0.0
  %v508 = vmax.f32 %v460, 0.0
  %v509 = vmax.f32 %v462, 0.0
  %v510 = vmax.f32 %v465, 0.0
  %v511 = vmax.f32 %v467, 0.0
  %v512 = vmax.f32 %v470, 0.0
  %v513 = vmax.f32 %v472, 0.0
  %v514 = vmax.f32 %v475, 0.0
  %v515 = vmax.f32 %v477, 0.0
  %v516 = vmax.f32 %v480, 0.0
  %v517 = vmax.f32 %v482, 0.0
  %v518 = vmax.f32 %v485, 0.0
  %v519 = vpack.c.bf16 %v488, %v488
  %v520 = vpack.c.bf16 %v489, %v489
  %v521 = vpack.c.bf16 %v490, %v490
  %v522 = vpack.c.bf16 %v491, %v491
  %v523 = vpack.c.bf16 %v492, %v492
  %v524 = vpack.c.bf16 %v493, %v493
  %v525 = vpack.c.bf16 %v494, %v494
  %v526 = vpack.c.bf16 %v495, %v495
  %v527 = vpack.c.bf16 %v496, %v496
  %v528 = vpack.c.bf16 %v497, %v497
  %v529 = vpack.c.bf16 %v498, %v498
  %v530 = vpack.c.bf16 %v499, %v499
  %v531 = vpack.c.bf16 %v500, %v500
  %v532 = vpack.c.bf16 %v501, %v501
  %v533 = vpack.c.bf16 %v502, %v502
  %v534 = vpack.c.bf16 %v503, %v503
  %v535 = vpack.c.bf16 %v504, %v504
  %v536 = vpack.c.bf16 %v505, %v505
  %v537 = vpack.c.bf16 %v506, %v506
  %v538 = vpack.c.bf16 %v507, %v507
  %v539 = vpack.c.bf16 %v508, %v508
  %v540 = vpack.c.bf16 %v509, %v509
  %v541 = vpack.c.bf16 %v510, %v510
  %v542 = vpack.c.bf16 %v511, %v511
  %v543 = vpack.c.bf16 %v512, %v512
  %v544 = vpack.c.bf16 %v513, %v513
  %v545 = vpack.c.bf16 %v514, %v514
  %v546 = vpack.c.bf16 %v515, %v515
  %v547 = vpack.c.bf16 %v516, %v516
  %v548 = vpack.c.bf16 %v517, %v517
  %v549 = vpack.c.bf16 %v518, %v518
  %vm550 = vcmask 257024
  %551 = vst.msk [vmem:[%s3] sm:$0xf] %vm550, %v519
  %552 = vst.msk [vmem:[%s3 + $0x4] sm:$0xf] %vm550, %v520
  %553 = vst.msk [vmem:[%s3 + $0x8] sm:$0xf] %vm550, %v521
  %554 = vst.msk [vmem:[%s3 + $0xc] sm:$0xf] %vm550, %v522
  %555 = vst.msk [vmem:[%s3 + $0x10] sm:$0xf] %vm550, %v523
  %556 = vst.msk [vmem:[%s3 + $0x14] sm:$0xf] %vm550, %v524
  %557 = vst.msk [vmem:[%s3 + $0x18] sm:$0xf] %vm550, %v525
  %558 = vst.msk [vmem:[%s3 + $0x1c] sm:$0xf] %vm550, %v526
  %559 = vst.msk [vmem:[%s3 + $0x20] sm:$0xf] %vm550, %v527
  %560 = vst.msk [vmem:[%s3 + $0x24] sm:$0xf] %vm550, %v528
  %561 = vst.msk [vmem:[%s3 + $0x28] sm:$0xf] %vm550, %v529
  %562 = vst.msk [vmem:[%s3 + $0x2c] sm:$0xf] %vm550, %v530
  %563 = vst.msk [vmem:[%s3 + $0x30] sm:$0xf] %vm550, %v531
  %564 = vst.msk [vmem:[%s3 + $0x34] sm:$0xf] %vm550, %v532
  %565 = vst.msk [vmem:[%s3 + $0x38] sm:$0xf] %vm550, %v533
  %566 = vst.msk [vmem:[%s3 + $0x3c] sm:$0xf] %vm550, %v534
  %567 = vst.msk [vmem:[%s3 + $0x40] sm:$0xf] %vm550, %v535
  %568 = vst.msk [vmem:[%s3 + $0x44] sm:$0xf] %vm550, %v536
  %569 = vst.msk [vmem:[%s3 + $0x48] sm:$0xf] %vm550, %v537
  %570 = vst.msk [vmem:[%s3 + $0x4c] sm:$0xf] %vm550, %v538
  %571 = vst.msk [vmem:[%s3 + $0x50] sm:$0xf] %vm550, %v539
  %572 = vst.msk [vmem:[%s3 + $0x54] sm:$0xf] %vm550, %v540
  %573 = vst.msk [vmem:[%s3 + $0x58] sm:$0xf] %vm550, %v541
  %574 = vst.msk [vmem:[%s3 + $0x5c] sm:$0xf] %vm550, %v542
  %575 = vst.msk [vmem:[%s3 + $0x60] sm:$0xf] %vm550, %v543
  %576 = vst.msk [vmem:[%s3 + $0x64] sm:$0xf] %vm550, %v544
  %577 = vst.msk [vmem:[%s3 + $0x68] sm:$0xf] %vm550, %v545
  %578 = vst.msk [vmem:[%s3 + $0x6c] sm:$0xf] %vm550, %v546
  %579 = vst.msk [vmem:[%s3 + $0x70] sm:$0xf] %vm550, %v547
  %580 = vst.msk [vmem:[%s3 + $0x74] sm:$0xf] %vm550, %v548
  %vm581 = vcmask 253952
  %582 = vst.msk [vmem:[%s3 + $0x78] sm:$0x1] %vm581, %v549
  // Predicated region
  $region14: #{net_forward.8} parent=0 // pred_check
    _
  $region15: #{net_forward.8} parent=0 // pred_check_branch
    %584 = sbr.rel (0) target = $region17
  $region16: #{net_forward.8} parent=0 // pred_region
    _
  $region17: #{net_forward.8} parent=0 // pred_fallthru
    _
  // Predicated region
  $region18: #{net_forward.8} parent=0 // pred_check
    _
  $region19: #{net_forward.8} parent=0 // pred_check_branch
    %586 = sbr.rel (0) target = $region21
  $region20: #{net_forward.8} parent=0 // pred_region
    _
  $region21: #{net_forward.8} parent=0 // pred_fallthru
    _

// kernel: net_forward.9
$region0: #{net_forward.9}
  #allocation0 [shape = 'u32[]', space=smem, size = 0x4, offset = 0x4, fixed_abs, tag = 'smem constant byte address 0x4 - core index']
  #allocation1 [shape = 'u32[72,128]{1,0:T(1,128)}', space=vmem, size = 0x9000, scoped, tag = 'internal scratch']
  %s0 = inlined_call_operand.vmem [shape: bf16[50,288], index: 0, kind: input, shape index: {}]
  %s1 = inlined_call_operand.vmem [shape: bf16[288,64], index: 1, kind: input, shape index: {}]
  %s2 = inlined_call_operand.vmem [shape: f32[1,64], index: 2, kind: input, shape index: {}]
  %s3 = inlined_call_operand.vmem [shape: bf16[50,64], index: 3, kind: output, shape index: {}]
  %s4 = sld [smem:[#allocation0]]
  $region22: #{net_forward.9} parent=0
    _
  %s6 = ssub.s32 1, %s4
  %s7 = scalar_select 0, %s6, %s4
  // Predicated region
  $region2: #{net_forward.9} parent=0 // pred_check
    _
  $region3: #{net_forward.9} parent=0 // pred_check_branch
    %9 = sbr.rel (0) target = $region5
  $region4: #{net_forward.9} parent=0 // pred_region
    _
  $region5: #{net_forward.9} parent=0 // pred_fallthru
    _
  // Predicated region
  $region6: #{net_forward.9} parent=0 // pred_check
    _
  $region7: #{net_forward.9} parent=0 // pred_check_branch
    %11 = sbr.rel (0) target = $region9
  $region8: #{net_forward.9} parent=0 // pred_region
    _
  $region9: #{net_forward.9} parent=0 // pred_fallthru
    _
  // Predicated region
  $region10: #{net_forward.9} parent=0 // pred_check
    _
  $region11: #{net_forward.9} parent=0 // pred_check_branch
    %13 = sbr.rel (0) target = $region13
  $region12: #{net_forward.9} parent=0 // pred_region
    _
  $region13: #{net_forward.9} parent=0 // pred_fallthru
    _
  %v15 = vld [vmem:[%s0] sm:$0xff]
  %v16 = vld [vmem:[%s0 + $0x8] sm:$0xf]
  %v17 = vld [vmem:[%s0 + $0xc] sm:$0xff]
  %v18 = vld [vmem:[%s0 + $0x14] sm:$0xf]
  %v19 = vld [vmem:[%s0 + $0x18] sm:$0xff]
  %v20 = vld [vmem:[%s0 + $0x20] sm:$0xf]
  %v21 = vld [vmem:[%s0 + $0x24] sm:$0xff]
  %v22 = vld [vmem:[%s0 + $0x2c] sm:$0xf]
  %v23 = vld [vmem:[%s0 + $0x30] sm:$0xff]
  %v24 = vld [vmem:[%s0 + $0x38] sm:$0xf]
  %v25 = vld [vmem:[%s0 + $0x3c] sm:$0xff]
  %v26 = vld [vmem:[%s0 + $0x44] sm:$0xf]
  %v27 = vld [vmem:[%s0 + $0x48] sm:$0x11]
  %v28 = vld [vmem:[%s0 + $0x50] sm:$0x1]
  %v29 = vld [vmem:[%s1] sm:$0xf]
  %v30 = vld [vmem:[%s1 + $0x4] sm:$0xf]
  %v31 = vld [vmem:[%s1 + $0x8] sm:$0xf]
  %v32 = vld [vmem:[%s1 + $0xc] sm:$0xf]
  %v33 = vld [vmem:[%s1 + $0x10] sm:$0xf]
  %v34 = vld [vmem:[%s1 + $0x14] sm:$0xf]
  %v35 = vld [vmem:[%s1 + $0x18] sm:$0xf]
  %v36 = vld [vmem:[%s1 + $0x1c] sm:$0xf]
  %v37 = vld [vmem:[%s1 + $0x20] sm:$0xf]
  %v38 = vld [vmem:[%s1 + $0x24] sm:$0xf]
  %v39 = vld [vmem:[%s1 + $0x28] sm:$0xf]
  %v40 = vld [vmem:[%s1 + $0x2c] sm:$0xf]
  %v41 = vld [vmem:[%s1 + $0x30] sm:$0xf]
  %v42 = vld [vmem:[%s1 + $0x34] sm:$0xf]
  %v43 = vld [vmem:[%s1 + $0x38] sm:$0xf]
  %v44 = vld [vmem:[%s1 + $0x3c] sm:$0xf]
  %v45 = vld [vmem:[%s1 + $0x40] sm:$0xf]
  %v46 = vld [vmem:[%s1 + $0x44] sm:$0xf]
  %v47 = vld [vmem:[%s1 + $0x48] sm:$0xf]
  %v48 = vld [vmem:[%s1 + $0x4c] sm:$0xf]
  %v49 = vld [vmem:[%s1 + $0x50] sm:$0xf]
  %v50 = vld [vmem:[%s1 + $0x54] sm:$0xf]
  %v51 = vld [vmem:[%s1 + $0x58] sm:$0xf]
  %v52 = vld [vmem:[%s1 + $0x5c] sm:$0xf]
  %v53 = vld [vmem:[%s1 + $0x60] sm:$0xf]
  %v54 = vld [vmem:[%s1 + $0x64] sm:$0xf]
  %v55 = vld [vmem:[%s1 + $0x68] sm:$0xf]
  %v56 = vld [vmem:[%s1 + $0x6c] sm:$0xf]
  %v57 = vld [vmem:[%s1 + $0x70] sm:$0xf]
  %v58 = vld [vmem:[%s1 + $0x74] sm:$0xf]
  %v59 = vld [vmem:[%s1 + $0x78] sm:$0xf]
  %v60 = vld [vmem:[%s1 + $0x7c] sm:$0xf]
  %v61 = vld [vmem:[%s1 + $0x80] sm:$0xf]
  %v62 = vld [vmem:[%s1 + $0x84] sm:$0xf]
  %v63 = vld [vmem:[%s1 + $0x88] sm:$0xf]
  %v64 = vld [vmem:[%s1 + $0x8c] sm:$0xf]
  %v65 = vld [vmem:[%s2] sm:$0x1]
  %v67 = vperm.slane %v65, 0
  %v83 = vunpack.c.l.b16 %v15
  %v84 = vunpack.c.h.b16 %v15
  %v85 = vunpack.c.l.b16 %v16
  %v86 = vunpack.c.l.b16 %v17
  %v87 = vunpack.c.h.b16 %v17
  %v88 = vunpack.c.l.b16 %v18
  %v89 = vunpack.c.l.b16 %v19
  %v90 = vunpack.c.h.b16 %v19
  %v91 = vunpack.c.l.b16 %v20
  %v92 = vunpack.c.l.b16 %v21
  %v93 = vunpack.c.h.b16 %v21
  %v94 = vunpack.c.l.b16 %v22
  %v95 = vunpack.c.l.b16 %v23
  %v96 = vunpack.c.h.b16 %v23
  %v97 = vunpack.c.l.b16 %v24
  %v98 = vunpack.c.l.b16 %v25
  %v99 = vunpack.c.h.b16 %v25
  %v100 = vunpack.c.l.b16 %v26
  %v101 = vunpack.c.l.b16 %v27
  %v102 = vunpack.c.h.b16 %v27
  %v103 = vunpack.c.l.b16 %v28
  %v104 = vpack.c.b16 %v86, %v83
  %v105 = vpack.c.b16 %v87, %v84
  %v106 = vpack.c.b16 %v88, %v85
  %v107 = vpack.c.b16 %v92, %v89
  %v108 = vpack.c.b16 %v93, %v90
  %v109 = vpack.c.b16 %v94, %v91
  %v110 = vpack.c.b16 %v98, %v95
  %v111 = vpack.c.b16 %v99, %v96
  %v112 = vpack.c.b16 %v100, %v97
  %v113 = vpack.c.b16 %v101, %v101
  %v114 = vpack.c.b16 %v102, %v102
  %v115 = vpack.c.b16 %v103, %v103
  %v160 = vunpack.c.l.b16 %v29
  %v161 = vunpack.c.l.b16 %v30
  %v162 = vunpack.c.l.b16 %v31
  %v163 = vunpack.c.l.b16 %v32
  %v164 = vunpack.c.l.b16 %v33
  %v165 = vunpack.c.l.b16 %v34
  %v166 = vunpack.c.l.b16 %v35
  %v167 = vunpack.c.l.b16 %v36
  %v168 = vunpack.c.l.b16 %v37
  %v169 = vunpack.c.l.b16 %v38
  %v170 = vunpack.c.l.b16 %v39
  %v171 = vunpack.c.l.b16 %v40
  %v172 = vunpack.c.l.b16 %v41
  %v173 = vunpack.c.l.b16 %v42
  %v174 = vunpack.c.l.b16 %v43
  %v175 = vunpack.c.l.b16 %v44
  %v176 = vunpack.c.l.b16 %v45
  %v177 = vunpack.c.l.b16 %v46
  %v178 = vunpack.c.l.b16 %v47
  %v179 = vunpack.c.l.b16 %v48
  %v180 = vunpack.c.l.b16 %v49
  %v181 = vunpack.c.l.b16 %v50
  %v182 = vunpack.c.l.b16 %v51
  %v183 = vunpack.c.l.b16 %v52
  %v184 = vunpack.c.l.b16 %v53
  %v185 = vunpack.c.l.b16 %v54
  %v186 = vunpack.c.l.b16 %v55
  %v187 = vunpack.c.l.b16 %v56
  %v188 = vunpack.c.l.b16 %v57
  %v189 = vunpack.c.l.b16 %v58
  %v190 = vunpack.c.l.b16 %v59
  %v191 = vunpack.c.l.b16 %v60
  %v192 = vunpack.c.l.b16 %v61
  %v193 = vunpack.c.l.b16 %v62
  %v194 = vunpack.c.l.b16 %v63
  %v195 = vunpack.c.l.b16 %v64
  %v196 = vpack.c.b16 %v161, %v160
  %v197 = vpack.c.b16 %v163, %v162
  %v198 = vpack.c.b16 %v165, %v164
  %v199 = vpack.c.b16 %v167, %v166
  %v200 = vpack.c.b16 %v169, %v168
  %v201 = vpack.c.b16 %v171, %v170
  %v202 = vpack.c.b16 %v173, %v172
  %v203 = vpack.c.b16 %v175, %v174
  %v204 = vpack.c.b16 %v177, %v176
  %v205 = vpack.c.b16 %v179, %v178
  %v206 = vpack.c.b16 %v181, %v180
  %v207 = vpack.c.b16 %v183, %v182
  %v208 = vpack.c.b16 %v185, %v184
  %v209 = vpack.c.b16 %v187, %v186
  %v210 = vpack.c.b16 %v189, %v188
  %v211 = vpack.c.b16 %v191, %v190
  %v212 = vpack.c.b16 %v193, %v192
  %v213 = vpack.c.b16 %v195, %v194
  %vm232 = vcmask 261120
  %v234 = vsel %vm232, %v106, 0
  %v237 = vsel %vm232, %v109, 0
  %v240 = vsel %vm232, %v112, 0
  %v243 = vsel %vm232, %v115, 0
  %245 = vmatpush.bf16.msra.mxu0 %v203
  %246 = vmatpush.bf16.msra.mxu0 %v202
  %247 = vmatpush.bf16.msra.mxu0 %v201
  %248 = vmatpush.bf16.msra.mxu0 %v200
  %249 = vmatpush.bf16.msra.mxu0 %v199
  %250 = vmatpush.bf16.msra.mxu0 %v198
  %251 = vmatpush.bf16.msra.mxu0 %v197
  %252 = vmatpush.bf16.msra.mxu0 %v196
  %253 = vmatmul.bf16.gmra.mxu0 %v104
  %v254 = vpop.f32.mrf.mxu0
  %v255 = vadd.f32 %v67, %v254
  %v256 = vpop.f32.mrf.mxu0
  %v257 = vadd.f32 %v67, %v256
  %258 = vmatmul.bf16.gmra.mxu0 %v107
  %v259 = vpop.f32.mrf.mxu0
  %v260 = vadd.f32 %v67, %v259
  %v261 = vpop.f32.mrf.mxu0
  %v262 = vadd.f32 %v67, %v261
  %263 = vmatmul.bf16.gmra.mxu0 %v110
  %v264 = vpop.f32.mrf.mxu0
  %v265 = vadd.f32 %v67, %v264
  %v266 = vpop.f32.mrf.mxu0
  %v267 = vadd.f32 %v67, %v266
  %268 = vmatmul.bf16.gmra.mxu0 %v113
  %v269 = vpop.f32.mrf.mxu0
  %v270 = vadd.f32 %v67, %v269
  %v271 = vpop.f32.mrf.mxu0
  %272 = vdwg.mxu0
  %273 = vmatpush.bf16.msra.mxu0 %v211
  %274 = vmatpush.bf16.msra.mxu0 %v210
  %275 = vmatpush.bf16.msra.mxu0 %v209
  %276 = vmatpush.bf16.msra.mxu0 %v208
  %277 = vmatpush.bf16.msra.mxu0 %v207
  %278 = vmatpush.bf16.msra.mxu0 %v206
  %279 = vmatpush.bf16.msra.mxu0 %v205
  %280 = vmatpush.bf16.msra.mxu0 %v204
  %281 = vmatmul.bf16.gmra.mxu0 %v105
  %v282 = vpop.f32.mrf.mxu0
  %v283 = vadd.f32 %v255, %v282
  %v284 = vpop.f32.mrf.mxu0
  %v285 = vadd.f32 %v257, %v284
  %286 = vmatmul.bf16.gmra.mxu0 %v108
  %v287 = vpop.f32.mrf.mxu0
  %v288 = vadd.f32 %v260, %v287
  %v289 = vpop.f32.mrf.mxu0
  %v290 = vadd.f32 %v262, %v289
  %291 = vmatmul.bf16.gmra.mxu0 %v111
  %v292 = vpop.f32.mrf.mxu0
  %v293 = vadd.f32 %v265, %v292
  %v294 = vpop.f32.mrf.mxu0
  %v295 = vadd.f32 %v267, %v294
  %296 = vmatmul.bf16.gmra.mxu0 %v114
  %v297 = vpop.f32.mrf.mxu0
  %v298 = vadd.f32 %v270, %v297
  %v299 = vpop.f32.mrf.mxu0
  %300 = vdwg.mxu0
  %301 = vmatpush.bf16.msra.mxu0 0
  %302 = vmatpush.bf16.msra.mxu0 0
  %303 = vmatpush.bf16.msra.mxu0 0
  %304 = vmatpush.bf16.msra.mxu0 0
  %305 = vmatpush.bf16.msra.mxu0 0
  %306 = vmatpush.bf16.msra.mxu0 0
  %307 = vmatpush.bf16.msra.mxu0 %v213
  %308 = vmatpush.bf16.msra.mxu0 %v212
  %309 = vmatmul.bf16.gmra.mxu0 %v234
  %v310 = vpop.f32.mrf.mxu0
  %v311 = vadd.f32 %v283, %v310
  %v312 = vpop.f32.mrf.mxu0
  %v313 = vadd.f32 %v285, %v312
  %314 = vmatmul.bf16.gmra.mxu0 %v237
  %v315 = vpop.f32.mrf.mxu0
  %v316 = vadd.f32 %v288, %v315
  %v317 = vpop.f32.mrf.mxu0
  %v318 = vadd.f32 %v290, %v317
  %319 = vmatmul.bf16.gmra.mxu0 %v240
  %v320 = vpop.f32.mrf.mxu0
  %v321 = vadd.f32 %v293, %v320
  %v322 = vpop.f32.mrf.mxu0
  %v323 = vadd.f32 %v295, %v322
  %324 = vmatmul.bf16.gmra.mxu0 %v243
  %v325 = vpop.f32.mrf.mxu0
  %v326 = vadd.f32 %v298, %v325
  %v327 = vpop.f32.mrf.mxu0
  %328 = vdwg.mxu0
  %v329 = vmax.f32 %v311, 0.0
  %v330 = vmax.f32 %v313, 0.0
  %v331 = vmax.f32 %v316, 0.0
  %v332 = vmax.f32 %v318, 0.0
  %v333 = vmax.f32 %v321, 0.0
  %v334 = vmax.f32 %v323, 0.0
  %v335 = vmax.f32 %v326, 0.0
  %v336 = vpack.c.bf16 %v329, %v329
  %v337 = vpack.c.bf16 %v330, %v330
  %v338 = vpack.c.bf16 %v331, %v331
  %v339 = vpack.c.bf16 %v332, %v332
  %v340 = vpack.c.bf16 %v333, %v333
  %v341 = vpack.c.bf16 %v334, %v334
  %v342 = vpack.c.bf16 %v335, %v335
  %vm343 = vcmask 519168
  %344 = vst.msk [vmem:[%s3] sm:$0xf] %vm343, %v336
  %345 = vst.msk [vmem:[%s3 + $0x4] sm:$0xf] %vm343, %v337
  %346 = vst.msk [vmem:[%s3 + $0x8] sm:$0xf] %vm343, %v338
  %347 = vst.msk [vmem:[%s3 + $0xc] sm:$0xf] %vm343, %v339
  %348 = vst.msk [vmem:[%s3 + $0x10] sm:$0xf] %vm343, %v340
  %349 = vst.msk [vmem:[%s3 + $0x14] sm:$0xf] %vm343, %v341
  %vm350 = vcmask 516096
  %351 = vst.msk [vmem:[%s3 + $0x18] sm:$0x1] %vm350, %v342
  // Predicated region
  $region14: #{net_forward.9} parent=0 // pred_check
    _
  $region15: #{net_forward.9} parent=0 // pred_check_branch
    %353 = sbr.rel (0) target = $region17
  $region16: #{net_forward.9} parent=0 // pred_region
    _
  $region17: #{net_forward.9} parent=0 // pred_fallthru
    _
  // Predicated region
  $region18: #{net_forward.9} parent=0 // pred_check
    _
  $region19: #{net_forward.9} parent=0 // pred_check_branch
    %355 = sbr.rel (0) target = $region21
  $region20: #{net_forward.9} parent=0 // pred_region
    _
  $region21: #{net_forward.9} parent=0 // pred_fallthru
    _

// kernel: net_forward.10
$region0: #{net_forward.10}
  #allocation0 [shape = 'u32[]', space=smem, size = 0x4, offset = 0x4, fixed_abs, tag = 'smem constant byte address 0x4 - core index']
  #allocation1 [shape = 'u32[72,128]{1,0:T(1,128)}', space=vmem, size = 0x9000, scoped, tag = 'internal scratch']
  %s0 = inlined_call_operand.vmem [shape: bf16[18,576], index: 0, kind: input, shape index: {}]
  %s1 = inlined_call_operand.vmem [shape: bf16[576,128], index: 1, kind: input, shape index: {}]
  %s2 = inlined_call_operand.vmem [shape: f32[1,128], index: 2, kind: input, shape index: {}]
  %s3 = inlined_call_operand.vmem [shape: bf16[18,128], index: 3, kind: output, shape index: {}]
  %s4 = sld [smem:[#allocation0]]
  $region22: #{net_forward.10} parent=0
    _
  %s6 = ssub.s32 1, %s4
  %s7 = scalar_select 0, %s6, %s4
  // Predicated region
  $region2: #{net_forward.10} parent=0 // pred_check
    _
  $region3: #{net_forward.10} parent=0 // pred_check_branch
    %9 = sbr.rel (0) target = $region5
  $region4: #{net_forward.10} parent=0 // pred_region
    _
  $region5: #{net_forward.10} parent=0 // pred_fallthru
    _
  // Predicated region
  $region6: #{net_forward.10} parent=0 // pred_check
    _
  $region7: #{net_forward.10} parent=0 // pred_check_branch
    %11 = sbr.rel (0) target = $region9
  $region8: #{net_forward.10} parent=0 // pred_region
    _
  $region9: #{net_forward.10} parent=0 // pred_fallthru
    _
  // Predicated region
  $region10: #{net_forward.10} parent=0 // pred_check
    _
  $region11: #{net_forward.10} parent=0 // pred_check_branch
    %13 = sbr.rel (0) target = $region13
  $region12: #{net_forward.10} parent=0 // pred_region
    _
  $region13: #{net_forward.10} parent=0 // pred_fallthru
    _
  %v15 = vld [vmem:[%s0] sm:$0xff]
  %v16 = vld [vmem:[%s0 + $0x8] sm:$0xff]
  %v17 = vld [vmem:[%s0 + $0x10] sm:$0xf]
  %v18 = vld [vmem:[%s0 + $0x14] sm:$0xff]
  %v19 = vld [vmem:[%s0 + $0x1c] sm:$0xff]
  %v20 = vld [vmem:[%s0 + $0x24] sm:$0xf]
  %v21 = vld [vmem:[%s0 + $0x28] sm:$0x11]
  %v22 = vld [vmem:[%s0 + $0x30] sm:$0x11]
  %v23 = vld [vmem:[%s0 + $0x38] sm:$0x1]
  %v24 = vld [vmem:[%s1] sm:$0xf]
  %v25 = vld [vmem:[%s1 + $0x4] sm:$0xf]
  %v26 = vld [vmem:[%s1 + $0x8] sm:$0xf]
  %v27 = vld [vmem:[%s1 + $0xc] sm:$0xf]
  %v28 = vld [vmem:[%s1 + $0x10] sm:$0xf]
  %v29 = vld [vmem:[%s1 + $0x14] sm:$0xf]
  %v30 = vld [vmem:[%s1 + $0x18] sm:$0xf]
  %v31 = vld [vmem:[%s1 + $0x1c] sm:$0xf]
  %v32 = vld [vmem:[%s1 + $0x20] sm:$0xf]
  %v33 = vld [vmem:[%s1 + $0x24] sm:$0xf]
  %v34 = vld [vmem:[%s1 + $0x28] sm:$0xf]
  %v35 = vld [vmem:[%s1 + $0x2c] sm:$0xf]
  %v36 = vld [vmem:[%s1 + $0x30] sm:$0xf]
  %v37 = vld [vmem:[%s1 + $0x34] sm:$0xf]
  %v38 = vld [vmem:[%s1 + $0x38] sm:$0xf]
  %v39 = vld [vmem:[%s1 + $0x3c] sm:$0xf]
  %v40 = vld [vmem:[%s1 + $0x40] sm:$0xf]
  %v41 = vld [vmem:[%s1 + $0x44] sm:$0xf]
  %v42 = vld [vmem:[%s1 + $0x48] sm:$0xf]
  %v43 = vld [vmem:[%s1 + $0x4c] sm:$0xf]
  %v44 = vld [vmem:[%s1 + $0x50] sm:$0xf]
  %v45 = vld [vmem:[%s1 + $0x54] sm:$0xf]
  %v46 = vld [vmem:[%s1 + $0x58] sm:$0xf]
  %v47 = vld [vmem:[%s1 + $0x5c] sm:$0xf]
  %v48 = vld [vmem:[%s1 + $0x60] sm:$0xf]
  %v49 = vld [vmem:[%s1 + $0x64] sm:$0xf]
  %v50 = vld [vmem:[%s1 + $0x68] sm:$0xf]
  %v51 = vld [vmem:[%s1 + $0x6c] sm:$0xf]
  %v52 = vld [vmem:[%s1 + $0x70] sm:$0xf]
  %v53 = vld [vmem:[%s1 + $0x74] sm:$0xf]
  %v54 = vld [vmem:[%s1 + $0x78] sm:$0xf]
  %v55 = vld [vmem:[%s1 + $0x7c] sm:$0xf]
  %v56 = vld [vmem:[%s1 + $0x80] sm:$0xf]
  %v57 = vld [vmem:[%s1 + $0x84] sm:$0xf]
  %v58 = vld [vmem:[%s1 + $0x88] sm:$0xf]
  %v59 = vld [vmem:[%s1 + $0x8c] sm:$0xf]
  %v60 = vld [vmem:[%s1 + $0x90] sm:$0xf]
  %v61 = vld [vmem:[%s1 + $0x94] sm:$0xf]
  %v62 = vld [vmem:[%s1 + $0x98] sm:$0xf]
  %v63 = vld [vmem:[%s1 + $0x9c] sm:$0xf]
  %v64 = vld [vmem:[%s1 + $0xa0] sm:$0xf]
  %v65 = vld [vmem:[%s1 + $0xa4] sm:$0xf]
  %v66 = vld [vmem:[%s1 + $0xa8] sm:$0xf]
  %v67 = vld [vmem:[%s1 + $0xac] sm:$0xf]
  %v68 = vld [vmem:[%s1 + $0xb0] sm:$0xf]
  %v69 = vld [vmem:[%s1 + $0xb4] sm:$0xf]
  %v70 = vld [vmem:[%s1 + $0xb8] sm:$0xf]
  %v71 = vld [vmem:[%s1 + $0xbc] sm:$0xf]
  %v72 = vld [vmem:[%s1 + $0xc0] sm:$0xf]
  %v73 = vld [vmem:[%s1 + $0xc4] sm:$0xf]
  %v74 = vld [vmem:[%s1 + $0xc8] sm:$0xf]
  %v75 = vld [vmem:[%s1 + $0xcc] sm:$0xf]
  %v76 = vld [vmem:[%s1 + $0xd0] sm:$0xf]
  %v77 = vld [vmem:[%s1 + $0xd4] sm:$0xf]
  %v78 = vld [vmem:[%s1 + $0xd8] sm:$0xf]
  %v79 = vld [vmem:[%s1 + $0xdc] sm:$0xf]
  %v80 = vld [vmem:[%s1 + $0xe0] sm:$0xf]
  %v81 = vld [vmem:[%s1 + $0xe4] sm:$0xf]
  %v82 = vld [vmem:[%s1 + $0xe8] sm:$0xf]
  %v83 = vld [vmem:[%s1 + $0xec] sm:$0xf]
  %v84 = vld [vmem:[%s1 + $0xf0] sm:$0xf]
  %v85 = vld [vmem:[%s1 + $0xf4] sm:$0xf]
  %v86 = vld [vmem:[%s1 + $0xf8] sm:$0xf]
  %v87 = vld [vmem:[%s1 + $0xfc] sm:$0xf]
  %v88 = vld [vmem:[%s1 + $0x100] sm:$0xf]
  %v89 = vld [vmem:[%s1 + $0x104] sm:$0xf]
  %v90 = vld [vmem:[%s1 + $0x108] sm:$0xf]
  %v91 = vld [vmem:[%s1 + $0x10c] sm:$0xf]
  %v92 = vld [vmem:[%s1 + $0x110] sm:$0xf]
  %v93 = vld [vmem:[%s1 + $0x114] sm:$0xf]
  %v94 = vld [vmem:[%s1 + $0x118] sm:$0xf]
  %v95 = vld [vmem:[%s1 + $0x11c] sm:$0xf]
  %v96 = vld [vmem:[%s2] sm:$0x1]
  %v98 = vperm.slane %v96, 0
  %v109 = vunpack.c.l.b16 %v15
  %v110 = vunpack.c.h.b16 %v15
  %v111 = vunpack.c.l.b16 %v16
  %v112 = vunpack.c.h.b16 %v16
  %v113 = vunpack.c.l.b16 %v17
  %v114 = vunpack.c.l.b16 %v18
  %v115 = vunpack.c.h.b16 %v18
  %v116 = vunpack.c.l.b16 %v19
  %v117 = vunpack.c.h.b16 %v19
  %v118 = vunpack.c.l.b16 %v20
  %v119 = vunpack.c.l.b16 %v21
  %v120 = vunpack.c.h.b16 %v21
  %v121 = vunpack.c.l.b16 %v22
  %v122 = vunpack.c.h.b16 %v22
  %v123 = vunpack.c.l.b16 %v23
  %v124 = vpack.c.b16 %v114, %v109
  %v125 = vpack.c.b16 %v115, %v110
  %v126 = vpack.c.b16 %v116, %v111
  %v127 = vpack.c.b16 %v117, %v112
  %v128 = vpack.c.b16 %v118, %v113
  %v129 = vpack.c.b16 %v119, %v119
  %v130 = vpack.c.b16 %v120, %v120
  %v131 = vpack.c.b16 %v121, %v121
  %v132 = vpack.c.b16 %v122, %v122
  %v133 = vpack.c.b16 %v123, %v123
  %v214 = vunpack.c.l.b16 %v24
  %v215 = vunpack.c.l.b16 %v25
  %v216 = vunpack.c.l.b16 %v26
  %v217 = vunpack.c.l.b16 %v27
  %v218 = vunpack.c.l.b16 %v28
  %v219 = vunpack.c.l.b16 %v29
  %v220 = vunpack.c.l.b16 %v30
  %v221 = vunpack.c.l.b16 %v31
  %v222 = vunpack.c.l.b16 %v32
  %v223 = vunpack.c.l.b16 %v33
  %v224 = vunpack.c.l.b16 %v34
  %v225 = vunpack.c.l.b16 %v35
  %v226 = vunpack.c.l.b16 %v36
  %v227 = vunpack.c.l.b16 %v37
  %v228 = vunpack.c.l.b16 %v38
  %v229 = vunpack.c.l.b16 %v39
  %v230 = vunpack.c.l.b16 %v40
  %v231 = vunpack.c.l.b16 %v41
  %v232 = vunpack.c.l.b16 %v42
  %v233 = vunpack.c.l.b16 %v43
  %v234 = vunpack.c.l.b16 %v44
  %v235 = vunpack.c.l.b16 %v45
  %v236 = vunpack.c.l.b16 %v46
  %v237 = vunpack.c.l.b16 %v47
  %v238 = vunpack.c.l.b16 %v48
  %v239 = vunpack.c.l.b16 %v49
  %v240 = vunpack.c.l.b16 %v50
  %v241 = vunpack.c.l.b16 %v51
  %v242 = vunpack.c.l.b16 %v52
  %v243 = vunpack.c.l.b16 %v53
  %v244 = vunpack.c.l.b16 %v54
  %v245 = vunpack.c.l.b16 %v55
  %v246 = vunpack.c.l.b16 %v56
  %v247 = vunpack.c.l.b16 %v57
  %v248 = vunpack.c.l.b16 %v58
  %v249 = vunpack.c.l.b16 %v59
  %v250 = vunpack.c.l.b16 %v60
  %v251 = vunpack.c.l.b16 %v61
  %v252 = vunpack.c.l.b16 %v62
  %v253 = vunpack.c.l.b16 %v63
  %v254 = vunpack.c.l.b16 %v64
  %v255 = vunpack.c.l.b16 %v65
  %v256 = vunpack.c.l.b16 %v66
  %v257 = vunpack.c.l.b16 %v67
  %v258 = vunpack.c.l.b16 %v68
  %v259 = vunpack.c.l.b16 %v69
  %v260 = vunpack.c.l.b16 %v70
  %v261 = vunpack.c.l.b16 %v71
  %v262 = vunpack.c.l.b16 %v72
  %v263 = vunpack.c.l.b16 %v73
  %v264 = vunpack.c.l.b16 %v74
  %v265 = vunpack.c.l.b16 %v75
  %v266 = vunpack.c.l.b16 %v76
  %v267 = vunpack.c.l.b16 %v77
  %v268 = vunpack.c.l.b16 %v78
  %v269 = vunpack.c.l.b16 %v79
  %v270 = vunpack.c.l.b16 %v80
  %v271 = vunpack.c.l.b16 %v81
  %v272 = vunpack.c.l.b16 %v82
  %v273 = vunpack.c.l.b16 %v83
  %v274 = vunpack.c.l.b16 %v84
  %v275 = vunpack.c.l.b16 %v85
  %v276 = vunpack.c.l.b16 %v86
  %v277 = vunpack.c.l.b16 %v87
  %v278 = vunpack.c.l.b16 %v88
  %v279 = vunpack.c.l.b16 %v89
  %v280 = vunpack.c.l.b16 %v90
  %v281 = vunpack.c.l.b16 %v91
  %v282 = vunpack.c.l.b16 %v92
  %v283 = vunpack.c.l.b16 %v93
  %v284 = vunpack.c.l.b16 %v94
  %v285 = vunpack.c.l.b16 %v95
  %v286 = vpack.c.b16 %v215, %v214
  %v287 = vpack.c.b16 %v217, %v216
  %v288 = vpack.c.b16 %v219, %v218
  %v289 = vpack.c.b16 %v221, %v220
  %v290 = vpack.c.b16 %v223, %v222
  %v291 = vpack.c.b16 %v225, %v224
  %v292 = vpack.c.b16 %v227, %v226
  %v293 = vpack.c.b16 %v229, %v228
  %v294 = vpack.c.b16 %v231, %v230
  %v295 = vpack.c.b16 %v233, %v232
  %v296 = vpack.c.b16 %v235, %v234
  %v297 = vpack.c.b16 %v237, %v236
  %v298 = vpack.c.b16 %v239, %v238
  %v299 = vpack.c.b16 %v241, %v240
  %v300 = vpack.c.b16 %v243, %v242
  %v301 = vpack.c.b16 %v245, %v244
  %v302 = vpack.c.b16 %v247, %v246
  %v303 = vpack.c.b16 %v249, %v248
  %v304 = vpack.c.b16 %v251, %v250
  %v305 = vpack.c.b16 %v253, %v252
  %v306 = vpack.c.b16 %v255, %v254
  %v307 = vpack.c.b16 %v257, %v256
  %v308 = vpack.c.b16 %v259, %v258
  %v309 = vpack.c.b16 %v261, %v260
  %v310 = vpack.c.b16 %v263, %v262
  %v311 = vpack.c.b16 %v265, %v264
  %v312 = vpack.c.b16 %v267, %v266
  %v313 = vpack.c.b16 %v269, %v268
  %v314 = vpack.c.b16 %v271, %v270
  %v315 = vpack.c.b16 %v273, %v272
  %v316 = vpack.c.b16 %v275, %v274
  %v317 = vpack.c.b16 %v277, %v276
  %v318 = vpack.c.b16 %v279, %v278
  %v319 = vpack.c.b16 %v281, %v280
  %v320 = vpack.c.b16 %v283, %v282
  %v321 = vpack.c.b16 %v285, %v284
  %vm358 = vcmask 523264
  %v360 = vsel %vm358, %v128, 0
  %v363 = vsel %vm358, %v133, 0
  %365 = vmatpush.bf16.msra.mxu0 %v293
  %366 = vmatpush.bf16.msra.mxu0 %v292
  %367 = vmatpush.bf16.msra.mxu0 %v291
  %368 = vmatpush.bf16.msra.mxu0 %v290
  %369 = vmatpush.bf16.msra.mxu0 %v289
  %370 = vmatpush.bf16.msra.mxu0 %v288
  %371 = vmatpush.bf16.msra.mxu0 %v287
  %372 = vmatpush.bf16.msra.mxu0 %v286
  %373 = vmatmul.bf16.gmra.mxu0 %v124
  %v374 = vpop.f32.mrf.mxu0
  %v375 = vadd.f32 %v98, %v374
  %v376 = vpop.f32.mrf.mxu0
  %v377 = vadd.f32 %v98, %v376
  %378 = vmatmul.bf16.gmra.mxu0 %v129
  %v379 = vpop.f32.mrf.mxu0
  %v380 = vadd.f32 %v98, %v379
  %v381 = vpop.f32.mrf.mxu0
  %382 = vdwg.mxu0
  %383 = vmatpush.bf16.msra.mxu0 %v301
  %384 = vmatpush.bf16.msra.mxu0 %v300
  %385 = vmatpush.bf16.msra.mxu0 %v299
  %386 = vmatpush.bf16.msra.mxu0 %v298
  %387 = vmatpush.bf16.msra.mxu0 %v297
  %388 = vmatpush.bf16.msra.mxu0 %v296
  %389 = vmatpush.bf16.msra.mxu0 %v295
  %390 = vmatpush.bf16.msra.mxu0 %v294
  %391 = vmatmul.bf16.gmra.mxu0 %v125
  %v392 = vpop.f32.mrf.mxu0
  %v393 = vadd.f32 %v375, %v392
  %v394 = vpop.f32.mrf.mxu0
  %v395 = vadd.f32 %v377, %v394
  %396 = vmatmul.bf16.gmra.mxu0 %v130
  %v397 = vpop.f32.mrf.mxu0
  %v398 = vadd.f32 %v380, %v397
  %v399 = vpop.f32.mrf.mxu0
  %400 = vdwg.mxu0
  %401 = vmatpush.bf16.msra.mxu0 %v309
  %402 = vmatpush.bf16.msra.mxu0 %v308
  %403 = vmatpush.bf16.msra.mxu0 %v307
  %404 = vmatpush.bf16.msra.mxu0 %v306
  %405 = vmatpush.bf16.msra.mxu0 %v305
  %406 = vmatpush.bf16.msra.mxu0 %v304
  %407 = vmatpush.bf16.msra.mxu0 %v303
  %408 = vmatpush.bf16.msra.mxu0 %v302
  %409 = vmatmul.bf16.gmra.mxu0 %v126
  %v410 = vpop.f32.mrf.mxu0
  %v411 = vadd.f32 %v393, %v410
  %v412 = vpop.f32.mrf.mxu0
  %v413 = vadd.f32 %v395, %v412
  %414 = vmatmul.bf16.gmra.mxu0 %v131
  %v415 = vpop.f32.mrf.mxu0
  %v416 = vadd.f32 %v398, %v415
  %v417 = vpop.f32.mrf.mxu0
  %418 = vdwg.mxu0
  %419 = vmatpush.bf16.msra.mxu0 %v317
  %420 = vmatpush.bf16.msra.mxu0 %v316
  %421 = vmatpush.bf16.msra.mxu0 %v315
  %422 = vmatpush.bf16.msra.mxu0 %v314
  %423 = vmatpush.bf16.msra.mxu0 %v313
  %424 = vmatpush.bf16.msra.mxu0 %v312
  %425 = vmatpush.bf16.msra.mxu0 %v311
  %426 = vmatpush.bf16.msra.mxu0 %v310
  %427 = vmatmul.bf16.gmra.mxu0 %v127
  %v428 = vpop.f32.mrf.mxu0
  %v429 = vadd.f32 %v411, %v428
  %v430 = vpop.f32.mrf.mxu0
  %v431 = vadd.f32 %v413, %v430
  %432 = vmatmul.bf16.gmra.mxu0 %v132
  %v433 = vpop.f32.mrf.mxu0
  %v434 = vadd.f32 %v416, %v433
  %v435 = vpop.f32.mrf.mxu0
  %436 = vdwg.mxu0
  %437 = vmatpush.bf16.msra.mxu0 0
  %438 = vmatpush.bf16.msra.mxu0 0
  %439 = vmatpush.bf16.msra.mxu0 0
  %440 = vmatpush.bf16.msra.mxu0 0
  %441 = vmatpush.bf16.msra.mxu0 %v321
  %442 = vmatpush.bf16.msra.mxu0 %v320
  %443 = vmatpush.bf16.msra.mxu0 %v319
  %444 = vmatpush.bf16.msra.mxu0 %v318
  %445 = vmatmul.bf16.gmra.mxu0 %v360
  %v446 = vpop.f32.mrf.mxu0
  %v447 = vadd.f32 %v429, %v446
  %v448 = vpop.f32.mrf.mxu0
  %v449 = vadd.f32 %v431, %v448
  %450 = vmatmul.bf16.gmra.mxu0 %v363
  %v451 = vpop.f32.mrf.mxu0
  %v452 = vadd.f32 %v434, %v451
  %v453 = vpop.f32.mrf.mxu0
  %454 = vdwg.mxu0
  %v455 = vmax.f32 %v447, 0.0
  %v456 = vmax.f32 %v449, 0.0
  %v457 = vmax.f32 %v452, 0.0
  %v458 = vpack.c.bf16 %v455, %v455
  %v459 = vpack.c.bf16 %v456, %v456
  %v460 = vpack.c.bf16 %v457, %v457
  %461 = vst [vmem:[%s3] sm:$0xf] %v458
  %462 = vst [vmem:[%s3 + $0x4] sm:$0xf] %v459
  %463 = vst [vmem:[%s3 + $0x8] sm:$0x1] %v460
  // Predicated region
  $region14: #{net_forward.10} parent=0 // pred_check
    _
  $region15: #{net_forward.10} parent=0 // pred_check_branch
    %465 = sbr.rel (0) target = $region17
  $region16: #{net_forward.10} parent=0 // pred_region
    _
  $region17: #{net_forward.10} parent=0 // pred_fallthru
    _
  // Predicated region
  $region18: #{net_forward.10} parent=0 // pred_check
    _
  $region19: #{net_forward.10} parent=0 // pred_check_branch
    %467 = sbr.rel (0) target = $region21
  $region20: #{net_forward.10} parent=0 // pred_region
    _
  $region21: #{net_forward.10} parent=0 // pred_fallthru
    _

// kernel: net_forward.11
$region0: #{net_forward.11}
  #allocation0 [shape = 'u32[]', space=smem, size = 0x4, offset = 0x4, fixed_abs, tag = 'smem constant byte address 0x4 - core index']
  #allocation1 [shape = 'u32[72,128]{1,0:T(1,128)}', space=vmem, size = 0x9000, scoped, tag = 'internal scratch']
  %s0 = inlined_call_operand.vmem [shape: bf16[2,1152], index: 0, kind: input, shape index: {}]
  %s1 = inlined_call_operand.vmem [shape: bf16[1152,256], index: 1, kind: input, shape index: {}]
  %s2 = inlined_call_operand.vmem [shape: f32[1,256], index: 2, kind: input, shape index: {}]
  %s3 = inlined_call_operand.vmem [shape: bf16[256,200], index: 3, kind: input, shape index: {}]
  %s4 = inlined_call_operand.vmem [shape: f32[1,200], index: 4, kind: input, shape index: {}]
  %s5 = inlined_call_operand.vmem [shape: bf16[200,7], index: 5, kind: input, shape index: {}]
  %s6 = inlined_call_operand.vmem [shape: f32[1,7], index: 6, kind: input, shape index: {}]
  %s7 = inlined_call_operand.vmem [shape: f32[2,7], index: 7, kind: output, shape index: {}]
  %s8 = sld [smem:[#allocation0]]
  $region38: #{net_forward.11} parent=0
    _
  %s10 = ssub.s32 1, %s8
  %s11 = scalar_select 0, %s10, %s8
  // Predicated region
  $region2: #{net_forward.11} parent=0 // pred_check
    _
  $region3: #{net_forward.11} parent=0 // pred_check_branch
    %13 = sbr.rel (0) target = $region5
  $region4: #{net_forward.11} parent=0 // pred_region
    _
  $region5: #{net_forward.11} parent=0 // pred_fallthru
    _
  // Predicated region
  $region6: #{net_forward.11} parent=0 // pred_check
    _
  $region7: #{net_forward.11} parent=0 // pred_check_branch
    %15 = sbr.rel (0) target = $region9
  $region8: #{net_forward.11} parent=0 // pred_region
    _
  $region9: #{net_forward.11} parent=0 // pred_fallthru
    _
  // Predicated region
  $region10: #{net_forward.11} parent=0 // pred_check
    _
  $region11: #{net_forward.11} parent=0 // pred_check_branch
    %17 = sbr.rel (0) target = $region13
  $region12: #{net_forward.11} parent=0 // pred_region
    _
  $region13: #{net_forward.11} parent=0 // pred_fallthru
    _
  // Predicated region
  $region14: #{net_forward.11} parent=0 // pred_check
    _
  $region15: #{net_forward.11} parent=0 // pred_check_branch
    %19 = sbr.rel (0) target = $region17
  $region16: #{net_forward.11} parent=0 // pred_region
    _
  $region17: #{net_forward.11} parent=0 // pred_fallthru
    _
  // Predicated region
  $region18: #{net_forward.11} parent=0 // pred_check
    _
  $region19: #{net_forward.11} parent=0 // pred_check_branch
    %21 = sbr.rel (0) target = $region21
  $region20: #{net_forward.11} parent=0 // pred_region
    _
  $region21: #{net_forward.11} parent=0 // pred_fallthru
    _
  // Predicated region
  $region22: #{net_forward.11} parent=0 // pred_check
    _
  $region23: #{net_forward.11} parent=0 // pred_check_branch
    %23 = sbr.rel (0) target = $region25
  $region24: #{net_forward.11} parent=0 // pred_region
    _
  $region25: #{net_forward.11} parent=0 // pred_fallthru
    _
  // Predicated region
  $region26: #{net_forward.11} parent=0 // pred_check
    _
  $region27: #{net_forward.11} parent=0 // pred_check_branch
    %25 = sbr.rel (0) target = $region29
  $region28: #{net_forward.11} parent=0 // pred_region
    _
  $region29: #{net_forward.11} parent=0 // pred_fallthru
    _
  %v27 = vld [vmem:[%s0] sm:$0xff]
  %v28 = vld [vmem:[%s0 + $0x8] sm:$0x1]
  %v29 = vld [vmem:[%s1] sm:$0xff]
  %v30 = vld [vmem:[%s1 + $0x8] sm:$0xff]
  %v31 = vld [vmem:[%s1 + $0x10] sm:$0xff]
  %v32 = vld [vmem:[%s1 + $0x18] sm:$0xff]
  %v33 = vld [vmem:[%s1 + $0x20] sm:$0xff]
  %v34 = vld [vmem:[%s1 + $0x28] sm:$0xff]
  %v35 = vld [vmem:[%s1 + $0x30] sm:$0xff]
  %v36 = vld [vmem:[%s1 + $0x38] sm:$0xff]
  %v37 = vld [vmem:[%s1 + $0x40] sm:$0xff]
  %v38 = vld [vmem:[%s1 + $0x48] sm:$0xff]
  %v39 = vld [vmem:[%s1 + $0x50] sm:$0xff]
  %v40 = vld [vmem:[%s1 + $0x58] sm:$0xff]
  %v41 = vld [vmem:[%s1 + $0x60] sm:$0xff]
  %v42 = vld [vmem:[%s1 + $0x68] sm:$0xff]
  %v43 = vld [vmem:[%s1 + $0x70] sm:$0xff]
  %v44 = vld [vmem:[%s1 + $0x78] sm:$0xff]
  %v45 = vld [vmem:[%s1 + $0x80] sm:$0xff]
  %v46 = vld [vmem:[%s1 + $0x88] sm:$0xff]
  %v47 = vld [vmem:[%s1 + $0x90] sm:$0xff]
  %v48 = vld [vmem:[%s1 + $0x98] sm:$0xff]
  %v49 = vld [vmem:[%s1 + $0xa0] sm:$0xff]
  %v50 = vld [vmem:[%s1 + $0xa8] sm:$0xff]
  %v51 = vld [vmem:[%s1 + $0xb0] sm:$0xff]
  %v52 = vld [vmem:[%s1 + $0xb8] sm:$0xff]
  %v53 = vld [vmem:[%s1 + $0xc0] sm:$0xff]
  %v54 = vld [vmem:[%s1 + $0xc8] sm:$0xff]
  %v55 = vld [vmem:[%s1 + $0xd0] sm:$0xff]
  %v56 = vld [vmem:[%s1 + $0xd8] sm:$0xff]
  %v57 = vld [vmem:[%s1 + $0xe0] sm:$0xff]
  %v58 = vld [vmem:[%s1 + $0xe8] sm:$0xff]
  %v59 = vld [vmem:[%s1 + $0xf0] sm:$0xff]
  %v60 = vld [vmem:[%s1 + $0xf8] sm:$0xff]
  %v61 = vld [vmem:[%s1 + $0x100] sm:$0xff]
  %v62 = vld [vmem:[%s1 + $0x108] sm:$0xff]
  %v63 = vld [vmem:[%s1 + $0x110] sm:$0xff]
  %v64 = vld [vmem:[%s1 + $0x118] sm:$0xff]
  %v65 = vld [vmem:[%s1 + $0x120] sm:$0xff]
  %v66 = vld [vmem:[%s1 + $0x128] sm:$0xff]
  %v67 = vld [vmem:[%s1 + $0x130] sm:$0xff]
  %v68 = vld [vmem:[%s1 + $0x138] sm:$0xff]
  %v69 = vld [vmem:[%s1 + $0x140] sm:$0xff]
  %v70 = vld [vmem:[%s1 + $0x148] sm:$0xff]
  %v71 = vld [vmem:[%s1 + $0x150] sm:$0xff]
  %v72 = vld [vmem:[%s1 + $0x158] sm:$0xff]
  %v73 = vld [vmem:[%s1 + $0x160] sm:$0xff]
  %v74 = vld [vmem:[%s1 + $0x168] sm:$0xff]
  %v75 = vld [vmem:[%s1 + $0x170] sm:$0xff]
  %v76 = vld [vmem:[%s1 + $0x178] sm:$0xff]
  %v77 = vld [vmem:[%s1 + $0x180] sm:$0xff]
  %v78 = vld [vmem:[%s1 + $0x188] sm:$0xff]
  %v79 = vld [vmem:[%s1 + $0x190] sm:$0xff]
  %v80 = vld [vmem:[%s1 + $0x198] sm:$0xff]
  %v81 = vld [vmem:[%s1 + $0x1a0] sm:$0xff]
  %v82 = vld [vmem:[%s1 + $0x1a8] sm:$0xff]
  %v83 = vld [vmem:[%s1 + $0x1b0] sm:$0xff]
  %v84 = vld [vmem:[%s1 + $0x1b8] sm:$0xff]
  %v85 = vld [vmem:[%s1 + $0x1c0] sm:$0xff]
  %v86 = vld [vmem:[%s1 + $0x1c8] sm:$0xff]
  %v87 = vld [vmem:[%s1 + $0x1d0] sm:$0xff]
  %v88 = vld [vmem:[%s1 + $0x1d8] sm:$0xff]
  %v89 = vld [vmem:[%s1 + $0x1e0] sm:$0xff]
  %v90 = vld [vmem:[%s1 + $0x1e8] sm:$0xff]
  %v91 = vld [vmem:[%s1 + $0x1f0] sm:$0xff]
  %v92 = vld [vmem:[%s1 + $0x1f8] sm:$0xff]
  %v93 = vld [vmem:[%s1 + $0x200] sm:$0xff]
  %v94 = vld [vmem:[%s1 + $0x208] sm:$0xff]
  %v95 = vld [vmem:[%s1 + $0x210] sm:$0xff]
  %v96 = vld [vmem:[%s1 + $0x218] sm:$0xff]
  %v97 = vld [vmem:[%s1 + $0x220] sm:$0xff]
  %v98 = vld [vmem:[%s1 + $0x228] sm:$0xff]
  %v99 = vld [vmem:[%s1 + $0x230] sm:$0xff]
  %v100 = vld [vmem:[%s1 + $0x238] sm:$0xff]
  %v101 = vld [vmem:[%s1 + $0x240] sm:$0xff]
  %v102 = vld [vmem:[%s1 + $0x248] sm:$0xff]
  %v103 = vld [vmem:[%s1 + $0x250] sm:$0xff]
  %v104 = vld [vmem:[%s1 + $0x258] sm:$0xff]
  %v105 = vld [vmem:[%s1 + $0x260] sm:$0xff]
  %v106 = vld [vmem:[%s1 + $0x268] sm:$0xff]
  %v107 = vld [vmem:[%s1 + $0x270] sm:$0xff]
  %v108 = vld [vmem:[%s1 + $0x278] sm:$0xff]
  %v109 = vld [vmem:[%s1 + $0x280] sm:$0xff]
  %v110 = vld [vmem:[%s1 + $0x288] sm:$0xff]
  %v111 = vld [vmem:[%s1 + $0x290] sm:$0xff]
  %v112 = vld [vmem:[%s1 + $0x298] sm:$0xff]
  %v113 = vld [vmem:[%s1 + $0x2a0] sm:$0xff]
  %v114 = vld [vmem:[%s1 + $0x2a8] sm:$0xff]
  %v115 = vld [vmem:[%s1 + $0x2b0] sm:$0xff]
  %v116 = vld [vmem:[%s1 + $0x2b8] sm:$0xff]
  %v117 = vld [vmem:[%s1 + $0x2c0] sm:$0xff]
  %v118 = vld [vmem:[%s1 + $0x2c8] sm:$0xff]
  %v119 = vld [vmem:[%s1 + $0x2d0] sm:$0xff]
  %v120 = vld [vmem:[%s1 + $0x2d8] sm:$0xff]
  %v121 = vld [vmem:[%s1 + $0x2e0] sm:$0xff]
  %v122 = vld [vmem:[%s1 + $0x2e8] sm:$0xff]
  %v123 = vld [vmem:[%s1 + $0x2f0] sm:$0xff]
  %v124 = vld [vmem:[%s1 + $0x2f8] sm:$0xff]
  %v125 = vld [vmem:[%s1 + $0x300] sm:$0xff]
  %v126 = vld [vmem:[%s1 + $0x308] sm:$0xff]
  %v127 = vld [vmem:[%s1 + $0x310] sm:$0xff]
  %v128 = vld [vmem:[%s1 + $0x318] sm:$0xff]
  %v129 = vld [vmem:[%s1 + $0x320] sm:$0xff]
  %v130 = vld [vmem:[%s1 + $0x328] sm:$0xff]
  %v131 = vld [vmem:[%s1 + $0x330] sm:$0xff]
  %v132 = vld [vmem:[%s1 + $0x338] sm:$0xff]
  %v133 = vld [vmem:[%s1 + $0x340] sm:$0xff]
  %v134 = vld [vmem:[%s1 + $0x348] sm:$0xff]
  %v135 = vld [vmem:[%s1 + $0x350] sm:$0xff]
  %v136 = vld [vmem:[%s1 + $0x358] sm:$0xff]
  %v137 = vld [vmem:[%s1 + $0x360] sm:$0xff]
  %v138 = vld [vmem:[%s1 + $0x368] sm:$0xff]
  %v139 = vld [vmem:[%s1 + $0x370] sm:$0xff]
  %v140 = vld [vmem:[%s1 + $0x378] sm:$0xff]
  %v141 = vld [vmem:[%s1 + $0x380] sm:$0xff]
  %v142 = vld [vmem:[%s1 + $0x388] sm:$0xff]
  %v143 = vld [vmem:[%s1 + $0x390] sm:$0xff]
  %v144 = vld [vmem:[%s1 + $0x398] sm:$0xff]
  %v145 = vld [vmem:[%s1 + $0x3a0] sm:$0xff]
  %v146 = vld [vmem:[%s1 + $0x3a8] sm:$0xff]
  %v147 = vld [vmem:[%s1 + $0x3b0] sm:$0xff]
  %v148 = vld [vmem:[%s1 + $0x3b8] sm:$0xff]
  %v149 = vld [vmem:[%s1 + $0x3c0] sm:$0xff]
  %v150 = vld [vmem:[%s1 + $0x3c8] sm:$0xff]
  %v151 = vld [vmem:[%s1 + $0x3d0] sm:$0xff]
  %v152 = vld [vmem:[%s1 + $0x3d8] sm:$0xff]
  %v153 = vld [vmem:[%s1 + $0x3e0] sm:$0xff]
  %v154 = vld [vmem:[%s1 + $0x3e8] sm:$0xff]
  %v155 = vld [vmem:[%s1 + $0x3f0] sm:$0xff]
  %v156 = vld [vmem:[%s1 + $0x3f8] sm:$0xff]
  %v157 = vld [vmem:[%s1 + $0x400] sm:$0xff]
  %v158 = vld [vmem:[%s1 + $0x408] sm:$0xff]
  %v159 = vld [vmem:[%s1 + $0x410] sm:$0xff]
  %v160 = vld [vmem:[%s1 + $0x418] sm:$0xff]
  %v161 = vld [vmem:[%s1 + $0x420] sm:$0xff]
  %v162 = vld [vmem:[%s1 + $0x428] sm:$0xff]
  %v163 = vld [vmem:[%s1 + $0x430] sm:$0xff]
  %v164 = vld [vmem:[%s1 + $0x438] sm:$0xff]
  %v165 = vld [vmem:[%s1 + $0x440] sm:$0xff]
  %v166 = vld [vmem:[%s1 + $0x448] sm:$0xff]
  %v167 = vld [vmem:[%s1 + $0x450] sm:$0xff]
  %v168 = vld [vmem:[%s1 + $0x458] sm:$0xff]
  %v169 = vld [vmem:[%s1 + $0x460] sm:$0xff]
  %v170 = vld [vmem:[%s1 + $0x468] sm:$0xff]
  %v171 = vld [vmem:[%s1 + $0x470] sm:$0xff]
  %v172 = vld [vmem:[%s1 + $0x478] sm:$0xff]
  %v173 = vld [vmem:[%s2] sm:$0x3]
  %v175 = vperm.slane %v173, 0
  %v176 = vperm.slane %v173, 1
  %180 = vst [vmem:[#allocation1] ss:$9 sm:$0xff] %v27
  %v181 = vld [vmem:[#allocation1] sm:$0xff]
  %v182 = vld [vmem:[#allocation1 + $0x9] sm:$0xff]
  %v183 = vld [vmem:[#allocation1 + $0x12] sm:$0xff]
  %v184 = vld [vmem:[#allocation1 + $0x1b] sm:$0xff]
  %v185 = vld [vmem:[#allocation1 + $0x24] sm:$0xff]
  %v186 = vld [vmem:[#allocation1 + $0x2d] sm:$0xff]
  %v187 = vld [vmem:[#allocation1 + $0x36] sm:$0xff]
  %v188 = vld [vmem:[#allocation1 + $0x3f] sm:$0xff]
  %190 = vst [vmem:[#allocation1] ss:$9 sm:$0xff] %v28
  %v191 = vld [vmem:[#allocation1] sm:$0xff]
  %v345 = vunpack.c.l.b16 %v29
  %v346 = vunpack.c.h.b16 %v29
  %v347 = vunpack.c.l.b16 %v30
  %v348 = vunpack.c.h.b16 %v30
  %v349 = vunpack.c.l.b16 %v31
  %v350 = vunpack.c.h.b16 %v31
  %v351 = vunpack.c.l.b16 %v32
  %v352 = vunpack.c.h.b16 %v32
  %v353 = vunpack.c.l.b16 %v33
  %v354 = vunpack.c.h.b16 %v33
  %v355 = vunpack.c.l.b16 %v34
  %v356 = vunpack.c.h.b16 %v34
  %v357 = vunpack.c.l.b16 %v35
  %v358 = vunpack.c.h.b16 %v35
  %v359 = vunpack.c.l.b16 %v36
  %v360 = vunpack.c.h.b16 %v36
  %v361 = vunpack.c.l.b16 %v37
  %v362 = vunpack.c.h.b16 %v37
  %v363 = vunpack.c.l.b16 %v38
  %v364 = vunpack.c.h.b16 %v38
  %v365 = vunpack.c.l.b16 %v39
  %v366 = vunpack.c.h.b16 %v39
  %v367 = vunpack.c.l.b16 %v40
  %v368 = vunpack.c.h.b16 %v40
  %v369 = vunpack.c.l.b16 %v41
  %v370 = vunpack.c.h.b16 %v41
  %v371 = vunpack.c.l.b16 %v42
  %v372 = vunpack.c.h.b16 %v42
  %v373 = vunpack.c.l.b16 %v43
  %v374 = vunpack.c.h.b16 %v43
  %v375 = vunpack.c.l.b16 %v44
  %v376 = vunpack.c.h.b16 %v44
  %v377 = vunpack.c.l.b16 %v45
  %v378 = vunpack.c.h.b16 %v45
  %v379 = vunpack.c.l.b16 %v46
  %v380 = vunpack.c.h.b16 %v46
  %v381 = vunpack.c.l.b16 %v47
  %v382 = vunpack.c.h.b16 %v47
  %v383 = vunpack.c.l.b16 %v48
  %v384 = vunpack.c.h.b16 %v48
  %v385 = vunpack.c.l.b16 %v49
  %v386 = vunpack.c.h.b16 %v49
  %v387 = vunpack.c.l.b16 %v50
  %v388 = vunpack.c.h.b16 %v50
  %v389 = vunpack.c.l.b16 %v51
  %v390 = vunpack.c.h.b16 %v51
  %v391 = vunpack.c.l.b16 %v52
  %v392 = vunpack.c.h.b16 %v52
  %v393 = vunpack.c.l.b16 %v53
  %v394 = vunpack.c.h.b16 %v53
  %v395 = vunpack.c.l.b16 %v54
  %v396 = vunpack.c.h.b16 %v54
  %v397 = vunpack.c.l.b16 %v55
  %v398 = vunpack.c.h.b16 %v55
  %v399 = vunpack.c.l.b16 %v56
  %v400 = vunpack.c.h.b16 %v56
  %v401 = vunpack.c.l.b16 %v57
  %v402 = vunpack.c.h.b16 %v57
  %v403 = vunpack.c.l.b16 %v58
  %v404 = vunpack.c.h.b16 %v58
  %v405 = vunpack.c.l.b16 %v59
  %v406 = vunpack.c.h.b16 %v59
  %v407 = vunpack.c.l.b16 %v60
  %v408 = vunpack.c.h.b16 %v60
  %v409 = vunpack.c.l.b16 %v61
  %v410 = vunpack.c.h.b16 %v61
  %v411 = vunpack.c.l.b16 %v62
  %v412 = vunpack.c.h.b16 %v62
  %v413 = vunpack.c.l.b16 %v63
  %v414 = vunpack.c.h.b16 %v63
  %v415 = vunpack.c.l.b16 %v64
  %v416 = vunpack.c.h.b16 %v64
  %v417 = vunpack.c.l.b16 %v65
  %v418 = vunpack.c.h.b16 %v65
  %v419 = vunpack.c.l.b16 %v66
  %v420 = vunpack.c.h.b16 %v66
  %v421 = vunpack.c.l.b16 %v67
  %v422 = vunpack.c.h.b16 %v67
  %v423 = vunpack.c.l.b16 %v68
  %v424 = vunpack.c.h.b16 %v68
  %v425 = vunpack.c.l.b16 %v69
  %v426 = vunpack.c.h.b16 %v69
  %v427 = vunpack.c.l.b16 %v70
  %v428 = vunpack.c.h.b16 %v70
  %v429 = vunpack.c.l.b16 %v71
  %v430 = vunpack.c.h.b16 %v71
  %v431 = vunpack.c.l.b16 %v72
  %v432 = vunpack.c.h.b16 %v72
  %v433 = vunpack.c.l.b16 %v73
  %v434 = vunpack.c.h.b16 %v73
  %v435 = vunpack.c.l.b16 %v74
  %v436 = vunpack.c.h.b16 %v74
  %v437 = vunpack.c.l.b16 %v75
  %v438 = vunpack.c.h.b16 %v75
  %v439 = vunpack.c.l.b16 %v76
  %v440 = vunpack.c.h.b16 %v76
  %v441 = vunpack.c.l.b16 %v77
  %v442 = vunpack.c.h.b16 %v77
  %v443 = vunpack.c.l.b16 %v78
  %v444 = vunpack.c.h.b16 %v78
  %v445 = vunpack.c.l.b16 %v79
  %v446 = vunpack.c.h.b16 %v79
  %v447 = vunpack.c.l.b16 %v80
  %v448 = vunpack.c.h.b16 %v80
  %v449 = vunpack.c.l.b16 %v81
  %v450 = vunpack.c.h.b16 %v81
  %v451 = vunpack.c.l.b16 %v82
  %v452 = vunpack.c.h.b16 %v82
  %v453 = vunpack.c.l.b16 %v83
  %v454 = vunpack.c.h.b16 %v83
  %v455 = vunpack.c.l.b16 %v84
  %v456 = vunpack.c.h.b16 %v84
  %v457 = vunpack.c.l.b16 %v85
  %v458 = vunpack.c.h.b16 %v85
  %v459 = vunpack.c.l.b16 %v86
  %v460 = vunpack.c.h.b16 %v86
  %v461 = vunpack.c.l.b16 %v87
  %v462 = vunpack.c.h.b16 %v87
  %v463 = vunpack.c.l.b16 %v88
  %v464 = vunpack.c.h.b16 %v88
  %v465 = vunpack.c.l.b16 %v89
  %v466 = vunpack.c.h.b16 %v89
  %v467 = vunpack.c.l.b16 %v90
  %v468 = vunpack.c.h.b16 %v90
  %v469 = vunpack.c.l.b16 %v91
  %v470 = vunpack.c.h.b16 %v91
  %v471 = vunpack.c.l.b16 %v92
  %v472 = vunpack.c.h.b16 %v92
  %v473 = vunpack.c.l.b16 %v93
  %v474 = vunpack.c.h.b16 %v93
  %v475 = vunpack.c.l.b16 %v94
  %v476 = vunpack.c.h.b16 %v94
  %v477 = vunpack.c.l.b16 %v95
  %v478 = vunpack.c.h.b16 %v95
  %v479 = vunpack.c.l.b16 %v96
  %v480 = vunpack.c.h.b16 %v96
  %v481 = vunpack.c.l.b16 %v97
  %v482 = vunpack.c.h.b16 %v97
  %v483 = vunpack.c.l.b16 %v98
  %v484 = vunpack.c.h.b16 %v98
  %v485 = vunpack.c.l.b16 %v99
  %v486 = vunpack.c.h.b16 %v99
  %v487 = vunpack.c.l.b16 %v100
  %v488 = vunpack.c.h.b16 %v100
  %v489 = vunpack.c.l.b16 %v101
  %v490 = vunpack.c.h.b16 %v101
  %v491 = vunpack.c.l.b16 %v102
  %v492 = vunpack.c.h.b16 %v102
  %v493 = vunpack.c.l.b16 %v103
  %v494 = vunpack.c.h.b16 %v103
  %v495 = vunpack.c.l.b16 %v104
  %v496 = vunpack.c.h.b16 %v104
  %v497 = vunpack.c.l.b16 %v105
  %v498 = vunpack.c.h.b16 %v105
  %v499 = vunpack.c.l.b16 %v106
  %v500 = vunpack.c.h.b16 %v106
  %v501 = vunpack.c.l.b16 %v107
  %v502 = vunpack.c.h.b16 %v107
  %v503 = vunpack.c.l.b16 %v108
  %v504 = vunpack.c.h.b16 %v108
  %v505 = vunpack.c.l.b16 %v109
  %v506 = vunpack.c.h.b16 %v109
  %v507 = vunpack.c.l.b16 %v110
  %v508 = vunpack.c.h.b16 %v110
  %v509 = vunpack.c.l.b16 %v111
  %v510 = vunpack.c.h.b16 %v111
  %v511 = vunpack.c.l.b16 %v112
  %v512 = vunpack.c.h.b16 %v112
  %v513 = vunpack.c.l.b16 %v113
  %v514 = vunpack.c.h.b16 %v113
  %v515 = vunpack.c.l.b16 %v114
  %v516 = vunpack.c.h.b16 %v114
  %v517 = vunpack.c.l.b16 %v115
  %v518 = vunpack.c.h.b16 %v115
  %v519 = vunpack.c.l.b16 %v116
  %v520 = vunpack.c.h.b16 %v116
  %v521 = vunpack.c.l.b16 %v117
  %v522 = vunpack.c.h.b16 %v117
  %v523 = vunpack.c.l.b16 %v118
  %v524 = vunpack.c.h.b16 %v118
  %v525 = vunpack.c.l.b16 %v119
  %v526 = vunpack.c.h.b16 %v119
  %v527 = vunpack.c.l.b16 %v120
  %v528 = vunpack.c.h.b16 %v120
  %v529 = vunpack.c.l.b16 %v121
  %v530 = vunpack.c.h.b16 %v121
  %v531 = vunpack.c.l.b16 %v122
  %v532 = vunpack.c.h.b16 %v122
  %v533 = vunpack.c.l.b16 %v123
  %v534 = vunpack.c.h.b16 %v123
  %v535 = vunpack.c.l.b16 %v124
  %v536 = vunpack.c.h.b16 %v124
  %v537 = vunpack.c.l.b16 %v125
  %v538 = vunpack.c.h.b16 %v125
  %v539 = vunpack.c.l.b16 %v126
  %v540 = vunpack.c.h.b16 %v126
  %v541 = vunpack.c.l.b16 %v127
  %v542 = vunpack.c.h.b16 %v127
  %v543 = vunpack.c.l.b16 %v128
  %v544 = vunpack.c.h.b16 %v128
  %v545 = vunpack.c.l.b16 %v129
  %v546 = vunpack.c.h.b16 %v129
  %v547 = vunpack.c.l.b16 %v130
  %v548 = vunpack.c.h.b16 %v130
  %v549 = vunpack.c.l.b16 %v131
  %v550 = vunpack.c.h.b16 %v131
  %v551 = vunpack.c.l.b16 %v132
  %v552 = vunpack.c.h.b16 %v132
  %v553 = vunpack.c.l.b16 %v133
  %v554 = vunpack.c.h.b16 %v133
  %v555 = vunpack.c.l.b16 %v134
  %v556 = vunpack.c.h.b16 %v134
  %v557 = vunpack.c.l.b16 %v135
  %v558 = vunpack.c.h.b16 %v135
  %v559 = vunpack.c.l.b16 %v136
  %v560 = vunpack.c.h.b16 %v136
  %v561 = vunpack.c.l.b16 %v137
  %v562 = vunpack.c.h.b16 %v137
  %v563 = vunpack.c.l.b16 %v138
  %v564 = vunpack.c.h.b16 %v138
  %v565 = vunpack.c.l.b16 %v139
  %v566 = vunpack.c.h.b16 %v139
  %v567 = vunpack.c.l.b16 %v140
  %v568 = vunpack.c.h.b16 %v140
  %v569 = vunpack.c.l.b16 %v141
  %v570 = vunpack.c.h.b16 %v141
  %v571 = vunpack.c.l.b16 %v142
  %v572 = vunpack.c.h.b16 %v142
  %v573 = vunpack.c.l.b16 %v143
  %v574 = vunpack.c.h.b16 %v143
  %v575 = vunpack.c.l.b16 %v144
  %v576 = vunpack.c.h.b16 %v144
  %v577 = vunpack.c.l.b16 %v145
  %v578 = vunpack.c.h.b16 %v145
  %v579 = vunpack.c.l.b16 %v146
  %v580 = vunpack.c.h.b16 %v146
  %v581 = vunpack.c.l.b16 %v147
  %v582 = vunpack.c.h.b16 %v147
  %v583 = vunpack.c.l.b16 %v148
  %v584 = vunpack.c.h.b16 %v148
  %v585 = vunpack.c.l.b16 %v149
  %v586 = vunpack.c.h.b16 %v149
  %v587 = vunpack.c.l.b16 %v150
  %v588 = vunpack.c.h.b16 %v150
  %v589 = vunpack.c.l.b16 %v151
  %v590 = vunpack.c.h.b16 %v151
  %v591 = vunpack.c.l.b16 %v152
  %v592 = vunpack.c.h.b16 %v152
  %v593 = vunpack.c.l.b16 %v153
  %v594 = vunpack.c.h.b16 %v153
  %v595 = vunpack.c.l.b16 %v154
  %v596 = vunpack.c.h.b16 %v154
  %v597 = vunpack.c.l.b16 %v155
  %v598 = vunpack.c.h.b16 %v155
  %v599 = vunpack.c.l.b16 %v156
  %v600 = vunpack.c.h.b16 %v156
  %v601 = vunpack.c.l.b16 %v157
  %v602 = vunpack.c.h.b16 %v157
  %v603 = vunpack.c.l.b16 %v158
  %v604 = vunpack.c.h.b16 %v158
  %v605 = vunpack.c.l.b16 %v159
  %v606 = vunpack.c.h.b16 %v159
  %v607 = vunpack.c.l.b16 %v160
  %v608 = vunpack.c.h.b16 %v160
  %v609 = vunpack.c.l.b16 %v161
  %v610 = vunpack.c.h.b16 %v161
  %v611 = vunpack.c.l.b16 %v162
  %v612 = vunpack.c.h.b16 %v162
  %v613 = vunpack.c.l.b16 %v163
  %v614 = vunpack.c.h.b16 %v163
  %v615 = vunpack.c.l.b16 %v164
  %v616 = vunpack.c.h.b16 %v164
  %v617 = vunpack.c.l.b16 %v165
  %v618 = vunpack.c.h.b16 %v165
  %v619 = vunpack.c.l.b16 %v166
  %v620 = vunpack.c.h.b16 %v166
  %v621 = vunpack.c.l.b16 %v167
  %v622 = vunpack.c.h.b16 %v167
  %v623 = vunpack.c.l.b16 %v168
  %v624 = vunpack.c.h.b16 %v168
  %v625 = vunpack.c.l.b16 %v169
  %v626 = vunpack.c.h.b16 %v169
  %v627 = vunpack.c.l.b16 %v170
  %v628 = vunpack.c.h.b16 %v170
  %v629 = vunpack.c.l.b16 %v171
  %v630 = vunpack.c.h.b16 %v171
  %v631 = vunpack.c.l.b16 %v172
  %v632 = vunpack.c.h.b16 %v172
  %v633 = vpack.c.b16 %v347, %v345
  %v634 = vpack.c.b16 %v348, %v346
  %v635 = vpack.c.b16 %v351, %v349
  %v636 = vpack.c.b16 %v352, %v350
  %v637 = vpack.c.b16 %v355, %v353
  %v638 = vpack.c.b16 %v356, %v354
  %v639 = vpack.c.b16 %v359, %v357
  %v640 = vpack.c.b16 %v360, %v358
  %v641 = vpack.c.b16 %v363, %v361
  %v642 = vpack.c.b16 %v364, %v362
  %v643 = vpack.c.b16 %v367, %v365
  %v644 = vpack.c.b16 %v368, %v366
  %v645 = vpack.c.b16 %v371, %v369
  %v646 = vpack.c.b16 %v372, %v370
  %v647 = vpack.c.b16 %v375, %v373
  %v648 = vpack.c.b16 %v376, %v374
  %v649 = vpack.c.b16 %v379, %v377
  %v650 = vpack.c.b16 %v380, %v378
  %v651 = vpack.c.b16 %v383, %v381
  %v652 = vpack.c.b16 %v384, %v382
  %v653 = vpack.c.b16 %v387, %v385
  %v654 = vpack.c.b16 %v388, %v386
  %v655 = vpack.c.b16 %v391, %v389
  %v656 = vpack.c.b16 %v392, %v390
  %v657 = vpack.c.b16 %v395, %v393
  %v658 = vpack.c.b16 %v396, %v394
  %v659 = vpack.c.b16 %v399, %v397
  %v660 = vpack.c.b16 %v400, %v398
  %v661 = vpack.c.b16 %v403, %v401
  %v662 = vpack.c.b16 %v404, %v402
  %v663 = vpack.c.b16 %v407, %v405
  %v664 = vpack.c.b16 %v408, %v406
  %v665 = vpack.c.b16 %v411, %v409
  %v666 = vpack.c.b16 %v412, %v410
  %v667 = vpack.c.b16 %v415, %v413
  %v668 = vpack.c.b16 %v416, %v414
  %v669 = vpack.c.b16 %v419, %v417
  %v670 = vpack.c.b16 %v420, %v418
  %v671 = vpack.c.b16 %v423, %v421
  %v672 = vpack.c.b16 %v424, %v422
  %v673 = vpack.c.b16 %v427, %v425
  %v674 = vpack.c.b16 %v428, %v426
  %v675 = vpack.c.b16 %v431, %v429
  %v676 = vpack.c.b16 %v432, %v430
  %v677 = vpack.c.b16 %v435, %v433
  %v678 = vpack.c.b16 %v436, %v434
  %v679 = vpack.c.b16 %v439, %v437
  %v680 = vpack.c.b16 %v440, %v438
  %v681 = vpack.c.b16 %v443, %v441
  %v682 = vpack.c.b16 %v444, %v442
  %v683 = vpack.c.b16 %v447, %v445
  %v684 = vpack.c.b16 %v448, %v446
  %v685 = vpack.c.b16 %v451, %v449
  %v686 = vpack.c.b16 %v452, %v450
  %v687 = vpack.c.b16 %v455, %v453
  %v688 = vpack.c.b16 %v456, %v454
  %v689 = vpack.c.b16 %v459, %v457
  %v690 = vpack.c.b16 %v460, %v458
  %v691 = vpack.c.b16 %v463, %v461
  %v692 = vpack.c.b16 %v464, %v462
  %v693 = vpack.c.b16 %v467, %v465
  %v694 = vpack.c.b16 %v468, %v466
  %v695 = vpack.c.b16 %v471, %v469
  %v696 = vpack.c.b16 %v472, %v470
  %v697 = vpack.c.b16 %v475, %v473
  %v698 = vpack.c.b16 %v476, %v474
  %v699 = vpack.c.b16 %v479, %v477
  %v700 = vpack.c.b16 %v480, %v478
  %v701 = vpack.c.b16 %v483, %v481
  %v702 = vpack.c.b16 %v484, %v482
  %v703 = vpack.c.b16 %v487, %v485
  %v704 = vpack.c.b16 %v488, %v486
  %v705 = vpack.c.b16 %v491, %v489
  %v706 = vpack.c.b16 %v492, %v490
  %v707 = vpack.c.b16 %v495, %v493
  %v708 = vpack.c.b16 %v496, %v494
  %v709 = vpack.c.b16 %v499, %v497
  %v710 = vpack.c.b16 %v500, %v498
  %v711 = vpack.c.b16 %v503, %v501
  %v712 = vpack.c.b16 %v504, %v502
  %v713 = vpack.c.b16 %v507, %v505
  %v714 = vpack.c.b16 %v508, %v506
  %v715 = vpack.c.b16 %v511, %v509
  %v716 = vpack.c.b16 %v512, %v510
  %v717 = vpack.c.b16 %v515, %v513
  %v718 = vpack.c.b16 %v516, %v514
  %v719 = vpack.c.b16 %v519, %v517
  %v720 = vpack.c.b16 %v520, %v518
  %v721 = vpack.c.b16 %v523, %v521
  %v722 = vpack.c.b16 %v524, %v522
  %v723 = vpack.c.b16 %v527, %v525
  %v724 = vpack.c.b16 %v528, %v526
  %v725 = vpack.c.b16 %v531, %v529
  %v726 = vpack.c.b16 %v532, %v530
  %v727 = vpack.c.b16 %v535, %v533
  %v728 = vpack.c.b16 %v536, %v534
  %v729 = vpack.c.b16 %v539, %v537
  %v730 = vpack.c.b16 %v540, %v538
  %v731 = vpack.c.b16 %v543, %v541
  %v732 = vpack.c.b16 %v544, %v542
  %v733 = vpack.c.b16 %v547, %v545
  %v734 = vpack.c.b16 %v548, %v546
  %v735 = vpack.c.b16 %v551, %v549
  %v736 = vpack.c.b16 %v552, %v550
  %v737 = vpack.c.b16 %v555, %v553
  %v738 = vpack.c.b16 %v556, %v554
  %v739 = vpack.c.b16 %v559, %v557
  %v740 = vpack.c.b16 %v560, %v558
  %v741 = vpack.c.b16 %v563, %v561
  %v742 = vpack.c.b16 %v564, %v562
  %v743 = vpack.c.b16 %v567, %v565
  %v744 = vpack.c.b16 %v568, %v566
  %v745 = vpack.c.b16 %v571, %v569
  %v746 = vpack.c.b16 %v572, %v570
  %v747 = vpack.c.b16 %v575, %v573
  %v748 = vpack.c.b16 %v576, %v574
  %v749 = vpack.c.b16 %v579, %v577
  %v750 = vpack.c.b16 %v580, %v578
  %v751 = vpack.c.b16 %v583, %v581
  %v752 = vpack.c.b16 %v584, %v582
  %v753 = vpack.c.b16 %v587, %v585
  %v754 = vpack.c.b16 %v588, %v586
  %v755 = vpack.c.b16 %v591, %v589
  %v756 = vpack.c.b16 %v592, %v590
  %v757 = vpack.c.b16 %v595, %v593
  %v758 = vpack.c.b16 %v596, %v594
  %v759 = vpack.c.b16 %v599, %v597
  %v760 = vpack.c.b16 %v600, %v598
  %v761 = vpack.c.b16 %v603, %v601
  %v762 = vpack.c.b16 %v604, %v602
  %v763 = vpack.c.b16 %v607, %v605
  %v764 = vpack.c.b16 %v608, %v606
  %v765 = vpack.c.b16 %v611, %v609
  %v766 = vpack.c.b16 %v612, %v610
  %v767 = vpack.c.b16 %v615, %v613
  %v768 = vpack.c.b16 %v616, %v614
  %v769 = vpack.c.b16 %v619, %v617
  %v770 = vpack.c.b16 %v620, %v618
  %v771 = vpack.c.b16 %v623, %v621
  %v772 = vpack.c.b16 %v624, %v622
  %v773 = vpack.c.b16 %v627, %v625
  %v774 = vpack.c.b16 %v628, %v626
  %v775 = vpack.c.b16 %v631, %v629
  %v776 = vpack.c.b16 %v632, %v630
  %921 = vmatpush.bf16.msra.mxu0 %v647
  %922 = vmatpush.bf16.msra.mxu0 %v645
  %923 = vmatpush.bf16.msra.mxu0 %v643
  %924 = vmatpush.bf16.msra.mxu0 %v641
  %925 = vmatpush.bf16.msra.mxu0 %v639
  %926 = vmatpush.bf16.msra.mxu0 %v637
  %927 = vmatpush.bf16.msra.mxu0 %v635
  %928 = vmatpush.bf16.msra.mxu0 %v633
  %929 = vmatmul.bf16.gmra.mxu0 %v181
  %v930 = vpop.f32.mrf.mxu0
  %v931 = vadd.f32 %v175, %v930
  %v932 = vpop.f32.mrf.mxu0
  %933 = vdwg.mxu0
  %934 = vmatpush.bf16.msra.mxu0 %v663
  %935 = vmatpush.bf16.msra.mxu0 %v661
  %936 = vmatpush.bf16.msra.mxu0 %v659
  %937 = vmatpush.bf16.msra.mxu0 %v657
  %938 = vmatpush.bf16.msra.mxu0 %v655
  %939 = vmatpush.bf16.msra.mxu0 %v653
  %940 = vmatpush.bf16.msra.mxu0 %v651
  %941 = vmatpush.bf16.msra.mxu0 %v649
  %942 = vmatmul.bf16.gmra.mxu0 %v182
  %v943 = vpop.f32.mrf.mxu0
  %v944 = vadd.f32 %v931, %v943
  %v945 = vpop.f32.mrf.mxu0
  %946 = vdwg.mxu0
  %947 = vmatpush.bf16.msra.mxu0 %v679
  %948 = vmatpush.bf16.msra.mxu0 %v677
  %949 = vmatpush.bf16.msra.mxu0 %v675
  %950 = vmatpush.bf16.msra.mxu0 %v673
  %951 = vmatpush.bf16.msra.mxu0 %v671
  %952 = vmatpush.bf16.msra.mxu0 %v669
  %953 = vmatpush.bf16.msra.mxu0 %v667
  %954 = vmatpush.bf16.msra.mxu0 %v665
  %955 = vmatmul.bf16.gmra.mxu0 %v183
  %v956 = vpop.f32.mrf.mxu0
  %v957 = vadd.f32 %v944, %v956
  %v958 = vpop.f32.mrf.mxu0
  %959 = vdwg.mxu0
  %960 = vmatpush.bf16.msra.mxu0 %v695
  %961 = vmatpush.bf16.msra.mxu0 %v693
  %962 = vmatpush.bf16.msra.mxu0 %v691
  %963 = vmatpush.bf16.msra.mxu0 %v689
  %964 = vmatpush.bf16.msra.mxu0 %v687
  %965 = vmatpush.bf16.msra.mxu0 %v685
  %966 = vmatpush.bf16.msra.mxu0 %v683
  %967 = vmatpush.bf16.msra.mxu0 %v681
  %968 = vmatmul.bf16.gmra.mxu0 %v184
  %v969 = vpop.f32.mrf.mxu0
  %v970 = vadd.f32 %v957, %v969
  %v971 = vpop.f32.mrf.mxu0
  %972 = vdwg.mxu0
  %973 = vmatpush.bf16.msra.mxu0 %v711
  %974 = vmatpush.bf16.msra.mxu0 %v709
  %975 = vmatpush.bf16.msra.mxu0 %v707
  %976 = vmatpush.bf16.msra.mxu0 %v705
  %977 = vmatpush.bf16.msra.mxu0 %v703
  %978 = vmatpush.bf16.msra.mxu0 %v701
  %979 = vmatpush.bf16.msra.mxu0 %v699
  %980 = vmatpush.bf16.msra.mxu0 %v697
  %981 = vmatmul.bf16.gmra.mxu0 %v185
  %v982 = vpop.f32.mrf.mxu0
  %v983 = vadd.f32 %v970, %v982
  %v984 = vpop.f32.mrf.mxu0
  %985 = vdwg.mxu0
  %986 = vmatpush.bf16.msra.mxu0 %v727
  %987 = vmatpush.bf16.msra.mxu0 %v725
  %988 = vmatpush.bf16.msra.mxu0 %v723
  %989 = vmatpush.bf16.msra.mxu0 %v721
  %990 = vmatpush.bf16.msra.mxu0 %v719
  %991 = vmatpush.bf16.msra.mxu0 %v717
  %992 = vmatpush.bf16.msra.mxu0 %v715
  %993 = vmatpush.bf16.msra.mxu0 %v713
  %994 = vmatmul.bf16.gmra.mxu0 %v186
  %v995 = vpop.f32.mrf.mxu0
  %v996 = vadd.f32 %v983, %v995
  %v997 = vpop.f32.mrf.mxu0
  %998 = vdwg.mxu0
  %999 = vmatpush.bf16.msra.mxu0 %v743
  %1000 = vmatpush.bf16.msra.mxu0 %v741
  %1001 = vmatpush.bf16.msra.mxu0 %v739
  %1002 = vmatpush.bf16.msra.mxu0 %v737
  %1003 = vmatpush.bf16.msra.mxu0 %v735
  %1004 = vmatpush.bf16.msra.mxu0 %v733
  %1005 = vmatpush.bf16.msra.mxu0 %v731
  %1006 = vmatpush.bf16.msra.mxu0 %v729
  %1007 = vmatmul.bf16.gmra.mxu0 %v187
  %v1008 = vpop.f32.mrf.mxu0
  %v1009 = vadd.f32 %v996, %v1008
  %v1010 = vpop.f32.mrf.mxu0
  %1011 = vdwg.mxu0
  %1012 = vmatpush.bf16.msra.mxu0 %v759
  %1013 = vmatpush.bf16.msra.mxu0 %v757
  %1014 = vmatpush.bf16.msra.mxu0 %v755
  %1015 = vmatpush.bf16.msra.mxu0 %v753
  %1016 = vmatpush.bf16.msra.mxu0 %v751
  %1017 = vmatpush.bf16.msra.mxu0 %v749
  %1018 = vmatpush.bf16.msra.mxu0 %v747
  %1019 = vmatpush.bf16.msra.mxu0 %v745
  %1020 = vmatmul.bf16.gmra.mxu0 %v188
  %v1021 = vpop.f32.mrf.mxu0
  %v1022 = vadd.f32 %v1009, %v1021
  %v1023 = vpop.f32.mrf.mxu0
  %1024 = vdwg.mxu0
  %1025 = vmatpush.bf16.msra.mxu0 %v775
  %1026 = vmatpush.bf16.msra.mxu0 %v773
  %1027 = vmatpush.bf16.msra.mxu0 %v771
  %1028 = vmatpush.bf16.msra.mxu0 %v769
  %1029 = vmatpush.bf16.msra.mxu0 %v767
  %1030 = vmatpush.bf16.msra.mxu0 %v765
  %1031 = vmatpush.bf16.msra.mxu0 %v763
  %1032 = vmatpush.bf16.msra.mxu0 %v761
  %1033 = vmatmul.bf16.gmra.mxu0 %v191
  %v1034 = vpop.f32.mrf.mxu0
  %v1035 = vadd.f32 %v1022, %v1034
  %v1036 = vpop.f32.mrf.mxu0
  %1037 = vdwg.mxu0
  %1038 = vmatpush.bf16.msra.mxu0 %v648
  %1039 = vmatpush.bf16.msra.mxu0 %v646
  %1040 = vmatpush.bf16.msra.mxu0 %v644
  %1041 = vmatpush.bf16.msra.mxu0 %v642
  %1042 = vmatpush.bf16.msra.mxu0 %v640
  %1043 = vmatpush.bf16.msra.mxu0 %v638
  %1044 = vmatpush.bf16.msra.mxu0 %v636
  %1045 = vmatpush.bf16.msra.mxu0 %v634
  %1046 = vmatmul.bf16.gmra.mxu0 %v181
  %v1047 = vpop.f32.mrf.mxu0
  %v1048 = vadd.f32 %v176, %v1047
  %v1049 = vpop.f32.mrf.mxu0
  %1050 = vdwg.mxu0
  %1051 = vmatpush.bf16.msra.mxu0 %v664
  %1052 = vmatpush.bf16.msra.mxu0 %v662
  %1053 = vmatpush.bf16.msra.mxu0 %v660
  %1054 = vmatpush.bf16.msra.mxu0 %v658
  %1055 = vmatpush.bf16.msra.mxu0 %v656
  %1056 = vmatpush.bf16.msra.mxu0 %v654
  %1057 = vmatpush.bf16.msra.mxu0 %v652
  %1058 = vmatpush.bf16.msra.mxu0 %v650
  %1059 = vmatmul.bf16.gmra.mxu0 %v182
  %v1060 = vpop.f32.mrf.mxu0
  %v1061 = vadd.f32 %v1048, %v1060
  %v1062 = vpop.f32.mrf.mxu0
  %1063 = vdwg.mxu0
  %1064 = vmatpush.bf16.msra.mxu0 %v680
  %1065 = vmatpush.bf16.msra.mxu0 %v678
  %1066 = vmatpush.bf16.msra.mxu0 %v676
  %1067 = vmatpush.bf16.msra.mxu0 %v674
  %1068 = vmatpush.bf16.msra.mxu0 %v672
  %1069 = vmatpush.bf16.msra.mxu0 %v670
  %1070 = vmatpush.bf16.msra.mxu0 %v668
  %1071 = vmatpush.bf16.msra.mxu0 %v666
  %1072 = vmatmul.bf16.gmra.mxu0 %v183
  %v1073 = vpop.f32.mrf.mxu0
  %v1074 = vadd.f32 %v1061, %v1073
  %v1075 = vpop.f32.mrf.mxu0
  %1076 = vdwg.mxu0
  %1077 = vmatpush.bf16.msra.mxu0 %v696
  %1078 = vmatpush.bf16.msra.mxu0 %v694
  %1079 = vmatpush.bf16.msra.mxu0 %v692
  %1080 = vmatpush.bf16.msra.mxu0 %v690
  %1081 = vmatpush.bf16.msra.mxu0 %v688
  %1082 = vmatpush.bf16.msra.mxu0 %v686
  %1083 = vmatpush.bf16.msra.mxu0 %v684
  %1084 = vmatpush.bf16.msra.mxu0 %v682
  %1085 = vmatmul.bf16.gmra.mxu0 %v184
  %v1086 = vpop.f32.mrf.mxu0
  %v1087 = vadd.f32 %v1074, %v1086
  %v1088 = vpop.f32.mrf.mxu0
  %1089 = vdwg.mxu0
  %1090 = vmatpush.bf16.msra.mxu0 %v712
  %1091 = vmatpush.bf16.msra.mxu0 %v710
  %1092 = vmatpush.bf16.msra.mxu0 %v708
  %1093 = vmatpush.bf16.msra.mxu0 %v706
  %1094 = vmatpush.bf16.msra.mxu0 %v704
  %1095 = vmatpush.bf16.msra.mxu0 %v702
  %1096 = vmatpush.bf16.msra.mxu0 %v700
  %1097 = vmatpush.bf16.msra.mxu0 %v698
  %1098 = vmatmul.bf16.gmra.mxu0 %v185
  %v1099 = vpop.f32.mrf.mxu0
  %v1100 = vadd.f32 %v1087, %v1099
  %v1101 = vpop.f32.mrf.mxu0
  %1102 = vdwg.mxu0
  %1103 = vmatpush.bf16.msra.mxu0 %v728
  %1104 = vmatpush.bf16.msra.mxu0 %v726
  %1105 = vmatpush.bf16.msra.mxu0 %v724
  %1106 = vmatpush.bf16.msra.mxu0 %v722
  %1107 = vmatpush.bf16.msra.mxu0 %v720
  %1108 = vmatpush.bf16.msra.mxu0 %v718
  %1109 = vmatpush.bf16.msra.mxu0 %v716
  %1110 = vmatpush.bf16.msra.mxu0 %v714
  %1111 = vmatmul.bf16.gmra.mxu0 %v186
  %v1112 = vpop.f32.mrf.mxu0
  %v1113 = vadd.f32 %v1100, %v1112
  %v1114 = vpop.f32.mrf.mxu0
  %1115 = vdwg.mxu0
  %1116 = vmatpush.bf16.msra.mxu0 %v744
  %1117 = vmatpush.bf16.msra.mxu0 %v742
  %1118 = vmatpush.bf16.msra.mxu0 %v740
  %1119 = vmatpush.bf16.msra.mxu0 %v738
  %1120 = vmatpush.bf16.msra.mxu0 %v736
  %1121 = vmatpush.bf16.msra.mxu0 %v734
  %1122 = vmatpush.bf16.msra.mxu0 %v732
  %1123 = vmatpush.bf16.msra.mxu0 %v730
  %1124 = vmatmul.bf16.gmra.mxu0 %v187
  %v1125 = vpop.f32.mrf.mxu0
  %v1126 = vadd.f32 %v1113, %v1125
  %v1127 = vpop.f32.mrf.mxu0
  %1128 = vdwg.mxu0
  %1129 = vmatpush.bf16.msra.mxu0 %v760
  %1130 = vmatpush.bf16.msra.mxu0 %v758
  %1131 = vmatpush.bf16.msra.mxu0 %v756
  %1132 = vmatpush.bf16.msra.mxu0 %v754
  %1133 = vmatpush.bf16.msra.mxu0 %v752
  %1134 = vmatpush.bf16.msra.mxu0 %v750
  %1135 = vmatpush.bf16.msra.mxu0 %v748
  %1136 = vmatpush.bf16.msra.mxu0 %v746
  %1137 = vmatmul.bf16.gmra.mxu0 %v188
  %v1138 = vpop.f32.mrf.mxu0
  %v1139 = vadd.f32 %v1126, %v1138
  %v1140 = vpop.f32.mrf.mxu0
  %1141 = vdwg.mxu0
  %1142 = vmatpush.bf16.msra.mxu0 %v776
  %1143 = vmatpush.bf16.msra.mxu0 %v774
  %1144 = vmatpush.bf16.msra.mxu0 %v772
  %1145 = vmatpush.bf16.msra.mxu0 %v770
  %1146 = vmatpush.bf16.msra.mxu0 %v768
  %1147 = vmatpush.bf16.msra.mxu0 %v766
  %1148 = vmatpush.bf16.msra.mxu0 %v764
  %1149 = vmatpush.bf16.msra.mxu0 %v762
  %1150 = vmatmul.bf16.gmra.mxu0 %v191
  %v1151 = vpop.f32.mrf.mxu0
  %v1152 = vadd.f32 %v1139, %v1151
  %v1153 = vpop.f32.mrf.mxu0
  %1154 = vdwg.mxu0
  %v1155 = vmax.f32 %v1035, 0.0
  %v1156 = vmax.f32 %v1152, 0.0
  %v1157 = vpack.c.bf16 %v1155, %v1155
  %v1158 = vpack.c.bf16 %v1156, %v1156
  %v1159 = vld [vmem:[%s3] sm:$0xff]
  %v1160 = vld [vmem:[%s3 + $0x8] sm:$0xff]
  %v1161 = vld [vmem:[%s3 + $0x10] sm:$0xff]
  %v1162 = vld [vmem:[%s3 + $0x18] sm:$0xff]
  %v1163 = vld [vmem:[%s3 + $0x20] sm:$0xff]
  %v1164 = vld [vmem:[%s3 + $0x28] sm:$0xff]
  %v1165 = vld [vmem:[%s3 + $0x30] sm:$0xff]
  %v1166 = vld [vmem:[%s3 + $0x38] sm:$0xff]
  %v1167 = vld [vmem:[%s3 + $0x40] sm:$0xff]
  %v1168 = vld [vmem:[%s3 + $0x48] sm:$0xff]
  %v1169 = vld [vmem:[%s3 + $0x50] sm:$0xff]
  %v1170 = vld [vmem:[%s3 + $0x58] sm:$0xff]
  %v1171 = vld [vmem:[%s3 + $0x60] sm:$0xff]
  %v1172 = vld [vmem:[%s3 + $0x68] sm:$0xff]
  %v1173 = vld [vmem:[%s3 + $0x70] sm:$0xff]
  %v1174 = vld [vmem:[%s3 + $0x78] sm:$0xff]
  %v1175 = vld [vmem:[%s3 + $0x80] sm:$0xff]
  %v1176 = vld [vmem:[%s3 + $0x88] sm:$0xff]
  %v1177 = vld [vmem:[%s3 + $0x90] sm:$0xff]
  %v1178 = vld [vmem:[%s3 + $0x98] sm:$0xff]
  %v1179 = vld [vmem:[%s3 + $0xa0] sm:$0xff]
  %v1180 = vld [vmem:[%s3 + $0xa8] sm:$0xff]
  %v1181 = vld [vmem:[%s3 + $0xb0] sm:$0xff]
  %v1182 = vld [vmem:[%s3 + $0xb8] sm:$0xff]
  %v1183 = vld [vmem:[%s3 + $0xc0] sm:$0xff]
  %v1184 = vld [vmem:[%s3 + $0xc8] sm:$0xff]
  %v1185 = vld [vmem:[%s3 + $0xd0] sm:$0xff]
  %v1186 = vld [vmem:[%s3 + $0xd8] sm:$0xff]
  %v1187 = vld [vmem:[%s3 + $0xe0] sm:$0xff]
  %v1188 = vld [vmem:[%s3 + $0xe8] sm:$0xff]
  %v1189 = vld [vmem:[%s3 + $0xf0] sm:$0xff]
  %v1190 = vld [vmem:[%s3 + $0xf8] sm:$0xff]
  %v1191 = vld [vmem:[%s4] sm:$0x3]
  %v1193 = vperm.slane %v1191, 0
  %v1194 = vperm.slane %v1191, 1
  %v1229 = vunpack.c.l.b16 %v1159
  %v1230 = vunpack.c.h.b16 %v1159
  %v1231 = vunpack.c.l.b16 %v1160
  %v1232 = vunpack.c.h.b16 %v1160
  %v1233 = vunpack.c.l.b16 %v1161
  %v1234 = vunpack.c.h.b16 %v1161
  %v1235 = vunpack.c.l.b16 %v1162
  %v1236 = vunpack.c.h.b16 %v1162
  %v1237 = vunpack.c.l.b16 %v1163
  %v1238 = vunpack.c.h.b16 %v1163
  %v1239 = vunpack.c.l.b16 %v1164
  %v1240 = vunpack.c.h.b16 %v1164
  %v1241 = vunpack.c.l.b16 %v1165
  %v1242 = vunpack.c.h.b16 %v1165
  %v1243 = vunpack.c.l.b16 %v1166
  %v1244 = vunpack.c.h.b16 %v1166
  %v1245 = vunpack.c.l.b16 %v1167
  %v1246 = vunpack.c.h.b16 %v1167
  %v1247 = vunpack.c.l.b16 %v1168
  %v1248 = vunpack.c.h.b16 %v1168
  %v1249 = vunpack.c.l.b16 %v1169
  %v1250 = vunpack.c.h.b16 %v1169
  %v1251 = vunpack.c.l.b16 %v1170
  %v1252 = vunpack.c.h.b16 %v1170
  %v1253 = vunpack.c.l.b16 %v1171
  %v1254 = vunpack.c.h.b16 %v1171
  %v1255 = vunpack.c.l.b16 %v1172
  %v1256 = vunpack.c.h.b16 %v1172
  %v1257 = vunpack.c.l.b16 %v1173
  %v1258 = vunpack.c.h.b16 %v1173
  %v1259 = vunpack.c.l.b16 %v1174
  %v1260 = vunpack.c.h.b16 %v1174
  %v1261 = vunpack.c.l.b16 %v1175
  %v1262 = vunpack.c.h.b16 %v1175
  %v1263 = vunpack.c.l.b16 %v1176
  %v1264 = vunpack.c.h.b16 %v1176
  %v1265 = vunpack.c.l.b16 %v1177
  %v1266 = vunpack.c.h.b16 %v1177
  %v1267 = vunpack.c.l.b16 %v1178
  %v1268 = vunpack.c.h.b16 %v1178
  %v1269 = vunpack.c.l.b16 %v1179
  %v1270 = vunpack.c.h.b16 %v1179
  %v1271 = vunpack.c.l.b16 %v1180
  %v1272 = vunpack.c.h.b16 %v1180
  %v1273 = vunpack.c.l.b16 %v1181
  %v1274 = vunpack.c.h.b16 %v1181
  %v1275 = vunpack.c.l.b16 %v1182
  %v1276 = vunpack.c.h.b16 %v1182
  %v1277 = vunpack.c.l.b16 %v1183
  %v1278 = vunpack.c.h.b16 %v1183
  %v1279 = vunpack.c.l.b16 %v1184
  %v1280 = vunpack.c.h.b16 %v1184
  %v1281 = vunpack.c.l.b16 %v1185
  %v1282 = vunpack.c.h.b16 %v1185
  %v1283 = vunpack.c.l.b16 %v1186
  %v1284 = vunpack.c.h.b16 %v1186
  %v1285 = vunpack.c.l.b16 %v1187
  %v1286 = vunpack.c.h.b16 %v1187
  %v1287 = vunpack.c.l.b16 %v1188
  %v1288 = vunpack.c.h.b16 %v1188
  %v1289 = vunpack.c.l.b16 %v1189
  %v1290 = vunpack.c.h.b16 %v1189
  %v1291 = vunpack.c.l.b16 %v1190
  %v1292 = vunpack.c.h.b16 %v1190
  %v1293 = vpack.c.b16 %v1231, %v1229
  %v1294 = vpack.c.b16 %v1232, %v1230
  %v1295 = vpack.c.b16 %v1235, %v1233
  %v1296 = vpack.c.b16 %v1236, %v1234
  %v1297 = vpack.c.b16 %v1239, %v1237
  %v1298 = vpack.c.b16 %v1240, %v1238
  %v1299 = vpack.c.b16 %v1243, %v1241
  %v1300 = vpack.c.b16 %v1244, %v1242
  %v1301 = vpack.c.b16 %v1247, %v1245
  %v1302 = vpack.c.b16 %v1248, %v1246
  %v1303 = vpack.c.b16 %v1251, %v1249
  %v1304 = vpack.c.b16 %v1252, %v1250
  %v1305 = vpack.c.b16 %v1255, %v1253
  %v1306 = vpack.c.b16 %v1256, %v1254
  %v1307 = vpack.c.b16 %v1259, %v1257
  %v1308 = vpack.c.b16 %v1260, %v1258
  %v1309 = vpack.c.b16 %v1263, %v1261
  %v1310 = vpack.c.b16 %v1264, %v1262
  %v1311 = vpack.c.b16 %v1267, %v1265
  %v1312 = vpack.c.b16 %v1268, %v1266
  %v1313 = vpack.c.b16 %v1271, %v1269
  %v1314 = vpack.c.b16 %v1272, %v1270
  %v1315 = vpack.c.b16 %v1275, %v1273
  %v1316 = vpack.c.b16 %v1276, %v1274
  %v1317 = vpack.c.b16 %v1279, %v1277
  %v1318 = vpack.c.b16 %v1280, %v1278
  %v1319 = vpack.c.b16 %v1283, %v1281
  %v1320 = vpack.c.b16 %v1284, %v1282
  %v1321 = vpack.c.b16 %v1287, %v1285
  %v1322 = vpack.c.b16 %v1288, %v1286
  %v1323 = vpack.c.b16 %v1291, %v1289
  %v1324 = vpack.c.b16 %v1292, %v1290
  %1357 = vmatpush.bf16.msra.mxu0 %v1307
  %1358 = vmatpush.bf16.msra.mxu0 %v1305
  %1359 = vmatpush.bf16.msra.mxu0 %v1303
  %1360 = vmatpush.bf16.msra.mxu0 %v1301
  %1361 = vmatpush.bf16.msra.mxu0 %v1299
  %1362 = vmatpush.bf16.msra.mxu0 %v1297
  %1363 = vmatpush.bf16.msra.mxu0 %v1295
  %1364 = vmatpush.bf16.msra.mxu0 %v1293
  %1365 = vmatmul.bf16.gmra.mxu0 %v1157
  %v1366 = vpop.f32.mrf.mxu0
  %v1367 = vadd.f32 %v1193, %v1366
  %v1368 = vpop.f32.mrf.mxu0
  %1369 = vdwg.mxu0
  %1370 = vmatpush.bf16.msra.mxu0 %v1323
  %1371 = vmatpush.bf16.msra.mxu0 %v1321
  %1372 = vmatpush.bf16.msra.mxu0 %v1319
  %1373 = vmatpush.bf16.msra.mxu0 %v1317
  %1374 = vmatpush.bf16.msra.mxu0 %v1315
  %1375 = vmatpush.bf16.msra.mxu0 %v1313
  %1376 = vmatpush.bf16.msra.mxu0 %v1311
  %1377 = vmatpush.bf16.msra.mxu0 %v1309
  %1378 = vmatmul.bf16.gmra.mxu0 %v1158
  %v1379 = vpop.f32.mrf.mxu0
  %v1380 = vadd.f32 %v1367, %v1379
  %v1381 = vpop.f32.mrf.mxu0
  %1382 = vdwg.mxu0
  %1383 = vmatpush.bf16.msra.mxu0 %v1308
  %1384 = vmatpush.bf16.msra.mxu0 %v1306
  %1385 = vmatpush.bf16.msra.mxu0 %v1304
  %1386 = vmatpush.bf16.msra.mxu0 %v1302
  %1387 = vmatpush.bf16.msra.mxu0 %v1300
  %1388 = vmatpush.bf16.msra.mxu0 %v1298
  %1389 = vmatpush.bf16.msra.mxu0 %v1296
  %1390 = vmatpush.bf16.msra.mxu0 %v1294
  %1391 = vmatmul.bf16.gmra.mxu0 %v1157
  %v1392 = vpop.f32.mrf.mxu0
  %v1393 = vadd.f32 %v1194, %v1392
  %v1394 = vpop.f32.mrf.mxu0
  %1395 = vdwg.mxu0
  %1396 = vmatpush.bf16.msra.mxu0 %v1324
  %1397 = vmatpush.bf16.msra.mxu0 %v1322
  %1398 = vmatpush.bf16.msra.mxu0 %v1320
  %1399 = vmatpush.bf16.msra.mxu0 %v1318
  %1400 = vmatpush.bf16.msra.mxu0 %v1316
  %1401 = vmatpush.bf16.msra.mxu0 %v1314
  %1402 = vmatpush.bf16.msra.mxu0 %v1312
  %1403 = vmatpush.bf16.msra.mxu0 %v1310
  %1404 = vmatmul.bf16.gmra.mxu0 %v1158
  %v1405 = vpop.f32.mrf.mxu0
  %v1406 = vadd.f32 %v1393, %v1405
  %v1407 = vpop.f32.mrf.mxu0
  %1408 = vdwg.mxu0
  %v1409 = vmax.f32 %v1380, 0.0
  %v1410 = vmax.f32 %v1406, 0.0
  %v1411 = vpack.c.bf16 %v1409, %v1409
  %v1412 = vpack.c.bf16 %v1410, %v1410
  %v1413 = vld [vmem:[%s5] sm:$0xf]
  %v1414 = vld [vmem:[%s5 + $0x4] sm:$0xf]
  %v1415 = vld [vmem:[%s5 + $0x8] sm:$0xf]
  %v1416 = vld [vmem:[%s5 + $0xc] sm:$0xf]
  %v1417 = vld [vmem:[%s5 + $0x10] sm:$0xf]
  %v1418 = vld [vmem:[%s5 + $0x14] sm:$0xf]
  %v1419 = vld [vmem:[%s5 + $0x18] sm:$0xf]
  %v1420 = vld [vmem:[%s5 + $0x1c] sm:$0xf]
  %v1421 = vld [vmem:[%s5 + $0x20] sm:$0xf]
  %v1422 = vld [vmem:[%s5 + $0x24] sm:$0xf]
  %v1423 = vld [vmem:[%s5 + $0x28] sm:$0xf]
  %v1424 = vld [vmem:[%s5 + $0x2c] sm:$0xf]
  %v1425 = vld [vmem:[%s5 + $0x30] sm:$0xf]
  %v1426 = vld [vmem:[%s5 + $0x34] sm:$0xf]
  %v1427 = vld [vmem:[%s5 + $0x38] sm:$0xf]
  %v1428 = vld [vmem:[%s5 + $0x3c] sm:$0xf]
  %v1429 = vld [vmem:[%s5 + $0x40] sm:$0xf]
  %v1430 = vld [vmem:[%s5 + $0x44] sm:$0xf]
  %v1431 = vld [vmem:[%s5 + $0x48] sm:$0xf]
  %v1432 = vld [vmem:[%s5 + $0x4c] sm:$0xf]
  %v1433 = vld [vmem:[%s5 + $0x50] sm:$0xf]
  %v1434 = vld [vmem:[%s5 + $0x54] sm:$0xf]
  %v1435 = vld [vmem:[%s5 + $0x58] sm:$0xf]
  %v1436 = vld [vmem:[%s5 + $0x5c] sm:$0xf]
  %v1437 = vld [vmem:[%s5 + $0x60] sm:$0xf]
  %v1438 = vld [vmem:[%s6] sm:$0x1]
  %v1440 = vperm.slane %v1438, 0
  %v1467 = vunpack.c.l.b16 %v1413
  %v1468 = vunpack.c.l.b16 %v1414
  %v1469 = vunpack.c.l.b16 %v1415
  %v1470 = vunpack.c.l.b16 %v1416
  %v1471 = vunpack.c.l.b16 %v1417
  %v1472 = vunpack.c.l.b16 %v1418
  %v1473 = vunpack.c.l.b16 %v1419
  %v1474 = vunpack.c.l.b16 %v1420
  %v1475 = vunpack.c.l.b16 %v1421
  %v1476 = vunpack.c.l.b16 %v1422
  %v1477 = vunpack.c.l.b16 %v1423
  %v1478 = vunpack.c.l.b16 %v1424
  %v1479 = vunpack.c.l.b16 %v1425
  %v1480 = vunpack.c.l.b16 %v1426
  %v1481 = vunpack.c.l.b16 %v1427
  %v1482 = vunpack.c.l.b16 %v1428
  %v1483 = vunpack.c.l.b16 %v1429
  %v1484 = vunpack.c.l.b16 %v1430
  %v1485 = vunpack.c.l.b16 %v1431
  %v1486 = vunpack.c.l.b16 %v1432
  %v1487 = vunpack.c.l.b16 %v1433
  %v1488 = vunpack.c.l.b16 %v1434
  %v1489 = vunpack.c.l.b16 %v1435
  %v1490 = vunpack.c.l.b16 %v1436
  %v1491 = vunpack.c.l.b16 %v1437
  %v1492 = vpack.c.b16 %v1468, %v1467
  %v1493 = vpack.c.b16 %v1470, %v1469
  %v1494 = vpack.c.b16 %v1472, %v1471
  %v1495 = vpack.c.b16 %v1474, %v1473
  %v1496 = vpack.c.b16 %v1476, %v1475
  %v1497 = vpack.c.b16 %v1478, %v1477
  %v1498 = vpack.c.b16 %v1480, %v1479
  %v1499 = vpack.c.b16 %v1482, %v1481
  %v1500 = vpack.c.b16 %v1484, %v1483
  %v1501 = vpack.c.b16 %v1486, %v1485
  %v1502 = vpack.c.b16 %v1488, %v1487
  %v1503 = vpack.c.b16 %v1490, %v1489
  %v1504 = vpack.c.b16 %v1491, %v1491
  %vm1517 = vcmask 588800
  %v1519 = vsel %vm1517, %v1412, 0
  %vm1521 = vcmask 1043456
  %v1523 = vsel %vm1521, %v1504, 0
  %1525 = vmatpush.bf16.msra.mxu0 %v1499
  %1526 = vmatpush.bf16.msra.mxu0 %v1498
  %1527 = vmatpush.bf16.msra.mxu0 %v1497
  %1528 = vmatpush.bf16.msra.mxu0 %v1496
  %1529 = vmatpush.bf16.msra.mxu0 %v1495
  %1530 = vmatpush.bf16.msra.mxu0 %v1494
  %1531 = vmatpush.bf16.msra.mxu0 %v1493
  %1532 = vmatpush.bf16.msra.mxu0 %v1492
  %1533 = vmatmul.bf16.gmra.mxu0 %v1411
  %v1534 = vpop.f32.mrf.mxu0
  %v1535 = vadd.f32 %v1440, %v1534
  %v1536 = vpop.f32.mrf.mxu0
  %1537 = vdwg.mxu0
  %1538 = vmatpush.bf16.msra.mxu0 0
  %1539 = vmatpush.bf16.msra.mxu0 0
  %1540 = vmatpush.bf16.msra.mxu0 0
  %1541 = vmatpush.bf16.msra.mxu0 %v1523
  %1542 = vmatpush.bf16.msra.mxu0 %v1503
  %1543 = vmatpush.bf16.msra.mxu0 %v1502
  %1544 = vmatpush.bf16.msra.mxu0 %v1501
  %1545 = vmatpush.bf16.msra.mxu0 %v1500
  %1546 = vmatmul.bf16.gmra.mxu0 %v1519
  %v1547 = vpop.f32.mrf.mxu0
  %v1548 = vadd.f32 %v1535, %v1547
  %v1549 = vpop.f32.mrf.mxu0
  %1550 = vdwg.mxu0
  %vm1551 = vcmp.gt.f32.partialorder %v1548, 20.0
  %v1552 = vmin.f32 %v1548, 20.0
  %v1553 = vmul.f32 %v1552, 1.442695
  %v1554 = vpow.pop %v1553
  %v1555 = vadd.f32 %v1554, 1.0
  %v1556 = vlog2.pop %v1555
  %v1557 = vmul.f32 %v1556, 0.6931472
  %v1558 = vmul.f32 -0.5, %v1554
  %v1559 = vadd.f32 %v1558, 1.0
  %v1560 = vmul.f32 %v1559, %v1554
  %v1561 = vand.u32 2147483647, %v1554
  %vm1562 = vcmp.lt.f32.partialorder %v1561, 0.0004427343
  %v1563 = vsel %vm1562, %v1560, %v1557
  %v1564 = vsel %vm1551, %v1548, %v1563
  %v1565 = vadd.f32 %v1564, 1.0
  %v1566 = vlaneseq
  %v1567 = vand.u32 %v1566, 127
  %vm1568 = vcmp.eq.s32.totalorder %v1567, 0
  %v1569 = vsel %vm1568, %v1548, %v1565
  %vm1570 = vcmask 50176
  %1571 = vst.msk [vmem:[%s7] sm:$0x3] %vm1570, %v1569
  // Predicated region
  $region30: #{net_forward.11} parent=0 // pred_check
    _
  $region31: #{net_forward.11} parent=0 // pred_check_branch
    %1573 = sbr.rel (0) target = $region33
  $region32: #{net_forward.11} parent=0 // pred_region
    _
  $region33: #{net_forward.11} parent=0 // pred_fallthru
    _
  // Predicated region
  $region34: #{net_forward.11} parent=0 // pred_check
    _
  $region35: #{net_forward.11} parent=0 // pred_check_branch
    %1575 = sbr.rel (0) target = $region37
  $region36: #{net_forward.11} parent=0 // pred_region
    _
  $region37: #{net_forward.11} parent=0 // pred_fallthru
    _

</llo_original>
